<compile_context>
chip_gen: v7x
topology: tpu7x:2x2x1
jax: 0.10.0
libtpu: 0.0.40
codegen_flags: <defaults>
</compile_context>

<pallas_src>
import functools

import numpy as np
import jax
import jax.numpy as jnp
from jax.experimental import pallas as pl
from jax.experimental.pallas import tpu as pltpu

LEAKY_SLOPE = 0.01   # nn.LeakyReLU default
BN_EPS = 1e-5        # nn.BatchNorm default eps
LATENT_DIM = 32      # args.latent_dim

# Conv-stack geometry: 32x32x1 -> 16x16x32 -> 8x8x32 -> 4x4x32 (so fc1 sees 512 features).
_H0 = 32             # input spatial size
_H1, _H2, _H3 = 16, 8, 4
_C = 32              # channels of every conv layer


# ----------------------------------------------------------------------------
# Fused kernel
# ----------------------------------------------------------------------------
def _bn_lrelu(y, gamma, beta):
    """Training-mode BatchNorm over rows (axis 0) followed by LeakyReLU."""
    mean = jnp.mean(y, axis=0, keepdims=True)
    var = jnp.mean(jnp.square(y - mean), axis=0, keepdims=True)   # biased (training) variance
    y = (y - mean) * jax.lax.rsqrt(var + BN_EPS)
    y = y * gamma + beta
    return jnp.where(y > 0, y, LEAKY_SLOPE * y)


def _encoder_kernel(batch,
                    p1_ref, w1_ref, g1_ref, b1_ref,
                    s2_ref, w2_ref, g2_ref, b2_ref,
                    s3_ref, w3_ref, g3_ref, b3_ref,
                    tile_ref, mask_ref, rowsum_ref,
                    wfc1_ref, gfc1_ref, bfc1_ref,
                    wfc2_ref, gfc2_ref, bfc2_ref,
                    wz_ref, bz_ref,
                    out_ref,
                    a2_ref, a3_ref):
    f32 = jnp.float32
    n1 = _H1 * _H1        # 256 spatial positions after conv1
    n2 = _H2 * _H2        # 64  after conv2
    n3 = _H3 * _H3        # 16  after conv3

    # ---- conv1 + BN + LeakyReLU: (B*256, 9) @ (9, 32) -------------------------------------
    z1 = _bn_lrelu(jnp.dot(p1_ref[...], w1_ref[...], preferred_element_type=f32),
                   g1_ref[...], b1_ref[...])                                  # (B*256, 32)

    # ---- conv2: selection matmul (spatial gather) + 9 per-tap weight matmuls ---------------
    s2 = s2_ref[...]
    w2 = w2_ref[...]
    for b in range(batch):
        zb = z1[b * n1:(b + 1) * n1, :]                                       # (256, 32)
        taps = jnp.dot(s2, zb, preferred_element_type=f32)                    # (9*64, 32)
        acc = jnp.dot(taps[0:n2, :], w2[0:_C, :], preferred_element_type=f32)
        for t in range(1, 9):
            acc += jnp.dot(taps[t * n2:(t + 1) * n2, :],
                           w2[t * _C:(t + 1) * _C, :], preferred_element_type=f32)
        a2_ref[b * n2:(b + 1) * n2, :] = acc
    z2 = _bn_lrelu(a2_ref[...], g2_ref[...], b2_ref[...])                      # (B*64, 32)

    # ---- conv3 ------------------------------------------------------------------------------
    s3 = s3_ref[...]
    w3 = w3_ref[...]
    for b in range(batch):
        zb = z2[b * n2:(b + 1) * n2, :]                                       # (64, 32)
        taps = jnp.dot(s3, zb, preferred_element_type=f32)                    # (9*16, 32)
        acc = jnp.dot(taps[0:n3, :], w3[0:_C, :], preferred_element_type=f32)
        for t in range(1, 9):
            acc += jnp.dot(taps[t * n3:(t + 1) * n3, :],
                           w3[t * _C:(t + 1) * _C, :], preferred_element_type=f32)
        a3_ref[b * n3:(b + 1) * n3, :] = acc
    z3 = _bn_lrelu(a3_ref[...], g3_ref[...], b3_ref[...])                      # (B*16, 32)

    # ---- flatten (folded into the fc1 weight permutation) + fc1 ----------------------------
    # v[r, p*32 + c] == z3[r, c] if p == r % 16 else 0, so
    #   rowsum @ (v @ Wfc1) == torch.flatten(conv3_out, 1) @ fc1_w.T  (with permuted Wfc1 rows).
    v = jnp.dot(z3, tile_ref[...], preferred_element_type=f32) * mask_ref[...]   # (B*16, 512)
    per_row = jnp.dot(v, wfc1_ref[...], preferred_element_type=f32)              # (B*16, 256)
    h1 = jnp.dot(rowsum_ref[...], per_row, preferred_element_type=f32)           # (B, 256)
    h1 = _bn_lrelu(h1, gfc1_ref[...], bfc1_ref[...])

    # ---- fc2 --------------------------------------------------------------------------------
    h2 = _bn_lrelu(jnp.dot(h1, wfc2_ref[...], preferred_element_type=f32),
                   gfc2_ref[...], bfc2_ref[...])                                  # (B, 128)

    # ---- z head (keeps its bias; no BN follows) ---------------------------------------------
    out_ref[...] = jnp.dot(h2, wz_ref[...], preferred_element_type=f32) + bz_ref[...]


# ----------------------------------------------------------------------------
# One-time host-side preparation (constants + weight layout transforms)
# ----------------------------------------------------------------------------
def _selection_matrix(h_in):
    """Stacked 0/1 selection for a 3x3 / stride-2 / pad-1 conv on an (h_in x h_in) map.

    Row (t * n_out + ho * w_out + wo) selects input position (2*ho+di-1, 2*wo+dj-1) for
    tap t = di*3 + dj; out-of-bounds taps are all-zero rows (== zero padding).
    """
    h_out = h_in // 2
    n_in, n_out = h_in * h_in, h_out * h_out
    s = np.zeros((9 * n_out, n_in), dtype=np.float32)
    for di in range(3):
        for dj in range(3):
            t = di * 3 + dj
            for ho in range(h_out):
                for wo in range(h_out):
                    hi, wi = 2 * ho + di - 1, 2 * wo + dj - 1
                    if 0 <= hi < h_in and 0 <= wi < h_in:
                        s[t * n_out + ho * h_out + wo, hi * h_in + wi] = 1.0
    return jnp.asarray(s)


def _conv_w(w_pt):
    """PyTorch (Cout, Cin, 3, 3) -> rows (di*3+dj)*Cin + cin, cols Cout."""
    cout = w_pt.shape[0]
    return jnp.transpose(w_pt, (2, 3, 1, 0)).reshape(-1, cout)


def _fc1_rows(fc1_w):
    """fc1_w (256, 512) with torch flat index f = c*16 + p  ->  rows ordered p*32 + c."""
    t = fc1_w.reshape(fc1_w.shape[0], _C, _H3 * _H3)          # (out, c, p)
    return jnp.transpose(t, (2, 1, 0)).reshape(_H3 * _H3 * _C, fc1_w.shape[0])


def _flatten_constants(batch):
    """Constants for the in-kernel flatten trick."""
    n3 = _H3 * _H3
    tile = np.tile(np.eye(_C, dtype=np.float32), (1, n3))                     # (32, 512)
    rows = np.arange(batch * n3)
    cols = np.arange(n3 * _C)
    mask = (cols[None, :] // _C == rows[:, None] % n3).astype(np.float32)     # (B*16, 512)
    rowsum = (rows[None, :] // n3 == np.arange(batch)[:, None]).astype(np.float32)  # (B, B*16)
    return jnp.asarray(tile), jnp.asarray(mask), jnp.asarray(rowsum)


def prepare_inputs(params, batch):
    """Hoist every weight-layout transform / constant out of the per-call forward pass."""
    tile, mask, rowsum = _flatten_constants(batch)
    # NOTE: conv1/2/3 and fc1/fc2 biases are intentionally dropped -- a constant per-channel
    # bias in front of BatchNorm is exactly cancelled by the mean subtraction.
    return {
        "w1": _conv_w(params["conv1_w"]),                                     # (9, 32)
        "g1": params["bn1_g"].reshape(1, -1), "b1": params["bn1_b"].reshape(1, -1),
        "s2": _selection_matrix(_H1),                                         # (576, 256)
        "w2": _conv_w(params["conv2_w"]),                                     # (288, 32)
        "g2": params["bn2_g"].reshape(1, -1), "b2": params["bn2_b"].reshape(1, -1),
        "s3": _selection_matrix(_H2),                                         # (144, 64)
        "w3": _conv_w(params["conv3_w"]),                                     # (288, 32)
        "g3": params["bn3_g"].reshape(1, -1), "b3": params["bn3_b"].reshape(1, -1),
        "tile": tile, "mask": mask, "rowsum": rowsum,
        "wfc1": _fc1_rows(params["fc1_w"]),                                   # (512, 256)
        "gfc1": params["bn_fc1_g"].reshape(1, -1), "bfc1": params["bn_fc1_b"].reshape(1, -1),
        "wfc2": params["fc2_w"].T,                                            # (256, 128)
        "gfc2": params["bn_fc2_g"].reshape(1, -1), "bfc2": params["bn_fc2_b"].reshape(1, -1),
        "wz": params["z_w"].T,                                                # (128, latent)
        "bz": params["z_b"].reshape(1, -1),
    }


def _input_patches(x_nchw):
    """Input-layer im2col (Cin = 1): (B, 1, 32, 32) -> (B*256, 9), rows in (b, h, w) order."""
    b = x_nchw.shape[0]
    xp = jnp.pad(x_nchw[:, 0].astype(jnp.float32), ((0, 0), (1, 1), (1, 1)))
    cols = [xp[:, di:di + _H0:2, dj:dj + _H0:2] for di in range(3) for dj in range(3)]
    pat = jnp.stack(cols, axis=-1)                                            # (B, 16, 16, 9)
    return pat.reshape(b * _H1 * _H1, 9)


# ----------------------------------------------------------------------------
# Forward pass: one fused pallas_call
# ----------------------------------------------------------------------------
@jax.jit
def encoder_forward(x_nchw, prep):
    batch = x_nchw.shape[0]
    patches1 = _input_patches(x_nchw)

    operands = [
        patches1, prep["w1"], prep["g1"], prep["b1"],
        prep["s2"], prep["w2"], prep["g2"], prep["b2"],
        prep["s3"], prep["w3"], prep["g3"], prep["b3"],
        prep["tile"], prep["mask"], prep["rowsum"],
        prep["wfc1"], prep["gfc1"], prep["bfc1"],
        prep["wfc2"], prep["gfc2"], prep["bfc2"],
        prep["wz"], prep["bz"],
    ]
    in_specs = [pl.BlockSpec(op.shape, lambda i: (0, 0)) for op in operands]

    return pl.pallas_call(
        functools.partial(_encoder_kernel, batch),
        grid=(1,),
        in_specs=in_specs,
        out_specs=pl.BlockSpec((batch, LATENT_DIM), lambda i: (0, 0)),
        out_shape=jax.ShapeDtypeStruct((batch, LATENT_DIM), jnp.float32),
        scratch_shapes=[
            pltpu.VMEM((batch * _H2 * _H2, _C), jnp.float32),   # conv2 pre-activations
            pltpu.VMEM((batch * _H3 * _H3, _C), jnp.float32),   # conv3 pre-activations
        ],
    )(*operands)


# ----------------------------------------------------------------------------
# Parameters (deterministic synthetic init, PyTorch shapes)
# ----------------------------------------------------------------------------
def init_params(key):
    ks = jax.random.split(key, 17)

    def nrm(k, shape, scale=0.1):
        return scale * jax.random.normal(k, shape, dtype=jnp.float32)

    p = {}
    p["conv1_w"] = nrm(ks[0], (32, 1, 3, 3));     p["conv1_b"] = nrm(ks[1], (32,))
    p["conv2_w"] = nrm(ks[2], (32, 32, 3, 3));    p["conv2_b"] = nrm(ks[3], (32,))
    p["conv3_w"] = nrm(ks[4], (32, 32, 3, 3));    p["conv3_b"] = nrm(ks[5], (32,))
    p["fc1_w"] = nrm(ks[6], (256, 512));          p["fc1_b"] = nrm(ks[7], (256,))
    p["fc2_w"] = nrm(ks[8], (128, 256));          p["fc2_b"] = nrm(ks[9], (128,))
    p["z_w"] = nrm(ks[10], (LATENT_DIM, 128));    p["z_b"] = nrm(ks[11], (LATENT_DIM,))
    p["bn1_g"] = 1.0 + nrm(ks[12], (32,), 0.05);     p["bn1_b"] = nrm(ks[12], (32,), 0.05)
    p["bn2_g"] = 1.0 + nrm(ks[13], (32,), 0.05);     p["bn2_b"] = nrm(ks[13], (32,), 0.05)
    p["bn3_g"] = 1.0 + nrm(ks[14], (32,), 0.05);     p["bn3_b"] = nrm(ks[14], (32,), 0.05)
    p["bn_fc1_g"] = 1.0 + nrm(ks[15], (256,), 0.05); p["bn_fc1_b"] = nrm(ks[15], (256,), 0.05)
    p["bn_fc2_g"] = 1.0 + nrm(ks[16], (128,), 0.05); p["bn_fc2_b"] = nrm(ks[16], (128,), 0.05)
    return p


# ----------------------------------------------------------------------------
# Pure-JAX reference (with biases, XLA convs) for a sanity check
# ----------------------------------------------------------------------------
def encoder_reference(x, params):
    def bn(y, g, b, axes):
        m = jnp.mean(y, axis=axes, keepdims=True)
        v = jnp.mean(jnp.square(y - m), axis=axes, keepdims=True)
        yn = (y - m) * jax.lax.rsqrt(v + BN_EPS)
        shape = [1] * y.ndim
        shape[1 if y.ndim == 4 else -1] = -1
        return yn * g.reshape(shape) + b.reshape(shape)

    def lrelu(y):
        return jnp.where(y > 0, y, LEAKY_SLOPE * y)

    def conv(y, w, b):
        out = jax.lax.conv_general_dilated(
            y, w, window_strides=(2, 2), padding=((1, 1), (1, 1)),
            dimension_numbers=("NCHW", "OIHW", "NCHW"),
            precision=jax.lax.Precision.HIGHEST)
        return out + b.reshape(1, -1, 1, 1)

    h = lrelu(bn(conv(x, params["conv1_w"], params["conv1_b"]),
                 params["bn1_g"], params["bn1_b"], (0, 2, 3)))
    h = lrelu(bn(conv(h, params["conv2_w"], params["conv2_b"]),
                 params["bn2_g"], params["bn2_b"], (0, 2, 3)))
    h = lrelu(bn(conv(h, params["conv3_w"], params["conv3_b"]),
                 params["bn3_g"], params["bn3_b"], (0, 2, 3)))
    h = h.reshape(h.shape[0], -1)                                   # torch.flatten(x, 1) (NCHW)
    h = lrelu(bn(h @ params["fc1_w"].T + params["fc1_b"],
                 params["bn_fc1_g"], params["bn_fc1_b"], (0,)))
    h = lrelu(bn(h @ params["fc2_w"].T + params["fc2_b"],
                 params["bn_fc2_g"], params["bn_fc2_b"], (0,)))
    return h @ params["z_w"].T + params["z_b"]


if __name__ == "__main__":
    key = jax.random.PRNGKey(0)
    k_x, k_p = jax.random.split(key)

    # fc1 expects 512 = 32ch * 4 * 4  =>  32x32 single-channel images.
    x = jax.random.normal(k_x, (2, 1, 32, 32), dtype=jnp.float32)
    params = init_params(k_p)

    prep = prepare_inputs(params, batch=x.shape[0])                 # one-time weight prep
    z = encoder_forward(x, prep)
    z = jax.block_until_ready(z)
    assert z.shape == (2, LATENT_DIM), z.shape

    # Sanity check against a pure-JAX/XLA reference (f32 precision).
    with jax.default_matmul_precision("float32"):
        z_ref = jax.block_until_ready(encoder_reference(x, params))
    assert jnp.allclose(z, z_ref, atol=2e-2, rtol=2e-2), float(jnp.max(jnp.abs(z - z_ref)))

    print("KERNEL_OK")
</pallas_src>

<mosaic_0001>
module attributes {stable_mosaic.version = 11 : i64} {
  func.func @_encoder_kernel(%arg0: i32, %arg1: memref<512x9xf32, #tpu.memory_space<vmem>>, %arg2: memref<9x32xf32, #tpu.memory_space<vmem>>, %arg3: memref<1x32xf32, #tpu.memory_space<vmem>>, %arg4: memref<1x32xf32, #tpu.memory_space<vmem>>, %arg5: memref<576x256xf32, #tpu.memory_space<vmem>>, %arg6: memref<288x32xf32, #tpu.memory_space<vmem>>, %arg7: memref<1x32xf32, #tpu.memory_space<vmem>>, %arg8: memref<1x32xf32, #tpu.memory_space<vmem>>, %arg9: memref<144x64xf32, #tpu.memory_space<vmem>>, %arg10: memref<288x32xf32, #tpu.memory_space<vmem>>, %arg11: memref<1x32xf32, #tpu.memory_space<vmem>>, %arg12: memref<1x32xf32, #tpu.memory_space<vmem>>, %arg13: memref<32x512xf32, #tpu.memory_space<vmem>>, %arg14: memref<32x512xf32, #tpu.memory_space<vmem>>, %arg15: memref<2x32xf32, #tpu.memory_space<vmem>>, %arg16: memref<512x256xf32, #tpu.memory_space<vmem>>, %arg17: memref<1x256xf32, #tpu.memory_space<vmem>>, %arg18: memref<1x256xf32, #tpu.memory_space<vmem>>, %arg19: memref<256x128xf32, #tpu.memory_space<vmem>>, %arg20: memref<1x128xf32, #tpu.memory_space<vmem>>, %arg21: memref<1x128xf32, #tpu.memory_space<vmem>>, %arg22: memref<128x32xf32, #tpu.memory_space<vmem>>, %arg23: memref<1x32xf32, #tpu.memory_space<vmem>>, %arg24: memref<2x32xf32, #tpu.memory_space<vmem>>, %arg25: memref<128x32xf32, #tpu.memory_space<vmem>>, %arg26: memref<32x32xf32, #tpu.memory_space<vmem>>) attributes {dimension_semantics = [#tpu.dimension_semantics<arbitrary>], iteration_bounds = array<i64: 1>, scalar_prefetch = 0 : i64, scratch_operands = 2 : i64, tpu.core_type = #tpu.core_type<tc>, window_params = [{pipeline_mode = #tpu.pipeline_mode<synchronous>, transform_indices = @transform_0, window_bounds = array<i64: 512, 9>}, {pipeline_mode = #tpu.pipeline_mode<synchronous>, transform_indices = @transform_1, window_bounds = array<i64: 9, 32>}, {pipeline_mode = #tpu.pipeline_mode<synchronous>, transform_indices = @transform_2, window_bounds = array<i64: 1, 32>}, {pipeline_mode = #tpu.pipeline_mode<synchronous>, transform_indices = @transform_3, window_bounds = array<i64: 1, 32>}, {pipeline_mode = #tpu.pipeline_mode<synchronous>, transform_indices = @transform_4, window_bounds = array<i64: 576, 256>}, {pipeline_mode = #tpu.pipeline_mode<synchronous>, transform_indices = @transform_5, window_bounds = array<i64: 288, 32>}, {pipeline_mode = #tpu.pipeline_mode<synchronous>, transform_indices = @transform_6, window_bounds = array<i64: 1, 32>}, {pipeline_mode = #tpu.pipeline_mode<synchronous>, transform_indices = @transform_7, window_bounds = array<i64: 1, 32>}, {pipeline_mode = #tpu.pipeline_mode<synchronous>, transform_indices = @transform_8, window_bounds = array<i64: 144, 64>}, {pipeline_mode = #tpu.pipeline_mode<synchronous>, transform_indices = @transform_9, window_bounds = array<i64: 288, 32>}, {pipeline_mode = #tpu.pipeline_mode<synchronous>, transform_indices = @transform_10, window_bounds = array<i64: 1, 32>}, {pipeline_mode = #tpu.pipeline_mode<synchronous>, transform_indices = @transform_11, window_bounds = array<i64: 1, 32>}, {pipeline_mode = #tpu.pipeline_mode<synchronous>, transform_indices = @transform_12, window_bounds = array<i64: 32, 512>}, {pipeline_mode = #tpu.pipeline_mode<synchronous>, transform_indices = @transform_13, window_bounds = array<i64: 32, 512>}, {pipeline_mode = #tpu.pipeline_mode<synchronous>, transform_indices = @transform_14, window_bounds = array<i64: 2, 32>}, {pipeline_mode = #tpu.pipeline_mode<synchronous>, transform_indices = @transform_15, window_bounds = array<i64: 512, 256>}, {pipeline_mode = #tpu.pipeline_mode<synchronous>, transform_indices = @transform_16, window_bounds = array<i64: 1, 256>}, {pipeline_mode = #tpu.pipeline_mode<synchronous>, transform_indices = @transform_17, window_bounds = array<i64: 1, 256>}, {pipeline_mode = #tpu.pipeline_mode<synchronous>, transform_indices = @transform_18, window_bounds = array<i64: 256, 128>}, {pipeline_mode = #tpu.pipeline_mode<synchronous>, transform_indices = @transform_19, window_bounds = array<i64: 1, 128>}, {pipeline_mode = #tpu.pipeline_mode<synchronous>, transform_indices = @transform_20, window_bounds = array<i64: 1, 128>}, {pipeline_mode = #tpu.pipeline_mode<synchronous>, transform_indices = @transform_21, window_bounds = array<i64: 128, 32>}, {pipeline_mode = #tpu.pipeline_mode<synchronous>, transform_indices = @transform_22, window_bounds = array<i64: 1, 32>}, {pipeline_mode = #tpu.pipeline_mode<synchronous>, transform_indices = @transform_23, window_bounds = array<i64: 2, 32>}]} {
    %c0 = arith.constant 0 : index
    %c0_0 = arith.constant 0 : index
    %0 = vector.load %arg1[%c0, %c0_0] : memref<512x9xf32, #tpu.memory_space<vmem>>, vector<512x9xf32>
    %c0_1 = arith.constant 0 : index
    %c0_2 = arith.constant 0 : index
    %1 = vector.load %arg2[%c0_1, %c0_2] : memref<9x32xf32, #tpu.memory_space<vmem>>, vector<9x32xf32>
    %cst = arith.constant dense<0.000000e+00> : vector<512x32xf32>
    %2 = tpu.matmul %0, %1, %cst {dimension_numbers = #tpu.dot_dimension_numbers<[1], [0], [0], [1], [0, 0, 1, 1], [], []>} : vector<512x9xf32>, vector<9x32xf32>, vector<512x32xf32> -> vector<512x32xf32>
    %c0_3 = arith.constant 0 : index
    %c0_4 = arith.constant 0 : index
    %3 = vector.load %arg3[%c0_3, %c0_4] : memref<1x32xf32, #tpu.memory_space<vmem>>, vector<1x32xf32>
    %c0_5 = arith.constant 0 : index
    %c0_6 = arith.constant 0 : index
    %4 = vector.load %arg4[%c0_5, %c0_6] : memref<1x32xf32, #tpu.memory_space<vmem>>, vector<1x32xf32>
    %cst_7 = arith.constant dense<0.000000e+00> : vector<32xf32>
    %5 = vector.multi_reduction <add>, %2, %cst_7 [0] : vector<512x32xf32> to vector<32xf32>
    %6 = vector.shape_cast %5 : vector<32xf32> to vector<1x32xf32>
    %cst_8 = arith.constant 5.120000e+02 : f32
    %7 = vector.broadcast %cst_8 : f32 to vector<1x32xf32>
    %8 = arith.divf %6, %7 : vector<1x32xf32>
    %9 = vector.broadcast %8 : vector<1x32xf32> to vector<512x32xf32>
    %10 = arith.subf %2, %9 : vector<512x32xf32>
    %11 = arith.mulf %10, %10 : vector<512x32xf32>
    %cst_9 = arith.constant dense<0.000000e+00> : vector<32xf32>
    %12 = vector.multi_reduction <add>, %11, %cst_9 [0] : vector<512x32xf32> to vector<32xf32>
    %13 = vector.shape_cast %12 : vector<32xf32> to vector<1x32xf32>
    %cst_10 = arith.constant 5.120000e+02 : f32
    %14 = vector.broadcast %cst_10 : f32 to vector<1x32xf32>
    %15 = arith.divf %13, %14 : vector<1x32xf32>
    %16 = vector.broadcast %8 : vector<1x32xf32> to vector<512x32xf32>
    %17 = arith.subf %2, %16 : vector<512x32xf32>
    %cst_11 = arith.constant 9.99999974E-6 : f32
    %18 = vector.broadcast %cst_11 : f32 to vector<1x32xf32>
    %19 = arith.addf %15, %18 : vector<1x32xf32>
    %20 = math.rsqrt %19 : vector<1x32xf32>
    %21 = vector.broadcast %20 : vector<1x32xf32> to vector<512x32xf32>
    %22 = arith.mulf %17, %21 : vector<512x32xf32>
    %23 = vector.broadcast %3 : vector<1x32xf32> to vector<512x32xf32>
    %24 = arith.mulf %22, %23 : vector<512x32xf32>
    %25 = vector.broadcast %4 : vector<1x32xf32> to vector<512x32xf32>
    %26 = arith.addf %24, %25 : vector<512x32xf32>
    %cst_12 = arith.constant 0.000000e+00 : f32
    %27 = vector.broadcast %cst_12 : f32 to vector<512x32xf32>
    %28 = arith.cmpf ogt, %26, %27 : vector<512x32xf32>
    %cst_13 = arith.constant 0.00999999977 : f32
    %29 = vector.broadcast %cst_13 : f32 to vector<512x32xf32>
    %30 = arith.mulf %29, %26 : vector<512x32xf32>
    %31 = arith.select %28, %26, %30 : vector<512x32xi1>, vector<512x32xf32>
    %c0_14 = arith.constant 0 : index
    %c0_15 = arith.constant 0 : index
    %32 = vector.load %arg5[%c0_14, %c0_15] : memref<576x256xf32, #tpu.memory_space<vmem>>, vector<576x256xf32>
    %c0_16 = arith.constant 0 : index
    %c0_17 = arith.constant 0 : index
    %33 = vector.load %arg6[%c0_16, %c0_17] : memref<288x32xf32, #tpu.memory_space<vmem>>, vector<288x32xf32>
    %34 = vector.extract_strided_slice %31 {offsets = [0, 0], sizes = [256, 32], strides = [1, 1]} : vector<512x32xf32> to vector<256x32xf32>
    %cst_18 = arith.constant dense<0.000000e+00> : vector<576x32xf32>
    %35 = tpu.matmul %32, %34, %cst_18 {dimension_numbers = #tpu.dot_dimension_numbers<[1], [0], [0], [1], [0, 0, 1, 1], [], []>} : vector<576x256xf32>, vector<256x32xf32>, vector<576x32xf32> -> vector<576x32xf32>
    %36 = vector.extract_strided_slice %35 {offsets = [0, 0], sizes = [64, 32], strides = [1, 1]} : vector<576x32xf32> to vector<64x32xf32>
    %37 = vector.extract_strided_slice %33 {offsets = [0, 0], sizes = [32, 32], strides = [1, 1]} : vector<288x32xf32> to vector<32x32xf32>
    %cst_19 = arith.constant dense<0.000000e+00> : vector<64x32xf32>
    %38 = tpu.matmul %36, %37, %cst_19 {dimension_numbers = #tpu.dot_dimension_numbers<[1], [0], [0], [1], [0, 0, 1, 1], [], []>} : vector<64x32xf32>, vector<32x32xf32>, vector<64x32xf32> -> vector<64x32xf32>
    %39 = vector.extract_strided_slice %35 {offsets = [64, 0], sizes = [64, 32], strides = [1, 1]} : vector<576x32xf32> to vector<64x32xf32>
    %40 = vector.extract_strided_slice %33 {offsets = [32, 0], sizes = [32, 32], strides = [1, 1]} : vector<288x32xf32> to vector<32x32xf32>
    %cst_20 = arith.constant dense<0.000000e+00> : vector<64x32xf32>
    %41 = tpu.matmul %39, %40, %cst_20 {dimension_numbers = #tpu.dot_dimension_numbers<[1], [0], [0], [1], [0, 0, 1, 1], [], []>} : vector<64x32xf32>, vector<32x32xf32>, vector<64x32xf32> -> vector<64x32xf32>
    %42 = arith.addf %38, %41 : vector<64x32xf32>
    %43 = vector.extract_strided_slice %35 {offsets = [128, 0], sizes = [64, 32], strides = [1, 1]} : vector<576x32xf32> to vector<64x32xf32>
    %44 = vector.extract_strided_slice %33 {offsets = [64, 0], sizes = [32, 32], strides = [1, 1]} : vector<288x32xf32> to vector<32x32xf32>
    %cst_21 = arith.constant dense<0.000000e+00> : vector<64x32xf32>
    %45 = tpu.matmul %43, %44, %cst_21 {dimension_numbers = #tpu.dot_dimension_numbers<[1], [0], [0], [1], [0, 0, 1, 1], [], []>} : vector<64x32xf32>, vector<32x32xf32>, vector<64x32xf32> -> vector<64x32xf32>
    %46 = arith.addf %42, %45 : vector<64x32xf32>
    %47 = vector.extract_strided_slice %35 {offsets = [192, 0], sizes = [64, 32], strides = [1, 1]} : vector<576x32xf32> to vector<64x32xf32>
    %48 = vector.extract_strided_slice %33 {offsets = [96, 0], sizes = [32, 32], strides = [1, 1]} : vector<288x32xf32> to vector<32x32xf32>
    %cst_22 = arith.constant dense<0.000000e+00> : vector<64x32xf32>
    %49 = tpu.matmul %47, %48, %cst_22 {dimension_numbers = #tpu.dot_dimension_numbers<[1], [0], [0], [1], [0, 0, 1, 1], [], []>} : vector<64x32xf32>, vector<32x32xf32>, vector<64x32xf32> -> vector<64x32xf32>
    %50 = arith.addf %46, %49 : vector<64x32xf32>
    %51 = vector.extract_strided_slice %35 {offsets = [256, 0], sizes = [64, 32], strides = [1, 1]} : vector<576x32xf32> to vector<64x32xf32>
    %52 = vector.extract_strided_slice %33 {offsets = [128, 0], sizes = [32, 32], strides = [1, 1]} : vector<288x32xf32> to vector<32x32xf32>
    %cst_23 = arith.constant dense<0.000000e+00> : vector<64x32xf32>
    %53 = tpu.matmul %51, %52, %cst_23 {dimension_numbers = #tpu.dot_dimension_numbers<[1], [0], [0], [1], [0, 0, 1, 1], [], []>} : vector<64x32xf32>, vector<32x32xf32>, vector<64x32xf32> -> vector<64x32xf32>
    %54 = arith.addf %50, %53 : vector<64x32xf32>
    %55 = vector.extract_strided_slice %35 {offsets = [320, 0], sizes = [64, 32], strides = [1, 1]} : vector<576x32xf32> to vector<64x32xf32>
    %56 = vector.extract_strided_slice %33 {offsets = [160, 0], sizes = [32, 32], strides = [1, 1]} : vector<288x32xf32> to vector<32x32xf32>
    %cst_24 = arith.constant dense<0.000000e+00> : vector<64x32xf32>
    %57 = tpu.matmul %55, %56, %cst_24 {dimension_numbers = #tpu.dot_dimension_numbers<[1], [0], [0], [1], [0, 0, 1, 1], [], []>} : vector<64x32xf32>, vector<32x32xf32>, vector<64x32xf32> -> vector<64x32xf32>
    %58 = arith.addf %54, %57 : vector<64x32xf32>
    %59 = vector.extract_strided_slice %35 {offsets = [384, 0], sizes = [64, 32], strides = [1, 1]} : vector<576x32xf32> to vector<64x32xf32>
    %60 = vector.extract_strided_slice %33 {offsets = [192, 0], sizes = [32, 32], strides = [1, 1]} : vector<288x32xf32> to vector<32x32xf32>
    %cst_25 = arith.constant dense<0.000000e+00> : vector<64x32xf32>
    %61 = tpu.matmul %59, %60, %cst_25 {dimension_numbers = #tpu.dot_dimension_numbers<[1], [0], [0], [1], [0, 0, 1, 1], [], []>} : vector<64x32xf32>, vector<32x32xf32>, vector<64x32xf32> -> vector<64x32xf32>
    %62 = arith.addf %58, %61 : vector<64x32xf32>
    %63 = vector.extract_strided_slice %35 {offsets = [448, 0], sizes = [64, 32], strides = [1, 1]} : vector<576x32xf32> to vector<64x32xf32>
    %64 = vector.extract_strided_slice %33 {offsets = [224, 0], sizes = [32, 32], strides = [1, 1]} : vector<288x32xf32> to vector<32x32xf32>
    %cst_26 = arith.constant dense<0.000000e+00> : vector<64x32xf32>
    %65 = tpu.matmul %63, %64, %cst_26 {dimension_numbers = #tpu.dot_dimension_numbers<[1], [0], [0], [1], [0, 0, 1, 1], [], []>} : vector<64x32xf32>, vector<32x32xf32>, vector<64x32xf32> -> vector<64x32xf32>
    %66 = arith.addf %62, %65 : vector<64x32xf32>
    %67 = vector.extract_strided_slice %35 {offsets = [512, 0], sizes = [64, 32], strides = [1, 1]} : vector<576x32xf32> to vector<64x32xf32>
    %68 = vector.extract_strided_slice %33 {offsets = [256, 0], sizes = [32, 32], strides = [1, 1]} : vector<288x32xf32> to vector<32x32xf32>
    %cst_27 = arith.constant dense<0.000000e+00> : vector<64x32xf32>
    %69 = tpu.matmul %67, %68, %cst_27 {dimension_numbers = #tpu.dot_dimension_numbers<[1], [0], [0], [1], [0, 0, 1, 1], [], []>} : vector<64x32xf32>, vector<32x32xf32>, vector<64x32xf32> -> vector<64x32xf32>
    %70 = arith.addf %66, %69 : vector<64x32xf32>
    %c0_28 = arith.constant 0 : index
    %c0_29 = arith.constant 0 : index
    %71 = vector.load %arg25[%c0_28, %c0_29] : memref<128x32xf32, #tpu.memory_space<vmem>>, vector<64x32xf32>
    tpu.vector_store %arg25[%c0_28, %c0_29], %70 {strides = array<i32>} : memref<128x32xf32, #tpu.memory_space<vmem>>, vector<64x32xf32>,
    %72 = vector.extract_strided_slice %31 {offsets = [256, 0], sizes = [256, 32], strides = [1, 1]} : vector<512x32xf32> to vector<256x32xf32>
    %cst_30 = arith.constant dense<0.000000e+00> : vector<576x32xf32>
    %73 = tpu.matmul %32, %72, %cst_30 {dimension_numbers = #tpu.dot_dimension_numbers<[1], [0], [0], [1], [0, 0, 1, 1], [], []>} : vector<576x256xf32>, vector<256x32xf32>, vector<576x32xf32> -> vector<576x32xf32>
    %74 = vector.extract_strided_slice %73 {offsets = [0, 0], sizes = [64, 32], strides = [1, 1]} : vector<576x32xf32> to vector<64x32xf32>
    %75 = vector.extract_strided_slice %33 {offsets = [0, 0], sizes = [32, 32], strides = [1, 1]} : vector<288x32xf32> to vector<32x32xf32>
    %cst_31 = arith.constant dense<0.000000e+00> : vector<64x32xf32>
    %76 = tpu.matmul %74, %75, %cst_31 {dimension_numbers = #tpu.dot_dimension_numbers<[1], [0], [0], [1], [0, 0, 1, 1], [], []>} : vector<64x32xf32>, vector<32x32xf32>, vector<64x32xf32> -> vector<64x32xf32>
    %77 = vector.extract_strided_slice %73 {offsets = [64, 0], sizes = [64, 32], strides = [1, 1]} : vector<576x32xf32> to vector<64x32xf32>
    %78 = vector.extract_strided_slice %33 {offsets = [32, 0], sizes = [32, 32], strides = [1, 1]} : vector<288x32xf32> to vector<32x32xf32>
    %cst_32 = arith.constant dense<0.000000e+00> : vector<64x32xf32>
    %79 = tpu.matmul %77, %78, %cst_32 {dimension_numbers = #tpu.dot_dimension_numbers<[1], [0], [0], [1], [0, 0, 1, 1], [], []>} : vector<64x32xf32>, vector<32x32xf32>, vector<64x32xf32> -> vector<64x32xf32>
    %80 = arith.addf %76, %79 : vector<64x32xf32>
    %81 = vector.extract_strided_slice %73 {offsets = [128, 0], sizes = [64, 32], strides = [1, 1]} : vector<576x32xf32> to vector<64x32xf32>
    %82 = vector.extract_strided_slice %33 {offsets = [64, 0], sizes = [32, 32], strides = [1, 1]} : vector<288x32xf32> to vector<32x32xf32>
    %cst_33 = arith.constant dense<0.000000e+00> : vector<64x32xf32>
    %83 = tpu.matmul %81, %82, %cst_33 {dimension_numbers = #tpu.dot_dimension_numbers<[1], [0], [0], [1], [0, 0, 1, 1], [], []>} : vector<64x32xf32>, vector<32x32xf32>, vector<64x32xf32> -> vector<64x32xf32>
    %84 = arith.addf %80, %83 : vector<64x32xf32>
    %85 = vector.extract_strided_slice %73 {offsets = [192, 0], sizes = [64, 32], strides = [1, 1]} : vector<576x32xf32> to vector<64x32xf32>
    %86 = vector.extract_strided_slice %33 {offsets = [96, 0], sizes = [32, 32], strides = [1, 1]} : vector<288x32xf32> to vector<32x32xf32>
    %cst_34 = arith.constant dense<0.000000e+00> : vector<64x32xf32>
    %87 = tpu.matmul %85, %86, %cst_34 {dimension_numbers = #tpu.dot_dimension_numbers<[1], [0], [0], [1], [0, 0, 1, 1], [], []>} : vector<64x32xf32>, vector<32x32xf32>, vector<64x32xf32> -> vector<64x32xf32>
    %88 = arith.addf %84, %87 : vector<64x32xf32>
    %89 = vector.extract_strided_slice %73 {offsets = [256, 0], sizes = [64, 32], strides = [1, 1]} : vector<576x32xf32> to vector<64x32xf32>
    %90 = vector.extract_strided_slice %33 {offsets = [128, 0], sizes = [32, 32], strides = [1, 1]} : vector<288x32xf32> to vector<32x32xf32>
    %cst_35 = arith.constant dense<0.000000e+00> : vector<64x32xf32>
    %91 = tpu.matmul %89, %90, %cst_35 {dimension_numbers = #tpu.dot_dimension_numbers<[1], [0], [0], [1], [0, 0, 1, 1], [], []>} : vector<64x32xf32>, vector<32x32xf32>, vector<64x32xf32> -> vector<64x32xf32>
    %92 = arith.addf %88, %91 : vector<64x32xf32>
    %93 = vector.extract_strided_slice %73 {offsets = [320, 0], sizes = [64, 32], strides = [1, 1]} : vector<576x32xf32> to vector<64x32xf32>
    %94 = vector.extract_strided_slice %33 {offsets = [160, 0], sizes = [32, 32], strides = [1, 1]} : vector<288x32xf32> to vector<32x32xf32>
    %cst_36 = arith.constant dense<0.000000e+00> : vector<64x32xf32>
    %95 = tpu.matmul %93, %94, %cst_36 {dimension_numbers = #tpu.dot_dimension_numbers<[1], [0], [0], [1], [0, 0, 1, 1], [], []>} : vector<64x32xf32>, vector<32x32xf32>, vector<64x32xf32> -> vector<64x32xf32>
    %96 = arith.addf %92, %95 : vector<64x32xf32>
    %97 = vector.extract_strided_slice %73 {offsets = [384, 0], sizes = [64, 32], strides = [1, 1]} : vector<576x32xf32> to vector<64x32xf32>
    %98 = vector.extract_strided_slice %33 {offsets = [192, 0], sizes = [32, 32], strides = [1, 1]} : vector<288x32xf32> to vector<32x32xf32>
    %cst_37 = arith.constant dense<0.000000e+00> : vector<64x32xf32>
    %99 = tpu.matmul %97, %98, %cst_37 {dimension_numbers = #tpu.dot_dimension_numbers<[1], [0], [0], [1], [0, 0, 1, 1], [], []>} : vector<64x32xf32>, vector<32x32xf32>, vector<64x32xf32> -> vector<64x32xf32>
    %100 = arith.addf %96, %99 : vector<64x32xf32>
    %101 = vector.extract_strided_slice %73 {offsets = [448, 0], sizes = [64, 32], strides = [1, 1]} : vector<576x32xf32> to vector<64x32xf32>
    %102 = vector.extract_strided_slice %33 {offsets = [224, 0], sizes = [32, 32], strides = [1, 1]} : vector<288x32xf32> to vector<32x32xf32>
    %cst_38 = arith.constant dense<0.000000e+00> : vector<64x32xf32>
    %103 = tpu.matmul %101, %102, %cst_38 {dimension_numbers = #tpu.dot_dimension_numbers<[1], [0], [0], [1], [0, 0, 1, 1], [], []>} : vector<64x32xf32>, vector<32x32xf32>, vector<64x32xf32> -> vector<64x32xf32>
    %104 = arith.addf %100, %103 : vector<64x32xf32>
    %105 = vector.extract_strided_slice %73 {offsets = [512, 0], sizes = [64, 32], strides = [1, 1]} : vector<576x32xf32> to vector<64x32xf32>
    %106 = vector.extract_strided_slice %33 {offsets = [256, 0], sizes = [32, 32], strides = [1, 1]} : vector<288x32xf32> to vector<32x32xf32>
    %cst_39 = arith.constant dense<0.000000e+00> : vector<64x32xf32>
    %107 = tpu.matmul %105, %106, %cst_39 {dimension_numbers = #tpu.dot_dimension_numbers<[1], [0], [0], [1], [0, 0, 1, 1], [], []>} : vector<64x32xf32>, vector<32x32xf32>, vector<64x32xf32> -> vector<64x32xf32>
    %108 = arith.addf %104, %107 : vector<64x32xf32>
    %c64 = arith.constant 64 : index
    %c0_40 = arith.constant 0 : index
    %109 = vector.load %arg25[%c64, %c0_40] : memref<128x32xf32, #tpu.memory_space<vmem>>, vector<64x32xf32>
    tpu.vector_store %arg25[%c64, %c0_40], %108 {strides = array<i32>} : memref<128x32xf32, #tpu.memory_space<vmem>>, vector<64x32xf32>,
    %c0_41 = arith.constant 0 : index
    %c0_42 = arith.constant 0 : index
    %110 = vector.load %arg25[%c0_41, %c0_42] : memref<128x32xf32, #tpu.memory_space<vmem>>, vector<128x32xf32>
    %c0_43 = arith.constant 0 : index
    %c0_44 = arith.constant 0 : index
    %111 = vector.load %arg7[%c0_43, %c0_44] : memref<1x32xf32, #tpu.memory_space<vmem>>, vector<1x32xf32>
    %c0_45 = arith.constant 0 : index
    %c0_46 = arith.constant 0 : index
    %112 = vector.load %arg8[%c0_45, %c0_46] : memref<1x32xf32, #tpu.memory_space<vmem>>, vector<1x32xf32>
    %cst_47 = arith.constant dense<0.000000e+00> : vector<32xf32>
    %113 = vector.multi_reduction <add>, %110, %cst_47 [0] : vector<128x32xf32> to vector<32xf32>
    %114 = vector.shape_cast %113 : vector<32xf32> to vector<1x32xf32>
    %cst_48 = arith.constant 1.280000e+02 : f32
    %115 = vector.broadcast %cst_48 : f32 to vector<1x32xf32>
    %116 = arith.divf %114, %115 : vector<1x32xf32>
    %117 = vector.broadcast %116 : vector<1x32xf32> to vector<128x32xf32>
    %118 = arith.subf %110, %117 : vector<128x32xf32>
    %119 = arith.mulf %118, %118 : vector<128x32xf32>
    %cst_49 = arith.constant dense<0.000000e+00> : vector<32xf32>
    %120 = vector.multi_reduction <add>, %119, %cst_49 [0] : vector<128x32xf32> to vector<32xf32>
    %121 = vector.shape_cast %120 : vector<32xf32> to vector<1x32xf32>
    %cst_50 = arith.constant 1.280000e+02 : f32
    %122 = vector.broadcast %cst_50 : f32 to vector<1x32xf32>
    %123 = arith.divf %121, %122 : vector<1x32xf32>
    %124 = vector.broadcast %116 : vector<1x32xf32> to vector<128x32xf32>
    %125 = arith.subf %110, %124 : vector<128x32xf32>
    %cst_51 = arith.constant 9.99999974E-6 : f32
    %126 = vector.broadcast %cst_51 : f32 to vector<1x32xf32>
    %127 = arith.addf %123, %126 : vector<1x32xf32>
    %128 = math.rsqrt %127 : vector<1x32xf32>
    %129 = vector.broadcast %128 : vector<1x32xf32> to vector<128x32xf32>
    %130 = arith.mulf %125, %129 : vector<128x32xf32>
    %131 = vector.broadcast %111 : vector<1x32xf32> to vector<128x32xf32>
    %132 = arith.mulf %130, %131 : vector<128x32xf32>
    %133 = vector.broadcast %112 : vector<1x32xf32> to vector<128x32xf32>
    %134 = arith.addf %132, %133 : vector<128x32xf32>
    %cst_52 = arith.constant 0.000000e+00 : f32
    %135 = vector.broadcast %cst_52 : f32 to vector<128x32xf32>
    %136 = arith.cmpf ogt, %134, %135 : vector<128x32xf32>
    %cst_53 = arith.constant 0.00999999977 : f32
    %137 = vector.broadcast %cst_53 : f32 to vector<128x32xf32>
    %138 = arith.mulf %137, %134 : vector<128x32xf32>
    %139 = arith.select %136, %134, %138 : vector<128x32xi1>, vector<128x32xf32>
    %c0_54 = arith.constant 0 : index
    %c0_55 = arith.constant 0 : index
    %140 = vector.load %arg9[%c0_54, %c0_55] : memref<144x64xf32, #tpu.memory_space<vmem>>, vector<144x64xf32>
    %c0_56 = arith.constant 0 : index
    %c0_57 = arith.constant 0 : index
    %141 = vector.load %arg10[%c0_56, %c0_57] : memref<288x32xf32, #tpu.memory_space<vmem>>, vector<288x32xf32>
    %142 = vector.extract_strided_slice %139 {offsets = [0, 0], sizes = [64, 32], strides = [1, 1]} : vector<128x32xf32> to vector<64x32xf32>
    %cst_58 = arith.constant dense<0.000000e+00> : vector<144x32xf32>
    %143 = tpu.matmul %140, %142, %cst_58 {dimension_numbers = #tpu.dot_dimension_numbers<[1], [0], [0], [1], [0, 0, 1, 1], [], []>} : vector<144x64xf32>, vector<64x32xf32>, vector<144x32xf32> -> vector<144x32xf32>
    %144 = vector.extract_strided_slice %143 {offsets = [0, 0], sizes = [16, 32], strides = [1, 1]} : vector<144x32xf32> to vector<16x32xf32>
    %145 = vector.extract_strided_slice %141 {offsets = [0, 0], sizes = [32, 32], strides = [1, 1]} : vector<288x32xf32> to vector<32x32xf32>
    %cst_59 = arith.constant dense<0.000000e+00> : vector<16x32xf32>
    %146 = tpu.matmul %144, %145, %cst_59 {dimension_numbers = #tpu.dot_dimension_numbers<[1], [0], [0], [1], [0, 0, 1, 1], [], []>} : vector<16x32xf32>, vector<32x32xf32>, vector<16x32xf32> -> vector<16x32xf32>
    %147 = vector.extract_strided_slice %143 {offsets = [16, 0], sizes = [16, 32], strides = [1, 1]} : vector<144x32xf32> to vector<16x32xf32>
    %148 = vector.extract_strided_slice %141 {offsets = [32, 0], sizes = [32, 32], strides = [1, 1]} : vector<288x32xf32> to vector<32x32xf32>
    %cst_60 = arith.constant dense<0.000000e+00> : vector<16x32xf32>
    %149 = tpu.matmul %147, %148, %cst_60 {dimension_numbers = #tpu.dot_dimension_numbers<[1], [0], [0], [1], [0, 0, 1, 1], [], []>} : vector<16x32xf32>, vector<32x32xf32>, vector<16x32xf32> -> vector<16x32xf32>
    %150 = arith.addf %146, %149 : vector<16x32xf32>
    %151 = vector.extract_strided_slice %143 {offsets = [32, 0], sizes = [16, 32], strides = [1, 1]} : vector<144x32xf32> to vector<16x32xf32>
    %152 = vector.extract_strided_slice %141 {offsets = [64, 0], sizes = [32, 32], strides = [1, 1]} : vector<288x32xf32> to vector<32x32xf32>
    %cst_61 = arith.constant dense<0.000000e+00> : vector<16x32xf32>
    %153 = tpu.matmul %151, %152, %cst_61 {dimension_numbers = #tpu.dot_dimension_numbers<[1], [0], [0], [1], [0, 0, 1, 1], [], []>} : vector<16x32xf32>, vector<32x32xf32>, vector<16x32xf32> -> vector<16x32xf32>
    %154 = arith.addf %150, %153 : vector<16x32xf32>
    %155 = vector.extract_strided_slice %143 {offsets = [48, 0], sizes = [16, 32], strides = [1, 1]} : vector<144x32xf32> to vector<16x32xf32>
    %156 = vector.extract_strided_slice %141 {offsets = [96, 0], sizes = [32, 32], strides = [1, 1]} : vector<288x32xf32> to vector<32x32xf32>
    %cst_62 = arith.constant dense<0.000000e+00> : vector<16x32xf32>
    %157 = tpu.matmul %155, %156, %cst_62 {dimension_numbers = #tpu.dot_dimension_numbers<[1], [0], [0], [1], [0, 0, 1, 1], [], []>} : vector<16x32xf32>, vector<32x32xf32>, vector<16x32xf32> -> vector<16x32xf32>
    %158 = arith.addf %154, %157 : vector<16x32xf32>
    %159 = vector.extract_strided_slice %143 {offsets = [64, 0], sizes = [16, 32], strides = [1, 1]} : vector<144x32xf32> to vector<16x32xf32>
    %160 = vector.extract_strided_slice %141 {offsets = [128, 0], sizes = [32, 32], strides = [1, 1]} : vector<288x32xf32> to vector<32x32xf32>
    %cst_63 = arith.constant dense<0.000000e+00> : vector<16x32xf32>
    %161 = tpu.matmul %159, %160, %cst_63 {dimension_numbers = #tpu.dot_dimension_numbers<[1], [0], [0], [1], [0, 0, 1, 1], [], []>} : vector<16x32xf32>, vector<32x32xf32>, vector<16x32xf32> -> vector<16x32xf32>
    %162 = arith.addf %158, %161 : vector<16x32xf32>
    %163 = vector.extract_strided_slice %143 {offsets = [80, 0], sizes = [16, 32], strides = [1, 1]} : vector<144x32xf32> to vector<16x32xf32>
    %164 = vector.extract_strided_slice %141 {offsets = [160, 0], sizes = [32, 32], strides = [1, 1]} : vector<288x32xf32> to vector<32x32xf32>
    %cst_64 = arith.constant dense<0.000000e+00> : vector<16x32xf32>
    %165 = tpu.matmul %163, %164, %cst_64 {dimension_numbers = #tpu.dot_dimension_numbers<[1], [0], [0], [1], [0, 0, 1, 1], [], []>} : vector<16x32xf32>, vector<32x32xf32>, vector<16x32xf32> -> vector<16x32xf32>
    %166 = arith.addf %162, %165 : vector<16x32xf32>
    %167 = vector.extract_strided_slice %143 {offsets = [96, 0], sizes = [16, 32], strides = [1, 1]} : vector<144x32xf32> to vector<16x32xf32>
    %168 = vector.extract_strided_slice %141 {offsets = [192, 0], sizes = [32, 32], strides = [1, 1]} : vector<288x32xf32> to vector<32x32xf32>
    %cst_65 = arith.constant dense<0.000000e+00> : vector<16x32xf32>
    %169 = tpu.matmul %167, %168, %cst_65 {dimension_numbers = #tpu.dot_dimension_numbers<[1], [0], [0], [1], [0, 0, 1, 1], [], []>} : vector<16x32xf32>, vector<32x32xf32>, vector<16x32xf32> -> vector<16x32xf32>
    %170 = arith.addf %166, %169 : vector<16x32xf32>
    %171 = vector.extract_strided_slice %143 {offsets = [112, 0], sizes = [16, 32], strides = [1, 1]} : vector<144x32xf32> to vector<16x32xf32>
    %172 = vector.extract_strided_slice %141 {offsets = [224, 0], sizes = [32, 32], strides = [1, 1]} : vector<288x32xf32> to vector<32x32xf32>
    %cst_66 = arith.constant dense<0.000000e+00> : vector<16x32xf32>
    %173 = tpu.matmul %171, %172, %cst_66 {dimension_numbers = #tpu.dot_dimension_numbers<[1], [0], [0], [1], [0, 0, 1, 1], [], []>} : vector<16x32xf32>, vector<32x32xf32>, vector<16x32xf32> -> vector<16x32xf32>
    %174 = arith.addf %170, %173 : vector<16x32xf32>
    %175 = vector.extract_strided_slice %143 {offsets = [128, 0], sizes = [16, 32], strides = [1, 1]} : vector<144x32xf32> to vector<16x32xf32>
    %176 = vector.extract_strided_slice %141 {offsets = [256, 0], sizes = [32, 32], strides = [1, 1]} : vector<288x32xf32> to vector<32x32xf32>
    %cst_67 = arith.constant dense<0.000000e+00> : vector<16x32xf32>
    %177 = tpu.matmul %175, %176, %cst_67 {dimension_numbers = #tpu.dot_dimension_numbers<[1], [0], [0], [1], [0, 0, 1, 1], [], []>} : vector<16x32xf32>, vector<32x32xf32>, vector<16x32xf32> -> vector<16x32xf32>
    %178 = arith.addf %174, %177 : vector<16x32xf32>
    %c0_68 = arith.constant 0 : index
    %c0_69 = arith.constant 0 : index
    %179 = vector.load %arg26[%c0_68, %c0_69] : memref<32x32xf32, #tpu.memory_space<vmem>>, vector<16x32xf32>
    tpu.vector_store %arg26[%c0_68, %c0_69], %178 {strides = array<i32>} : memref<32x32xf32, #tpu.memory_space<vmem>>, vector<16x32xf32>,
    %180 = vector.extract_strided_slice %139 {offsets = [64, 0], sizes = [64, 32], strides = [1, 1]} : vector<128x32xf32> to vector<64x32xf32>
    %cst_70 = arith.constant dense<0.000000e+00> : vector<144x32xf32>
    %181 = tpu.matmul %140, %180, %cst_70 {dimension_numbers = #tpu.dot_dimension_numbers<[1], [0], [0], [1], [0, 0, 1, 1], [], []>} : vector<144x64xf32>, vector<64x32xf32>, vector<144x32xf32> -> vector<144x32xf32>
    %182 = vector.extract_strided_slice %181 {offsets = [0, 0], sizes = [16, 32], strides = [1, 1]} : vector<144x32xf32> to vector<16x32xf32>
    %183 = vector.extract_strided_slice %141 {offsets = [0, 0], sizes = [32, 32], strides = [1, 1]} : vector<288x32xf32> to vector<32x32xf32>
    %cst_71 = arith.constant dense<0.000000e+00> : vector<16x32xf32>
    %184 = tpu.matmul %182, %183, %cst_71 {dimension_numbers = #tpu.dot_dimension_numbers<[1], [0], [0], [1], [0, 0, 1, 1], [], []>} : vector<16x32xf32>, vector<32x32xf32>, vector<16x32xf32> -> vector<16x32xf32>
    %185 = vector.extract_strided_slice %181 {offsets = [16, 0], sizes = [16, 32], strides = [1, 1]} : vector<144x32xf32> to vector<16x32xf32>
    %186 = vector.extract_strided_slice %141 {offsets = [32, 0], sizes = [32, 32], strides = [1, 1]} : vector<288x32xf32> to vector<32x32xf32>
    %cst_72 = arith.constant dense<0.000000e+00> : vector<16x32xf32>
    %187 = tpu.matmul %185, %186, %cst_72 {dimension_numbers = #tpu.dot_dimension_numbers<[1], [0], [0], [1], [0, 0, 1, 1], [], []>} : vector<16x32xf32>, vector<32x32xf32>, vector<16x32xf32> -> vector<16x32xf32>
    %188 = arith.addf %184, %187 : vector<16x32xf32>
    %189 = vector.extract_strided_slice %181 {offsets = [32, 0], sizes = [16, 32], strides = [1, 1]} : vector<144x32xf32> to vector<16x32xf32>
    %190 = vector.extract_strided_slice %141 {offsets = [64, 0], sizes = [32, 32], strides = [1, 1]} : vector<288x32xf32> to vector<32x32xf32>
    %cst_73 = arith.constant dense<0.000000e+00> : vector<16x32xf32>
    %191 = tpu.matmul %189, %190, %cst_73 {dimension_numbers = #tpu.dot_dimension_numbers<[1], [0], [0], [1], [0, 0, 1, 1], [], []>} : vector<16x32xf32>, vector<32x32xf32>, vector<16x32xf32> -> vector<16x32xf32>
    %192 = arith.addf %188, %191 : vector<16x32xf32>
    %193 = vector.extract_strided_slice %181 {offsets = [48, 0], sizes = [16, 32], strides = [1, 1]} : vector<144x32xf32> to vector<16x32xf32>
    %194 = vector.extract_strided_slice %141 {offsets = [96, 0], sizes = [32, 32], strides = [1, 1]} : vector<288x32xf32> to vector<32x32xf32>
    %cst_74 = arith.constant dense<0.000000e+00> : vector<16x32xf32>
    %195 = tpu.matmul %193, %194, %cst_74 {dimension_numbers = #tpu.dot_dimension_numbers<[1], [0], [0], [1], [0, 0, 1, 1], [], []>} : vector<16x32xf32>, vector<32x32xf32>, vector<16x32xf32> -> vector<16x32xf32>
    %196 = arith.addf %192, %195 : vector<16x32xf32>
    %197 = vector.extract_strided_slice %181 {offsets = [64, 0], sizes = [16, 32], strides = [1, 1]} : vector<144x32xf32> to vector<16x32xf32>
    %198 = vector.extract_strided_slice %141 {offsets = [128, 0], sizes = [32, 32], strides = [1, 1]} : vector<288x32xf32> to vector<32x32xf32>
    %cst_75 = arith.constant dense<0.000000e+00> : vector<16x32xf32>
    %199 = tpu.matmul %197, %198, %cst_75 {dimension_numbers = #tpu.dot_dimension_numbers<[1], [0], [0], [1], [0, 0, 1, 1], [], []>} : vector<16x32xf32>, vector<32x32xf32>, vector<16x32xf32> -> vector<16x32xf32>
    %200 = arith.addf %196, %199 : vector<16x32xf32>
    %201 = vector.extract_strided_slice %181 {offsets = [80, 0], sizes = [16, 32], strides = [1, 1]} : vector<144x32xf32> to vector<16x32xf32>
    %202 = vector.extract_strided_slice %141 {offsets = [160, 0], sizes = [32, 32], strides = [1, 1]} : vector<288x32xf32> to vector<32x32xf32>
    %cst_76 = arith.constant dense<0.000000e+00> : vector<16x32xf32>
    %203 = tpu.matmul %201, %202, %cst_76 {dimension_numbers = #tpu.dot_dimension_numbers<[1], [0], [0], [1], [0, 0, 1, 1], [], []>} : vector<16x32xf32>, vector<32x32xf32>, vector<16x32xf32> -> vector<16x32xf32>
    %204 = arith.addf %200, %203 : vector<16x32xf32>
    %205 = vector.extract_strided_slice %181 {offsets = [96, 0], sizes = [16, 32], strides = [1, 1]} : vector<144x32xf32> to vector<16x32xf32>
    %206 = vector.extract_strided_slice %141 {offsets = [192, 0], sizes = [32, 32], strides = [1, 1]} : vector<288x32xf32> to vector<32x32xf32>
    %cst_77 = arith.constant dense<0.000000e+00> : vector<16x32xf32>
    %207 = tpu.matmul %205, %206, %cst_77 {dimension_numbers = #tpu.dot_dimension_numbers<[1], [0], [0], [1], [0, 0, 1, 1], [], []>} : vector<16x32xf32>, vector<32x32xf32>, vector<16x32xf32> -> vector<16x32xf32>
    %208 = arith.addf %204, %207 : vector<16x32xf32>
    %209 = vector.extract_strided_slice %181 {offsets = [112, 0], sizes = [16, 32], strides = [1, 1]} : vector<144x32xf32> to vector<16x32xf32>
    %210 = vector.extract_strided_slice %141 {offsets = [224, 0], sizes = [32, 32], strides = [1, 1]} : vector<288x32xf32> to vector<32x32xf32>
    %cst_78 = arith.constant dense<0.000000e+00> : vector<16x32xf32>
    %211 = tpu.matmul %209, %210, %cst_78 {dimension_numbers = #tpu.dot_dimension_numbers<[1], [0], [0], [1], [0, 0, 1, 1], [], []>} : vector<16x32xf32>, vector<32x32xf32>, vector<16x32xf32> -> vector<16x32xf32>
    %212 = arith.addf %208, %211 : vector<16x32xf32>
    %213 = vector.extract_strided_slice %181 {offsets = [128, 0], sizes = [16, 32], strides = [1, 1]} : vector<144x32xf32> to vector<16x32xf32>
    %214 = vector.extract_strided_slice %141 {offsets = [256, 0], sizes = [32, 32], strides = [1, 1]} : vector<288x32xf32> to vector<32x32xf32>
    %cst_79 = arith.constant dense<0.000000e+00> : vector<16x32xf32>
    %215 = tpu.matmul %213, %214, %cst_79 {dimension_numbers = #tpu.dot_dimension_numbers<[1], [0], [0], [1], [0, 0, 1, 1], [], []>} : vector<16x32xf32>, vector<32x32xf32>, vector<16x32xf32> -> vector<16x32xf32>
    %216 = arith.addf %212, %215 : vector<16x32xf32>
    %c16 = arith.constant 16 : index
    %c0_80 = arith.constant 0 : index
    %217 = vector.load %arg26[%c16, %c0_80] : memref<32x32xf32, #tpu.memory_space<vmem>>, vector<16x32xf32>
    tpu.vector_store %arg26[%c16, %c0_80], %216 {strides = array<i32>} : memref<32x32xf32, #tpu.memory_space<vmem>>, vector<16x32xf32>,
    %c0_81 = arith.constant 0 : index
    %c0_82 = arith.constant 0 : index
    %218 = vector.load %arg26[%c0_81, %c0_82] : memref<32x32xf32, #tpu.memory_space<vmem>>, vector<32x32xf32>
    %c0_83 = arith.constant 0 : index
    %c0_84 = arith.constant 0 : index
    %219 = vector.load %arg11[%c0_83, %c0_84] : memref<1x32xf32, #tpu.memory_space<vmem>>, vector<1x32xf32>
    %c0_85 = arith.constant 0 : index
    %c0_86 = arith.constant 0 : index
    %220 = vector.load %arg12[%c0_85, %c0_86] : memref<1x32xf32, #tpu.memory_space<vmem>>, vector<1x32xf32>
    %cst_87 = arith.constant dense<0.000000e+00> : vector<32xf32>
    %221 = vector.multi_reduction <add>, %218, %cst_87 [0] : vector<32x32xf32> to vector<32xf32>
    %222 = vector.shape_cast %221 : vector<32xf32> to vector<1x32xf32>
    %cst_88 = arith.constant 3.200000e+01 : f32
    %223 = vector.broadcast %cst_88 : f32 to vector<1x32xf32>
    %224 = arith.divf %222, %223 : vector<1x32xf32>
    %225 = vector.broadcast %224 : vector<1x32xf32> to vector<32x32xf32>
    %226 = arith.subf %218, %225 : vector<32x32xf32>
    %227 = arith.mulf %226, %226 : vector<32x32xf32>
    %cst_89 = arith.constant dense<0.000000e+00> : vector<32xf32>
    %228 = vector.multi_reduction <add>, %227, %cst_89 [0] : vector<32x32xf32> to vector<32xf32>
    %229 = vector.shape_cast %228 : vector<32xf32> to vector<1x32xf32>
    %cst_90 = arith.constant 3.200000e+01 : f32
    %230 = vector.broadcast %cst_90 : f32 to vector<1x32xf32>
    %231 = arith.divf %229, %230 : vector<1x32xf32>
    %232 = vector.broadcast %224 : vector<1x32xf32> to vector<32x32xf32>
    %233 = arith.subf %218, %232 : vector<32x32xf32>
    %cst_91 = arith.constant 9.99999974E-6 : f32
    %234 = vector.broadcast %cst_91 : f32 to vector<1x32xf32>
    %235 = arith.addf %231, %234 : vector<1x32xf32>
    %236 = math.rsqrt %235 : vector<1x32xf32>
    %237 = vector.broadcast %236 : vector<1x32xf32> to vector<32x32xf32>
    %238 = arith.mulf %233, %237 : vector<32x32xf32>
    %239 = vector.broadcast %219 : vector<1x32xf32> to vector<32x32xf32>
    %240 = arith.mulf %238, %239 : vector<32x32xf32>
    %241 = vector.broadcast %220 : vector<1x32xf32> to vector<32x32xf32>
    %242 = arith.addf %240, %241 : vector<32x32xf32>
    %cst_92 = arith.constant 0.000000e+00 : f32
    %243 = vector.broadcast %cst_92 : f32 to vector<32x32xf32>
    %244 = arith.cmpf ogt, %242, %243 : vector<32x32xf32>
    %cst_93 = arith.constant 0.00999999977 : f32
    %245 = vector.broadcast %cst_93 : f32 to vector<32x32xf32>
    %246 = arith.mulf %245, %242 : vector<32x32xf32>
    %247 = arith.select %244, %242, %246 : vector<32x32xi1>, vector<32x32xf32>
    %c0_94 = arith.constant 0 : index
    %c0_95 = arith.constant 0 : index
    %248 = vector.load %arg13[%c0_94, %c0_95] : memref<32x512xf32, #tpu.memory_space<vmem>>, vector<32x512xf32>
    %cst_96 = arith.constant dense<0.000000e+00> : vector<32x512xf32>
    %249 = tpu.matmul %247, %248, %cst_96 {dimension_numbers = #tpu.dot_dimension_numbers<[1], [0], [0], [1], [0, 0, 1, 1], [], []>} : vector<32x32xf32>, vector<32x512xf32>, vector<32x512xf32> -> vector<32x512xf32>
    %c0_97 = arith.constant 0 : index
    %c0_98 = arith.constant 0 : index
    %250 = vector.load %arg14[%c0_97, %c0_98] : memref<32x512xf32, #tpu.memory_space<vmem>>, vector<32x512xf32>
    %251 = arith.mulf %249, %250 : vector<32x512xf32>
    %c0_99 = arith.constant 0 : index
    %c0_100 = arith.constant 0 : index
    %252 = vector.load %arg16[%c0_99, %c0_100] : memref<512x256xf32, #tpu.memory_space<vmem>>, vector<512x256xf32>
    %cst_101 = arith.constant dense<0.000000e+00> : vector<32x256xf32>
    %253 = tpu.matmul %251, %252, %cst_101 {dimension_numbers = #tpu.dot_dimension_numbers<[1], [0], [0], [1], [0, 0, 1, 1], [], []>} : vector<32x512xf32>, vector<512x256xf32>, vector<32x256xf32> -> vector<32x256xf32>
    %c0_102 = arith.constant 0 : index
    %c0_103 = arith.constant 0 : index
    %254 = vector.load %arg15[%c0_102, %c0_103] : memref<2x32xf32, #tpu.memory_space<vmem>>, vector<2x32xf32>
    %cst_104 = arith.constant dense<0.000000e+00> : vector<2x256xf32>
    %255 = tpu.matmul %254, %253, %cst_104 {dimension_numbers = #tpu.dot_dimension_numbers<[1], [0], [0], [1], [0, 0, 1, 1], [], []>} : vector<2x32xf32>, vector<32x256xf32>, vector<2x256xf32> -> vector<2x256xf32>
    %c0_105 = arith.constant 0 : index
    %c0_106 = arith.constant 0 : index
    %256 = vector.load %arg17[%c0_105, %c0_106] : memref<1x256xf32, #tpu.memory_space<vmem>>, vector<1x256xf32>
    %c0_107 = arith.constant 0 : index
    %c0_108 = arith.constant 0 : index
    %257 = vector.load %arg18[%c0_107, %c0_108] : memref<1x256xf32, #tpu.memory_space<vmem>>, vector<1x256xf32>
    %cst_109 = arith.constant dense<0.000000e+00> : vector<256xf32>
    %258 = vector.multi_reduction <add>, %255, %cst_109 [0] : vector<2x256xf32> to vector<256xf32>
    %259 = vector.shape_cast %258 : vector<256xf32> to vector<1x256xf32>
    %cst_110 = arith.constant 2.000000e+00 : f32
    %260 = vector.broadcast %cst_110 : f32 to vector<1x256xf32>
    %261 = arith.divf %259, %260 : vector<1x256xf32>
    %262 = vector.broadcast %261 : vector<1x256xf32> to vector<2x256xf32>
    %263 = arith.subf %255, %262 : vector<2x256xf32>
    %264 = arith.mulf %263, %263 : vector<2x256xf32>
    %cst_111 = arith.constant dense<0.000000e+00> : vector<256xf32>
    %265 = vector.multi_reduction <add>, %264, %cst_111 [0] : vector<2x256xf32> to vector<256xf32>
    %266 = vector.shape_cast %265 : vector<256xf32> to vector<1x256xf32>
    %cst_112 = arith.constant 2.000000e+00 : f32
    %267 = vector.broadcast %cst_112 : f32 to vector<1x256xf32>
    %268 = arith.divf %266, %267 : vector<1x256xf32>
    %269 = vector.broadcast %261 : vector<1x256xf32> to vector<2x256xf32>
    %270 = arith.subf %255, %269 : vector<2x256xf32>
    %cst_113 = arith.constant 9.99999974E-6 : f32
    %271 = vector.broadcast %cst_113 : f32 to vector<1x256xf32>
    %272 = arith.addf %268, %271 : vector<1x256xf32>
    %273 = math.rsqrt %272 : vector<1x256xf32>
    %274 = vector.broadcast %273 : vector<1x256xf32> to vector<2x256xf32>
    %275 = arith.mulf %270, %274 : vector<2x256xf32>
    %276 = vector.broadcast %256 : vector<1x256xf32> to vector<2x256xf32>
    %277 = arith.mulf %275, %276 : vector<2x256xf32>
    %278 = vector.broadcast %257 : vector<1x256xf32> to vector<2x256xf32>
    %279 = arith.addf %277, %278 : vector<2x256xf32>
    %cst_114 = arith.constant 0.000000e+00 : f32
    %280 = vector.broadcast %cst_114 : f32 to vector<2x256xf32>
    %281 = arith.cmpf ogt, %279, %280 : vector<2x256xf32>
    %cst_115 = arith.constant 0.00999999977 : f32
    %282 = vector.broadcast %cst_115 : f32 to vector<2x256xf32>
    %283 = arith.mulf %282, %279 : vector<2x256xf32>
    %284 = arith.select %281, %279, %283 : vector<2x256xi1>, vector<2x256xf32>
    %c0_116 = arith.constant 0 : index
    %c0_117 = arith.constant 0 : index
    %285 = vector.load %arg19[%c0_116, %c0_117] : memref<256x128xf32, #tpu.memory_space<vmem>>, vector<256x128xf32>
    %cst_118 = arith.constant dense<0.000000e+00> : vector<2x128xf32>
    %286 = tpu.matmul %284, %285, %cst_118 {dimension_numbers = #tpu.dot_dimension_numbers<[1], [0], [0], [1], [0, 0, 1, 1], [], []>} : vector<2x256xf32>, vector<256x128xf32>, vector<2x128xf32> -> vector<2x128xf32>
    %c0_119 = arith.constant 0 : index
    %c0_120 = arith.constant 0 : index
    %287 = vector.load %arg20[%c0_119, %c0_120] : memref<1x128xf32, #tpu.memory_space<vmem>>, vector<1x128xf32>
    %c0_121 = arith.constant 0 : index
    %c0_122 = arith.constant 0 : index
    %288 = vector.load %arg21[%c0_121, %c0_122] : memref<1x128xf32, #tpu.memory_space<vmem>>, vector<1x128xf32>
    %cst_123 = arith.constant dense<0.000000e+00> : vector<128xf32>
    %289 = vector.multi_reduction <add>, %286, %cst_123 [0] : vector<2x128xf32> to vector<128xf32>
    %290 = vector.shape_cast %289 : vector<128xf32> to vector<1x128xf32>
    %cst_124 = arith.constant 2.000000e+00 : f32
    %291 = vector.broadcast %cst_124 : f32 to vector<1x128xf32>
    %292 = arith.divf %290, %291 : vector<1x128xf32>
    %293 = vector.broadcast %292 : vector<1x128xf32> to vector<2x128xf32>
    %294 = arith.subf %286, %293 : vector<2x128xf32>
    %295 = arith.mulf %294, %294 : vector<2x128xf32>
    %cst_125 = arith.constant dense<0.000000e+00> : vector<128xf32>
    %296 = vector.multi_reduction <add>, %295, %cst_125 [0] : vector<2x128xf32> to vector<128xf32>
    %297 = vector.shape_cast %296 : vector<128xf32> to vector<1x128xf32>
    %cst_126 = arith.constant 2.000000e+00 : f32
    %298 = vector.broadcast %cst_126 : f32 to vector<1x128xf32>
    %299 = arith.divf %297, %298 : vector<1x128xf32>
    %300 = vector.broadcast %292 : vector<1x128xf32> to vector<2x128xf32>
    %301 = arith.subf %286, %300 : vector<2x128xf32>
    %cst_127 = arith.constant 9.99999974E-6 : f32
    %302 = vector.broadcast %cst_127 : f32 to vector<1x128xf32>
    %303 = arith.addf %299, %302 : vector<1x128xf32>
    %304 = math.rsqrt %303 : vector<1x128xf32>
    %305 = vector.broadcast %304 : vector<1x128xf32> to vector<2x128xf32>
    %306 = arith.mulf %301, %305 : vector<2x128xf32>
    %307 = vector.broadcast %287 : vector<1x128xf32> to vector<2x128xf32>
    %308 = arith.mulf %306, %307 : vector<2x128xf32>
    %309 = vector.broadcast %288 : vector<1x128xf32> to vector<2x128xf32>
    %310 = arith.addf %308, %309 : vector<2x128xf32>
    %cst_128 = arith.constant 0.000000e+00 : f32
    %311 = vector.broadcast %cst_128 : f32 to vector<2x128xf32>
    %312 = arith.cmpf ogt, %310, %311 : vector<2x128xf32>
    %cst_129 = arith.constant 0.00999999977 : f32
    %313 = vector.broadcast %cst_129 : f32 to vector<2x128xf32>
    %314 = arith.mulf %313, %310 : vector<2x128xf32>
    %315 = arith.select %312, %310, %314 : vector<2x128xi1>, vector<2x128xf32>
    %c0_130 = arith.constant 0 : index
    %c0_131 = arith.constant 0 : index
    %316 = vector.load %arg22[%c0_130, %c0_131] : memref<128x32xf32, #tpu.memory_space<vmem>>, vector<128x32xf32>
    %cst_132 = arith.constant dense<0.000000e+00> : vector<2x32xf32>
    %317 = tpu.matmul %315, %316, %cst_132 {dimension_numbers = #tpu.dot_dimension_numbers<[1], [0], [0], [1], [0, 0, 1, 1], [], []>} : vector<2x128xf32>, vector<128x32xf32>, vector<2x32xf32> -> vector<2x32xf32>
    %c0_133 = arith.constant 0 : index
    %c0_134 = arith.constant 0 : index
    %318 = vector.load %arg23[%c0_133, %c0_134] : memref<1x32xf32, #tpu.memory_space<vmem>>, vector<1x32xf32>
    %319 = vector.broadcast %318 : vector<1x32xf32> to vector<2x32xf32>
    %320 = arith.addf %317, %319 : vector<2x32xf32>
    %c0_135 = arith.constant 0 : index
    %c0_136 = arith.constant 0 : index
    %321 = vector.load %arg24[%c0_135, %c0_136] : memref<2x32xf32, #tpu.memory_space<vmem>>, vector<2x32xf32>
    tpu.vector_store %arg24[%c0_135, %c0_136], %320 {strides = array<i32>} : memref<2x32xf32, #tpu.memory_space<vmem>>, vector<2x32xf32>,
    return
  }
  func.func @transform_0(%arg0: i32) -> (i32, i32) {
    %c0_i32 = arith.constant 0 : i32
    %c0_i32_0 = arith.constant 0 : i32
    %c0_i32_1 = arith.constant 0 : i32
    return %c0_i32, %c0_i32_0 : i32, i32
  }
  func.func @transform_1(%arg0: i32) -> (i32, i32) {
    %c0_i32 = arith.constant 0 : i32
    %c0_i32_0 = arith.constant 0 : i32
    %c0_i32_1 = arith.constant 0 : i32
    return %c0_i32, %c0_i32_0 : i32, i32
  }
  func.func @transform_2(%arg0: i32) -> (i32, i32) {
    %c0_i32 = arith.constant 0 : i32
    %c0_i32_0 = arith.constant 0 : i32
    %c0_i32_1 = arith.constant 0 : i32
    return %c0_i32, %c0_i32_0 : i32, i32
  }
  func.func @transform_3(%arg0: i32) -> (i32, i32) {
    %c0_i32 = arith.constant 0 : i32
    %c0_i32_0 = arith.constant 0 : i32
    %c0_i32_1 = arith.constant 0 : i32
    return %c0_i32, %c0_i32_0 : i32, i32
  }
  func.func @transform_4(%arg0: i32) -> (i32, i32) {
    %c0_i32 = arith.constant 0 : i32
    %c0_i32_0 = arith.constant 0 : i32
    %c0_i32_1 = arith.constant 0 : i32
    return %c0_i32, %c0_i32_0 : i32, i32
  }
  func.func @transform_5(%arg0: i32) -> (i32, i32) {
    %c0_i32 = arith.constant 0 : i32
    %c0_i32_0 = arith.constant 0 : i32
    %c0_i32_1 = arith.constant 0 : i32
    return %c0_i32, %c0_i32_0 : i32, i32
  }
  func.func @transform_6(%arg0: i32) -> (i32, i32) {
    %c0_i32 = arith.constant 0 : i32
    %c0_i32_0 = arith.constant 0 : i32
    %c0_i32_1 = arith.constant 0 : i32
    return %c0_i32, %c0_i32_0 : i32, i32
  }
  func.func @transform_7(%arg0: i32) -> (i32, i32) {
    %c0_i32 = arith.constant 0 : i32
    %c0_i32_0 = arith.constant 0 : i32
    %c0_i32_1 = arith.constant 0 : i32
    return %c0_i32, %c0_i32_0 : i32, i32
  }
  func.func @transform_8(%arg0: i32) -> (i32, i32) {
    %c0_i32 = arith.constant 0 : i32
    %c0_i32_0 = arith.constant 0 : i32
    %c0_i32_1 = arith.constant 0 : i32
    return %c0_i32, %c0_i32_0 : i32, i32
  }
  func.func @transform_9(%arg0: i32) -> (i32, i32) {
    %c0_i32 = arith.constant 0 : i32
    %c0_i32_0 = arith.constant 0 : i32
    %c0_i32_1 = arith.constant 0 : i32
    return %c0_i32, %c0_i32_0 : i32, i32
  }
  func.func @transform_10(%arg0: i32) -> (i32, i32) {
    %c0_i32 = arith.constant 0 : i32
    %c0_i32_0 = arith.constant 0 : i32
    %c0_i32_1 = arith.constant 0 : i32
    return %c0_i32, %c0_i32_0 : i32, i32
  }
  func.func @transform_11(%arg0: i32) -> (i32, i32) {
    %c0_i32 = arith.constant 0 : i32
    %c0_i32_0 = arith.constant 0 : i32
    %c0_i32_1 = arith.constant 0 : i32
    return %c0_i32, %c0_i32_0 : i32, i32
  }
  func.func @transform_12(%arg0: i32) -> (i32, i32) {
    %c0_i32 = arith.constant 0 : i32
    %c0_i32_0 = arith.constant 0 : i32
    %c0_i32_1 = arith.constant 0 : i32
    return %c0_i32, %c0_i32_0 : i32, i32
  }
  func.func @transform_13(%arg0: i32) -> (i32, i32) {
    %c0_i32 = arith.constant 0 : i32
    %c0_i32_0 = arith.constant 0 : i32
    %c0_i32_1 = arith.constant 0 : i32
    return %c0_i32, %c0_i32_0 : i32, i32
  }
  func.func @transform_14(%arg0: i32) -> (i32, i32) {
    %c0_i32 = arith.constant 0 : i32
    %c0_i32_0 = arith.constant 0 : i32
    %c0_i32_1 = arith.constant 0 : i32
    return %c0_i32, %c0_i32_0 : i32, i32
  }
  func.func @transform_15(%arg0: i32) -> (i32, i32) {
    %c0_i32 = arith.constant 0 : i32
    %c0_i32_0 = arith.constant 0 : i32
    %c0_i32_1 = arith.constant 0 : i32
    return %c0_i32, %c0_i32_0 : i32, i32
  }
  func.func @transform_16(%arg0: i32) -> (i32, i32) {
    %c0_i32 = arith.constant 0 : i32
    %c0_i32_0 = arith.constant 0 : i32
    %c0_i32_1 = arith.constant 0 : i32
    return %c0_i32, %c0_i32_0 : i32, i32
  }
  func.func @transform_17(%arg0: i32) -> (i32, i32) {
    %c0_i32 = arith.constant 0 : i32
    %c0_i32_0 = arith.constant 0 : i32
    %c0_i32_1 = arith.constant 0 : i32
    return %c0_i32, %c0_i32_0 : i32, i32
  }
  func.func @transform_18(%arg0: i32) -> (i32, i32) {
    %c0_i32 = arith.constant 0 : i32
    %c0_i32_0 = arith.constant 0 : i32
    %c0_i32_1 = arith.constant 0 : i32
    return %c0_i32, %c0_i32_0 : i32, i32
  }
  func.func @transform_19(%arg0: i32) -> (i32, i32) {
    %c0_i32 = arith.constant 0 : i32
    %c0_i32_0 = arith.constant 0 : i32
    %c0_i32_1 = arith.constant 0 : i32
    return %c0_i32, %c0_i32_0 : i32, i32
  }
  func.func @transform_20(%arg0: i32) -> (i32, i32) {
    %c0_i32 = arith.constant 0 : i32
    %c0_i32_0 = arith.constant 0 : i32
    %c0_i32_1 = arith.constant 0 : i32
    return %c0_i32, %c0_i32_0 : i32, i32
  }
  func.func @transform_21(%arg0: i32) -> (i32, i32) {
    %c0_i32 = arith.constant 0 : i32
    %c0_i32_0 = arith.constant 0 : i32
    %c0_i32_1 = arith.constant 0 : i32
    return %c0_i32, %c0_i32_0 : i32, i32
  }
  func.func @transform_22(%arg0: i32) -> (i32, i32) {
    %c0_i32 = arith.constant 0 : i32
    %c0_i32_0 = arith.constant 0 : i32
    %c0_i32_1 = arith.constant 0 : i32
    return %c0_i32, %c0_i32_0 : i32, i32
  }
  func.func @transform_23(%arg0: i32) -> (i32, i32) {
    %c0_i32 = arith.constant 0 : i32
    %c0_i32_0 = arith.constant 0 : i32
    %c0_i32_1 = arith.constant 0 : i32
    return %c0_i32, %c0_i32_0 : i32, i32
  }
}

</mosaic_0001>

<llo_original>
// kernel: encoder_forward.1
$region0: #{encoder_forward.1}
  #allocation0 [shape = 'u32[]', space=smem, size = 0x4, offset = 0x4, fixed_abs, tag = 'smem constant byte address 0x4 - core index']
  #allocation1 [shape = 'u32[144,128]{1,0:T(1,128)}', space=vmem, size = 0x12000, scoped, tag = 'internal scratch']
  #allocation2 [shape = 'f32[128,32]{1,0:T(8,128)}', space=vmem, size = 0x10000, scoped, tag = 'scratch operand']
  #allocation3 [shape = 'f32[32,32]{1,0:T(8,128)}', space=vmem, size = 0x4000, scoped, tag = 'scratch operand']
  %s0 = inlined_call_operand.vmem [shape: f32[512,9], index: 0, kind: input, shape index: {}]
  %s1 = inlined_call_operand.hbm [shape: f32[9,32], index: 1, kind: input, shape index: {}]
  %s2 = inlined_call_operand.hbm [shape: f32[1,32], index: 2, kind: input, shape index: {}]
  %s3 = inlined_call_operand.hbm [shape: f32[1,32], index: 3, kind: input, shape index: {}]
  %s4 = inlined_call_operand.vmem [shape: f32[576,256], index: 4, kind: input, shape index: {}]
  %s5 = inlined_call_operand.vmem [shape: f32[288,32], index: 5, kind: input, shape index: {}]
  %s6 = inlined_call_operand.hbm [shape: f32[1,32], index: 6, kind: input, shape index: {}]
  %s7 = inlined_call_operand.hbm [shape: f32[1,32], index: 7, kind: input, shape index: {}]
  %s8 = inlined_call_operand.vmem [shape: f32[144,64], index: 8, kind: input, shape index: {}]
  %s9 = inlined_call_operand.vmem [shape: f32[288,32], index: 9, kind: input, shape index: {}]
  %s10 = inlined_call_operand.hbm [shape: f32[1,32], index: 10, kind: input, shape index: {}]
  %s11 = inlined_call_operand.hbm [shape: f32[1,32], index: 11, kind: input, shape index: {}]
  %s12 = inlined_call_operand.vmem [shape: f32[32,512], index: 12, kind: input, shape index: {}]
  %s13 = inlined_call_operand.vmem [shape: f32[32,512], index: 13, kind: input, shape index: {}]
  %s14 = inlined_call_operand.hbm [shape: f32[2,32], index: 14, kind: input, shape index: {}]
  %s15 = inlined_call_operand.vmem [shape: f32[512,256], index: 15, kind: input, shape index: {}]
  %s16 = inlined_call_operand.hbm [shape: f32[1,256], index: 16, kind: input, shape index: {}]
  %s17 = inlined_call_operand.hbm [shape: f32[1,256], index: 17, kind: input, shape index: {}]
  %s18 = inlined_call_operand.vmem [shape: f32[256,128], index: 18, kind: input, shape index: {}]
  %s19 = inlined_call_operand.hbm [shape: f32[1,128], index: 19, kind: input, shape index: {}]
  %s20 = inlined_call_operand.hbm [shape: f32[1,128], index: 20, kind: input, shape index: {}]
  %s21 = inlined_call_operand.vmem [shape: f32[128,32], index: 21, kind: input, shape index: {}]
  %s22 = inlined_call_operand.hbm [shape: f32[1,32], index: 22, kind: input, shape index: {}]
  %s23 = inlined_call_operand.hbm [shape: f32[2,32], index: 23, kind: output, shape index: {}]
  %s24 = sld [smem:[#allocation0]]
  $region154: #{encoder_forward.1} parent=0
    _
  %s26 = ssub.s32 1, %s24
  %s27 = scalar_select 0, %s26, %s24
  $region1: #{encoder_forward.1} parent=0
    #allocation4 [shape = 'u8[8192]{0}', space=vmem, size = 0x2000, scoped, tag = 'input window, operand 1, single buffered']
    #allocation5 [shape = 's32[1]{0}', space=sflag, size = 0x4, scoped, tag = 'scoped memory for encoder_forward.1']
    #allocation6 [shape = 's32[1]{0}', space=sflag, size = 0x4, scoped, tag = 'scoped memory for encoder_forward.1']
    #allocation7 [shape = 'u8[512]{0}', space=vmem, size = 0x400, scoped, tag = 'input window, operand 2, single buffered']
    #allocation8 [shape = 's32[1]{0}', space=sflag, size = 0x4, scoped, tag = 'scoped memory for encoder_forward.1']
    #allocation9 [shape = 'u8[512]{0}', space=vmem, size = 0x400, scoped, tag = 'input window, operand 3, single buffered']
    #allocation10 [shape = 'u8[512]{0}', space=vmem, size = 0x400, scoped, tag = 'input window, operand 6, single buffered']
    #allocation11 [shape = 's32[1]{0}', space=sflag, size = 0x4, scoped, tag = 'scoped memory for encoder_forward.1']
    #allocation12 [shape = 'u8[512]{0}', space=vmem, size = 0x400, scoped, tag = 'input window, operand 7, single buffered']
    #allocation13 [shape = 'u8[512]{0}', space=vmem, size = 0x400, scoped, tag = 'input window, operand 10, single buffered']
    #allocation14 [shape = 's32[1]{0}', space=sflag, size = 0x4, scoped, tag = 'scoped memory for encoder_forward.1']
    #allocation15 [shape = 'u8[512]{0}', space=vmem, size = 0x400, scoped, tag = 'input window, operand 11, single buffered']
    #allocation16 [shape = 'u8[1024]{0}', space=vmem, size = 0x400, scoped, tag = 'input window, operand 14, single buffered']
    #allocation17 [shape = 's32[1]{0}', space=sflag, size = 0x4, scoped, tag = 'scoped memory for encoder_forward.1']
    #allocation18 [shape = 'u8[1024]{0}', space=vmem, size = 0x400, scoped, tag = 'input window, operand 16, single buffered']
    #allocation19 [shape = 'u8[1024]{0}', space=vmem, size = 0x400, scoped, tag = 'input window, operand 17, single buffered']
    #allocation20 [shape = 's32[1]{0}', space=sflag, size = 0x4, scoped, tag = 'scoped memory for encoder_forward.1']
    #allocation21 [shape = 'u8[512]{0}', space=vmem, size = 0x400, scoped, tag = 'input window, operand 19, single buffered']
    #allocation22 [shape = 'u8[512]{0}', space=vmem, size = 0x400, scoped, tag = 'input window, operand 20, single buffered']
    #allocation23 [shape = 's32[1]{0}', space=sflag, size = 0x4, scoped, tag = 'scoped memory for encoder_forward.1']
    #allocation24 [shape = 'u8[512]{0}', space=vmem, size = 0x400, scoped, tag = 'input window, operand 22, single buffered']
    #allocation25 [shape = 'u8[1024]{0}', space=vmem, size = 0x400, scoped, tag = 'output window, operand 0, single buffered']
    %28 = vsyncpa [#allocation5], 0
    %29 = vsyncpa [#allocation8], 0
    %30 = vsyncpa [#allocation11], 0
    %31 = vsyncpa [#allocation14], 0
    %32 = vsyncpa [#allocation17], 0
    %33 = vsyncpa [#allocation20], 0
    %34 = vsyncpa [#allocation23], 0
    %35 = vsyncpa [#allocation6], 0
    // Predicated region
    $region2: #{encoder_forward.1} parent=1 // pred_check
      _
    $region3: #{encoder_forward.1} parent=1 // pred_check_branch
      %37 = sbr.rel (0) target = $region5
    $region4: #{encoder_forward.1} parent=1 // pred_region
      _
    $region5: #{encoder_forward.1} parent=1 // pred_fallthru
      _
    // Predicated region
    $region6: #{encoder_forward.1} parent=1 // pred_check
      _
    $region7: #{encoder_forward.1} parent=1 // pred_check_branch
      %39 = sbr.rel (0) target = $region9
    $region8: #{encoder_forward.1} parent=1 // pred_region
      %s41 = ssub.s32 256, 256
      %42 = vsyncadd [#allocation5], %s41
      %s43 = sshll.u32 [#allocation4], 4
      %s44 = int_to_ptr.vmem [resolvable:$true] %s43
      %49 = dma.hbm_to_vmem [thread:$0]  %s1, 256, %s44, [#allocation5], 128, 128, 8
    $region9: #{encoder_forward.1} parent=1 // pred_fallthru
      _
    // Predicated region
    $region10: #{encoder_forward.1} parent=1 // pred_check
      _
    $region11: #{encoder_forward.1} parent=1 // pred_check_branch
      %51 = sbr.rel (0) target = $region13
    $region12: #{encoder_forward.1} parent=1 // pred_region
      %s53 = ssub.s32 16, 16
      %54 = vsyncadd [#allocation8], %s53
      %s56 = sshll.u32 [#allocation7], 4
      %s57 = int_to_ptr.vmem [resolvable:$true] %s56
      %59 = dma.hbm_to_vmem [thread:$0]  %s2, 16, %s57, [#allocation8]
    $region13: #{encoder_forward.1} parent=1 // pred_fallthru
      _
    // Predicated region
    $region14: #{encoder_forward.1} parent=1 // pred_check
      _
    $region15: #{encoder_forward.1} parent=1 // pred_check_branch
      %61 = sbr.rel (0) target = $region17
    $region16: #{encoder_forward.1} parent=1 // pred_region
      %s63 = ssub.s32 16, 16
      %64 = vsyncadd [#allocation8], %s63
      %s66 = sshll.u32 [#allocation9], 4
      %s67 = int_to_ptr.vmem [resolvable:$true] %s66
      %69 = dma.hbm_to_vmem [thread:$0]  %s3, 16, %s67, [#allocation8]
    $region17: #{encoder_forward.1} parent=1 // pred_fallthru
      _
    // Predicated region
    $region18: #{encoder_forward.1} parent=1 // pred_check
      _
    $region19: #{encoder_forward.1} parent=1 // pred_check_branch
      %71 = sbr.rel (0) target = $region21
    $region20: #{encoder_forward.1} parent=1 // pred_region
      _
    $region21: #{encoder_forward.1} parent=1 // pred_fallthru
      _
    // Predicated region
    $region22: #{encoder_forward.1} parent=1 // pred_check
      _
    $region23: #{encoder_forward.1} parent=1 // pred_check_branch
      %73 = sbr.rel (0) target = $region25
    $region24: #{encoder_forward.1} parent=1 // pred_region
      _
    $region25: #{encoder_forward.1} parent=1 // pred_fallthru
      _
    // Predicated region
    $region26: #{encoder_forward.1} parent=1 // pred_check
      _
    $region27: #{encoder_forward.1} parent=1 // pred_check_branch
      %75 = sbr.rel (0) target = $region29
    $region28: #{encoder_forward.1} parent=1 // pred_region
      %s77 = ssub.s32 16, 16
      %78 = vsyncadd [#allocation11], %s77
      %s80 = sshll.u32 [#allocation10], 4
      %s81 = int_to_ptr.vmem [resolvable:$true] %s80
      %83 = dma.hbm_to_vmem [thread:$0]  %s6, 16, %s81, [#allocation11]
    $region29: #{encoder_forward.1} parent=1 // pred_fallthru
      _
    // Predicated region
    $region30: #{encoder_forward.1} parent=1 // pred_check
      _
    $region31: #{encoder_forward.1} parent=1 // pred_check_branch
      %85 = sbr.rel (0) target = $region33
    $region32: #{encoder_forward.1} parent=1 // pred_region
      %s87 = ssub.s32 16, 16
      %88 = vsyncadd [#allocation11], %s87
      %s90 = sshll.u32 [#allocation12], 4
      %s91 = int_to_ptr.vmem [resolvable:$true] %s90
      %93 = dma.hbm_to_vmem [thread:$0]  %s7, 16, %s91, [#allocation11]
    $region33: #{encoder_forward.1} parent=1 // pred_fallthru
      _
    // Predicated region
    $region34: #{encoder_forward.1} parent=1 // pred_check
      _
    $region35: #{encoder_forward.1} parent=1 // pred_check_branch
      %95 = sbr.rel (0) target = $region37
    $region36: #{encoder_forward.1} parent=1 // pred_region
      _
    $region37: #{encoder_forward.1} parent=1 // pred_fallthru
      _
    // Predicated region
    $region38: #{encoder_forward.1} parent=1 // pred_check
      _
    $region39: #{encoder_forward.1} parent=1 // pred_check_branch
      %97 = sbr.rel (0) target = $region41
    $region40: #{encoder_forward.1} parent=1 // pred_region
      _
    $region41: #{encoder_forward.1} parent=1 // pred_fallthru
      _
    // Predicated region
    $region42: #{encoder_forward.1} parent=1 // pred_check
      _
    $region43: #{encoder_forward.1} parent=1 // pred_check_branch
      %99 = sbr.rel (0) target = $region45
    $region44: #{encoder_forward.1} parent=1 // pred_region
      %s101 = ssub.s32 16, 16
      %102 = vsyncadd [#allocation14], %s101
      %s104 = sshll.u32 [#allocation13], 4
      %s105 = int_to_ptr.vmem [resolvable:$true] %s104
      %107 = dma.hbm_to_vmem [thread:$0]  %s10, 16, %s105, [#allocation14]
    $region45: #{encoder_forward.1} parent=1 // pred_fallthru
      _
    // Predicated region
    $region46: #{encoder_forward.1} parent=1 // pred_check
      _
    $region47: #{encoder_forward.1} parent=1 // pred_check_branch
      %109 = sbr.rel (0) target = $region49
    $region48: #{encoder_forward.1} parent=1 // pred_region
      %s111 = ssub.s32 16, 16
      %112 = vsyncadd [#allocation14], %s111
      %s114 = sshll.u32 [#allocation15], 4
      %s115 = int_to_ptr.vmem [resolvable:$true] %s114
      %117 = dma.hbm_to_vmem [thread:$0]  %s11, 16, %s115, [#allocation14]
    $region49: #{encoder_forward.1} parent=1 // pred_fallthru
      _
    // Predicated region
    $region50: #{encoder_forward.1} parent=1 // pred_check
      _
    $region51: #{encoder_forward.1} parent=1 // pred_check_branch
      %119 = sbr.rel (0) target = $region53
    $region52: #{encoder_forward.1} parent=1 // pred_region
      _
    $region53: #{encoder_forward.1} parent=1 // pred_fallthru
      _
    // Predicated region
    $region54: #{encoder_forward.1} parent=1 // pred_check
      _
    $region55: #{encoder_forward.1} parent=1 // pred_check_branch
      %121 = sbr.rel (0) target = $region57
    $region56: #{encoder_forward.1} parent=1 // pred_region
      _
    $region57: #{encoder_forward.1} parent=1 // pred_fallthru
      _
    // Predicated region
    $region58: #{encoder_forward.1} parent=1 // pred_check
      _
    $region59: #{encoder_forward.1} parent=1 // pred_check_branch
      %123 = sbr.rel (0) target = $region61
    $region60: #{encoder_forward.1} parent=1 // pred_region
      %s125 = ssub.s32 32, 32
      %126 = vsyncadd [#allocation17], %s125
      %s128 = sshll.u32 [#allocation16], 4
      %s129 = int_to_ptr.vmem [resolvable:$true] %s128
      %131 = dma.hbm_to_vmem [thread:$0]  %s14, 32, %s129, [#allocation17]
    $region61: #{encoder_forward.1} parent=1 // pred_fallthru
      _
    // Predicated region
    $region62: #{encoder_forward.1} parent=1 // pred_check
      _
    $region63: #{encoder_forward.1} parent=1 // pred_check_branch
      %133 = sbr.rel (0) target = $region65
    $region64: #{encoder_forward.1} parent=1 // pred_region
      _
    $region65: #{encoder_forward.1} parent=1 // pred_fallthru
      _
    // Predicated region
    $region66: #{encoder_forward.1} parent=1 // pred_check
      _
    $region67: #{encoder_forward.1} parent=1 // pred_check_branch
      %135 = sbr.rel (0) target = $region69
    $region68: #{encoder_forward.1} parent=1 // pred_region
      %s137 = ssub.s32 32, 32
      %138 = vsyncadd [#allocation17], %s137
      %s140 = sshll.u32 [#allocation18], 4
      %s141 = int_to_ptr.vmem [resolvable:$true] %s140
      %143 = dma.hbm_to_vmem [thread:$0]  %s16, 32, %s141, [#allocation17]
    $region69: #{encoder_forward.1} parent=1 // pred_fallthru
      _
    // Predicated region
    $region70: #{encoder_forward.1} parent=1 // pred_check
      _
    $region71: #{encoder_forward.1} parent=1 // pred_check_branch
      %145 = sbr.rel (0) target = $region73
    $region72: #{encoder_forward.1} parent=1 // pred_region
      %s147 = ssub.s32 32, 32
      %148 = vsyncadd [#allocation20], %s147
      %s150 = sshll.u32 [#allocation19], 4
      %s151 = int_to_ptr.vmem [resolvable:$true] %s150
      %153 = dma.hbm_to_vmem [thread:$0]  %s17, 32, %s151, [#allocation20]
    $region73: #{encoder_forward.1} parent=1 // pred_fallthru
      _
    // Predicated region
    $region74: #{encoder_forward.1} parent=1 // pred_check
      _
    $region75: #{encoder_forward.1} parent=1 // pred_check_branch
      %155 = sbr.rel (0) target = $region77
    $region76: #{encoder_forward.1} parent=1 // pred_region
      _
    $region77: #{encoder_forward.1} parent=1 // pred_fallthru
      _
    // Predicated region
    $region78: #{encoder_forward.1} parent=1 // pred_check
      _
    $region79: #{encoder_forward.1} parent=1 // pred_check_branch
      %157 = sbr.rel (0) target = $region81
    $region80: #{encoder_forward.1} parent=1 // pred_region
      %s159 = ssub.s32 16, 16
      %160 = vsyncadd [#allocation20], %s159
      %s162 = sshll.u32 [#allocation21], 4
      %s163 = int_to_ptr.vmem [resolvable:$true] %s162
      %165 = dma.hbm_to_vmem [thread:$0]  %s19, 16, %s163, [#allocation20]
    $region81: #{encoder_forward.1} parent=1 // pred_fallthru
      _
    // Predicated region
    $region82: #{encoder_forward.1} parent=1 // pred_check
      _
    $region83: #{encoder_forward.1} parent=1 // pred_check_branch
      %167 = sbr.rel (0) target = $region85
    $region84: #{encoder_forward.1} parent=1 // pred_region
      %s169 = ssub.s32 16, 16
      %170 = vsyncadd [#allocation23], %s169
      %s172 = sshll.u32 [#allocation22], 4
      %s173 = int_to_ptr.vmem [resolvable:$true] %s172
      %175 = dma.hbm_to_vmem [thread:$0]  %s20, 16, %s173, [#allocation23]
    $region85: #{encoder_forward.1} parent=1 // pred_fallthru
      _
    // Predicated region
    $region86: #{encoder_forward.1} parent=1 // pred_check
      _
    $region87: #{encoder_forward.1} parent=1 // pred_check_branch
      %177 = sbr.rel (0) target = $region89
    $region88: #{encoder_forward.1} parent=1 // pred_region
      _
    $region89: #{encoder_forward.1} parent=1 // pred_fallthru
      _
    // Predicated region
    $region90: #{encoder_forward.1} parent=1 // pred_check
      _
    $region91: #{encoder_forward.1} parent=1 // pred_check_branch
      %179 = sbr.rel (0) target = $region93
    $region92: #{encoder_forward.1} parent=1 // pred_region
      %s181 = ssub.s32 16, 16
      %182 = vsyncadd [#allocation23], %s181
      %s184 = sshll.u32 [#allocation24], 4
      %s185 = int_to_ptr.vmem [resolvable:$true] %s184
      %187 = dma.hbm_to_vmem [thread:$0]  %s22, 16, %s185, [#allocation23]
    $region93: #{encoder_forward.1} parent=1 // pred_fallthru
      _
    // Predicated region
    $region94: #{encoder_forward.1} parent=1 // pred_check
      _
    $region95: #{encoder_forward.1} parent=1 // pred_check_branch
      %189 = sbr.rel (0) target = $region97
    $region96: #{encoder_forward.1} parent=1 // pred_region
      %190 = dma.done [#allocation5], 256
    $region97: #{encoder_forward.1} parent=1 // pred_fallthru
      _
    // Predicated region
    $region98: #{encoder_forward.1} parent=1 // pred_check
      _
    $region99: #{encoder_forward.1} parent=1 // pred_check_branch
      %192 = sbr.rel (0) target = $region101
    $region100: #{encoder_forward.1} parent=1 // pred_region
      %193 = dma.done [#allocation8], 16
    $region101: #{encoder_forward.1} parent=1 // pred_fallthru
      _
    // Predicated region
    $region102: #{encoder_forward.1} parent=1 // pred_check
      _
    $region103: #{encoder_forward.1} parent=1 // pred_check_branch
      %195 = sbr.rel (0) target = $region105
    $region104: #{encoder_forward.1} parent=1 // pred_region
      %196 = dma.done [#allocation8], 16
    $region105: #{encoder_forward.1} parent=1 // pred_fallthru
      _
    // Predicated region
    $region106: #{encoder_forward.1} parent=1 // pred_check
      _
    $region107: #{encoder_forward.1} parent=1 // pred_check_branch
      %198 = sbr.rel (0) target = $region109
    $region108: #{encoder_forward.1} parent=1 // pred_region
      %199 = dma.done [#allocation11], 16
    $region109: #{encoder_forward.1} parent=1 // pred_fallthru
      _
    // Predicated region
    $region110: #{encoder_forward.1} parent=1 // pred_check
      _
    $region111: #{encoder_forward.1} parent=1 // pred_check_branch
      %201 = sbr.rel (0) target = $region113
    $region112: #{encoder_forward.1} parent=1 // pred_region
      %202 = dma.done [#allocation11], 16
    $region113: #{encoder_forward.1} parent=1 // pred_fallthru
      _
    // Predicated region
    $region114: #{encoder_forward.1} parent=1 // pred_check
      _
    $region115: #{encoder_forward.1} parent=1 // pred_check_branch
      %204 = sbr.rel (0) target = $region117
    $region116: #{encoder_forward.1} parent=1 // pred_region
      %205 = dma.done [#allocation14], 16
    $region117: #{encoder_forward.1} parent=1 // pred_fallthru
      _
    // Predicated region
    $region118: #{encoder_forward.1} parent=1 // pred_check
      _
    $region119: #{encoder_forward.1} parent=1 // pred_check_branch
      %207 = sbr.rel (0) target = $region121
    $region120: #{encoder_forward.1} parent=1 // pred_region
      %208 = dma.done [#allocation14], 16
    $region121: #{encoder_forward.1} parent=1 // pred_fallthru
      _
    // Predicated region
    $region122: #{encoder_forward.1} parent=1 // pred_check
      _
    $region123: #{encoder_forward.1} parent=1 // pred_check_branch
      %210 = sbr.rel (0) target = $region125
    $region124: #{encoder_forward.1} parent=1 // pred_region
      %211 = dma.done [#allocation17], 32
    $region125: #{encoder_forward.1} parent=1 // pred_fallthru
      _
    // Predicated region
    $region126: #{encoder_forward.1} parent=1 // pred_check
      _
    $region127: #{encoder_forward.1} parent=1 // pred_check_branch
      %213 = sbr.rel (0) target = $region129
    $region128: #{encoder_forward.1} parent=1 // pred_region
      %214 = dma.done [#allocation17], 32
    $region129: #{encoder_forward.1} parent=1 // pred_fallthru
      _
    // Predicated region
    $region130: #{encoder_forward.1} parent=1 // pred_check
      _
    $region131: #{encoder_forward.1} parent=1 // pred_check_branch
      %216 = sbr.rel (0) target = $region133
    $region132: #{encoder_forward.1} parent=1 // pred_region
      %217 = dma.done [#allocation20], 32
    $region133: #{encoder_forward.1} parent=1 // pred_fallthru
      _
    // Predicated region
    $region134: #{encoder_forward.1} parent=1 // pred_check
      _
    $region135: #{encoder_forward.1} parent=1 // pred_check_branch
      %219 = sbr.rel (0) target = $region137
    $region136: #{encoder_forward.1} parent=1 // pred_region
      %220 = dma.done [#allocation20], 16
    $region137: #{encoder_forward.1} parent=1 // pred_fallthru
      _
    // Predicated region
    $region138: #{encoder_forward.1} parent=1 // pred_check
      _
    $region139: #{encoder_forward.1} parent=1 // pred_check_branch
      %222 = sbr.rel (0) target = $region141
    $region140: #{encoder_forward.1} parent=1 // pred_region
      %223 = dma.done [#allocation23], 16
    $region141: #{encoder_forward.1} parent=1 // pred_fallthru
      _
    // Predicated region
    $region142: #{encoder_forward.1} parent=1 // pred_check
      _
    $region143: #{encoder_forward.1} parent=1 // pred_check_branch
      %225 = sbr.rel (0) target = $region145
    $region144: #{encoder_forward.1} parent=1 // pred_region
      %226 = dma.done [#allocation23], 16
    $region145: #{encoder_forward.1} parent=1 // pred_fallthru
      _
    %v227 = vld [vmem:[%s0] sm:$0xff]
    %v228 = vld [vmem:[%s0 + $0x8] sm:$0xff]
    %v229 = vld [vmem:[%s0 + $0x10] sm:$0xff]
    %v230 = vld [vmem:[%s0 + $0x18] sm:$0xff]
    %v231 = vld [vmem:[%s0 + $0x20] sm:$0xff]
    %v232 = vld [vmem:[%s0 + $0x28] sm:$0xff]
    %v233 = vld [vmem:[%s0 + $0x30] sm:$0xff]
    %v234 = vld [vmem:[%s0 + $0x38] sm:$0xff]
    %v235 = vld [vmem:[%s0 + $0x40] sm:$0xff]
    %v236 = vld [vmem:[%s0 + $0x48] sm:$0xff]
    %v237 = vld [vmem:[%s0 + $0x50] sm:$0xff]
    %v238 = vld [vmem:[%s0 + $0x58] sm:$0xff]
    %v239 = vld [vmem:[%s0 + $0x60] sm:$0xff]
    %v240 = vld [vmem:[%s0 + $0x68] sm:$0xff]
    %v241 = vld [vmem:[%s0 + $0x70] sm:$0xff]
    %v242 = vld [vmem:[%s0 + $0x78] sm:$0xff]
    %v243 = vld [vmem:[%s0 + $0x80] sm:$0xff]
    %v244 = vld [vmem:[%s0 + $0x88] sm:$0xff]
    %v245 = vld [vmem:[%s0 + $0x90] sm:$0xff]
    %v246 = vld [vmem:[%s0 + $0x98] sm:$0xff]
    %v247 = vld [vmem:[%s0 + $0xa0] sm:$0xff]
    %v248 = vld [vmem:[%s0 + $0xa8] sm:$0xff]
    %v249 = vld [vmem:[%s0 + $0xb0] sm:$0xff]
    %v250 = vld [vmem:[%s0 + $0xb8] sm:$0xff]
    %v251 = vld [vmem:[%s0 + $0xc0] sm:$0xff]
    %v252 = vld [vmem:[%s0 + $0xc8] sm:$0xff]
    %v253 = vld [vmem:[%s0 + $0xd0] sm:$0xff]
    %v254 = vld [vmem:[%s0 + $0xd8] sm:$0xff]
    %v255 = vld [vmem:[%s0 + $0xe0] sm:$0xff]
    %v256 = vld [vmem:[%s0 + $0xe8] sm:$0xff]
    %v257 = vld [vmem:[%s0 + $0xf0] sm:$0xff]
    %v258 = vld [vmem:[%s0 + $0xf8] sm:$0xff]
    %v259 = vld [vmem:[%s0 + $0x100] sm:$0xff]
    %v260 = vld [vmem:[%s0 + $0x108] sm:$0xff]
    %v261 = vld [vmem:[%s0 + $0x110] sm:$0xff]
    %v262 = vld [vmem:[%s0 + $0x118] sm:$0xff]
    %v263 = vld [vmem:[%s0 + $0x120] sm:$0xff]
    %v264 = vld [vmem:[%s0 + $0x128] sm:$0xff]
    %v265 = vld [vmem:[%s0 + $0x130] sm:$0xff]
    %v266 = vld [vmem:[%s0 + $0x138] sm:$0xff]
    %v267 = vld [vmem:[%s0 + $0x140] sm:$0xff]
    %v268 = vld [vmem:[%s0 + $0x148] sm:$0xff]
    %v269 = vld [vmem:[%s0 + $0x150] sm:$0xff]
    %v270 = vld [vmem:[%s0 + $0x158] sm:$0xff]
    %v271 = vld [vmem:[%s0 + $0x160] sm:$0xff]
    %v272 = vld [vmem:[%s0 + $0x168] sm:$0xff]
    %v273 = vld [vmem:[%s0 + $0x170] sm:$0xff]
    %v274 = vld [vmem:[%s0 + $0x178] sm:$0xff]
    %v275 = vld [vmem:[%s0 + $0x180] sm:$0xff]
    %v276 = vld [vmem:[%s0 + $0x188] sm:$0xff]
    %v277 = vld [vmem:[%s0 + $0x190] sm:$0xff]
    %v278 = vld [vmem:[%s0 + $0x198] sm:$0xff]
    %v279 = vld [vmem:[%s0 + $0x1a0] sm:$0xff]
    %v280 = vld [vmem:[%s0 + $0x1a8] sm:$0xff]
    %v281 = vld [vmem:[%s0 + $0x1b0] sm:$0xff]
    %v282 = vld [vmem:[%s0 + $0x1b8] sm:$0xff]
    %v283 = vld [vmem:[%s0 + $0x1c0] sm:$0xff]
    %v284 = vld [vmem:[%s0 + $0x1c8] sm:$0xff]
    %v285 = vld [vmem:[%s0 + $0x1d0] sm:$0xff]
    %v286 = vld [vmem:[%s0 + $0x1d8] sm:$0xff]
    %v287 = vld [vmem:[%s0 + $0x1e0] sm:$0xff]
    %v288 = vld [vmem:[%s0 + $0x1e8] sm:$0xff]
    %v289 = vld [vmem:[%s0 + $0x1f0] sm:$0xff]
    %v290 = vld [vmem:[%s0 + $0x1f8] sm:$0xff]
    %v291 = vld [vmem:[#allocation4] sm:$0xff]
    %v292 = vld [vmem:[#allocation4 + $0x8] sm:$0x1]
    %vm293 = vcmask 72704
    %v295 = vsel %vm293, %v227, 0
    %v298 = vsel %vm293, %v228, 0
    %v301 = vsel %vm293, %v229, 0
    %v304 = vsel %vm293, %v230, 0
    %v307 = vsel %vm293, %v231, 0
    %v310 = vsel %vm293, %v232, 0
    %v313 = vsel %vm293, %v233, 0
    %v316 = vsel %vm293, %v234, 0
    %v319 = vsel %vm293, %v235, 0
    %v322 = vsel %vm293, %v236, 0
    %v325 = vsel %vm293, %v237, 0
    %v328 = vsel %vm293, %v238, 0
    %v331 = vsel %vm293, %v239, 0
    %v334 = vsel %vm293, %v240, 0
    %v337 = vsel %vm293, %v241, 0
    %v340 = vsel %vm293, %v242, 0
    %v343 = vsel %vm293, %v243, 0
    %v346 = vsel %vm293, %v244, 0
    %v349 = vsel %vm293, %v245, 0
    %v352 = vsel %vm293, %v246, 0
    %v355 = vsel %vm293, %v247, 0
    %v358 = vsel %vm293, %v248, 0
    %v361 = vsel %vm293, %v249, 0
    %v364 = vsel %vm293, %v250, 0
    %v367 = vsel %vm293, %v251, 0
    %v370 = vsel %vm293, %v252, 0
    %v373 = vsel %vm293, %v253, 0
    %v376 = vsel %vm293, %v254, 0
    %v379 = vsel %vm293, %v255, 0
    %v382 = vsel %vm293, %v256, 0
    %v385 = vsel %vm293, %v257, 0
    %v388 = vsel %vm293, %v258, 0
    %v391 = vsel %vm293, %v259, 0
    %v394 = vsel %vm293, %v260, 0
    %v397 = vsel %vm293, %v261, 0
    %v400 = vsel %vm293, %v262, 0
    %v403 = vsel %vm293, %v263, 0
    %v406 = vsel %vm293, %v264, 0
    %v409 = vsel %vm293, %v265, 0
    %v412 = vsel %vm293, %v266, 0
    %v415 = vsel %vm293, %v267, 0
    %v418 = vsel %vm293, %v268, 0
    %v421 = vsel %vm293, %v269, 0
    %v424 = vsel %vm293, %v270, 0
    %v427 = vsel %vm293, %v271, 0
    %v430 = vsel %vm293, %v272, 0
    %v433 = vsel %vm293, %v273, 0
    %v436 = vsel %vm293, %v274, 0
    %v439 = vsel %vm293, %v275, 0
    %v442 = vsel %vm293, %v276, 0
    %v445 = vsel %vm293, %v277, 0
    %v448 = vsel %vm293, %v278, 0
    %v451 = vsel %vm293, %v279, 0
    %v454 = vsel %vm293, %v280, 0
    %v457 = vsel %vm293, %v281, 0
    %v460 = vsel %vm293, %v282, 0
    %v463 = vsel %vm293, %v283, 0
    %v466 = vsel %vm293, %v284, 0
    %v469 = vsel %vm293, %v285, 0
    %v472 = vsel %vm293, %v286, 0
    %v475 = vsel %vm293, %v287, 0
    %v478 = vsel %vm293, %v288, 0
    %v481 = vsel %vm293, %v289, 0
    %v484 = vsel %vm293, %v290, 0
    %vm486 = vcmask 1040384
    %v488 = vsel %vm486, %v292, 0
    %490 = vmatprep.subr.mxu0 0.0
    %491 = vmatpush1.msra.mxu0 %v291
    %492 = vmatprep.subr.mxu0 0.0
    %493 = vmatpush1.msra.mxu0 %v488
    %494 = vmatprep.subr.mxu0 0.0
    %495 = vmatpush1.msra.mxu0 0.0
    %496 = vmatprep.subr.mxu0 0.0
    %497 = vmatpush1.msra.mxu0 0.0
    %498 = vmatprep.subr.mxu0 0.0
    %499 = vmatpush1.msra.mxu0 0.0
    %500 = vmatprep.subr.mxu0 0.0
    %501 = vmatpush1.msra.mxu0 0.0
    %502 = vmatprep.subr.mxu0 0.0
    %503 = vmatpush1.msra.mxu0 0.0
    %504 = vmatprep.subr.mxu0 0.0
    %505 = vmatpush1.msra.mxu0 0.0
    %506 = vmatprep.subr.mxu0 0.0
    %507 = vmatpush1.msra.mxu0 0.0
    %508 = vmatprep.subr.mxu0 0.0
    %509 = vmatpush1.msra.mxu0 0.0
    %510 = vmatprep.subr.mxu0 0.0
    %511 = vmatpush1.msra.mxu0 0.0
    %512 = vmatprep.subr.mxu0 0.0
    %513 = vmatpush1.msra.mxu0 0.0
    %514 = vmatprep.subr.mxu0 0.0
    %515 = vmatpush1.msra.mxu0 0.0
    %516 = vmatprep.subr.mxu0 0.0
    %517 = vmatpush1.msra.mxu0 0.0
    %518 = vmatprep.subr.mxu0 0.0
    %519 = vmatpush1.msra.mxu0 0.0
    %520 = vmatprep.subr.mxu0 0.0
    %521 = vmatpush1.msra.mxu0 0.0
    %522 = vmatprep.subr.mxu0 0.0
    %523 = vmatpush1.msra.mxu0 0.0
    %524 = vmatprep.subr.mxu0 0.0
    %525 = vmatpush1.msra.mxu0 0.0
    %526 = vmatprep.subr.mxu0 0.0
    %527 = vmatpush1.msra.mxu0 0.0
    %528 = vmatprep.subr.mxu0 0.0
    %529 = vmatpush1.msra.mxu0 0.0
    %530 = vmatprep.subr.mxu0 0.0
    %531 = vmatpush1.msra.mxu0 0.0
    %532 = vmatprep.subr.mxu0 0.0
    %533 = vmatpush1.msra.mxu0 0.0
    %534 = vmatprep.subr.mxu0 0.0
    %535 = vmatpush1.msra.mxu0 0.0
    %536 = vmatprep.subr.mxu0 0.0
    %537 = vmatpush1.msra.mxu0 0.0
    %538 = vmatprep.subr.mxu0 0.0
    %539 = vmatpush1.msra.mxu0 0.0
    %540 = vmatprep.subr.mxu0 0.0
    %541 = vmatpush1.msra.mxu0 0.0
    %542 = vmatprep.subr.mxu0 0.0
    %543 = vmatpush1.msra.mxu0 0.0
    %544 = vmatprep.subr.mxu0 0.0
    %545 = vmatpush1.msra.mxu0 0.0
    %546 = vmatprep.subr.mxu0 0.0
    %547 = vmatpush1.msra.mxu0 0.0
    %548 = vmatprep.subr.mxu0 0.0
    %549 = vmatpush1.msra.mxu0 0.0
    %550 = vmatprep.subr.mxu0 0.0
    %551 = vmatpush1.msra.mxu0 0.0
    %552 = vmatprep.subr.mxu0 0.0
    %553 = vmatpush1.msra.mxu0 0.0
    %554 = vmatprep.mubr.f32.mxu0 0.0
    %555 = vmatmul.mubr.f32.gmra.mrb[0].mxu0 %v295
    %v556 = vpop.f32.mrb[0].mxu0
    %v557 = vadd.f32 0.0, %v556
    %v558 = vpop.f32.mrb[0].mxu0
    %559 = vmatprep.mubr.f32.mxu0 0.0
    %560 = vmatmul.mubr.f32.gmra.mrb[0].mxu0 %v298
    %v561 = vpop.f32.mrb[0].mxu0
    %v562 = vadd.f32 0.0, %v561
    %v563 = vpop.f32.mrb[0].mxu0
    %564 = vmatprep.mubr.f32.mxu0 0.0
    %565 = vmatmul.mubr.f32.gmra.mrb[0].mxu0 %v301
    %v566 = vpop.f32.mrb[0].mxu0
    %v567 = vadd.f32 0.0, %v566
    %v568 = vpop.f32.mrb[0].mxu0
    %569 = vmatprep.mubr.f32.mxu0 0.0
    %570 = vmatmul.mubr.f32.gmra.mrb[0].mxu0 %v304
    %v571 = vpop.f32.mrb[0].mxu0
    %v572 = vadd.f32 0.0, %v571
    %v573 = vpop.f32.mrb[0].mxu0
    %574 = vmatprep.mubr.f32.mxu0 0.0
    %575 = vmatmul.mubr.f32.gmra.mrb[0].mxu0 %v307
    %v576 = vpop.f32.mrb[0].mxu0
    %v577 = vadd.f32 0.0, %v576
    %v578 = vpop.f32.mrb[0].mxu0
    %579 = vmatprep.mubr.f32.mxu0 0.0
    %580 = vmatmul.mubr.f32.gmra.mrb[0].mxu0 %v310
    %v581 = vpop.f32.mrb[0].mxu0
    %v582 = vadd.f32 0.0, %v581
    %v583 = vpop.f32.mrb[0].mxu0
    %584 = vmatprep.mubr.f32.mxu0 0.0
    %585 = vmatmul.mubr.f32.gmra.mrb[0].mxu0 %v313
    %v586 = vpop.f32.mrb[0].mxu0
    %v587 = vadd.f32 0.0, %v586
    %v588 = vpop.f32.mrb[0].mxu0
    %589 = vmatprep.mubr.f32.mxu0 0.0
    %590 = vmatmul.mubr.f32.gmra.mrb[0].mxu0 %v316
    %v591 = vpop.f32.mrb[0].mxu0
    %v592 = vadd.f32 0.0, %v591
    %v593 = vpop.f32.mrb[0].mxu0
    %594 = vmatprep.mubr.f32.mxu0 0.0
    %595 = vmatmul.mubr.f32.gmra.mrb[0].mxu0 %v319
    %v596 = vpop.f32.mrb[0].mxu0
    %v597 = vadd.f32 0.0, %v596
    %v598 = vpop.f32.mrb[0].mxu0
    %599 = vmatprep.mubr.f32.mxu0 0.0
    %600 = vmatmul.mubr.f32.gmra.mrb[0].mxu0 %v322
    %v601 = vpop.f32.mrb[0].mxu0
    %v602 = vadd.f32 0.0, %v601
    %v603 = vpop.f32.mrb[0].mxu0
    %604 = vmatprep.mubr.f32.mxu0 0.0
    %605 = vmatmul.mubr.f32.gmra.mrb[0].mxu0 %v325
    %v606 = vpop.f32.mrb[0].mxu0
    %v607 = vadd.f32 0.0, %v606
    %v608 = vpop.f32.mrb[0].mxu0
    %609 = vmatprep.mubr.f32.mxu0 0.0
    %610 = vmatmul.mubr.f32.gmra.mrb[0].mxu0 %v328
    %v611 = vpop.f32.mrb[0].mxu0
    %v612 = vadd.f32 0.0, %v611
    %v613 = vpop.f32.mrb[0].mxu0
    %614 = vmatprep.mubr.f32.mxu0 0.0
    %615 = vmatmul.mubr.f32.gmra.mrb[0].mxu0 %v331
    %v616 = vpop.f32.mrb[0].mxu0
    %v617 = vadd.f32 0.0, %v616
    %v618 = vpop.f32.mrb[0].mxu0
    %619 = vmatprep.mubr.f32.mxu0 0.0
    %620 = vmatmul.mubr.f32.gmra.mrb[0].mxu0 %v334
    %v621 = vpop.f32.mrb[0].mxu0
    %v622 = vadd.f32 0.0, %v621
    %v623 = vpop.f32.mrb[0].mxu0
    %624 = vmatprep.mubr.f32.mxu0 0.0
    %625 = vmatmul.mubr.f32.gmra.mrb[0].mxu0 %v337
    %v626 = vpop.f32.mrb[0].mxu0
    %v627 = vadd.f32 0.0, %v626
    %v628 = vpop.f32.mrb[0].mxu0
    %629 = vmatprep.mubr.f32.mxu0 0.0
    %630 = vmatmul.mubr.f32.gmra.mrb[0].mxu0 %v340
    %v631 = vpop.f32.mrb[0].mxu0
    %v632 = vadd.f32 0.0, %v631
    %v633 = vpop.f32.mrb[0].mxu0
    %634 = vmatprep.mubr.f32.mxu0 0.0
    %635 = vmatmul.mubr.f32.gmra.mrb[0].mxu0 %v343
    %v636 = vpop.f32.mrb[0].mxu0
    %v637 = vadd.f32 0.0, %v636
    %v638 = vpop.f32.mrb[0].mxu0
    %639 = vmatprep.mubr.f32.mxu0 0.0
    %640 = vmatmul.mubr.f32.gmra.mrb[0].mxu0 %v346
    %v641 = vpop.f32.mrb[0].mxu0
    %v642 = vadd.f32 0.0, %v641
    %v643 = vpop.f32.mrb[0].mxu0
    %644 = vmatprep.mubr.f32.mxu0 0.0
    %645 = vmatmul.mubr.f32.gmra.mrb[0].mxu0 %v349
    %v646 = vpop.f32.mrb[0].mxu0
    %v647 = vadd.f32 0.0, %v646
    %v648 = vpop.f32.mrb[0].mxu0
    %649 = vmatprep.mubr.f32.mxu0 0.0
    %650 = vmatmul.mubr.f32.gmra.mrb[0].mxu0 %v352
    %v651 = vpop.f32.mrb[0].mxu0
    %v652 = vadd.f32 0.0, %v651
    %v653 = vpop.f32.mrb[0].mxu0
    %654 = vmatprep.mubr.f32.mxu0 0.0
    %655 = vmatmul.mubr.f32.gmra.mrb[0].mxu0 %v355
    %v656 = vpop.f32.mrb[0].mxu0
    %v657 = vadd.f32 0.0, %v656
    %v658 = vpop.f32.mrb[0].mxu0
    %659 = vmatprep.mubr.f32.mxu0 0.0
    %660 = vmatmul.mubr.f32.gmra.mrb[0].mxu0 %v358
    %v661 = vpop.f32.mrb[0].mxu0
    %v662 = vadd.f32 0.0, %v661
    %v663 = vpop.f32.mrb[0].mxu0
    %664 = vmatprep.mubr.f32.mxu0 0.0
    %665 = vmatmul.mubr.f32.gmra.mrb[0].mxu0 %v361
    %v666 = vpop.f32.mrb[0].mxu0
    %v667 = vadd.f32 0.0, %v666
    %v668 = vpop.f32.mrb[0].mxu0
    %669 = vmatprep.mubr.f32.mxu0 0.0
    %670 = vmatmul.mubr.f32.gmra.mrb[0].mxu0 %v364
    %v671 = vpop.f32.mrb[0].mxu0
    %v672 = vadd.f32 0.0, %v671
    %v673 = vpop.f32.mrb[0].mxu0
    %674 = vmatprep.mubr.f32.mxu0 0.0
    %675 = vmatmul.mubr.f32.gmra.mrb[0].mxu0 %v367
    %v676 = vpop.f32.mrb[0].mxu0
    %v677 = vadd.f32 0.0, %v676
    %v678 = vpop.f32.mrb[0].mxu0
    %679 = vmatprep.mubr.f32.mxu0 0.0
    %680 = vmatmul.mubr.f32.gmra.mrb[0].mxu0 %v370
    %v681 = vpop.f32.mrb[0].mxu0
    %v682 = vadd.f32 0.0, %v681
    %v683 = vpop.f32.mrb[0].mxu0
    %684 = vmatprep.mubr.f32.mxu0 0.0
    %685 = vmatmul.mubr.f32.gmra.mrb[0].mxu0 %v373
    %v686 = vpop.f32.mrb[0].mxu0
    %v687 = vadd.f32 0.0, %v686
    %v688 = vpop.f32.mrb[0].mxu0
    %689 = vmatprep.mubr.f32.mxu0 0.0
    %690 = vmatmul.mubr.f32.gmra.mrb[0].mxu0 %v376
    %v691 = vpop.f32.mrb[0].mxu0
    %v692 = vadd.f32 0.0, %v691
    %v693 = vpop.f32.mrb[0].mxu0
    %694 = vmatprep.mubr.f32.mxu0 0.0
    %695 = vmatmul.mubr.f32.gmra.mrb[0].mxu0 %v379
    %v696 = vpop.f32.mrb[0].mxu0
    %v697 = vadd.f32 0.0, %v696
    %v698 = vpop.f32.mrb[0].mxu0
    %699 = vmatprep.mubr.f32.mxu0 0.0
    %700 = vmatmul.mubr.f32.gmra.mrb[0].mxu0 %v382
    %v701 = vpop.f32.mrb[0].mxu0
    %v702 = vadd.f32 0.0, %v701
    %v703 = vpop.f32.mrb[0].mxu0
    %704 = vmatprep.mubr.f32.mxu0 0.0
    %705 = vmatmul.mubr.f32.gmra.mrb[0].mxu0 %v385
    %v706 = vpop.f32.mrb[0].mxu0
    %v707 = vadd.f32 0.0, %v706
    %v708 = vpop.f32.mrb[0].mxu0
    %709 = vmatprep.mubr.f32.mxu0 0.0
    %710 = vmatmul.mubr.f32.gmra.mrb[0].mxu0 %v388
    %v711 = vpop.f32.mrb[0].mxu0
    %v712 = vadd.f32 0.0, %v711
    %v713 = vpop.f32.mrb[0].mxu0
    %714 = vmatprep.mubr.f32.mxu0 0.0
    %715 = vmatmul.mubr.f32.gmra.mrb[0].mxu0 %v391
    %v716 = vpop.f32.mrb[0].mxu0
    %v717 = vadd.f32 0.0, %v716
    %v718 = vpop.f32.mrb[0].mxu0
    %719 = vmatprep.mubr.f32.mxu0 0.0
    %720 = vmatmul.mubr.f32.gmra.mrb[0].mxu0 %v394
    %v721 = vpop.f32.mrb[0].mxu0
    %v722 = vadd.f32 0.0, %v721
    %v723 = vpop.f32.mrb[0].mxu0
    %724 = vmatprep.mubr.f32.mxu0 0.0
    %725 = vmatmul.mubr.f32.gmra.mrb[0].mxu0 %v397
    %v726 = vpop.f32.mrb[0].mxu0
    %v727 = vadd.f32 0.0, %v726
    %v728 = vpop.f32.mrb[0].mxu0
    %729 = vmatprep.mubr.f32.mxu0 0.0
    %730 = vmatmul.mubr.f32.gmra.mrb[0].mxu0 %v400
    %v731 = vpop.f32.mrb[0].mxu0
    %v732 = vadd.f32 0.0, %v731
    %v733 = vpop.f32.mrb[0].mxu0
    %734 = vmatprep.mubr.f32.mxu0 0.0
    %735 = vmatmul.mubr.f32.gmra.mrb[0].mxu0 %v403
    %v736 = vpop.f32.mrb[0].mxu0
    %v737 = vadd.f32 0.0, %v736
    %v738 = vpop.f32.mrb[0].mxu0
    %739 = vmatprep.mubr.f32.mxu0 0.0
    %740 = vmatmul.mubr.f32.gmra.mrb[0].mxu0 %v406
    %v741 = vpop.f32.mrb[0].mxu0
    %v742 = vadd.f32 0.0, %v741
    %v743 = vpop.f32.mrb[0].mxu0
    %744 = vmatprep.mubr.f32.mxu0 0.0
    %745 = vmatmul.mubr.f32.gmra.mrb[0].mxu0 %v409
    %v746 = vpop.f32.mrb[0].mxu0
    %v747 = vadd.f32 0.0, %v746
    %v748 = vpop.f32.mrb[0].mxu0
    %749 = vmatprep.mubr.f32.mxu0 0.0
    %750 = vmatmul.mubr.f32.gmra.mrb[0].mxu0 %v412
    %v751 = vpop.f32.mrb[0].mxu0
    %v752 = vadd.f32 0.0, %v751
    %v753 = vpop.f32.mrb[0].mxu0
    %754 = vmatprep.mubr.f32.mxu0 0.0
    %755 = vmatmul.mubr.f32.gmra.mrb[0].mxu0 %v415
    %v756 = vpop.f32.mrb[0].mxu0
    %v757 = vadd.f32 0.0, %v756
    %v758 = vpop.f32.mrb[0].mxu0
    %759 = vmatprep.mubr.f32.mxu0 0.0
    %760 = vmatmul.mubr.f32.gmra.mrb[0].mxu0 %v418
    %v761 = vpop.f32.mrb[0].mxu0
    %v762 = vadd.f32 0.0, %v761
    %v763 = vpop.f32.mrb[0].mxu0
    %764 = vmatprep.mubr.f32.mxu0 0.0
    %765 = vmatmul.mubr.f32.gmra.mrb[0].mxu0 %v421
    %v766 = vpop.f32.mrb[0].mxu0
    %v767 = vadd.f32 0.0, %v766
    %v768 = vpop.f32.mrb[0].mxu0
    %769 = vmatprep.mubr.f32.mxu0 0.0
    %770 = vmatmul.mubr.f32.gmra.mrb[0].mxu0 %v424
    %v771 = vpop.f32.mrb[0].mxu0
    %v772 = vadd.f32 0.0, %v771
    %v773 = vpop.f32.mrb[0].mxu0
    %774 = vmatprep.mubr.f32.mxu0 0.0
    %775 = vmatmul.mubr.f32.gmra.mrb[0].mxu0 %v427
    %v776 = vpop.f32.mrb[0].mxu0
    %v777 = vadd.f32 0.0, %v776
    %v778 = vpop.f32.mrb[0].mxu0
    %779 = vmatprep.mubr.f32.mxu0 0.0
    %780 = vmatmul.mubr.f32.gmra.mrb[0].mxu0 %v430
    %v781 = vpop.f32.mrb[0].mxu0
    %v782 = vadd.f32 0.0, %v781
    %v783 = vpop.f32.mrb[0].mxu0
    %784 = vmatprep.mubr.f32.mxu0 0.0
    %785 = vmatmul.mubr.f32.gmra.mrb[0].mxu0 %v433
    %v786 = vpop.f32.mrb[0].mxu0
    %v787 = vadd.f32 0.0, %v786
    %v788 = vpop.f32.mrb[0].mxu0
    %789 = vmatprep.mubr.f32.mxu0 0.0
    %790 = vmatmul.mubr.f32.gmra.mrb[0].mxu0 %v436
    %v791 = vpop.f32.mrb[0].mxu0
    %v792 = vadd.f32 0.0, %v791
    %v793 = vpop.f32.mrb[0].mxu0
    %794 = vmatprep.mubr.f32.mxu0 0.0
    %795 = vmatmul.mubr.f32.gmra.mrb[0].mxu0 %v439
    %v796 = vpop.f32.mrb[0].mxu0
    %v797 = vadd.f32 0.0, %v796
    %v798 = vpop.f32.mrb[0].mxu0
    %799 = vmatprep.mubr.f32.mxu0 0.0
    %800 = vmatmul.mubr.f32.gmra.mrb[0].mxu0 %v442
    %v801 = vpop.f32.mrb[0].mxu0
    %v802 = vadd.f32 0.0, %v801
    %v803 = vpop.f32.mrb[0].mxu0
    %804 = vmatprep.mubr.f32.mxu0 0.0
    %805 = vmatmul.mubr.f32.gmra.mrb[0].mxu0 %v445
    %v806 = vpop.f32.mrb[0].mxu0
    %v807 = vadd.f32 0.0, %v806
    %v808 = vpop.f32.mrb[0].mxu0
    %809 = vmatprep.mubr.f32.mxu0 0.0
    %810 = vmatmul.mubr.f32.gmra.mrb[0].mxu0 %v448
    %v811 = vpop.f32.mrb[0].mxu0
    %v812 = vadd.f32 0.0, %v811
    %v813 = vpop.f32.mrb[0].mxu0
    %814 = vmatprep.mubr.f32.mxu0 0.0
    %815 = vmatmul.mubr.f32.gmra.mrb[0].mxu0 %v451
    %v816 = vpop.f32.mrb[0].mxu0
    %v817 = vadd.f32 0.0, %v816
    %v818 = vpop.f32.mrb[0].mxu0
    %819 = vmatprep.mubr.f32.mxu0 0.0
    %820 = vmatmul.mubr.f32.gmra.mrb[0].mxu0 %v454
    %v821 = vpop.f32.mrb[0].mxu0
    %v822 = vadd.f32 0.0, %v821
    %v823 = vpop.f32.mrb[0].mxu0
    %824 = vmatprep.mubr.f32.mxu0 0.0
    %825 = vmatmul.mubr.f32.gmra.mrb[0].mxu0 %v457
    %v826 = vpop.f32.mrb[0].mxu0
    %v827 = vadd.f32 0.0, %v826
    %v828 = vpop.f32.mrb[0].mxu0
    %829 = vmatprep.mubr.f32.mxu0 0.0
    %830 = vmatmul.mubr.f32.gmra.mrb[0].mxu0 %v460
    %v831 = vpop.f32.mrb[0].mxu0
    %v832 = vadd.f32 0.0, %v831
    %v833 = vpop.f32.mrb[0].mxu0
    %834 = vmatprep.mubr.f32.mxu0 0.0
    %835 = vmatmul.mubr.f32.gmra.mrb[0].mxu0 %v463
    %v836 = vpop.f32.mrb[0].mxu0
    %v837 = vadd.f32 0.0, %v836
    %v838 = vpop.f32.mrb[0].mxu0
    %839 = vmatprep.mubr.f32.mxu0 0.0
    %840 = vmatmul.mubr.f32.gmra.mrb[0].mxu0 %v466
    %v841 = vpop.f32.mrb[0].mxu0
    %v842 = vadd.f32 0.0, %v841
    %v843 = vpop.f32.mrb[0].mxu0
    %844 = vmatprep.mubr.f32.mxu0 0.0
    %845 = vmatmul.mubr.f32.gmra.mrb[0].mxu0 %v469
    %v846 = vpop.f32.mrb[0].mxu0
    %v847 = vadd.f32 0.0, %v846
    %v848 = vpop.f32.mrb[0].mxu0
    %849 = vmatprep.mubr.f32.mxu0 0.0
    %850 = vmatmul.mubr.f32.gmra.mrb[0].mxu0 %v472
    %v851 = vpop.f32.mrb[0].mxu0
    %v852 = vadd.f32 0.0, %v851
    %v853 = vpop.f32.mrb[0].mxu0
    %854 = vmatprep.mubr.f32.mxu0 0.0
    %855 = vmatmul.mubr.f32.gmra.mrb[0].mxu0 %v475
    %v856 = vpop.f32.mrb[0].mxu0
    %v857 = vadd.f32 0.0, %v856
    %v858 = vpop.f32.mrb[0].mxu0
    %859 = vmatprep.mubr.f32.mxu0 0.0
    %860 = vmatmul.mubr.f32.gmra.mrb[0].mxu0 %v478
    %v861 = vpop.f32.mrb[0].mxu0
    %v862 = vadd.f32 0.0, %v861
    %v863 = vpop.f32.mrb[0].mxu0
    %864 = vmatprep.mubr.f32.mxu0 0.0
    %865 = vmatmul.mubr.f32.gmra.mrb[0].mxu0 %v481
    %v866 = vpop.f32.mrb[0].mxu0
    %v867 = vadd.f32 0.0, %v866
    %v868 = vpop.f32.mrb[0].mxu0
    %869 = vmatprep.mubr.f32.mxu0 0.0
    %870 = vmatmul.mubr.f32.gmra.mrb[0].mxu0 %v484
    %v871 = vpop.f32.mrb[0].mxu0
    %v872 = vadd.f32 0.0, %v871
    %v873 = vpop.f32.mrb[0].mxu0
    %874 = vdwg.mxu0
    %v875 = vld [vmem:[#allocation7] sm:$0x1]
    %v876 = vld [vmem:[#allocation9] sm:$0x1]
    %vm877 = vcmask 261120
    %v878 = vsel %vm877, %v557, 0.0
    %v879 = vsel %vm877, %v562, 0.0
    %v880 = vadd.f32 %v878, %v879
    %v881 = vsel %vm877, %v567, 0.0
    %v882 = vadd.f32 %v880, %v881
    %v883 = vsel %vm877, %v572, 0.0
    %v884 = vadd.f32 %v882, %v883
    %v885 = vsel %vm877, %v577, 0.0
    %v886 = vadd.f32 %v884, %v885
    %v887 = vsel %vm877, %v582, 0.0
    %v888 = vadd.f32 %v886, %v887
    %v889 = vsel %vm877, %v587, 0.0
    %v890 = vadd.f32 %v888, %v889
    %v891 = vsel %vm877, %v592, 0.0
    %v892 = vadd.f32 %v890, %v891
    %v893 = vsel %vm877, %v597, 0.0
    %v894 = vadd.f32 %v892, %v893
    %v895 = vsel %vm877, %v602, 0.0
    %v896 = vadd.f32 %v894, %v895
    %v897 = vsel %vm877, %v607, 0.0
    %v898 = vadd.f32 %v896, %v897
    %v899 = vsel %vm877, %v612, 0.0
    %v900 = vadd.f32 %v898, %v899
    %v901 = vsel %vm877, %v617, 0.0
    %v902 = vadd.f32 %v900, %v901
    %v903 = vsel %vm877, %v622, 0.0
    %v904 = vadd.f32 %v902, %v903
    %v905 = vsel %vm877, %v627, 0.0
    %v906 = vadd.f32 %v904, %v905
    %v907 = vsel %vm877, %v632, 0.0
    %v908 = vadd.f32 %v906, %v907
    %v909 = vsel %vm877, %v637, 0.0
    %v910 = vadd.f32 %v908, %v909
    %v911 = vsel %vm877, %v642, 0.0
    %v912 = vadd.f32 %v910, %v911
    %v913 = vsel %vm877, %v647, 0.0
    %v914 = vadd.f32 %v912, %v913
    %v915 = vsel %vm877, %v652, 0.0
    %v916 = vadd.f32 %v914, %v915
    %v917 = vsel %vm877, %v657, 0.0
    %v918 = vadd.f32 %v916, %v917
    %v919 = vsel %vm877, %v662, 0.0
    %v920 = vadd.f32 %v918, %v919
    %v921 = vsel %vm877, %v667, 0.0
    %v922 = vadd.f32 %v920, %v921
    %v923 = vsel %vm877, %v672, 0.0
    %v924 = vadd.f32 %v922, %v923
    %v925 = vsel %vm877, %v677, 0.0
    %v926 = vadd.f32 %v924, %v925
    %v927 = vsel %vm877, %v682, 0.0
    %v928 = vadd.f32 %v926, %v927
    %v929 = vsel %vm877, %v687, 0.0
    %v930 = vadd.f32 %v928, %v929
    %v931 = vsel %vm877, %v692, 0.0
    %v932 = vadd.f32 %v930, %v931
    %v933 = vsel %vm877, %v697, 0.0
    %v934 = vadd.f32 %v932, %v933
    %v935 = vsel %vm877, %v702, 0.0
    %v936 = vadd.f32 %v934, %v935
    %v937 = vsel %vm877, %v707, 0.0
    %v938 = vadd.f32 %v936, %v937
    %v939 = vsel %vm877, %v712, 0.0
    %v940 = vadd.f32 %v938, %v939
    %v941 = vsel %vm877, %v717, 0.0
    %v942 = vadd.f32 %v940, %v941
    %v943 = vsel %vm877, %v722, 0.0
    %v944 = vadd.f32 %v942, %v943
    %v945 = vsel %vm877, %v727, 0.0
    %v946 = vadd.f32 %v944, %v945
    %v947 = vsel %vm877, %v732, 0.0
    %v948 = vadd.f32 %v946, %v947
    %v949 = vsel %vm877, %v737, 0.0
    %v950 = vadd.f32 %v948, %v949
    %v951 = vsel %vm877, %v742, 0.0
    %v952 = vadd.f32 %v950, %v951
    %v953 = vsel %vm877, %v747, 0.0
    %v954 = vadd.f32 %v952, %v953
    %v955 = vsel %vm877, %v752, 0.0
    %v956 = vadd.f32 %v954, %v955
    %v957 = vsel %vm877, %v757, 0.0
    %v958 = vadd.f32 %v956, %v957
    %v959 = vsel %vm877, %v762, 0.0
    %v960 = vadd.f32 %v958, %v959
    %v961 = vsel %vm877, %v767, 0.0
    %v962 = vadd.f32 %v960, %v961
    %v963 = vsel %vm877, %v772, 0.0
    %v964 = vadd.f32 %v962, %v963
    %v965 = vsel %vm877, %v777, 0.0
    %v966 = vadd.f32 %v964, %v965
    %v967 = vsel %vm877, %v782, 0.0
    %v968 = vadd.f32 %v966, %v967
    %v969 = vsel %vm877, %v787, 0.0
    %v970 = vadd.f32 %v968, %v969
    %v971 = vsel %vm877, %v792, 0.0
    %v972 = vadd.f32 %v970, %v971
    %v973 = vsel %vm877, %v797, 0.0
    %v974 = vadd.f32 %v972, %v973
    %v975 = vsel %vm877, %v802, 0.0
    %v976 = vadd.f32 %v974, %v975
    %v977 = vsel %vm877, %v807, 0.0
    %v978 = vadd.f32 %v976, %v977
    %v979 = vsel %vm877, %v812, 0.0
    %v980 = vadd.f32 %v978, %v979
    %v981 = vsel %vm877, %v817, 0.0
    %v982 = vadd.f32 %v980, %v981
    %v983 = vsel %vm877, %v822, 0.0
    %v984 = vadd.f32 %v982, %v983
    %v985 = vsel %vm877, %v827, 0.0
    %v986 = vadd.f32 %v984, %v985
    %v987 = vsel %vm877, %v832, 0.0
    %v988 = vadd.f32 %v986, %v987
    %v989 = vsel %vm877, %v837, 0.0
    %v990 = vadd.f32 %v988, %v989
    %v991 = vsel %vm877, %v842, 0.0
    %v992 = vadd.f32 %v990, %v991
    %v993 = vsel %vm877, %v847, 0.0
    %v994 = vadd.f32 %v992, %v993
    %v995 = vsel %vm877, %v852, 0.0
    %v996 = vadd.f32 %v994, %v995
    %v997 = vsel %vm877, %v857, 0.0
    %v998 = vadd.f32 %v996, %v997
    %v999 = vsel %vm877, %v862, 0.0
    %v1000 = vadd.f32 %v998, %v999
    %v1001 = vsel %vm877, %v867, 0.0
    %v1002 = vadd.f32 %v1000, %v1001
    %v1003 = vsel %vm877, %v872, 0.0
    %v1004 = vadd.f32 %v1002, %v1003
    %v1005 = vrot.slane %v1004, 4
    %v1006 = vadd.f32 %v1004, %v1005
    %v1007 = vrot.slane %v1006, 2
    %v1008 = vadd.f32 %v1006, %v1007
    %v1009 = vrot.slane %v1008, 1
    %v1010 = vadd.f32 %v1008, %v1009
    %v1011 = vrcp.pop 512.0
    %v1012 = vmul.f32 %v1010, %v1011
    %v1013 = vsub.f32 %v557, %v1012
    %v1014 = vsub.f32 %v562, %v1012
    %v1015 = vsub.f32 %v567, %v1012
    %v1016 = vsub.f32 %v572, %v1012
    %v1017 = vsub.f32 %v577, %v1012
    %v1018 = vsub.f32 %v582, %v1012
    %v1019 = vsub.f32 %v587, %v1012
    %v1020 = vsub.f32 %v592, %v1012
    %v1021 = vsub.f32 %v597, %v1012
    %v1022 = vsub.f32 %v602, %v1012
    %v1023 = vsub.f32 %v607, %v1012
    %v1024 = vsub.f32 %v612, %v1012
    %v1025 = vsub.f32 %v617, %v1012
    %v1026 = vsub.f32 %v622, %v1012
    %v1027 = vsub.f32 %v627, %v1012
    %v1028 = vsub.f32 %v632, %v1012
    %v1029 = vsub.f32 %v637, %v1012
    %v1030 = vsub.f32 %v642, %v1012
    %v1031 = vsub.f32 %v647, %v1012
    %v1032 = vsub.f32 %v652, %v1012
    %v1033 = vsub.f32 %v657, %v1012
    %v1034 = vsub.f32 %v662, %v1012
    %v1035 = vsub.f32 %v667, %v1012
    %v1036 = vsub.f32 %v672, %v1012
    %v1037 = vsub.f32 %v677, %v1012
    %v1038 = vsub.f32 %v682, %v1012
    %v1039 = vsub.f32 %v687, %v1012
    %v1040 = vsub.f32 %v692, %v1012
    %v1041 = vsub.f32 %v697, %v1012
    %v1042 = vsub.f32 %v702, %v1012
    %v1043 = vsub.f32 %v707, %v1012
    %v1044 = vsub.f32 %v712, %v1012
    %v1045 = vsub.f32 %v717, %v1012
    %v1046 = vsub.f32 %v722, %v1012
    %v1047 = vsub.f32 %v727, %v1012
    %v1048 = vsub.f32 %v732, %v1012
    %v1049 = vsub.f32 %v737, %v1012
    %v1050 = vsub.f32 %v742, %v1012
    %v1051 = vsub.f32 %v747, %v1012
    %v1052 = vsub.f32 %v752, %v1012
    %v1053 = vsub.f32 %v757, %v1012
    %v1054 = vsub.f32 %v762, %v1012
    %v1055 = vsub.f32 %v767, %v1012
    %v1056 = vsub.f32 %v772, %v1012
    %v1057 = vsub.f32 %v777, %v1012
    %v1058 = vsub.f32 %v782, %v1012
    %v1059 = vsub.f32 %v787, %v1012
    %v1060 = vsub.f32 %v792, %v1012
    %v1061 = vsub.f32 %v797, %v1012
    %v1062 = vsub.f32 %v802, %v1012
    %v1063 = vsub.f32 %v807, %v1012
    %v1064 = vsub.f32 %v812, %v1012
    %v1065 = vsub.f32 %v817, %v1012
    %v1066 = vsub.f32 %v822, %v1012
    %v1067 = vsub.f32 %v827, %v1012
    %v1068 = vsub.f32 %v832, %v1012
    %v1069 = vsub.f32 %v837, %v1012
    %v1070 = vsub.f32 %v842, %v1012
    %v1071 = vsub.f32 %v847, %v1012
    %v1072 = vsub.f32 %v852, %v1012
    %v1073 = vsub.f32 %v857, %v1012
    %v1074 = vsub.f32 %v862, %v1012
    %v1075 = vsub.f32 %v867, %v1012
    %v1076 = vsub.f32 %v872, %v1012
    %v1077 = vmul.f32 %v1013, %v1013
    %v1078 = vmul.f32 %v1014, %v1014
    %v1079 = vmul.f32 %v1015, %v1015
    %v1080 = vmul.f32 %v1016, %v1016
    %v1081 = vmul.f32 %v1017, %v1017
    %v1082 = vmul.f32 %v1018, %v1018
    %v1083 = vmul.f32 %v1019, %v1019
    %v1084 = vmul.f32 %v1020, %v1020
    %v1085 = vmul.f32 %v1021, %v1021
    %v1086 = vmul.f32 %v1022, %v1022
    %v1087 = vmul.f32 %v1023, %v1023
    %v1088 = vmul.f32 %v1024, %v1024
    %v1089 = vmul.f32 %v1025, %v1025
    %v1090 = vmul.f32 %v1026, %v1026
    %v1091 = vmul.f32 %v1027, %v1027
    %v1092 = vmul.f32 %v1028, %v1028
    %v1093 = vmul.f32 %v1029, %v1029
    %v1094 = vmul.f32 %v1030, %v1030
    %v1095 = vmul.f32 %v1031, %v1031
    %v1096 = vmul.f32 %v1032, %v1032
    %v1097 = vmul.f32 %v1033, %v1033
    %v1098 = vmul.f32 %v1034, %v1034
    %v1099 = vmul.f32 %v1035, %v1035
    %v1100 = vmul.f32 %v1036, %v1036
    %v1101 = vmul.f32 %v1037, %v1037
    %v1102 = vmul.f32 %v1038, %v1038
    %v1103 = vmul.f32 %v1039, %v1039
    %v1104 = vmul.f32 %v1040, %v1040
    %v1105 = vmul.f32 %v1041, %v1041
    %v1106 = vmul.f32 %v1042, %v1042
    %v1107 = vmul.f32 %v1043, %v1043
    %v1108 = vmul.f32 %v1044, %v1044
    %v1109 = vmul.f32 %v1045, %v1045
    %v1110 = vmul.f32 %v1046, %v1046
    %v1111 = vmul.f32 %v1047, %v1047
    %v1112 = vmul.f32 %v1048, %v1048
    %v1113 = vmul.f32 %v1049, %v1049
    %v1114 = vmul.f32 %v1050, %v1050
    %v1115 = vmul.f32 %v1051, %v1051
    %v1116 = vmul.f32 %v1052, %v1052
    %v1117 = vmul.f32 %v1053, %v1053
    %v1118 = vmul.f32 %v1054, %v1054
    %v1119 = vmul.f32 %v1055, %v1055
    %v1120 = vmul.f32 %v1056, %v1056
    %v1121 = vmul.f32 %v1057, %v1057
    %v1122 = vmul.f32 %v1058, %v1058
    %v1123 = vmul.f32 %v1059, %v1059
    %v1124 = vmul.f32 %v1060, %v1060
    %v1125 = vmul.f32 %v1061, %v1061
    %v1126 = vmul.f32 %v1062, %v1062
    %v1127 = vmul.f32 %v1063, %v1063
    %v1128 = vmul.f32 %v1064, %v1064
    %v1129 = vmul.f32 %v1065, %v1065
    %v1130 = vmul.f32 %v1066, %v1066
    %v1131 = vmul.f32 %v1067, %v1067
    %v1132 = vmul.f32 %v1068, %v1068
    %v1133 = vmul.f32 %v1069, %v1069
    %v1134 = vmul.f32 %v1070, %v1070
    %v1135 = vmul.f32 %v1071, %v1071
    %v1136 = vmul.f32 %v1072, %v1072
    %v1137 = vmul.f32 %v1073, %v1073
    %v1138 = vmul.f32 %v1074, %v1074
    %v1139 = vmul.f32 %v1075, %v1075
    %v1140 = vmul.f32 %v1076, %v1076
    %v1141 = vsel %vm877, %v1077, 0.0
    %v1142 = vsel %vm877, %v1078, 0.0
    %v1143 = vadd.f32 %v1141, %v1142
    %v1144 = vsel %vm877, %v1079, 0.0
    %v1145 = vadd.f32 %v1143, %v1144
    %v1146 = vsel %vm877, %v1080, 0.0
    %v1147 = vadd.f32 %v1145, %v1146
    %v1148 = vsel %vm877, %v1081, 0.0
    %v1149 = vadd.f32 %v1147, %v1148
    %v1150 = vsel %vm877, %v1082, 0.0
    %v1151 = vadd.f32 %v1149, %v1150
    %v1152 = vsel %vm877, %v1083, 0.0
    %v1153 = vadd.f32 %v1151, %v1152
    %v1154 = vsel %vm877, %v1084, 0.0
    %v1155 = vadd.f32 %v1153, %v1154
    %v1156 = vsel %vm877, %v1085, 0.0
    %v1157 = vadd.f32 %v1155, %v1156
    %v1158 = vsel %vm877, %v1086, 0.0
    %v1159 = vadd.f32 %v1157, %v1158
    %v1160 = vsel %vm877, %v1087, 0.0
    %v1161 = vadd.f32 %v1159, %v1160
    %v1162 = vsel %vm877, %v1088, 0.0
    %v1163 = vadd.f32 %v1161, %v1162
    %v1164 = vsel %vm877, %v1089, 0.0
    %v1165 = vadd.f32 %v1163, %v1164
    %v1166 = vsel %vm877, %v1090, 0.0
    %v1167 = vadd.f32 %v1165, %v1166
    %v1168 = vsel %vm877, %v1091, 0.0
    %v1169 = vadd.f32 %v1167, %v1168
    %v1170 = vsel %vm877, %v1092, 0.0
    %v1171 = vadd.f32 %v1169, %v1170
    %v1172 = vsel %vm877, %v1093, 0.0
    %v1173 = vadd.f32 %v1171, %v1172
    %v1174 = vsel %vm877, %v1094, 0.0
    %v1175 = vadd.f32 %v1173, %v1174
    %v1176 = vsel %vm877, %v1095, 0.0
    %v1177 = vadd.f32 %v1175, %v1176
    %v1178 = vsel %vm877, %v1096, 0.0
    %v1179 = vadd.f32 %v1177, %v1178
    %v1180 = vsel %vm877, %v1097, 0.0
    %v1181 = vadd.f32 %v1179, %v1180
    %v1182 = vsel %vm877, %v1098, 0.0
    %v1183 = vadd.f32 %v1181, %v1182
    %v1184 = vsel %vm877, %v1099, 0.0
    %v1185 = vadd.f32 %v1183, %v1184
    %v1186 = vsel %vm877, %v1100, 0.0
    %v1187 = vadd.f32 %v1185, %v1186
    %v1188 = vsel %vm877, %v1101, 0.0
    %v1189 = vadd.f32 %v1187, %v1188
    %v1190 = vsel %vm877, %v1102, 0.0
    %v1191 = vadd.f32 %v1189, %v1190
    %v1192 = vsel %vm877, %v1103, 0.0
    %v1193 = vadd.f32 %v1191, %v1192
    %v1194 = vsel %vm877, %v1104, 0.0
    %v1195 = vadd.f32 %v1193, %v1194
    %v1196 = vsel %vm877, %v1105, 0.0
    %v1197 = vadd.f32 %v1195, %v1196
    %v1198 = vsel %vm877, %v1106, 0.0
    %v1199 = vadd.f32 %v1197, %v1198
    %v1200 = vsel %vm877, %v1107, 0.0
    %v1201 = vadd.f32 %v1199, %v1200
    %v1202 = vsel %vm877, %v1108, 0.0
    %v1203 = vadd.f32 %v1201, %v1202
    %v1204 = vsel %vm877, %v1109, 0.0
    %v1205 = vadd.f32 %v1203, %v1204
    %v1206 = vsel %vm877, %v1110, 0.0
    %v1207 = vadd.f32 %v1205, %v1206
    %v1208 = vsel %vm877, %v1111, 0.0
    %v1209 = vadd.f32 %v1207, %v1208
    %v1210 = vsel %vm877, %v1112, 0.0
    %v1211 = vadd.f32 %v1209, %v1210
    %v1212 = vsel %vm877, %v1113, 0.0
    %v1213 = vadd.f32 %v1211, %v1212
    %v1214 = vsel %vm877, %v1114, 0.0
    %v1215 = vadd.f32 %v1213, %v1214
    %v1216 = vsel %vm877, %v1115, 0.0
    %v1217 = vadd.f32 %v1215, %v1216
    %v1218 = vsel %vm877, %v1116, 0.0
    %v1219 = vadd.f32 %v1217, %v1218
    %v1220 = vsel %vm877, %v1117, 0.0
    %v1221 = vadd.f32 %v1219, %v1220
    %v1222 = vsel %vm877, %v1118, 0.0
    %v1223 = vadd.f32 %v1221, %v1222
    %v1224 = vsel %vm877, %v1119, 0.0
    %v1225 = vadd.f32 %v1223, %v1224
    %v1226 = vsel %vm877, %v1120, 0.0
    %v1227 = vadd.f32 %v1225, %v1226
    %v1228 = vsel %vm877, %v1121, 0.0
    %v1229 = vadd.f32 %v1227, %v1228
    %v1230 = vsel %vm877, %v1122, 0.0
    %v1231 = vadd.f32 %v1229, %v1230
    %v1232 = vsel %vm877, %v1123, 0.0
    %v1233 = vadd.f32 %v1231, %v1232
    %v1234 = vsel %vm877, %v1124, 0.0
    %v1235 = vadd.f32 %v1233, %v1234
    %v1236 = vsel %vm877, %v1125, 0.0
    %v1237 = vadd.f32 %v1235, %v1236
    %v1238 = vsel %vm877, %v1126, 0.0
    %v1239 = vadd.f32 %v1237, %v1238
    %v1240 = vsel %vm877, %v1127, 0.0
    %v1241 = vadd.f32 %v1239, %v1240
    %v1242 = vsel %vm877, %v1128, 0.0
    %v1243 = vadd.f32 %v1241, %v1242
    %v1244 = vsel %vm877, %v1129, 0.0
    %v1245 = vadd.f32 %v1243, %v1244
    %v1246 = vsel %vm877, %v1130, 0.0
    %v1247 = vadd.f32 %v1245, %v1246
    %v1248 = vsel %vm877, %v1131, 0.0
    %v1249 = vadd.f32 %v1247, %v1248
    %v1250 = vsel %vm877, %v1132, 0.0
    %v1251 = vadd.f32 %v1249, %v1250
    %v1252 = vsel %vm877, %v1133, 0.0
    %v1253 = vadd.f32 %v1251, %v1252
    %v1254 = vsel %vm877, %v1134, 0.0
    %v1255 = vadd.f32 %v1253, %v1254
    %v1256 = vsel %vm877, %v1135, 0.0
    %v1257 = vadd.f32 %v1255, %v1256
    %v1258 = vsel %vm877, %v1136, 0.0
    %v1259 = vadd.f32 %v1257, %v1258
    %v1260 = vsel %vm877, %v1137, 0.0
    %v1261 = vadd.f32 %v1259, %v1260
    %v1262 = vsel %vm877, %v1138, 0.0
    %v1263 = vadd.f32 %v1261, %v1262
    %v1264 = vsel %vm877, %v1139, 0.0
    %v1265 = vadd.f32 %v1263, %v1264
    %v1266 = vsel %vm877, %v1140, 0.0
    %v1267 = vadd.f32 %v1265, %v1266
    %v1268 = vrot.slane %v1267, 4
    %v1269 = vadd.f32 %v1267, %v1268
    %v1270 = vrot.slane %v1269, 2
    %v1271 = vadd.f32 %v1269, %v1270
    %v1272 = vrot.slane %v1271, 1
    %v1273 = vadd.f32 %v1271, %v1272
    %v1274 = vmul.f32 %v1273, %v1011
    %v1275 = vadd.f32 %v1274, 1e-05
    %v1276 = vrsqrt.pop %v1275
    %v1277 = vmul.f32 %v1013, %v1276
    %v1278 = vmul.f32 %v1014, %v1276
    %v1279 = vmul.f32 %v1015, %v1276
    %v1280 = vmul.f32 %v1016, %v1276
    %v1281 = vmul.f32 %v1017, %v1276
    %v1282 = vmul.f32 %v1018, %v1276
    %v1283 = vmul.f32 %v1019, %v1276
    %v1284 = vmul.f32 %v1020, %v1276
    %v1285 = vmul.f32 %v1021, %v1276
    %v1286 = vmul.f32 %v1022, %v1276
    %v1287 = vmul.f32 %v1023, %v1276
    %v1288 = vmul.f32 %v1024, %v1276
    %v1289 = vmul.f32 %v1025, %v1276
    %v1290 = vmul.f32 %v1026, %v1276
    %v1291 = vmul.f32 %v1027, %v1276
    %v1292 = vmul.f32 %v1028, %v1276
    %v1293 = vmul.f32 %v1029, %v1276
    %v1294 = vmul.f32 %v1030, %v1276
    %v1295 = vmul.f32 %v1031, %v1276
    %v1296 = vmul.f32 %v1032, %v1276
    %v1297 = vmul.f32 %v1033, %v1276
    %v1298 = vmul.f32 %v1034, %v1276
    %v1299 = vmul.f32 %v1035, %v1276
    %v1300 = vmul.f32 %v1036, %v1276
    %v1301 = vmul.f32 %v1037, %v1276
    %v1302 = vmul.f32 %v1038, %v1276
    %v1303 = vmul.f32 %v1039, %v1276
    %v1304 = vmul.f32 %v1040, %v1276
    %v1305 = vmul.f32 %v1041, %v1276
    %v1306 = vmul.f32 %v1042, %v1276
    %v1307 = vmul.f32 %v1043, %v1276
    %v1308 = vmul.f32 %v1044, %v1276
    %v1309 = vmul.f32 %v1045, %v1276
    %v1310 = vmul.f32 %v1046, %v1276
    %v1311 = vmul.f32 %v1047, %v1276
    %v1312 = vmul.f32 %v1048, %v1276
    %v1313 = vmul.f32 %v1049, %v1276
    %v1314 = vmul.f32 %v1050, %v1276
    %v1315 = vmul.f32 %v1051, %v1276
    %v1316 = vmul.f32 %v1052, %v1276
    %v1317 = vmul.f32 %v1053, %v1276
    %v1318 = vmul.f32 %v1054, %v1276
    %v1319 = vmul.f32 %v1055, %v1276
    %v1320 = vmul.f32 %v1056, %v1276
    %v1321 = vmul.f32 %v1057, %v1276
    %v1322 = vmul.f32 %v1058, %v1276
    %v1323 = vmul.f32 %v1059, %v1276
    %v1324 = vmul.f32 %v1060, %v1276
    %v1325 = vmul.f32 %v1061, %v1276
    %v1326 = vmul.f32 %v1062, %v1276
    %v1327 = vmul.f32 %v1063, %v1276
    %v1328 = vmul.f32 %v1064, %v1276
    %v1329 = vmul.f32 %v1065, %v1276
    %v1330 = vmul.f32 %v1066, %v1276
    %v1331 = vmul.f32 %v1067, %v1276
    %v1332 = vmul.f32 %v1068, %v1276
    %v1333 = vmul.f32 %v1069, %v1276
    %v1334 = vmul.f32 %v1070, %v1276
    %v1335 = vmul.f32 %v1071, %v1276
    %v1336 = vmul.f32 %v1072, %v1276
    %v1337 = vmul.f32 %v1073, %v1276
    %v1338 = vmul.f32 %v1074, %v1276
    %v1339 = vmul.f32 %v1075, %v1276
    %v1340 = vmul.f32 %v1076, %v1276
    %v1342 = vlaneseq
    %v1343 = vshrl.u32 %v1342, 7
    %v1344 = vsub.s32 0, %v1343
    %v1345 = vrot.slane %v875, %v1344
    %v1347 = vmul.f32 %v1277, %v1345
    %v1348 = vmul.f32 %v1278, %v1345
    %v1349 = vmul.f32 %v1279, %v1345
    %v1350 = vmul.f32 %v1280, %v1345
    %v1351 = vmul.f32 %v1281, %v1345
    %v1352 = vmul.f32 %v1282, %v1345
    %v1353 = vmul.f32 %v1283, %v1345
    %v1354 = vmul.f32 %v1284, %v1345
    %v1355 = vmul.f32 %v1285, %v1345
    %v1356 = vmul.f32 %v1286, %v1345
    %v1357 = vmul.f32 %v1287, %v1345
    %v1358 = vmul.f32 %v1288, %v1345
    %v1359 = vmul.f32 %v1289, %v1345
    %v1360 = vmul.f32 %v1290, %v1345
    %v1361 = vmul.f32 %v1291, %v1345
    %v1362 = vmul.f32 %v1292, %v1345
    %v1363 = vmul.f32 %v1293, %v1345
    %v1364 = vmul.f32 %v1294, %v1345
    %v1365 = vmul.f32 %v1295, %v1345
    %v1366 = vmul.f32 %v1296, %v1345
    %v1367 = vmul.f32 %v1297, %v1345
    %v1368 = vmul.f32 %v1298, %v1345
    %v1369 = vmul.f32 %v1299, %v1345
    %v1370 = vmul.f32 %v1300, %v1345
    %v1371 = vmul.f32 %v1301, %v1345
    %v1372 = vmul.f32 %v1302, %v1345
    %v1373 = vmul.f32 %v1303, %v1345
    %v1374 = vmul.f32 %v1304, %v1345
    %v1375 = vmul.f32 %v1305, %v1345
    %v1376 = vmul.f32 %v1306, %v1345
    %v1377 = vmul.f32 %v1307, %v1345
    %v1378 = vmul.f32 %v1308, %v1345
    %v1379 = vmul.f32 %v1309, %v1345
    %v1380 = vmul.f32 %v1310, %v1345
    %v1381 = vmul.f32 %v1311, %v1345
    %v1382 = vmul.f32 %v1312, %v1345
    %v1383 = vmul.f32 %v1313, %v1345
    %v1384 = vmul.f32 %v1314, %v1345
    %v1385 = vmul.f32 %v1315, %v1345
    %v1386 = vmul.f32 %v1316, %v1345
    %v1387 = vmul.f32 %v1317, %v1345
    %v1388 = vmul.f32 %v1318, %v1345
    %v1389 = vmul.f32 %v1319, %v1345
    %v1390 = vmul.f32 %v1320, %v1345
    %v1391 = vmul.f32 %v1321, %v1345
    %v1392 = vmul.f32 %v1322, %v1345
    %v1393 = vmul.f32 %v1323, %v1345
    %v1394 = vmul.f32 %v1324, %v1345
    %v1395 = vmul.f32 %v1325, %v1345
    %v1396 = vmul.f32 %v1326, %v1345
    %v1397 = vmul.f32 %v1327, %v1345
    %v1398 = vmul.f32 %v1328, %v1345
    %v1399 = vmul.f32 %v1329, %v1345
    %v1400 = vmul.f32 %v1330, %v1345
    %v1401 = vmul.f32 %v1331, %v1345
    %v1402 = vmul.f32 %v1332, %v1345
    %v1403 = vmul.f32 %v1333, %v1345
    %v1404 = vmul.f32 %v1334, %v1345
    %v1405 = vmul.f32 %v1335, %v1345
    %v1406 = vmul.f32 %v1336, %v1345
    %v1407 = vmul.f32 %v1337, %v1345
    %v1408 = vmul.f32 %v1338, %v1345
    %v1409 = vmul.f32 %v1339, %v1345
    %v1410 = vmul.f32 %v1340, %v1345
    %v1412 = vlaneseq
    %v1413 = vshrl.u32 %v1412, 7
    %v1414 = vsub.s32 0, %v1413
    %v1415 = vrot.slane %v876, %v1414
    %v1417 = vadd.f32 %v1347, %v1415
    %v1418 = vadd.f32 %v1348, %v1415
    %v1419 = vadd.f32 %v1349, %v1415
    %v1420 = vadd.f32 %v1350, %v1415
    %v1421 = vadd.f32 %v1351, %v1415
    %v1422 = vadd.f32 %v1352, %v1415
    %v1423 = vadd.f32 %v1353, %v1415
    %v1424 = vadd.f32 %v1354, %v1415
    %v1425 = vadd.f32 %v1355, %v1415
    %v1426 = vadd.f32 %v1356, %v1415
    %v1427 = vadd.f32 %v1357, %v1415
    %v1428 = vadd.f32 %v1358, %v1415
    %v1429 = vadd.f32 %v1359, %v1415
    %v1430 = vadd.f32 %v1360, %v1415
    %v1431 = vadd.f32 %v1361, %v1415
    %v1432 = vadd.f32 %v1362, %v1415
    %v1433 = vadd.f32 %v1363, %v1415
    %v1434 = vadd.f32 %v1364, %v1415
    %v1435 = vadd.f32 %v1365, %v1415
    %v1436 = vadd.f32 %v1366, %v1415
    %v1437 = vadd.f32 %v1367, %v1415
    %v1438 = vadd.f32 %v1368, %v1415
    %v1439 = vadd.f32 %v1369, %v1415
    %v1440 = vadd.f32 %v1370, %v1415
    %v1441 = vadd.f32 %v1371, %v1415
    %v1442 = vadd.f32 %v1372, %v1415
    %v1443 = vadd.f32 %v1373, %v1415
    %v1444 = vadd.f32 %v1374, %v1415
    %v1445 = vadd.f32 %v1375, %v1415
    %v1446 = vadd.f32 %v1376, %v1415
    %v1447 = vadd.f32 %v1377, %v1415
    %v1448 = vadd.f32 %v1378, %v1415
    %v1449 = vadd.f32 %v1379, %v1415
    %v1450 = vadd.f32 %v1380, %v1415
    %v1451 = vadd.f32 %v1381, %v1415
    %v1452 = vadd.f32 %v1382, %v1415
    %v1453 = vadd.f32 %v1383, %v1415
    %v1454 = vadd.f32 %v1384, %v1415
    %v1455 = vadd.f32 %v1385, %v1415
    %v1456 = vadd.f32 %v1386, %v1415
    %v1457 = vadd.f32 %v1387, %v1415
    %v1458 = vadd.f32 %v1388, %v1415
    %v1459 = vadd.f32 %v1389, %v1415
    %v1460 = vadd.f32 %v1390, %v1415
    %v1461 = vadd.f32 %v1391, %v1415
    %v1462 = vadd.f32 %v1392, %v1415
    %v1463 = vadd.f32 %v1393, %v1415
    %v1464 = vadd.f32 %v1394, %v1415
    %v1465 = vadd.f32 %v1395, %v1415
    %v1466 = vadd.f32 %v1396, %v1415
    %v1467 = vadd.f32 %v1397, %v1415
    %v1468 = vadd.f32 %v1398, %v1415
    %v1469 = vadd.f32 %v1399, %v1415
    %v1470 = vadd.f32 %v1400, %v1415
    %v1471 = vadd.f32 %v1401, %v1415
    %v1472 = vadd.f32 %v1402, %v1415
    %v1473 = vadd.f32 %v1403, %v1415
    %v1474 = vadd.f32 %v1404, %v1415
    %v1475 = vadd.f32 %v1405, %v1415
    %v1476 = vadd.f32 %v1406, %v1415
    %v1477 = vadd.f32 %v1407, %v1415
    %v1478 = vadd.f32 %v1408, %v1415
    %v1479 = vadd.f32 %v1409, %v1415
    %v1480 = vadd.f32 %v1410, %v1415
    %vm1481 = vcmp.gt.f32.partialorder %v1417, 0.0
    %vm1482 = vcmp.gt.f32.partialorder %v1418, 0.0
    %vm1483 = vcmp.gt.f32.partialorder %v1419, 0.0
    %vm1484 = vcmp.gt.f32.partialorder %v1420, 0.0
    %vm1485 = vcmp.gt.f32.partialorder %v1421, 0.0
    %vm1486 = vcmp.gt.f32.partialorder %v1422, 0.0
    %vm1487 = vcmp.gt.f32.partialorder %v1423, 0.0
    %vm1488 = vcmp.gt.f32.partialorder %v1424, 0.0
    %vm1489 = vcmp.gt.f32.partialorder %v1425, 0.0
    %vm1490 = vcmp.gt.f32.partialorder %v1426, 0.0
    %vm1491 = vcmp.gt.f32.partialorder %v1427, 0.0
    %vm1492 = vcmp.gt.f32.partialorder %v1428, 0.0
    %vm1493 = vcmp.gt.f32.partialorder %v1429, 0.0
    %vm1494 = vcmp.gt.f32.partialorder %v1430, 0.0
    %vm1495 = vcmp.gt.f32.partialorder %v1431, 0.0
    %vm1496 = vcmp.gt.f32.partialorder %v1432, 0.0
    %vm1497 = vcmp.gt.f32.partialorder %v1433, 0.0
    %vm1498 = vcmp.gt.f32.partialorder %v1434, 0.0
    %vm1499 = vcmp.gt.f32.partialorder %v1435, 0.0
    %vm1500 = vcmp.gt.f32.partialorder %v1436, 0.0
    %vm1501 = vcmp.gt.f32.partialorder %v1437, 0.0
    %vm1502 = vcmp.gt.f32.partialorder %v1438, 0.0
    %vm1503 = vcmp.gt.f32.partialorder %v1439, 0.0
    %vm1504 = vcmp.gt.f32.partialorder %v1440, 0.0
    %vm1505 = vcmp.gt.f32.partialorder %v1441, 0.0
    %vm1506 = vcmp.gt.f32.partialorder %v1442, 0.0
    %vm1507 = vcmp.gt.f32.partialorder %v1443, 0.0
    %vm1508 = vcmp.gt.f32.partialorder %v1444, 0.0
    %vm1509 = vcmp.gt.f32.partialorder %v1445, 0.0
    %vm1510 = vcmp.gt.f32.partialorder %v1446, 0.0
    %vm1511 = vcmp.gt.f32.partialorder %v1447, 0.0
    %vm1512 = vcmp.gt.f32.partialorder %v1448, 0.0
    %vm1513 = vcmp.gt.f32.partialorder %v1449, 0.0
    %vm1514 = vcmp.gt.f32.partialorder %v1450, 0.0
    %vm1515 = vcmp.gt.f32.partialorder %v1451, 0.0
    %vm1516 = vcmp.gt.f32.partialorder %v1452, 0.0
    %vm1517 = vcmp.gt.f32.partialorder %v1453, 0.0
    %vm1518 = vcmp.gt.f32.partialorder %v1454, 0.0
    %vm1519 = vcmp.gt.f32.partialorder %v1455, 0.0
    %vm1520 = vcmp.gt.f32.partialorder %v1456, 0.0
    %vm1521 = vcmp.gt.f32.partialorder %v1457, 0.0
    %vm1522 = vcmp.gt.f32.partialorder %v1458, 0.0
    %vm1523 = vcmp.gt.f32.partialorder %v1459, 0.0
    %vm1524 = vcmp.gt.f32.partialorder %v1460, 0.0
    %vm1525 = vcmp.gt.f32.partialorder %v1461, 0.0
    %vm1526 = vcmp.gt.f32.partialorder %v1462, 0.0
    %vm1527 = vcmp.gt.f32.partialorder %v1463, 0.0
    %vm1528 = vcmp.gt.f32.partialorder %v1464, 0.0
    %vm1529 = vcmp.gt.f32.partialorder %v1465, 0.0
    %vm1530 = vcmp.gt.f32.partialorder %v1466, 0.0
    %vm1531 = vcmp.gt.f32.partialorder %v1467, 0.0
    %vm1532 = vcmp.gt.f32.partialorder %v1468, 0.0
    %vm1533 = vcmp.gt.f32.partialorder %v1469, 0.0
    %vm1534 = vcmp.gt.f32.partialorder %v1470, 0.0
    %vm1535 = vcmp.gt.f32.partialorder %v1471, 0.0
    %vm1536 = vcmp.gt.f32.partialorder %v1472, 0.0
    %vm1537 = vcmp.gt.f32.partialorder %v1473, 0.0
    %vm1538 = vcmp.gt.f32.partialorder %v1474, 0.0
    %vm1539 = vcmp.gt.f32.partialorder %v1475, 0.0
    %vm1540 = vcmp.gt.f32.partialorder %v1476, 0.0
    %vm1541 = vcmp.gt.f32.partialorder %v1477, 0.0
    %vm1542 = vcmp.gt.f32.partialorder %v1478, 0.0
    %vm1543 = vcmp.gt.f32.partialorder %v1479, 0.0
    %vm1544 = vcmp.gt.f32.partialorder %v1480, 0.0
    %v1545 = vmul.f32 %v1417, 0.01
    %v1546 = vmul.f32 %v1418, 0.01
    %v1547 = vmul.f32 %v1419, 0.01
    %v1548 = vmul.f32 %v1420, 0.01
    %v1549 = vmul.f32 %v1421, 0.01
    %v1550 = vmul.f32 %v1422, 0.01
    %v1551 = vmul.f32 %v1423, 0.01
    %v1552 = vmul.f32 %v1424, 0.01
    %v1553 = vmul.f32 %v1425, 0.01
    %v1554 = vmul.f32 %v1426, 0.01
    %v1555 = vmul.f32 %v1427, 0.01
    %v1556 = vmul.f32 %v1428, 0.01
    %v1557 = vmul.f32 %v1429, 0.01
    %v1558 = vmul.f32 %v1430, 0.01
    %v1559 = vmul.f32 %v1431, 0.01
    %v1560 = vmul.f32 %v1432, 0.01
    %v1561 = vmul.f32 %v1433, 0.01
    %v1562 = vmul.f32 %v1434, 0.01
    %v1563 = vmul.f32 %v1435, 0.01
    %v1564 = vmul.f32 %v1436, 0.01
    %v1565 = vmul.f32 %v1437, 0.01
    %v1566 = vmul.f32 %v1438, 0.01
    %v1567 = vmul.f32 %v1439, 0.01
    %v1568 = vmul.f32 %v1440, 0.01
    %v1569 = vmul.f32 %v1441, 0.01
    %v1570 = vmul.f32 %v1442, 0.01
    %v1571 = vmul.f32 %v1443, 0.01
    %v1572 = vmul.f32 %v1444, 0.01
    %v1573 = vmul.f32 %v1445, 0.01
    %v1574 = vmul.f32 %v1446, 0.01
    %v1575 = vmul.f32 %v1447, 0.01
    %v1576 = vmul.f32 %v1448, 0.01
    %v1577 = vmul.f32 %v1449, 0.01
    %v1578 = vmul.f32 %v1450, 0.01
    %v1579 = vmul.f32 %v1451, 0.01
    %v1580 = vmul.f32 %v1452, 0.01
    %v1581 = vmul.f32 %v1453, 0.01
    %v1582 = vmul.f32 %v1454, 0.01
    %v1583 = vmul.f32 %v1455, 0.01
    %v1584 = vmul.f32 %v1456, 0.01
    %v1585 = vmul.f32 %v1457, 0.01
    %v1586 = vmul.f32 %v1458, 0.01
    %v1587 = vmul.f32 %v1459, 0.01
    %v1588 = vmul.f32 %v1460, 0.01
    %v1589 = vmul.f32 %v1461, 0.01
    %v1590 = vmul.f32 %v1462, 0.01
    %v1591 = vmul.f32 %v1463, 0.01
    %v1592 = vmul.f32 %v1464, 0.01
    %v1593 = vmul.f32 %v1465, 0.01
    %v1594 = vmul.f32 %v1466, 0.01
    %v1595 = vmul.f32 %v1467, 0.01
    %v1596 = vmul.f32 %v1468, 0.01
    %v1597 = vmul.f32 %v1469, 0.01
    %v1598 = vmul.f32 %v1470, 0.01
    %v1599 = vmul.f32 %v1471, 0.01
    %v1600 = vmul.f32 %v1472, 0.01
    %v1601 = vmul.f32 %v1473, 0.01
    %v1602 = vmul.f32 %v1474, 0.01
    %v1603 = vmul.f32 %v1475, 0.01
    %v1604 = vmul.f32 %v1476, 0.01
    %v1605 = vmul.f32 %v1477, 0.01
    %v1606 = vmul.f32 %v1478, 0.01
    %v1607 = vmul.f32 %v1479, 0.01
    %v1608 = vmul.f32 %v1480, 0.01
    %v1609 = vsel %vm1481, %v1417, %v1545
    %v1610 = vsel %vm1482, %v1418, %v1546
    %v1611 = vsel %vm1483, %v1419, %v1547
    %v1612 = vsel %vm1484, %v1420, %v1548
    %v1613 = vsel %vm1485, %v1421, %v1549
    %v1614 = vsel %vm1486, %v1422, %v1550
    %v1615 = vsel %vm1487, %v1423, %v1551
    %v1616 = vsel %vm1488, %v1424, %v1552
    %v1617 = vsel %vm1489, %v1425, %v1553
    %v1618 = vsel %vm1490, %v1426, %v1554
    %v1619 = vsel %vm1491, %v1427, %v1555
    %v1620 = vsel %vm1492, %v1428, %v1556
    %v1621 = vsel %vm1493, %v1429, %v1557
    %v1622 = vsel %vm1494, %v1430, %v1558
    %v1623 = vsel %vm1495, %v1431, %v1559
    %v1624 = vsel %vm1496, %v1432, %v1560
    %v1625 = vsel %vm1497, %v1433, %v1561
    %v1626 = vsel %vm1498, %v1434, %v1562
    %v1627 = vsel %vm1499, %v1435, %v1563
    %v1628 = vsel %vm1500, %v1436, %v1564
    %v1629 = vsel %vm1501, %v1437, %v1565
    %v1630 = vsel %vm1502, %v1438, %v1566
    %v1631 = vsel %vm1503, %v1439, %v1567
    %v1632 = vsel %vm1504, %v1440, %v1568
    %v1633 = vsel %vm1505, %v1441, %v1569
    %v1634 = vsel %vm1506, %v1442, %v1570
    %v1635 = vsel %vm1507, %v1443, %v1571
    %v1636 = vsel %vm1508, %v1444, %v1572
    %v1637 = vsel %vm1509, %v1445, %v1573
    %v1638 = vsel %vm1510, %v1446, %v1574
    %v1639 = vsel %vm1511, %v1447, %v1575
    %v1640 = vsel %vm1512, %v1448, %v1576
    %v1641 = vsel %vm1513, %v1449, %v1577
    %v1642 = vsel %vm1514, %v1450, %v1578
    %v1643 = vsel %vm1515, %v1451, %v1579
    %v1644 = vsel %vm1516, %v1452, %v1580
    %v1645 = vsel %vm1517, %v1453, %v1581
    %v1646 = vsel %vm1518, %v1454, %v1582
    %v1647 = vsel %vm1519, %v1455, %v1583
    %v1648 = vsel %vm1520, %v1456, %v1584
    %v1649 = vsel %vm1521, %v1457, %v1585
    %v1650 = vsel %vm1522, %v1458, %v1586
    %v1651 = vsel %vm1523, %v1459, %v1587
    %v1652 = vsel %vm1524, %v1460, %v1588
    %v1653 = vsel %vm1525, %v1461, %v1589
    %v1654 = vsel %vm1526, %v1462, %v1590
    %v1655 = vsel %vm1527, %v1463, %v1591
    %v1656 = vsel %vm1528, %v1464, %v1592
    %v1657 = vsel %vm1529, %v1465, %v1593
    %v1658 = vsel %vm1530, %v1466, %v1594
    %v1659 = vsel %vm1531, %v1467, %v1595
    %v1660 = vsel %vm1532, %v1468, %v1596
    %v1661 = vsel %vm1533, %v1469, %v1597
    %v1662 = vsel %vm1534, %v1470, %v1598
    %v1663 = vsel %vm1535, %v1471, %v1599
    %v1664 = vsel %vm1536, %v1472, %v1600
    %v1665 = vsel %vm1537, %v1473, %v1601
    %v1666 = vsel %vm1538, %v1474, %v1602
    %v1667 = vsel %vm1539, %v1475, %v1603
    %v1668 = vsel %vm1540, %v1476, %v1604
    %v1669 = vsel %vm1541, %v1477, %v1605
    %v1670 = vsel %vm1542, %v1478, %v1606
    %v1671 = vsel %vm1543, %v1479, %v1607
    %v1672 = vsel %vm1544, %v1480, %v1608
    %v1673 = vld [vmem:[%s4] sm:$0xff]
    %v1674 = vld [vmem:[%s4 + $0x8] sm:$0xff]
    %v1675 = vld [vmem:[%s4 + $0x10] sm:$0xff]
    %v1676 = vld [vmem:[%s4 + $0x18] sm:$0xff]
    %v1677 = vld [vmem:[%s4 + $0x20] sm:$0xff]
    %v1678 = vld [vmem:[%s4 + $0x28] sm:$0xff]
    %v1679 = vld [vmem:[%s4 + $0x30] sm:$0xff]
    %v1680 = vld [vmem:[%s4 + $0x38] sm:$0xff]
    %v1681 = vld [vmem:[%s4 + $0x40] sm:$0xff]
    %v1682 = vld [vmem:[%s4 + $0x48] sm:$0xff]
    %v1683 = vld [vmem:[%s4 + $0x50] sm:$0xff]
    %v1684 = vld [vmem:[%s4 + $0x58] sm:$0xff]
    %v1685 = vld [vmem:[%s4 + $0x60] sm:$0xff]
    %v1686 = vld [vmem:[%s4 + $0x68] sm:$0xff]
    %v1687 = vld [vmem:[%s4 + $0x70] sm:$0xff]
    %v1688 = vld [vmem:[%s4 + $0x78] sm:$0xff]
    %v1689 = vld [vmem:[%s4 + $0x80] sm:$0xff]
    %v1690 = vld [vmem:[%s4 + $0x88] sm:$0xff]
    %v1691 = vld [vmem:[%s4 + $0x90] sm:$0xff]
    %v1692 = vld [vmem:[%s4 + $0x98] sm:$0xff]
    %v1693 = vld [vmem:[%s4 + $0xa0] sm:$0xff]
    %v1694 = vld [vmem:[%s4 + $0xa8] sm:$0xff]
    %v1695 = vld [vmem:[%s4 + $0xb0] sm:$0xff]
    %v1696 = vld [vmem:[%s4 + $0xb8] sm:$0xff]
    %v1697 = vld [vmem:[%s4 + $0xc0] sm:$0xff]
    %v1698 = vld [vmem:[%s4 + $0xc8] sm:$0xff]
    %v1699 = vld [vmem:[%s4 + $0xd0] sm:$0xff]
    %v1700 = vld [vmem:[%s4 + $0xd8] sm:$0xff]
    %v1701 = vld [vmem:[%s4 + $0xe0] sm:$0xff]
    %v1702 = vld [vmem:[%s4 + $0xe8] sm:$0xff]
    %v1703 = vld [vmem:[%s4 + $0xf0] sm:$0xff]
    %v1704 = vld [vmem:[%s4 + $0xf8] sm:$0xff]
    %v1705 = vld [vmem:[%s4 + $0x100] sm:$0xff]
    %v1706 = vld [vmem:[%s4 + $0x108] sm:$0xff]
    %v1707 = vld [vmem:[%s4 + $0x110] sm:$0xff]
    %v1708 = vld [vmem:[%s4 + $0x118] sm:$0xff]
    %v1709 = vld [vmem:[%s4 + $0x120] sm:$0xff]
    %v1710 = vld [vmem:[%s4 + $0x128] sm:$0xff]
    %v1711 = vld [vmem:[%s4 + $0x130] sm:$0xff]
    %v1712 = vld [vmem:[%s4 + $0x138] sm:$0xff]
    %v1713 = vld [vmem:[%s4 + $0x140] sm:$0xff]
    %v1714 = vld [vmem:[%s4 + $0x148] sm:$0xff]
    %v1715 = vld [vmem:[%s4 + $0x150] sm:$0xff]
    %v1716 = vld [vmem:[%s4 + $0x158] sm:$0xff]
    %v1717 = vld [vmem:[%s4 + $0x160] sm:$0xff]
    %v1718 = vld [vmem:[%s4 + $0x168] sm:$0xff]
    %v1719 = vld [vmem:[%s4 + $0x170] sm:$0xff]
    %v1720 = vld [vmem:[%s4 + $0x178] sm:$0xff]
    %v1721 = vld [vmem:[%s4 + $0x180] sm:$0xff]
    %v1722 = vld [vmem:[%s4 + $0x188] sm:$0xff]
    %v1723 = vld [vmem:[%s4 + $0x190] sm:$0xff]
    %v1724 = vld [vmem:[%s4 + $0x198] sm:$0xff]
    %v1725 = vld [vmem:[%s4 + $0x1a0] sm:$0xff]
    %v1726 = vld [vmem:[%s4 + $0x1a8] sm:$0xff]
    %v1727 = vld [vmem:[%s4 + $0x1b0] sm:$0xff]
    %v1728 = vld [vmem:[%s4 + $0x1b8] sm:$0xff]
    %v1729 = vld [vmem:[%s4 + $0x1c0] sm:$0xff]
    %v1730 = vld [vmem:[%s4 + $0x1c8] sm:$0xff]
    %v1731 = vld [vmem:[%s4 + $0x1d0] sm:$0xff]
    %v1732 = vld [vmem:[%s4 + $0x1d8] sm:$0xff]
    %v1733 = vld [vmem:[%s4 + $0x1e0] sm:$0xff]
    %v1734 = vld [vmem:[%s4 + $0x1e8] sm:$0xff]
    %v1735 = vld [vmem:[%s4 + $0x1f0] sm:$0xff]
    %v1736 = vld [vmem:[%s4 + $0x1f8] sm:$0xff]
    %v1737 = vld [vmem:[%s4 + $0x200] sm:$0xff]
    %v1738 = vld [vmem:[%s4 + $0x208] sm:$0xff]
    %v1739 = vld [vmem:[%s4 + $0x210] sm:$0xff]
    %v1740 = vld [vmem:[%s4 + $0x218] sm:$0xff]
    %v1741 = vld [vmem:[%s4 + $0x220] sm:$0xff]
    %v1742 = vld [vmem:[%s4 + $0x228] sm:$0xff]
    %v1743 = vld [vmem:[%s4 + $0x230] sm:$0xff]
    %v1744 = vld [vmem:[%s4 + $0x238] sm:$0xff]
    %v1745 = vld [vmem:[%s4 + $0x240] sm:$0xff]
    %v1746 = vld [vmem:[%s4 + $0x248] sm:$0xff]
    %v1747 = vld [vmem:[%s4 + $0x250] sm:$0xff]
    %v1748 = vld [vmem:[%s4 + $0x258] sm:$0xff]
    %v1749 = vld [vmem:[%s4 + $0x260] sm:$0xff]
    %v1750 = vld [vmem:[%s4 + $0x268] sm:$0xff]
    %v1751 = vld [vmem:[%s4 + $0x270] sm:$0xff]
    %v1752 = vld [vmem:[%s4 + $0x278] sm:$0xff]
    %v1753 = vld [vmem:[%s4 + $0x280] sm:$0xff]
    %v1754 = vld [vmem:[%s4 + $0x288] sm:$0xff]
    %v1755 = vld [vmem:[%s4 + $0x290] sm:$0xff]
    %v1756 = vld [vmem:[%s4 + $0x298] sm:$0xff]
    %v1757 = vld [vmem:[%s4 + $0x2a0] sm:$0xff]
    %v1758 = vld [vmem:[%s4 + $0x2a8] sm:$0xff]
    %v1759 = vld [vmem:[%s4 + $0x2b0] sm:$0xff]
    %v1760 = vld [vmem:[%s4 + $0x2b8] sm:$0xff]
    %v1761 = vld [vmem:[%s4 + $0x2c0] sm:$0xff]
    %v1762 = vld [vmem:[%s4 + $0x2c8] sm:$0xff]
    %v1763 = vld [vmem:[%s4 + $0x2d0] sm:$0xff]
    %v1764 = vld [vmem:[%s4 + $0x2d8] sm:$0xff]
    %v1765 = vld [vmem:[%s4 + $0x2e0] sm:$0xff]
    %v1766 = vld [vmem:[%s4 + $0x2e8] sm:$0xff]
    %v1767 = vld [vmem:[%s4 + $0x2f0] sm:$0xff]
    %v1768 = vld [vmem:[%s4 + $0x2f8] sm:$0xff]
    %v1769 = vld [vmem:[%s4 + $0x300] sm:$0xff]
    %v1770 = vld [vmem:[%s4 + $0x308] sm:$0xff]
    %v1771 = vld [vmem:[%s4 + $0x310] sm:$0xff]
    %v1772 = vld [vmem:[%s4 + $0x318] sm:$0xff]
    %v1773 = vld [vmem:[%s4 + $0x320] sm:$0xff]
    %v1774 = vld [vmem:[%s4 + $0x328] sm:$0xff]
    %v1775 = vld [vmem:[%s4 + $0x330] sm:$0xff]
    %v1776 = vld [vmem:[%s4 + $0x338] sm:$0xff]
    %v1777 = vld [vmem:[%s4 + $0x340] sm:$0xff]
    %v1778 = vld [vmem:[%s4 + $0x348] sm:$0xff]
    %v1779 = vld [vmem:[%s4 + $0x350] sm:$0xff]
    %v1780 = vld [vmem:[%s4 + $0x358] sm:$0xff]
    %v1781 = vld [vmem:[%s4 + $0x360] sm:$0xff]
    %v1782 = vld [vmem:[%s4 + $0x368] sm:$0xff]
    %v1783 = vld [vmem:[%s4 + $0x370] sm:$0xff]
    %v1784 = vld [vmem:[%s4 + $0x378] sm:$0xff]
    %v1785 = vld [vmem:[%s4 + $0x380] sm:$0xff]
    %v1786 = vld [vmem:[%s4 + $0x388] sm:$0xff]
    %v1787 = vld [vmem:[%s4 + $0x390] sm:$0xff]
    %v1788 = vld [vmem:[%s4 + $0x398] sm:$0xff]
    %v1789 = vld [vmem:[%s4 + $0x3a0] sm:$0xff]
    %v1790 = vld [vmem:[%s4 + $0x3a8] sm:$0xff]
    %v1791 = vld [vmem:[%s4 + $0x3b0] sm:$0xff]
    %v1792 = vld [vmem:[%s4 + $0x3b8] sm:$0xff]
    %v1793 = vld [vmem:[%s4 + $0x3c0] sm:$0xff]
    %v1794 = vld [vmem:[%s4 + $0x3c8] sm:$0xff]
    %v1795 = vld [vmem:[%s4 + $0x3d0] sm:$0xff]
    %v1796 = vld [vmem:[%s4 + $0x3d8] sm:$0xff]
    %v1797 = vld [vmem:[%s4 + $0x3e0] sm:$0xff]
    %v1798 = vld [vmem:[%s4 + $0x3e8] sm:$0xff]
    %v1799 = vld [vmem:[%s4 + $0x3f0] sm:$0xff]
    %v1800 = vld [vmem:[%s4 + $0x3f8] sm:$0xff]
    %v1801 = vld [vmem:[%s4 + $0x400] sm:$0xff]
    %v1802 = vld [vmem:[%s4 + $0x408] sm:$0xff]
    %v1803 = vld [vmem:[%s4 + $0x410] sm:$0xff]
    %v1804 = vld [vmem:[%s4 + $0x418] sm:$0xff]
    %v1805 = vld [vmem:[%s4 + $0x420] sm:$0xff]
    %v1806 = vld [vmem:[%s4 + $0x428] sm:$0xff]
    %v1807 = vld [vmem:[%s4 + $0x430] sm:$0xff]
    %v1808 = vld [vmem:[%s4 + $0x438] sm:$0xff]
    %v1809 = vld [vmem:[%s4 + $0x440] sm:$0xff]
    %v1810 = vld [vmem:[%s4 + $0x448] sm:$0xff]
    %v1811 = vld [vmem:[%s4 + $0x450] sm:$0xff]
    %v1812 = vld [vmem:[%s4 + $0x458] sm:$0xff]
    %v1813 = vld [vmem:[%s4 + $0x460] sm:$0xff]
    %v1814 = vld [vmem:[%s4 + $0x468] sm:$0xff]
    %v1815 = vld [vmem:[%s4 + $0x470] sm:$0xff]
    %v1816 = vld [vmem:[%s4 + $0x478] sm:$0xff]
    %v1817 = vld [vmem:[%s5] sm:$0xff]
    %v1818 = vld [vmem:[%s5 + $0x8] sm:$0xff]
    %v1819 = vld [vmem:[%s5 + $0x10] sm:$0xff]
    %v1820 = vld [vmem:[%s5 + $0x18] sm:$0xff]
    %v1821 = vld [vmem:[%s5 + $0x20] sm:$0xff]
    %v1822 = vld [vmem:[%s5 + $0x28] sm:$0xff]
    %v1823 = vld [vmem:[%s5 + $0x30] sm:$0xff]
    %v1824 = vld [vmem:[%s5 + $0x38] sm:$0xff]
    %v1825 = vld [vmem:[%s5 + $0x40] sm:$0xff]
    %v1826 = vld [vmem:[%s5 + $0x48] sm:$0xff]
    %v1827 = vld [vmem:[%s5 + $0x50] sm:$0xff]
    %v1828 = vld [vmem:[%s5 + $0x58] sm:$0xff]
    %v1829 = vld [vmem:[%s5 + $0x60] sm:$0xff]
    %v1830 = vld [vmem:[%s5 + $0x68] sm:$0xff]
    %v1831 = vld [vmem:[%s5 + $0x70] sm:$0xff]
    %v1832 = vld [vmem:[%s5 + $0x78] sm:$0xff]
    %v1833 = vld [vmem:[%s5 + $0x80] sm:$0xff]
    %v1834 = vld [vmem:[%s5 + $0x88] sm:$0xff]
    %v1835 = vld [vmem:[%s5 + $0x90] sm:$0xff]
    %v1836 = vld [vmem:[%s5 + $0x98] sm:$0xff]
    %v1837 = vld [vmem:[%s5 + $0xa0] sm:$0xff]
    %v1838 = vld [vmem:[%s5 + $0xa8] sm:$0xff]
    %v1839 = vld [vmem:[%s5 + $0xb0] sm:$0xff]
    %v1840 = vld [vmem:[%s5 + $0xb8] sm:$0xff]
    %v1841 = vld [vmem:[%s5 + $0xc0] sm:$0xff]
    %v1842 = vld [vmem:[%s5 + $0xc8] sm:$0xff]
    %v1843 = vld [vmem:[%s5 + $0xd0] sm:$0xff]
    %v1844 = vld [vmem:[%s5 + $0xd8] sm:$0xff]
    %v1845 = vld [vmem:[%s5 + $0xe0] sm:$0xff]
    %v1846 = vld [vmem:[%s5 + $0xe8] sm:$0xff]
    %v1847 = vld [vmem:[%s5 + $0xf0] sm:$0xff]
    %v1848 = vld [vmem:[%s5 + $0xf8] sm:$0xff]
    %v1849 = vld [vmem:[%s5 + $0x100] sm:$0xff]
    %v1850 = vld [vmem:[%s5 + $0x108] sm:$0xff]
    %v1851 = vld [vmem:[%s5 + $0x110] sm:$0xff]
    %v1852 = vld [vmem:[%s5 + $0x118] sm:$0xff]
    %1853 = vmatprep.subr.mxu0 0.0
    %1854 = vmatpush1.msra.mxu0 %v1609
    %1855 = vmatprep.subr.mxu0 0.0
    %1856 = vmatpush1.msra.mxu0 %v1610
    %1857 = vmatprep.subr.mxu0 0.0
    %1858 = vmatpush1.msra.mxu0 %v1611
    %1859 = vmatprep.subr.mxu0 0.0
    %1860 = vmatpush1.msra.mxu0 %v1612
    %1861 = vmatprep.subr.mxu0 0.0
    %1862 = vmatpush1.msra.mxu0 %v1613
    %1863 = vmatprep.subr.mxu0 0.0
    %1864 = vmatpush1.msra.mxu0 %v1614
    %1865 = vmatprep.subr.mxu0 0.0
    %1866 = vmatpush1.msra.mxu0 %v1615
    %1867 = vmatprep.subr.mxu0 0.0
    %1868 = vmatpush1.msra.mxu0 %v1616
    %1869 = vmatprep.subr.mxu0 0.0
    %1870 = vmatpush1.msra.mxu0 %v1617
    %1871 = vmatprep.subr.mxu0 0.0
    %1872 = vmatpush1.msra.mxu0 %v1618
    %1873 = vmatprep.subr.mxu0 0.0
    %1874 = vmatpush1.msra.mxu0 %v1619
    %1875 = vmatprep.subr.mxu0 0.0
    %1876 = vmatpush1.msra.mxu0 %v1620
    %1877 = vmatprep.subr.mxu0 0.0
    %1878 = vmatpush1.msra.mxu0 %v1621
    %1879 = vmatprep.subr.mxu0 0.0
    %1880 = vmatpush1.msra.mxu0 %v1622
    %1881 = vmatprep.subr.mxu0 0.0
    %1882 = vmatpush1.msra.mxu0 %v1623
    %1883 = vmatprep.subr.mxu0 0.0
    %1884 = vmatpush1.msra.mxu0 %v1624
    %1885 = vmatprep.subr.mxu0 0.0
    %1886 = vmatpush1.msra.mxu0 %v1625
    %1887 = vmatprep.subr.mxu0 0.0
    %1888 = vmatpush1.msra.mxu0 %v1626
    %1889 = vmatprep.subr.mxu0 0.0
    %1890 = vmatpush1.msra.mxu0 %v1627
    %1891 = vmatprep.subr.mxu0 0.0
    %1892 = vmatpush1.msra.mxu0 %v1628
    %1893 = vmatprep.subr.mxu0 0.0
    %1894 = vmatpush1.msra.mxu0 %v1629
    %1895 = vmatprep.subr.mxu0 0.0
    %1896 = vmatpush1.msra.mxu0 %v1630
    %1897 = vmatprep.subr.mxu0 0.0
    %1898 = vmatpush1.msra.mxu0 %v1631
    %1899 = vmatprep.subr.mxu0 0.0
    %1900 = vmatpush1.msra.mxu0 %v1632
    %1901 = vmatprep.subr.mxu0 0.0
    %1902 = vmatpush1.msra.mxu0 %v1633
    %1903 = vmatprep.subr.mxu0 0.0
    %1904 = vmatpush1.msra.mxu0 %v1634
    %1905 = vmatprep.subr.mxu0 0.0
    %1906 = vmatpush1.msra.mxu0 %v1635
    %1907 = vmatprep.subr.mxu0 0.0
    %1908 = vmatpush1.msra.mxu0 %v1636
    %1909 = vmatprep.subr.mxu0 0.0
    %1910 = vmatpush1.msra.mxu0 %v1637
    %1911 = vmatprep.subr.mxu0 0.0
    %1912 = vmatpush1.msra.mxu0 %v1638
    %1913 = vmatprep.subr.mxu0 0.0
    %1914 = vmatpush1.msra.mxu0 %v1639
    %1915 = vmatprep.subr.mxu0 0.0
    %1916 = vmatpush1.msra.mxu0 %v1640
    %1917 = vmatprep.mubr.f32.mxu0 %v1674
    %1918 = vmatmul.mubr.f32.gmra.mrb[0].mxu0 %v1673
    %v1919 = vpop.f32.mrb[0].mxu0
    %v1920 = vadd.f32 0.0, %v1919
    %v1921 = vpop.f32.mrb[0].mxu0
    %1922 = vmatprep.mubr.f32.mxu0 %v1676
    %1923 = vmatmul.mubr.f32.gmra.mrb[0].mxu0 %v1675
    %v1924 = vpop.f32.mrb[0].mxu0
    %v1925 = vadd.f32 0.0, %v1924
    %v1926 = vpop.f32.mrb[0].mxu0
    %1927 = vmatprep.mubr.f32.mxu0 %v1678
    %1928 = vmatmul.mubr.f32.gmra.mrb[0].mxu0 %v1677
    %v1929 = vpop.f32.mrb[0].mxu0
    %v1930 = vadd.f32 0.0, %v1929
    %v1931 = vpop.f32.mrb[0].mxu0
    %1932 = vmatprep.mubr.f32.mxu0 %v1680
    %1933 = vmatmul.mubr.f32.gmra.mrb[0].mxu0 %v1679
    %v1934 = vpop.f32.mrb[0].mxu0
    %v1935 = vadd.f32 0.0, %v1934
    %v1936 = vpop.f32.mrb[0].mxu0
    %1937 = vmatprep.mubr.f32.mxu0 %v1682
    %1938 = vmatmul.mubr.f32.gmra.mrb[0].mxu0 %v1681
    %v1939 = vpop.f32.mrb[0].mxu0
    %v1940 = vadd.f32 0.0, %v1939
    %v1941 = vpop.f32.mrb[0].mxu0
    %1942 = vmatprep.mubr.f32.mxu0 %v1684
    %1943 = vmatmul.mubr.f32.gmra.mrb[0].mxu0 %v1683
    %v1944 = vpop.f32.mrb[0].mxu0
    %v1945 = vadd.f32 0.0, %v1944
    %v1946 = vpop.f32.mrb[0].mxu0
    %1947 = vmatprep.mubr.f32.mxu0 %v1686
    %1948 = vmatmul.mubr.f32.gmra.mrb[0].mxu0 %v1685
    %v1949 = vpop.f32.mrb[0].mxu0
    %v1950 = vadd.f32 0.0, %v1949
    %v1951 = vpop.f32.mrb[0].mxu0
    %1952 = vmatprep.mubr.f32.mxu0 %v1688
    %1953 = vmatmul.mubr.f32.gmra.mrb[0].mxu0 %v1687
    %v1954 = vpop.f32.mrb[0].mxu0
    %v1955 = vadd.f32 0.0, %v1954
    %v1956 = vpop.f32.mrb[0].mxu0
    %1957 = vmatprep.mubr.f32.mxu0 %v1690
    %1958 = vmatmul.mubr.f32.gmra.mrb[0].mxu0 %v1689
    %v1959 = vpop.f32.mrb[0].mxu0
    %v1960 = vadd.f32 0.0, %v1959
    %v1961 = vpop.f32.mrb[0].mxu0
    %1962 = vmatprep.mubr.f32.mxu0 %v1692
    %1963 = vmatmul.mubr.f32.gmra.mrb[0].mxu0 %v1691
    %v1964 = vpop.f32.mrb[0].mxu0
    %v1965 = vadd.f32 0.0, %v1964
    %v1966 = vpop.f32.mrb[0].mxu0
    %1967 = vmatprep.mubr.f32.mxu0 %v1694
    %1968 = vmatmul.mubr.f32.gmra.mrb[0].mxu0 %v1693
    %v1969 = vpop.f32.mrb[0].mxu0
    %v1970 = vadd.f32 0.0, %v1969
    %v1971 = vpop.f32.mrb[0].mxu0
    %1972 = vmatprep.mubr.f32.mxu0 %v1696
    %1973 = vmatmul.mubr.f32.gmra.mrb[0].mxu0 %v1695
    %v1974 = vpop.f32.mrb[0].mxu0
    %v1975 = vadd.f32 0.0, %v1974
    %v1976 = vpop.f32.mrb[0].mxu0
    %1977 = vmatprep.mubr.f32.mxu0 %v1698
    %1978 = vmatmul.mubr.f32.gmra.mrb[0].mxu0 %v1697
    %v1979 = vpop.f32.mrb[0].mxu0
    %v1980 = vadd.f32 0.0, %v1979
    %v1981 = vpop.f32.mrb[0].mxu0
    %1982 = vmatprep.mubr.f32.mxu0 %v1700
    %1983 = vmatmul.mubr.f32.gmra.mrb[0].mxu0 %v1699
    %v1984 = vpop.f32.mrb[0].mxu0
    %v1985 = vadd.f32 0.0, %v1984
    %v1986 = vpop.f32.mrb[0].mxu0
    %1987 = vmatprep.mubr.f32.mxu0 %v1702
    %1988 = vmatmul.mubr.f32.gmra.mrb[0].mxu0 %v1701
    %v1989 = vpop.f32.mrb[0].mxu0
    %v1990 = vadd.f32 0.0, %v1989
    %v1991 = vpop.f32.mrb[0].mxu0
    %1992 = vmatprep.mubr.f32.mxu0 %v1704
    %1993 = vmatmul.mubr.f32.gmra.mrb[0].mxu0 %v1703
    %v1994 = vpop.f32.mrb[0].mxu0
    %v1995 = vadd.f32 0.0, %v1994
    %v1996 = vpop.f32.mrb[0].mxu0
    %1997 = vmatprep.mubr.f32.mxu0 %v1706
    %1998 = vmatmul.mubr.f32.gmra.mrb[0].mxu0 %v1705
    %v1999 = vpop.f32.mrb[0].mxu0
    %v2000 = vadd.f32 0.0, %v1999
    %v2001 = vpop.f32.mrb[0].mxu0
    %2002 = vmatprep.mubr.f32.mxu0 %v1708
    %2003 = vmatmul.mubr.f32.gmra.mrb[0].mxu0 %v1707
    %v2004 = vpop.f32.mrb[0].mxu0
    %v2005 = vadd.f32 0.0, %v2004
    %v2006 = vpop.f32.mrb[0].mxu0
    %2007 = vmatprep.mubr.f32.mxu0 %v1710
    %2008 = vmatmul.mubr.f32.gmra.mrb[0].mxu0 %v1709
    %v2009 = vpop.f32.mrb[0].mxu0
    %v2010 = vadd.f32 0.0, %v2009
    %v2011 = vpop.f32.mrb[0].mxu0
    %2012 = vmatprep.mubr.f32.mxu0 %v1712
    %2013 = vmatmul.mubr.f32.gmra.mrb[0].mxu0 %v1711
    %v2014 = vpop.f32.mrb[0].mxu0
    %v2015 = vadd.f32 0.0, %v2014
    %v2016 = vpop.f32.mrb[0].mxu0
    %2017 = vmatprep.mubr.f32.mxu0 %v1714
    %2018 = vmatmul.mubr.f32.gmra.mrb[0].mxu0 %v1713
    %v2019 = vpop.f32.mrb[0].mxu0
    %v2020 = vadd.f32 0.0, %v2019
    %v2021 = vpop.f32.mrb[0].mxu0
    %2022 = vmatprep.mubr.f32.mxu0 %v1716
    %2023 = vmatmul.mubr.f32.gmra.mrb[0].mxu0 %v1715
    %v2024 = vpop.f32.mrb[0].mxu0
    %v2025 = vadd.f32 0.0, %v2024
    %v2026 = vpop.f32.mrb[0].mxu0
    %2027 = vmatprep.mubr.f32.mxu0 %v1718
    %2028 = vmatmul.mubr.f32.gmra.mrb[0].mxu0 %v1717
    %v2029 = vpop.f32.mrb[0].mxu0
    %v2030 = vadd.f32 0.0, %v2029
    %v2031 = vpop.f32.mrb[0].mxu0
    %2032 = vmatprep.mubr.f32.mxu0 %v1720
    %2033 = vmatmul.mubr.f32.gmra.mrb[0].mxu0 %v1719
    %v2034 = vpop.f32.mrb[0].mxu0
    %v2035 = vadd.f32 0.0, %v2034
    %v2036 = vpop.f32.mrb[0].mxu0
    %2037 = vmatprep.mubr.f32.mxu0 %v1722
    %2038 = vmatmul.mubr.f32.gmra.mrb[0].mxu0 %v1721
    %v2039 = vpop.f32.mrb[0].mxu0
    %v2040 = vadd.f32 0.0, %v2039
    %v2041 = vpop.f32.mrb[0].mxu0
    %2042 = vmatprep.mubr.f32.mxu0 %v1724
    %2043 = vmatmul.mubr.f32.gmra.mrb[0].mxu0 %v1723
    %v2044 = vpop.f32.mrb[0].mxu0
    %v2045 = vadd.f32 0.0, %v2044
    %v2046 = vpop.f32.mrb[0].mxu0
    %2047 = vmatprep.mubr.f32.mxu0 %v1726
    %2048 = vmatmul.mubr.f32.gmra.mrb[0].mxu0 %v1725
    %v2049 = vpop.f32.mrb[0].mxu0
    %v2050 = vadd.f32 0.0, %v2049
    %v2051 = vpop.f32.mrb[0].mxu0
    %2052 = vmatprep.mubr.f32.mxu0 %v1728
    %2053 = vmatmul.mubr.f32.gmra.mrb[0].mxu0 %v1727
    %v2054 = vpop.f32.mrb[0].mxu0
    %v2055 = vadd.f32 0.0, %v2054
    %v2056 = vpop.f32.mrb[0].mxu0
    %2057 = vmatprep.mubr.f32.mxu0 %v1730
    %2058 = vmatmul.mubr.f32.gmra.mrb[0].mxu0 %v1729
    %v2059 = vpop.f32.mrb[0].mxu0
    %v2060 = vadd.f32 0.0, %v2059
    %v2061 = vpop.f32.mrb[0].mxu0
    %2062 = vmatprep.mubr.f32.mxu0 %v1732
    %2063 = vmatmul.mubr.f32.gmra.mrb[0].mxu0 %v1731
    %v2064 = vpop.f32.mrb[0].mxu0
    %v2065 = vadd.f32 0.0, %v2064
    %v2066 = vpop.f32.mrb[0].mxu0
    %2067 = vmatprep.mubr.f32.mxu0 %v1734
    %2068 = vmatmul.mubr.f32.gmra.mrb[0].mxu0 %v1733
    %v2069 = vpop.f32.mrb[0].mxu0
    %v2070 = vadd.f32 0.0, %v2069
    %v2071 = vpop.f32.mrb[0].mxu0
    %2072 = vmatprep.mubr.f32.mxu0 %v1736
    %2073 = vmatmul.mubr.f32.gmra.mrb[0].mxu0 %v1735
    %v2074 = vpop.f32.mrb[0].mxu0
    %v2075 = vadd.f32 0.0, %v2074
    %v2076 = vpop.f32.mrb[0].mxu0
    %2077 = vmatprep.mubr.f32.mxu0 %v1738
    %2078 = vmatmul.mubr.f32.gmra.mrb[0].mxu0 %v1737
    %v2079 = vpop.f32.mrb[0].mxu0
    %v2080 = vadd.f32 0.0, %v2079
    %v2081 = vpop.f32.mrb[0].mxu0
    %2082 = vmatprep.mubr.f32.mxu0 %v1740
    %2083 = vmatmul.mubr.f32.gmra.mrb[0].mxu0 %v1739
    %v2084 = vpop.f32.mrb[0].mxu0
    %v2085 = vadd.f32 0.0, %v2084
    %v2086 = vpop.f32.mrb[0].mxu0
    %2087 = vmatprep.mubr.f32.mxu0 %v1742
    %2088 = vmatmul.mubr.f32.gmra.mrb[0].mxu0 %v1741
    %v2089 = vpop.f32.mrb[0].mxu0
    %v2090 = vadd.f32 0.0, %v2089
    %v2091 = vpop.f32.mrb[0].mxu0
    %2092 = vmatprep.mubr.f32.mxu0 %v1744
    %2093 = vmatmul.mubr.f32.gmra.mrb[0].mxu0 %v1743
    %v2094 = vpop.f32.mrb[0].mxu0
    %v2095 = vadd.f32 0.0, %v2094
    %v2096 = vpop.f32.mrb[0].mxu0
    %2097 = vmatprep.mubr.f32.mxu0 %v1746
    %2098 = vmatmul.mubr.f32.gmra.mrb[0].mxu0 %v1745
    %v2099 = vpop.f32.mrb[0].mxu0
    %v2100 = vadd.f32 0.0, %v2099
    %v2101 = vpop.f32.mrb[0].mxu0
    %2102 = vmatprep.mubr.f32.mxu0 %v1748
    %2103 = vmatmul.mubr.f32.gmra.mrb[0].mxu0 %v1747
    %v2104 = vpop.f32.mrb[0].mxu0
    %v2105 = vadd.f32 0.0, %v2104
    %v2106 = vpop.f32.mrb[0].mxu0
    %2107 = vmatprep.mubr.f32.mxu0 %v1750
    %2108 = vmatmul.mubr.f32.gmra.mrb[0].mxu0 %v1749
    %v2109 = vpop.f32.mrb[0].mxu0
    %v2110 = vadd.f32 0.0, %v2109
    %v2111 = vpop.f32.mrb[0].mxu0
    %2112 = vmatprep.mubr.f32.mxu0 %v1752
    %2113 = vmatmul.mubr.f32.gmra.mrb[0].mxu0 %v1751
    %v2114 = vpop.f32.mrb[0].mxu0
    %v2115 = vadd.f32 0.0, %v2114
    %v2116 = vpop.f32.mrb[0].mxu0
    %2117 = vmatprep.mubr.f32.mxu0 %v1754
    %2118 = vmatmul.mubr.f32.gmra.mrb[0].mxu0 %v1753
    %v2119 = vpop.f32.mrb[0].mxu0
    %v2120 = vadd.f32 0.0, %v2119
    %v2121 = vpop.f32.mrb[0].mxu0
    %2122 = vmatprep.mubr.f32.mxu0 %v1756
    %2123 = vmatmul.mubr.f32.gmra.mrb[0].mxu0 %v1755
    %v2124 = vpop.f32.mrb[0].mxu0
    %v2125 = vadd.f32 0.0, %v2124
    %v2126 = vpop.f32.mrb[0].mxu0
    %2127 = vmatprep.mubr.f32.mxu0 %v1758
    %2128 = vmatmul.mubr.f32.gmra.mrb[0].mxu0 %v1757
    %v2129 = vpop.f32.mrb[0].mxu0
    %v2130 = vadd.f32 0.0, %v2129
    %v2131 = vpop.f32.mrb[0].mxu0
    %2132 = vmatprep.mubr.f32.mxu0 %v1760
    %2133 = vmatmul.mubr.f32.gmra.mrb[0].mxu0 %v1759
    %v2134 = vpop.f32.mrb[0].mxu0
    %v2135 = vadd.f32 0.0, %v2134
    %v2136 = vpop.f32.mrb[0].mxu0
    %2137 = vmatprep.mubr.f32.mxu0 %v1762
    %2138 = vmatmul.mubr.f32.gmra.mrb[0].mxu0 %v1761
    %v2139 = vpop.f32.mrb[0].mxu0
    %v2140 = vadd.f32 0.0, %v2139
    %v2141 = vpop.f32.mrb[0].mxu0
    %2142 = vmatprep.mubr.f32.mxu0 %v1764
    %2143 = vmatmul.mubr.f32.gmra.mrb[0].mxu0 %v1763
    %v2144 = vpop.f32.mrb[0].mxu0
    %v2145 = vadd.f32 0.0, %v2144
    %v2146 = vpop.f32.mrb[0].mxu0
    %2147 = vmatprep.mubr.f32.mxu0 %v1766
    %2148 = vmatmul.mubr.f32.gmra.mrb[0].mxu0 %v1765
    %v2149 = vpop.f32.mrb[0].mxu0
    %v2150 = vadd.f32 0.0, %v2149
    %v2151 = vpop.f32.mrb[0].mxu0
    %2152 = vmatprep.mubr.f32.mxu0 %v1768
    %2153 = vmatmul.mubr.f32.gmra.mrb[0].mxu0 %v1767
    %v2154 = vpop.f32.mrb[0].mxu0
    %v2155 = vadd.f32 0.0, %v2154
    %v2156 = vpop.f32.mrb[0].mxu0
    %2157 = vmatprep.mubr.f32.mxu0 %v1770
    %2158 = vmatmul.mubr.f32.gmra.mrb[0].mxu0 %v1769
    %v2159 = vpop.f32.mrb[0].mxu0
    %v2160 = vadd.f32 0.0, %v2159
    %v2161 = vpop.f32.mrb[0].mxu0
    %2162 = vmatprep.mubr.f32.mxu0 %v1772
    %2163 = vmatmul.mubr.f32.gmra.mrb[0].mxu0 %v1771
    %v2164 = vpop.f32.mrb[0].mxu0
    %v2165 = vadd.f32 0.0, %v2164
    %v2166 = vpop.f32.mrb[0].mxu0
    %2167 = vmatprep.mubr.f32.mxu0 %v1774
    %2168 = vmatmul.mubr.f32.gmra.mrb[0].mxu0 %v1773
    %v2169 = vpop.f32.mrb[0].mxu0
    %v2170 = vadd.f32 0.0, %v2169
    %v2171 = vpop.f32.mrb[0].mxu0
    %2172 = vmatprep.mubr.f32.mxu0 %v1776
    %2173 = vmatmul.mubr.f32.gmra.mrb[0].mxu0 %v1775
    %v2174 = vpop.f32.mrb[0].mxu0
    %v2175 = vadd.f32 0.0, %v2174
    %v2176 = vpop.f32.mrb[0].mxu0
    %2177 = vmatprep.mubr.f32.mxu0 %v1778
    %2178 = vmatmul.mubr.f32.gmra.mrb[0].mxu0 %v1777
    %v2179 = vpop.f32.mrb[0].mxu0
    %v2180 = vadd.f32 0.0, %v2179
    %v2181 = vpop.f32.mrb[0].mxu0
    %2182 = vmatprep.mubr.f32.mxu0 %v1780
    %2183 = vmatmul.mubr.f32.gmra.mrb[0].mxu0 %v1779
    %v2184 = vpop.f32.mrb[0].mxu0
    %v2185 = vadd.f32 0.0, %v2184
    %v2186 = vpop.f32.mrb[0].mxu0
    %2187 = vmatprep.mubr.f32.mxu0 %v1782
    %2188 = vmatmul.mubr.f32.gmra.mrb[0].mxu0 %v1781
    %v2189 = vpop.f32.mrb[0].mxu0
    %v2190 = vadd.f32 0.0, %v2189
    %v2191 = vpop.f32.mrb[0].mxu0
    %2192 = vmatprep.mubr.f32.mxu0 %v1784
    %2193 = vmatmul.mubr.f32.gmra.mrb[0].mxu0 %v1783
    %v2194 = vpop.f32.mrb[0].mxu0
    %v2195 = vadd.f32 0.0, %v2194
    %v2196 = vpop.f32.mrb[0].mxu0
    %2197 = vmatprep.mubr.f32.mxu0 %v1786
    %2198 = vmatmul.mubr.f32.gmra.mrb[0].mxu0 %v1785
    %v2199 = vpop.f32.mrb[0].mxu0
    %v2200 = vadd.f32 0.0, %v2199
    %v2201 = vpop.f32.mrb[0].mxu0
    %2202 = vmatprep.mubr.f32.mxu0 %v1788
    %2203 = vmatmul.mubr.f32.gmra.mrb[0].mxu0 %v1787
    %v2204 = vpop.f32.mrb[0].mxu0
    %v2205 = vadd.f32 0.0, %v2204
    %v2206 = vpop.f32.mrb[0].mxu0
    %2207 = vmatprep.mubr.f32.mxu0 %v1790
    %2208 = vmatmul.mubr.f32.gmra.mrb[0].mxu0 %v1789
    %v2209 = vpop.f32.mrb[0].mxu0
    %v2210 = vadd.f32 0.0, %v2209
    %v2211 = vpop.f32.mrb[0].mxu0
    %2212 = vmatprep.mubr.f32.mxu0 %v1792
    %2213 = vmatmul.mubr.f32.gmra.mrb[0].mxu0 %v1791
    %v2214 = vpop.f32.mrb[0].mxu0
    %v2215 = vadd.f32 0.0, %v2214
    %v2216 = vpop.f32.mrb[0].mxu0
    %2217 = vmatprep.mubr.f32.mxu0 %v1794
    %2218 = vmatmul.mubr.f32.gmra.mrb[0].mxu0 %v1793
    %v2219 = vpop.f32.mrb[0].mxu0
    %v2220 = vadd.f32 0.0, %v2219
    %v2221 = vpop.f32.mrb[0].mxu0
    %2222 = vmatprep.mubr.f32.mxu0 %v1796
    %2223 = vmatmul.mubr.f32.gmra.mrb[0].mxu0 %v1795
    %v2224 = vpop.f32.mrb[0].mxu0
    %v2225 = vadd.f32 0.0, %v2224
    %v2226 = vpop.f32.mrb[0].mxu0
    %2227 = vmatprep.mubr.f32.mxu0 %v1798
    %2228 = vmatmul.mubr.f32.gmra.mrb[0].mxu0 %v1797
    %v2229 = vpop.f32.mrb[0].mxu0
    %v2230 = vadd.f32 0.0, %v2229
    %v2231 = vpop.f32.mrb[0].mxu0
    %2232 = vmatprep.mubr.f32.mxu0 %v1800
    %2233 = vmatmul.mubr.f32.gmra.mrb[0].mxu0 %v1799
    %v2234 = vpop.f32.mrb[0].mxu0
    %v2235 = vadd.f32 0.0, %v2234
    %v2236 = vpop.f32.mrb[0].mxu0
    %2237 = vmatprep.mubr.f32.mxu0 %v1802
    %2238 = vmatmul.mubr.f32.gmra.mrb[0].mxu0 %v1801
    %v2239 = vpop.f32.mrb[0].mxu0
    %v2240 = vadd.f32 0.0, %v2239
    %v2241 = vpop.f32.mrb[0].mxu0
    %2242 = vmatprep.mubr.f32.mxu0 %v1804
    %2243 = vmatmul.mubr.f32.gmra.mrb[0].mxu0 %v1803
    %v2244 = vpop.f32.mrb[0].mxu0
    %v2245 = vadd.f32 0.0, %v2244
    %v2246 = vpop.f32.mrb[0].mxu0
    %2247 = vmatprep.mubr.f32.mxu0 %v1806
    %2248 = vmatmul.mubr.f32.gmra.mrb[0].mxu0 %v1805
    %v2249 = vpop.f32.mrb[0].mxu0
    %v2250 = vadd.f32 0.0, %v2249
    %v2251 = vpop.f32.mrb[0].mxu0
    %2252 = vmatprep.mubr.f32.mxu0 %v1808
    %2253 = vmatmul.mubr.f32.gmra.mrb[0].mxu0 %v1807
    %v2254 = vpop.f32.mrb[0].mxu0
    %v2255 = vadd.f32 0.0, %v2254
    %v2256 = vpop.f32.mrb[0].mxu0
    %2257 = vmatprep.mubr.f32.mxu0 %v1810
    %2258 = vmatmul.mubr.f32.gmra.mrb[0].mxu0 %v1809
    %v2259 = vpop.f32.mrb[0].mxu0
    %v2260 = vadd.f32 0.0, %v2259
    %v2261 = vpop.f32.mrb[0].mxu0
    %2262 = vmatprep.mubr.f32.mxu0 %v1812
    %2263 = vmatmul.mubr.f32.gmra.mrb[0].mxu0 %v1811
    %v2264 = vpop.f32.mrb[0].mxu0
    %v2265 = vadd.f32 0.0, %v2264
    %v2266 = vpop.f32.mrb[0].mxu0
    %2267 = vmatprep.mubr.f32.mxu0 %v1814
    %2268 = vmatmul.mubr.f32.gmra.mrb[0].mxu0 %v1813
    %v2269 = vpop.f32.mrb[0].mxu0
    %v2270 = vadd.f32 0.0, %v2269
    %v2271 = vpop.f32.mrb[0].mxu0
    %2272 = vmatprep.mubr.f32.mxu0 %v1816
    %2273 = vmatmul.mubr.f32.gmra.mrb[0].mxu0 %v1815
    %v2274 = vpop.f32.mrb[0].mxu0
    %v2275 = vadd.f32 0.0, %v2274
    %v2276 = vpop.f32.mrb[0].mxu0
    %2277 = vdwg.mxu0
    %v2279 = vsel %vm877, %v1960, 0
    %v2282 = vsel %vm877, %v1965, 0
    %v2285 = vsel %vm877, %v1970, 0
    %v2288 = vsel %vm877, %v1975, 0
    %v2291 = vsel %vm877, %v1980, 0
    %v2294 = vsel %vm877, %v1985, 0
    %v2297 = vsel %vm877, %v1990, 0
    %v2300 = vsel %vm877, %v1995, 0
    %2302 = vmatprep.subr.mxu0 0.0
    %2303 = vmatpush1.msra.mxu0 %v1821
    %2304 = vmatprep.subr.mxu0 0.0
    %2305 = vmatpush1.msra.mxu0 %v1822
    %2306 = vmatprep.subr.mxu0 0.0
    %2307 = vmatpush1.msra.mxu0 %v1823
    %2308 = vmatprep.subr.mxu0 0.0
    %2309 = vmatpush1.msra.mxu0 %v1824
    %2310 = vmatprep.subr.mxu0 0.0
    %2311 = vmatpush1.msra.mxu0 0.0
    %2312 = vmatprep.subr.mxu0 0.0
    %2313 = vmatpush1.msra.mxu0 0.0
    %2314 = vmatprep.subr.mxu0 0.0
    %2315 = vmatpush1.msra.mxu0 0.0
    %2316 = vmatprep.subr.mxu0 0.0
    %2317 = vmatpush1.msra.mxu0 0.0
    %2318 = vmatprep.subr.mxu0 0.0
    %2319 = vmatpush1.msra.mxu0 0.0
    %2320 = vmatprep.subr.mxu0 0.0
    %2321 = vmatpush1.msra.mxu0 0.0
    %2322 = vmatprep.subr.mxu0 0.0
    %2323 = vmatpush1.msra.mxu0 0.0
    %2324 = vmatprep.subr.mxu0 0.0
    %2325 = vmatpush1.msra.mxu0 0.0
    %2326 = vmatprep.subr.mxu0 0.0
    %2327 = vmatpush1.msra.mxu0 0.0
    %2328 = vmatprep.subr.mxu0 0.0
    %2329 = vmatpush1.msra.mxu0 0.0
    %2330 = vmatprep.subr.mxu0 0.0
    %2331 = vmatpush1.msra.mxu0 0.0
    %2332 = vmatprep.subr.mxu0 0.0
    %2333 = vmatpush1.msra.mxu0 0.0
    %2334 = vmatprep.subr.mxu0 0.0
    %2335 = vmatpush1.msra.mxu0 0.0
    %2336 = vmatprep.subr.mxu0 0.0
    %2337 = vmatpush1.msra.mxu0 0.0
    %2338 = vmatprep.subr.mxu0 0.0
    %2339 = vmatpush1.msra.mxu0 0.0
    %2340 = vmatprep.subr.mxu0 0.0
    %2341 = vmatpush1.msra.mxu0 0.0
    %2342 = vmatprep.subr.mxu0 0.0
    %2343 = vmatpush1.msra.mxu0 0.0
    %2344 = vmatprep.subr.mxu0 0.0
    %2345 = vmatpush1.msra.mxu0 0.0
    %2346 = vmatprep.subr.mxu0 0.0
    %2347 = vmatpush1.msra.mxu0 0.0
    %2348 = vmatprep.subr.mxu0 0.0
    %2349 = vmatpush1.msra.mxu0 0.0
    %2350 = vmatprep.subr.mxu0 0.0
    %2351 = vmatpush1.msra.mxu0 0.0
    %2352 = vmatprep.subr.mxu0 0.0
    %2353 = vmatpush1.msra.mxu0 0.0
    %2354 = vmatprep.subr.mxu0 0.0
    %2355 = vmatpush1.msra.mxu0 0.0
    %2356 = vmatprep.subr.mxu0 0.0
    %2357 = vmatpush1.msra.mxu0 0.0
    %2358 = vmatprep.subr.mxu0 0.0
    %2359 = vmatpush1.msra.mxu0 0.0
    %2360 = vmatprep.subr.mxu0 0.0
    %2361 = vmatpush1.msra.mxu0 0.0
    %2362 = vmatprep.subr.mxu0 0.0
    %2363 = vmatpush1.msra.mxu0 0.0
    %2364 = vmatprep.subr.mxu0 0.0
    %2365 = vmatpush1.msra.mxu0 0.0
    %2366 = vmatprep.mubr.f32.mxu0 0.0
    %2367 = vmatmul.mubr.f32.gmra.mrb[0].mxu0 %v2279
    %v2368 = vpop.f32.mrb[0].mxu0
    %v2369 = vadd.f32 0.0, %v2368
    %v2370 = vpop.f32.mrb[0].mxu0
    %2371 = vmatprep.mubr.f32.mxu0 0.0
    %2372 = vmatmul.mubr.f32.gmra.mrb[0].mxu0 %v2282
    %v2373 = vpop.f32.mrb[0].mxu0
    %v2374 = vadd.f32 0.0, %v2373
    %v2375 = vpop.f32.mrb[0].mxu0
    %2376 = vmatprep.mubr.f32.mxu0 0.0
    %2377 = vmatmul.mubr.f32.gmra.mrb[0].mxu0 %v2285
    %v2378 = vpop.f32.mrb[0].mxu0
    %v2379 = vadd.f32 0.0, %v2378
    %v2380 = vpop.f32.mrb[0].mxu0
    %2381 = vmatprep.mubr.f32.mxu0 0.0
    %2382 = vmatmul.mubr.f32.gmra.mrb[0].mxu0 %v2288
    %v2383 = vpop.f32.mrb[0].mxu0
    %v2384 = vadd.f32 0.0, %v2383
    %v2385 = vpop.f32.mrb[0].mxu0
    %2386 = vmatprep.mubr.f32.mxu0 0.0
    %2387 = vmatmul.mubr.f32.gmra.mrb[0].mxu0 %v2291
    %v2388 = vpop.f32.mrb[0].mxu0
    %v2389 = vadd.f32 0.0, %v2388
    %v2390 = vpop.f32.mrb[0].mxu0
    %2391 = vmatprep.mubr.f32.mxu0 0.0
    %2392 = vmatmul.mubr.f32.gmra.mrb[0].mxu0 %v2294
    %v2393 = vpop.f32.mrb[0].mxu0
    %v2394 = vadd.f32 0.0, %v2393
    %v2395 = vpop.f32.mrb[0].mxu0
    %2396 = vmatprep.mubr.f32.mxu0 0.0
    %2397 = vmatmul.mubr.f32.gmra.mrb[0].mxu0 %v2297
    %v2398 = vpop.f32.mrb[0].mxu0
    %v2399 = vadd.f32 0.0, %v2398
    %v2400 = vpop.f32.mrb[0].mxu0
    %2401 = vmatprep.mubr.f32.mxu0 0.0
    %2402 = vmatmul.mubr.f32.gmra.mrb[0].mxu0 %v2300
    %v2403 = vpop.f32.mrb[0].mxu0
    %v2404 = vadd.f32 0.0, %v2403
    %v2405 = vpop.f32.mrb[0].mxu0
    %2406 = vdwg.mxu0
    %v2408 = vsel %vm877, %v1920, 0
    %v2411 = vsel %vm877, %v1925, 0
    %v2414 = vsel %vm877, %v1930, 0
    %v2417 = vsel %vm877, %v1935, 0
    %v2420 = vsel %vm877, %v1940, 0
    %v2423 = vsel %vm877, %v1945, 0
    %v2426 = vsel %vm877, %v1950, 0
    %v2429 = vsel %vm877, %v1955, 0
    %2431 = vmatprep.subr.mxu0 0.0
    %2432 = vmatpush1.msra.mxu0 %v1817
    %2433 = vmatprep.subr.mxu0 0.0
    %2434 = vmatpush1.msra.mxu0 %v1818
    %2435 = vmatprep.subr.mxu0 0.0
    %2436 = vmatpush1.msra.mxu0 %v1819
    %2437 = vmatprep.subr.mxu0 0.0
    %2438 = vmatpush1.msra.mxu0 %v1820
    %2439 = vmatprep.subr.mxu0 0.0
    %2440 = vmatpush1.msra.mxu0 0.0
    %2441 = vmatprep.subr.mxu0 0.0
    %2442 = vmatpush1.msra.mxu0 0.0
    %2443 = vmatprep.subr.mxu0 0.0
    %2444 = vmatpush1.msra.mxu0 0.0
    %2445 = vmatprep.subr.mxu0 0.0
    %2446 = vmatpush1.msra.mxu0 0.0
    %2447 = vmatprep.subr.mxu0 0.0
    %2448 = vmatpush1.msra.mxu0 0.0
    %2449 = vmatprep.subr.mxu0 0.0
    %2450 = vmatpush1.msra.mxu0 0.0
    %2451 = vmatprep.subr.mxu0 0.0
    %2452 = vmatpush1.msra.mxu0 0.0
    %2453 = vmatprep.subr.mxu0 0.0
    %2454 = vmatpush1.msra.mxu0 0.0
    %2455 = vmatprep.subr.mxu0 0.0
    %2456 = vmatpush1.msra.mxu0 0.0
    %2457 = vmatprep.subr.mxu0 0.0
    %2458 = vmatpush1.msra.mxu0 0.0
    %2459 = vmatprep.subr.mxu0 0.0
    %2460 = vmatpush1.msra.mxu0 0.0
    %2461 = vmatprep.subr.mxu0 0.0
    %2462 = vmatpush1.msra.mxu0 0.0
    %2463 = vmatprep.subr.mxu0 0.0
    %2464 = vmatpush1.msra.mxu0 0.0
    %2465 = vmatprep.subr.mxu0 0.0
    %2466 = vmatpush1.msra.mxu0 0.0
    %2467 = vmatprep.subr.mxu0 0.0
    %2468 = vmatpush1.msra.mxu0 0.0
    %2469 = vmatprep.subr.mxu0 0.0
    %2470 = vmatpush1.msra.mxu0 0.0
    %2471 = vmatprep.subr.mxu0 0.0
    %2472 = vmatpush1.msra.mxu0 0.0
    %2473 = vmatprep.subr.mxu0 0.0
    %2474 = vmatpush1.msra.mxu0 0.0
    %2475 = vmatprep.subr.mxu0 0.0
    %2476 = vmatpush1.msra.mxu0 0.0
    %2477 = vmatprep.subr.mxu0 0.0
    %2478 = vmatpush1.msra.mxu0 0.0
    %2479 = vmatprep.subr.mxu0 0.0
    %2480 = vmatpush1.msra.mxu0 0.0
    %2481 = vmatprep.subr.mxu0 0.0
    %2482 = vmatpush1.msra.mxu0 0.0
    %2483 = vmatprep.subr.mxu0 0.0
    %2484 = vmatpush1.msra.mxu0 0.0
    %2485 = vmatprep.subr.mxu0 0.0
    %2486 = vmatpush1.msra.mxu0 0.0
    %2487 = vmatprep.subr.mxu0 0.0
    %2488 = vmatpush1.msra.mxu0 0.0
    %2489 = vmatprep.subr.mxu0 0.0
    %2490 = vmatpush1.msra.mxu0 0.0
    %2491 = vmatprep.subr.mxu0 0.0
    %2492 = vmatpush1.msra.mxu0 0.0
    %2493 = vmatprep.subr.mxu0 0.0
    %2494 = vmatpush1.msra.mxu0 0.0
    %2495 = vmatprep.mubr.f32.mxu0 0.0
    %2496 = vmatmul.mubr.f32.gmra.mrb[0].mxu0 %v2408
    %v2497 = vpop.f32.mrb[0].mxu0
    %v2498 = vadd.f32 %v2369, %v2497
    %v2499 = vpop.f32.mrb[0].mxu0
    %2500 = vmatprep.mubr.f32.mxu0 0.0
    %2501 = vmatmul.mubr.f32.gmra.mrb[0].mxu0 %v2411
    %v2502 = vpop.f32.mrb[0].mxu0
    %v2503 = vadd.f32 %v2374, %v2502
    %v2504 = vpop.f32.mrb[0].mxu0
    %2505 = vmatprep.mubr.f32.mxu0 0.0
    %2506 = vmatmul.mubr.f32.gmra.mrb[0].mxu0 %v2414
    %v2507 = vpop.f32.mrb[0].mxu0
    %v2508 = vadd.f32 %v2379, %v2507
    %v2509 = vpop.f32.mrb[0].mxu0
    %2510 = vmatprep.mubr.f32.mxu0 0.0
    %2511 = vmatmul.mubr.f32.gmra.mrb[0].mxu0 %v2417
    %v2512 = vpop.f32.mrb[0].mxu0
    %v2513 = vadd.f32 %v2384, %v2512
    %v2514 = vpop.f32.mrb[0].mxu0
    %2515 = vmatprep.mubr.f32.mxu0 0.0
    %2516 = vmatmul.mubr.f32.gmra.mrb[0].mxu0 %v2420
    %v2517 = vpop.f32.mrb[0].mxu0
    %v2518 = vadd.f32 %v2389, %v2517
    %v2519 = vpop.f32.mrb[0].mxu0
    %2520 = vmatprep.mubr.f32.mxu0 0.0
    %2521 = vmatmul.mubr.f32.gmra.mrb[0].mxu0 %v2423
    %v2522 = vpop.f32.mrb[0].mxu0
    %v2523 = vadd.f32 %v2394, %v2522
    %v2524 = vpop.f32.mrb[0].mxu0
    %2525 = vmatprep.mubr.f32.mxu0 0.0
    %2526 = vmatmul.mubr.f32.gmra.mrb[0].mxu0 %v2426
    %v2527 = vpop.f32.mrb[0].mxu0
    %v2528 = vadd.f32 %v2399, %v2527
    %v2529 = vpop.f32.mrb[0].mxu0
    %2530 = vmatprep.mubr.f32.mxu0 0.0
    %2531 = vmatmul.mubr.f32.gmra.mrb[0].mxu0 %v2429
    %v2532 = vpop.f32.mrb[0].mxu0
    %v2533 = vadd.f32 %v2404, %v2532
    %v2534 = vpop.f32.mrb[0].mxu0
    %2535 = vdwg.mxu0
    %v2537 = vsel %vm877, %v2000, 0
    %v2540 = vsel %vm877, %v2005, 0
    %v2543 = vsel %vm877, %v2010, 0
    %v2546 = vsel %vm877, %v2015, 0
    %v2549 = vsel %vm877, %v2020, 0
    %v2552 = vsel %vm877, %v2025, 0
    %v2555 = vsel %vm877, %v2030, 0
    %v2558 = vsel %vm877, %v2035, 0
    %2560 = vmatprep.subr.mxu0 0.0
    %2561 = vmatpush1.msra.mxu0 %v1825
    %2562 = vmatprep.subr.mxu0 0.0
    %2563 = vmatpush1.msra.mxu0 %v1826
    %2564 = vmatprep.subr.mxu0 0.0
    %2565 = vmatpush1.msra.mxu0 %v1827
    %2566 = vmatprep.subr.mxu0 0.0
    %2567 = vmatpush1.msra.mxu0 %v1828
    %2568 = vmatprep.subr.mxu0 0.0
    %2569 = vmatpush1.msra.mxu0 0.0
    %2570 = vmatprep.subr.mxu0 0.0
    %2571 = vmatpush1.msra.mxu0 0.0
    %2572 = vmatprep.subr.mxu0 0.0
    %2573 = vmatpush1.msra.mxu0 0.0
    %2574 = vmatprep.subr.mxu0 0.0
    %2575 = vmatpush1.msra.mxu0 0.0
    %2576 = vmatprep.subr.mxu0 0.0
    %2577 = vmatpush1.msra.mxu0 0.0
    %2578 = vmatprep.subr.mxu0 0.0
    %2579 = vmatpush1.msra.mxu0 0.0
    %2580 = vmatprep.subr.mxu0 0.0
    %2581 = vmatpush1.msra.mxu0 0.0
    %2582 = vmatprep.subr.mxu0 0.0
    %2583 = vmatpush1.msra.mxu0 0.0
    %2584 = vmatprep.subr.mxu0 0.0
    %2585 = vmatpush1.msra.mxu0 0.0
    %2586 = vmatprep.subr.mxu0 0.0
    %2587 = vmatpush1.msra.mxu0 0.0
    %2588 = vmatprep.subr.mxu0 0.0
    %2589 = vmatpush1.msra.mxu0 0.0
    %2590 = vmatprep.subr.mxu0 0.0
    %2591 = vmatpush1.msra.mxu0 0.0
    %2592 = vmatprep.subr.mxu0 0.0
    %2593 = vmatpush1.msra.mxu0 0.0
    %2594 = vmatprep.subr.mxu0 0.0
    %2595 = vmatpush1.msra.mxu0 0.0
    %2596 = vmatprep.subr.mxu0 0.0
    %2597 = vmatpush1.msra.mxu0 0.0
    %2598 = vmatprep.subr.mxu0 0.0
    %2599 = vmatpush1.msra.mxu0 0.0
    %2600 = vmatprep.subr.mxu0 0.0
    %2601 = vmatpush1.msra.mxu0 0.0
    %2602 = vmatprep.subr.mxu0 0.0
    %2603 = vmatpush1.msra.mxu0 0.0
    %2604 = vmatprep.subr.mxu0 0.0
    %2605 = vmatpush1.msra.mxu0 0.0
    %2606 = vmatprep.subr.mxu0 0.0
    %2607 = vmatpush1.msra.mxu0 0.0
    %2608 = vmatprep.subr.mxu0 0.0
    %2609 = vmatpush1.msra.mxu0 0.0
    %2610 = vmatprep.subr.mxu0 0.0
    %2611 = vmatpush1.msra.mxu0 0.0
    %2612 = vmatprep.subr.mxu0 0.0
    %2613 = vmatpush1.msra.mxu0 0.0
    %2614 = vmatprep.subr.mxu0 0.0
    %2615 = vmatpush1.msra.mxu0 0.0
    %2616 = vmatprep.subr.mxu0 0.0
    %2617 = vmatpush1.msra.mxu0 0.0
    %2618 = vmatprep.subr.mxu0 0.0
    %2619 = vmatpush1.msra.mxu0 0.0
    %2620 = vmatprep.subr.mxu0 0.0
    %2621 = vmatpush1.msra.mxu0 0.0
    %2622 = vmatprep.subr.mxu0 0.0
    %2623 = vmatpush1.msra.mxu0 0.0
    %2624 = vmatprep.mubr.f32.mxu0 0.0
    %2625 = vmatmul.mubr.f32.gmra.mrb[0].mxu0 %v2537
    %v2626 = vpop.f32.mrb[0].mxu0
    %v2627 = vadd.f32 0.0, %v2626
    %v2628 = vpop.f32.mrb[0].mxu0
    %2629 = vmatprep.mubr.f32.mxu0 0.0
    %2630 = vmatmul.mubr.f32.gmra.mrb[0].mxu0 %v2540
    %v2631 = vpop.f32.mrb[0].mxu0
    %v2632 = vadd.f32 0.0, %v2631
    %v2633 = vpop.f32.mrb[0].mxu0
    %2634 = vmatprep.mubr.f32.mxu0 0.0
    %2635 = vmatmul.mubr.f32.gmra.mrb[0].mxu0 %v2543
    %v2636 = vpop.f32.mrb[0].mxu0
    %v2637 = vadd.f32 0.0, %v2636
    %v2638 = vpop.f32.mrb[0].mxu0
    %2639 = vmatprep.mubr.f32.mxu0 0.0
    %2640 = vmatmul.mubr.f32.gmra.mrb[0].mxu0 %v2546
    %v2641 = vpop.f32.mrb[0].mxu0
    %v2642 = vadd.f32 0.0, %v2641
    %v2643 = vpop.f32.mrb[0].mxu0
    %2644 = vmatprep.mubr.f32.mxu0 0.0
    %2645 = vmatmul.mubr.f32.gmra.mrb[0].mxu0 %v2549
    %v2646 = vpop.f32.mrb[0].mxu0
    %v2647 = vadd.f32 0.0, %v2646
    %v2648 = vpop.f32.mrb[0].mxu0
    %2649 = vmatprep.mubr.f32.mxu0 0.0
    %2650 = vmatmul.mubr.f32.gmra.mrb[0].mxu0 %v2552
    %v2651 = vpop.f32.mrb[0].mxu0
    %v2652 = vadd.f32 0.0, %v2651
    %v2653 = vpop.f32.mrb[0].mxu0
    %2654 = vmatprep.mubr.f32.mxu0 0.0
    %2655 = vmatmul.mubr.f32.gmra.mrb[0].mxu0 %v2555
    %v2656 = vpop.f32.mrb[0].mxu0
    %v2657 = vadd.f32 0.0, %v2656
    %v2658 = vpop.f32.mrb[0].mxu0
    %2659 = vmatprep.mubr.f32.mxu0 0.0
    %2660 = vmatmul.mubr.f32.gmra.mrb[0].mxu0 %v2558
    %v2661 = vpop.f32.mrb[0].mxu0
    %v2662 = vadd.f32 0.0, %v2661
    %v2663 = vpop.f32.mrb[0].mxu0
    %2664 = vdwg.mxu0
    %v2665 = vadd.f32 %v2498, %v2627
    %v2666 = vadd.f32 %v2503, %v2632
    %v2667 = vadd.f32 %v2508, %v2637
    %v2668 = vadd.f32 %v2513, %v2642
    %v2669 = vadd.f32 %v2518, %v2647
    %v2670 = vadd.f32 %v2523, %v2652
    %v2671 = vadd.f32 %v2528, %v2657
    %v2672 = vadd.f32 %v2533, %v2662
    %v2674 = vsel %vm877, %v2040, 0
    %v2677 = vsel %vm877, %v2045, 0
    %v2680 = vsel %vm877, %v2050, 0
    %v2683 = vsel %vm877, %v2055, 0
    %v2686 = vsel %vm877, %v2060, 0
    %v2689 = vsel %vm877, %v2065, 0
    %v2692 = vsel %vm877, %v2070, 0
    %v2695 = vsel %vm877, %v2075, 0
    %2697 = vmatprep.subr.mxu0 0.0
    %2698 = vmatpush1.msra.mxu0 %v1829
    %2699 = vmatprep.subr.mxu0 0.0
    %2700 = vmatpush1.msra.mxu0 %v1830
    %2701 = vmatprep.subr.mxu0 0.0
    %2702 = vmatpush1.msra.mxu0 %v1831
    %2703 = vmatprep.subr.mxu0 0.0
    %2704 = vmatpush1.msra.mxu0 %v1832
    %2705 = vmatprep.subr.mxu0 0.0
    %2706 = vmatpush1.msra.mxu0 0.0
    %2707 = vmatprep.subr.mxu0 0.0
    %2708 = vmatpush1.msra.mxu0 0.0
    %2709 = vmatprep.subr.mxu0 0.0
    %2710 = vmatpush1.msra.mxu0 0.0
    %2711 = vmatprep.subr.mxu0 0.0
    %2712 = vmatpush1.msra.mxu0 0.0
    %2713 = vmatprep.subr.mxu0 0.0
    %2714 = vmatpush1.msra.mxu0 0.0
    %2715 = vmatprep.subr.mxu0 0.0
    %2716 = vmatpush1.msra.mxu0 0.0
    %2717 = vmatprep.subr.mxu0 0.0
    %2718 = vmatpush1.msra.mxu0 0.0
    %2719 = vmatprep.subr.mxu0 0.0
    %2720 = vmatpush1.msra.mxu0 0.0
    %2721 = vmatprep.subr.mxu0 0.0
    %2722 = vmatpush1.msra.mxu0 0.0
    %2723 = vmatprep.subr.mxu0 0.0
    %2724 = vmatpush1.msra.mxu0 0.0
    %2725 = vmatprep.subr.mxu0 0.0
    %2726 = vmatpush1.msra.mxu0 0.0
    %2727 = vmatprep.subr.mxu0 0.0
    %2728 = vmatpush1.msra.mxu0 0.0
    %2729 = vmatprep.subr.mxu0 0.0
    %2730 = vmatpush1.msra.mxu0 0.0
    %2731 = vmatprep.subr.mxu0 0.0
    %2732 = vmatpush1.msra.mxu0 0.0
    %2733 = vmatprep.subr.mxu0 0.0
    %2734 = vmatpush1.msra.mxu0 0.0
    %2735 = vmatprep.subr.mxu0 0.0
    %2736 = vmatpush1.msra.mxu0 0.0
    %2737 = vmatprep.subr.mxu0 0.0
    %2738 = vmatpush1.msra.mxu0 0.0
    %2739 = vmatprep.subr.mxu0 0.0
    %2740 = vmatpush1.msra.mxu0 0.0
    %2741 = vmatprep.subr.mxu0 0.0
    %2742 = vmatpush1.msra.mxu0 0.0
    %2743 = vmatprep.subr.mxu0 0.0
    %2744 = vmatpush1.msra.mxu0 0.0
    %2745 = vmatprep.subr.mxu0 0.0
    %2746 = vmatpush1.msra.mxu0 0.0
    %2747 = vmatprep.subr.mxu0 0.0
    %2748 = vmatpush1.msra.mxu0 0.0
    %2749 = vmatprep.subr.mxu0 0.0
    %2750 = vmatpush1.msra.mxu0 0.0
    %2751 = vmatprep.subr.mxu0 0.0
    %2752 = vmatpush1.msra.mxu0 0.0
    %2753 = vmatprep.subr.mxu0 0.0
    %2754 = vmatpush1.msra.mxu0 0.0
    %2755 = vmatprep.subr.mxu0 0.0
    %2756 = vmatpush1.msra.mxu0 0.0
    %2757 = vmatprep.subr.mxu0 0.0
    %2758 = vmatpush1.msra.mxu0 0.0
    %2759 = vmatprep.subr.mxu0 0.0
    %2760 = vmatpush1.msra.mxu0 0.0
    %2761 = vmatprep.mubr.f32.mxu0 0.0
    %2762 = vmatmul.mubr.f32.gmra.mrb[0].mxu0 %v2674
    %v2763 = vpop.f32.mrb[0].mxu0
    %v2764 = vadd.f32 0.0, %v2763
    %v2765 = vpop.f32.mrb[0].mxu0
    %2766 = vmatprep.mubr.f32.mxu0 0.0
    %2767 = vmatmul.mubr.f32.gmra.mrb[0].mxu0 %v2677
    %v2768 = vpop.f32.mrb[0].mxu0
    %v2769 = vadd.f32 0.0, %v2768
    %v2770 = vpop.f32.mrb[0].mxu0
    %2771 = vmatprep.mubr.f32.mxu0 0.0
    %2772 = vmatmul.mubr.f32.gmra.mrb[0].mxu0 %v2680
    %v2773 = vpop.f32.mrb[0].mxu0
    %v2774 = vadd.f32 0.0, %v2773
    %v2775 = vpop.f32.mrb[0].mxu0
    %2776 = vmatprep.mubr.f32.mxu0 0.0
    %2777 = vmatmul.mubr.f32.gmra.mrb[0].mxu0 %v2683
    %v2778 = vpop.f32.mrb[0].mxu0
    %v2779 = vadd.f32 0.0, %v2778
    %v2780 = vpop.f32.mrb[0].mxu0
    %2781 = vmatprep.mubr.f32.mxu0 0.0
    %2782 = vmatmul.mubr.f32.gmra.mrb[0].mxu0 %v2686
    %v2783 = vpop.f32.mrb[0].mxu0
    %v2784 = vadd.f32 0.0, %v2783
    %v2785 = vpop.f32.mrb[0].mxu0
    %2786 = vmatprep.mubr.f32.mxu0 0.0
    %2787 = vmatmul.mubr.f32.gmra.mrb[0].mxu0 %v2689
    %v2788 = vpop.f32.mrb[0].mxu0
    %v2789 = vadd.f32 0.0, %v2788
    %v2790 = vpop.f32.mrb[0].mxu0
    %2791 = vmatprep.mubr.f32.mxu0 0.0
    %2792 = vmatmul.mubr.f32.gmra.mrb[0].mxu0 %v2692
    %v2793 = vpop.f32.mrb[0].mxu0
    %v2794 = vadd.f32 0.0, %v2793
    %v2795 = vpop.f32.mrb[0].mxu0
    %2796 = vmatprep.mubr.f32.mxu0 0.0
    %2797 = vmatmul.mubr.f32.gmra.mrb[0].mxu0 %v2695
    %v2798 = vpop.f32.mrb[0].mxu0
    %v2799 = vadd.f32 0.0, %v2798
    %v2800 = vpop.f32.mrb[0].mxu0
    %2801 = vdwg.mxu0
    %v2802 = vadd.f32 %v2665, %v2764
    %v2803 = vadd.f32 %v2666, %v2769
    %v2804 = vadd.f32 %v2667, %v2774
    %v2805 = vadd.f32 %v2668, %v2779
    %v2806 = vadd.f32 %v2669, %v2784
    %v2807 = vadd.f32 %v2670, %v2789
    %v2808 = vadd.f32 %v2671, %v2794
    %v2809 = vadd.f32 %v2672, %v2799
    %v2811 = vsel %vm877, %v2080, 0
    %v2814 = vsel %vm877, %v2085, 0
    %v2817 = vsel %vm877, %v2090, 0
    %v2820 = vsel %vm877, %v2095, 0
    %v2823 = vsel %vm877, %v2100, 0
    %v2826 = vsel %vm877, %v2105, 0
    %v2829 = vsel %vm877, %v2110, 0
    %v2832 = vsel %vm877, %v2115, 0
    %2834 = vmatprep.subr.mxu0 0.0
    %2835 = vmatpush1.msra.mxu0 %v1833
    %2836 = vmatprep.subr.mxu0 0.0
    %2837 = vmatpush1.msra.mxu0 %v1834
    %2838 = vmatprep.subr.mxu0 0.0
    %2839 = vmatpush1.msra.mxu0 %v1835
    %2840 = vmatprep.subr.mxu0 0.0
    %2841 = vmatpush1.msra.mxu0 %v1836
    %2842 = vmatprep.subr.mxu0 0.0
    %2843 = vmatpush1.msra.mxu0 0.0
    %2844 = vmatprep.subr.mxu0 0.0
    %2845 = vmatpush1.msra.mxu0 0.0
    %2846 = vmatprep.subr.mxu0 0.0
    %2847 = vmatpush1.msra.mxu0 0.0
    %2848 = vmatprep.subr.mxu0 0.0
    %2849 = vmatpush1.msra.mxu0 0.0
    %2850 = vmatprep.subr.mxu0 0.0
    %2851 = vmatpush1.msra.mxu0 0.0
    %2852 = vmatprep.subr.mxu0 0.0
    %2853 = vmatpush1.msra.mxu0 0.0
    %2854 = vmatprep.subr.mxu0 0.0
    %2855 = vmatpush1.msra.mxu0 0.0
    %2856 = vmatprep.subr.mxu0 0.0
    %2857 = vmatpush1.msra.mxu0 0.0
    %2858 = vmatprep.subr.mxu0 0.0
    %2859 = vmatpush1.msra.mxu0 0.0
    %2860 = vmatprep.subr.mxu0 0.0
    %2861 = vmatpush1.msra.mxu0 0.0
    %2862 = vmatprep.subr.mxu0 0.0
    %2863 = vmatpush1.msra.mxu0 0.0
    %2864 = vmatprep.subr.mxu0 0.0
    %2865 = vmatpush1.msra.mxu0 0.0
    %2866 = vmatprep.subr.mxu0 0.0
    %2867 = vmatpush1.msra.mxu0 0.0
    %2868 = vmatprep.subr.mxu0 0.0
    %2869 = vmatpush1.msra.mxu0 0.0
    %2870 = vmatprep.subr.mxu0 0.0
    %2871 = vmatpush1.msra.mxu0 0.0
    %2872 = vmatprep.subr.mxu0 0.0
    %2873 = vmatpush1.msra.mxu0 0.0
    %2874 = vmatprep.subr.mxu0 0.0
    %2875 = vmatpush1.msra.mxu0 0.0
    %2876 = vmatprep.subr.mxu0 0.0
    %2877 = vmatpush1.msra.mxu0 0.0
    %2878 = vmatprep.subr.mxu0 0.0
    %2879 = vmatpush1.msra.mxu0 0.0
    %2880 = vmatprep.subr.mxu0 0.0
    %2881 = vmatpush1.msra.mxu0 0.0
    %2882 = vmatprep.subr.mxu0 0.0
    %2883 = vmatpush1.msra.mxu0 0.0
    %2884 = vmatprep.subr.mxu0 0.0
    %2885 = vmatpush1.msra.mxu0 0.0
    %2886 = vmatprep.subr.mxu0 0.0
    %2887 = vmatpush1.msra.mxu0 0.0
    %2888 = vmatprep.subr.mxu0 0.0
    %2889 = vmatpush1.msra.mxu0 0.0
    %2890 = vmatprep.subr.mxu0 0.0
    %2891 = vmatpush1.msra.mxu0 0.0
    %2892 = vmatprep.subr.mxu0 0.0
    %2893 = vmatpush1.msra.mxu0 0.0
    %2894 = vmatprep.subr.mxu0 0.0
    %2895 = vmatpush1.msra.mxu0 0.0
    %2896 = vmatprep.subr.mxu0 0.0
    %2897 = vmatpush1.msra.mxu0 0.0
    %2898 = vmatprep.mubr.f32.mxu0 0.0
    %2899 = vmatmul.mubr.f32.gmra.mrb[0].mxu0 %v2811
    %v2900 = vpop.f32.mrb[0].mxu0
    %v2901 = vadd.f32 0.0, %v2900
    %v2902 = vpop.f32.mrb[0].mxu0
    %2903 = vmatprep.mubr.f32.mxu0 0.0
    %2904 = vmatmul.mubr.f32.gmra.mrb[0].mxu0 %v2814
    %v2905 = vpop.f32.mrb[0].mxu0
    %v2906 = vadd.f32 0.0, %v2905
    %v2907 = vpop.f32.mrb[0].mxu0
    %2908 = vmatprep.mubr.f32.mxu0 0.0
    %2909 = vmatmul.mubr.f32.gmra.mrb[0].mxu0 %v2817
    %v2910 = vpop.f32.mrb[0].mxu0
    %v2911 = vadd.f32 0.0, %v2910
    %v2912 = vpop.f32.mrb[0].mxu0
    %2913 = vmatprep.mubr.f32.mxu0 0.0
    %2914 = vmatmul.mubr.f32.gmra.mrb[0].mxu0 %v2820
    %v2915 = vpop.f32.mrb[0].mxu0
    %v2916 = vadd.f32 0.0, %v2915
    %v2917 = vpop.f32.mrb[0].mxu0
    %2918 = vmatprep.mubr.f32.mxu0 0.0
    %2919 = vmatmul.mubr.f32.gmra.mrb[0].mxu0 %v2823
    %v2920 = vpop.f32.mrb[0].mxu0
    %v2921 = vadd.f32 0.0, %v2920
    %v2922 = vpop.f32.mrb[0].mxu0
    %2923 = vmatprep.mubr.f32.mxu0 0.0
    %2924 = vmatmul.mubr.f32.gmra.mrb[0].mxu0 %v2826
    %v2925 = vpop.f32.mrb[0].mxu0
    %v2926 = vadd.f32 0.0, %v2925
    %v2927 = vpop.f32.mrb[0].mxu0
    %2928 = vmatprep.mubr.f32.mxu0 0.0
    %2929 = vmatmul.mubr.f32.gmra.mrb[0].mxu0 %v2829
    %v2930 = vpop.f32.mrb[0].mxu0
    %v2931 = vadd.f32 0.0, %v2930
    %v2932 = vpop.f32.mrb[0].mxu0
    %2933 = vmatprep.mubr.f32.mxu0 0.0
    %2934 = vmatmul.mubr.f32.gmra.mrb[0].mxu0 %v2832
    %v2935 = vpop.f32.mrb[0].mxu0
    %v2936 = vadd.f32 0.0, %v2935
    %v2937 = vpop.f32.mrb[0].mxu0
    %2938 = vdwg.mxu0
    %v2939 = vadd.f32 %v2802, %v2901
    %v2940 = vadd.f32 %v2803, %v2906
    %v2941 = vadd.f32 %v2804, %v2911
    %v2942 = vadd.f32 %v2805, %v2916
    %v2943 = vadd.f32 %v2806, %v2921
    %v2944 = vadd.f32 %v2807, %v2926
    %v2945 = vadd.f32 %v2808, %v2931
    %v2946 = vadd.f32 %v2809, %v2936
    %v2948 = vsel %vm877, %v2120, 0
    %v2951 = vsel %vm877, %v2125, 0
    %v2954 = vsel %vm877, %v2130, 0
    %v2957 = vsel %vm877, %v2135, 0
    %v2960 = vsel %vm877, %v2140, 0
    %v2963 = vsel %vm877, %v2145, 0
    %v2966 = vsel %vm877, %v2150, 0
    %v2969 = vsel %vm877, %v2155, 0
    %2971 = vmatprep.subr.mxu0 0.0
    %2972 = vmatpush1.msra.mxu0 %v1837
    %2973 = vmatprep.subr.mxu0 0.0
    %2974 = vmatpush1.msra.mxu0 %v1838
    %2975 = vmatprep.subr.mxu0 0.0
    %2976 = vmatpush1.msra.mxu0 %v1839
    %2977 = vmatprep.subr.mxu0 0.0
    %2978 = vmatpush1.msra.mxu0 %v1840
    %2979 = vmatprep.subr.mxu0 0.0
    %2980 = vmatpush1.msra.mxu0 0.0
    %2981 = vmatprep.subr.mxu0 0.0
    %2982 = vmatpush1.msra.mxu0 0.0
    %2983 = vmatprep.subr.mxu0 0.0
    %2984 = vmatpush1.msra.mxu0 0.0
    %2985 = vmatprep.subr.mxu0 0.0
    %2986 = vmatpush1.msra.mxu0 0.0
    %2987 = vmatprep.subr.mxu0 0.0
    %2988 = vmatpush1.msra.mxu0 0.0
    %2989 = vmatprep.subr.mxu0 0.0
    %2990 = vmatpush1.msra.mxu0 0.0
    %2991 = vmatprep.subr.mxu0 0.0
    %2992 = vmatpush1.msra.mxu0 0.0
    %2993 = vmatprep.subr.mxu0 0.0
    %2994 = vmatpush1.msra.mxu0 0.0
    %2995 = vmatprep.subr.mxu0 0.0
    %2996 = vmatpush1.msra.mxu0 0.0
    %2997 = vmatprep.subr.mxu0 0.0
    %2998 = vmatpush1.msra.mxu0 0.0
    %2999 = vmatprep.subr.mxu0 0.0
    %3000 = vmatpush1.msra.mxu0 0.0
    %3001 = vmatprep.subr.mxu0 0.0
    %3002 = vmatpush1.msra.mxu0 0.0
    %3003 = vmatprep.subr.mxu0 0.0
    %3004 = vmatpush1.msra.mxu0 0.0
    %3005 = vmatprep.subr.mxu0 0.0
    %3006 = vmatpush1.msra.mxu0 0.0
    %3007 = vmatprep.subr.mxu0 0.0
    %3008 = vmatpush1.msra.mxu0 0.0
    %3009 = vmatprep.subr.mxu0 0.0
    %3010 = vmatpush1.msra.mxu0 0.0
    %3011 = vmatprep.subr.mxu0 0.0
    %3012 = vmatpush1.msra.mxu0 0.0
    %3013 = vmatprep.subr.mxu0 0.0
    %3014 = vmatpush1.msra.mxu0 0.0
    %3015 = vmatprep.subr.mxu0 0.0
    %3016 = vmatpush1.msra.mxu0 0.0
    %3017 = vmatprep.subr.mxu0 0.0
    %3018 = vmatpush1.msra.mxu0 0.0
    %3019 = vmatprep.subr.mxu0 0.0
    %3020 = vmatpush1.msra.mxu0 0.0
    %3021 = vmatprep.subr.mxu0 0.0
    %3022 = vmatpush1.msra.mxu0 0.0
    %3023 = vmatprep.subr.mxu0 0.0
    %3024 = vmatpush1.msra.mxu0 0.0
    %3025 = vmatprep.subr.mxu0 0.0
    %3026 = vmatpush1.msra.mxu0 0.0
    %3027 = vmatprep.subr.mxu0 0.0
    %3028 = vmatpush1.msra.mxu0 0.0
    %3029 = vmatprep.subr.mxu0 0.0
    %3030 = vmatpush1.msra.mxu0 0.0
    %3031 = vmatprep.subr.mxu0 0.0
    %3032 = vmatpush1.msra.mxu0 0.0
    %3033 = vmatprep.subr.mxu0 0.0
    %3034 = vmatpush1.msra.mxu0 0.0
    %3035 = vmatprep.mubr.f32.mxu0 0.0
    %3036 = vmatmul.mubr.f32.gmra.mrb[0].mxu0 %v2948
    %v3037 = vpop.f32.mrb[0].mxu0
    %v3038 = vadd.f32 0.0, %v3037
    %v3039 = vpop.f32.mrb[0].mxu0
    %3040 = vmatprep.mubr.f32.mxu0 0.0
    %3041 = vmatmul.mubr.f32.gmra.mrb[0].mxu0 %v2951
    %v3042 = vpop.f32.mrb[0].mxu0
    %v3043 = vadd.f32 0.0, %v3042
    %v3044 = vpop.f32.mrb[0].mxu0
    %3045 = vmatprep.mubr.f32.mxu0 0.0
    %3046 = vmatmul.mubr.f32.gmra.mrb[0].mxu0 %v2954
    %v3047 = vpop.f32.mrb[0].mxu0
    %v3048 = vadd.f32 0.0, %v3047
    %v3049 = vpop.f32.mrb[0].mxu0
    %3050 = vmatprep.mubr.f32.mxu0 0.0
    %3051 = vmatmul.mubr.f32.gmra.mrb[0].mxu0 %v2957
    %v3052 = vpop.f32.mrb[0].mxu0
    %v3053 = vadd.f32 0.0, %v3052
    %v3054 = vpop.f32.mrb[0].mxu0
    %3055 = vmatprep.mubr.f32.mxu0 0.0
    %3056 = vmatmul.mubr.f32.gmra.mrb[0].mxu0 %v2960
    %v3057 = vpop.f32.mrb[0].mxu0
    %v3058 = vadd.f32 0.0, %v3057
    %v3059 = vpop.f32.mrb[0].mxu0
    %3060 = vmatprep.mubr.f32.mxu0 0.0
    %3061 = vmatmul.mubr.f32.gmra.mrb[0].mxu0 %v2963
    %v3062 = vpop.f32.mrb[0].mxu0
    %v3063 = vadd.f32 0.0, %v3062
    %v3064 = vpop.f32.mrb[0].mxu0
    %3065 = vmatprep.mubr.f32.mxu0 0.0
    %3066 = vmatmul.mubr.f32.gmra.mrb[0].mxu0 %v2966
    %v3067 = vpop.f32.mrb[0].mxu0
    %v3068 = vadd.f32 0.0, %v3067
    %v3069 = vpop.f32.mrb[0].mxu0
    %3070 = vmatprep.mubr.f32.mxu0 0.0
    %3071 = vmatmul.mubr.f32.gmra.mrb[0].mxu0 %v2969
    %v3072 = vpop.f32.mrb[0].mxu0
    %v3073 = vadd.f32 0.0, %v3072
    %v3074 = vpop.f32.mrb[0].mxu0
    %3075 = vdwg.mxu0
    %v3076 = vadd.f32 %v2939, %v3038
    %v3077 = vadd.f32 %v2940, %v3043
    %v3078 = vadd.f32 %v2941, %v3048
    %v3079 = vadd.f32 %v2942, %v3053
    %v3080 = vadd.f32 %v2943, %v3058
    %v3081 = vadd.f32 %v2944, %v3063
    %v3082 = vadd.f32 %v2945, %v3068
    %v3083 = vadd.f32 %v2946, %v3073
    %v3085 = vsel %vm877, %v2160, 0
    %v3088 = vsel %vm877, %v2165, 0
    %v3091 = vsel %vm877, %v2170, 0
    %v3094 = vsel %vm877, %v2175, 0
    %v3097 = vsel %vm877, %v2180, 0
    %v3100 = vsel %vm877, %v2185, 0
    %v3103 = vsel %vm877, %v2190, 0
    %v3106 = vsel %vm877, %v2195, 0
    %3108 = vmatprep.subr.mxu0 0.0
    %3109 = vmatpush1.msra.mxu0 %v1841
    %3110 = vmatprep.subr.mxu0 0.0
    %3111 = vmatpush1.msra.mxu0 %v1842
    %3112 = vmatprep.subr.mxu0 0.0
    %3113 = vmatpush1.msra.mxu0 %v1843
    %3114 = vmatprep.subr.mxu0 0.0
    %3115 = vmatpush1.msra.mxu0 %v1844
    %3116 = vmatprep.subr.mxu0 0.0
    %3117 = vmatpush1.msra.mxu0 0.0
    %3118 = vmatprep.subr.mxu0 0.0
    %3119 = vmatpush1.msra.mxu0 0.0
    %3120 = vmatprep.subr.mxu0 0.0
    %3121 = vmatpush1.msra.mxu0 0.0
    %3122 = vmatprep.subr.mxu0 0.0
    %3123 = vmatpush1.msra.mxu0 0.0
    %3124 = vmatprep.subr.mxu0 0.0
    %3125 = vmatpush1.msra.mxu0 0.0
    %3126 = vmatprep.subr.mxu0 0.0
    %3127 = vmatpush1.msra.mxu0 0.0
    %3128 = vmatprep.subr.mxu0 0.0
    %3129 = vmatpush1.msra.mxu0 0.0
    %3130 = vmatprep.subr.mxu0 0.0
    %3131 = vmatpush1.msra.mxu0 0.0
    %3132 = vmatprep.subr.mxu0 0.0
    %3133 = vmatpush1.msra.mxu0 0.0
    %3134 = vmatprep.subr.mxu0 0.0
    %3135 = vmatpush1.msra.mxu0 0.0
    %3136 = vmatprep.subr.mxu0 0.0
    %3137 = vmatpush1.msra.mxu0 0.0
    %3138 = vmatprep.subr.mxu0 0.0
    %3139 = vmatpush1.msra.mxu0 0.0
    %3140 = vmatprep.subr.mxu0 0.0
    %3141 = vmatpush1.msra.mxu0 0.0
    %3142 = vmatprep.subr.mxu0 0.0
    %3143 = vmatpush1.msra.mxu0 0.0
    %3144 = vmatprep.subr.mxu0 0.0
    %3145 = vmatpush1.msra.mxu0 0.0
    %3146 = vmatprep.subr.mxu0 0.0
    %3147 = vmatpush1.msra.mxu0 0.0
    %3148 = vmatprep.subr.mxu0 0.0
    %3149 = vmatpush1.msra.mxu0 0.0
    %3150 = vmatprep.subr.mxu0 0.0
    %3151 = vmatpush1.msra.mxu0 0.0
    %3152 = vmatprep.subr.mxu0 0.0
    %3153 = vmatpush1.msra.mxu0 0.0
    %3154 = vmatprep.subr.mxu0 0.0
    %3155 = vmatpush1.msra.mxu0 0.0
    %3156 = vmatprep.subr.mxu0 0.0
    %3157 = vmatpush1.msra.mxu0 0.0
    %3158 = vmatprep.subr.mxu0 0.0
    %3159 = vmatpush1.msra.mxu0 0.0
    %3160 = vmatprep.subr.mxu0 0.0
    %3161 = vmatpush1.msra.mxu0 0.0
    %3162 = vmatprep.subr.mxu0 0.0
    %3163 = vmatpush1.msra.mxu0 0.0
    %3164 = vmatprep.subr.mxu0 0.0
    %3165 = vmatpush1.msra.mxu0 0.0
    %3166 = vmatprep.subr.mxu0 0.0
    %3167 = vmatpush1.msra.mxu0 0.0
    %3168 = vmatprep.subr.mxu0 0.0
    %3169 = vmatpush1.msra.mxu0 0.0
    %3170 = vmatprep.subr.mxu0 0.0
    %3171 = vmatpush1.msra.mxu0 0.0
    %3172 = vmatprep.mubr.f32.mxu0 0.0
    %3173 = vmatmul.mubr.f32.gmra.mrb[0].mxu0 %v3085
    %v3174 = vpop.f32.mrb[0].mxu0
    %v3175 = vadd.f32 0.0, %v3174
    %v3176 = vpop.f32.mrb[0].mxu0
    %3177 = vmatprep.mubr.f32.mxu0 0.0
    %3178 = vmatmul.mubr.f32.gmra.mrb[0].mxu0 %v3088
    %v3179 = vpop.f32.mrb[0].mxu0
    %v3180 = vadd.f32 0.0, %v3179
    %v3181 = vpop.f32.mrb[0].mxu0
    %3182 = vmatprep.mubr.f32.mxu0 0.0
    %3183 = vmatmul.mubr.f32.gmra.mrb[0].mxu0 %v3091
    %v3184 = vpop.f32.mrb[0].mxu0
    %v3185 = vadd.f32 0.0, %v3184
    %v3186 = vpop.f32.mrb[0].mxu0
    %3187 = vmatprep.mubr.f32.mxu0 0.0
    %3188 = vmatmul.mubr.f32.gmra.mrb[0].mxu0 %v3094
    %v3189 = vpop.f32.mrb[0].mxu0
    %v3190 = vadd.f32 0.0, %v3189
    %v3191 = vpop.f32.mrb[0].mxu0
    %3192 = vmatprep.mubr.f32.mxu0 0.0
    %3193 = vmatmul.mubr.f32.gmra.mrb[0].mxu0 %v3097
    %v3194 = vpop.f32.mrb[0].mxu0
    %v3195 = vadd.f32 0.0, %v3194
    %v3196 = vpop.f32.mrb[0].mxu0
    %3197 = vmatprep.mubr.f32.mxu0 0.0
    %3198 = vmatmul.mubr.f32.gmra.mrb[0].mxu0 %v3100
    %v3199 = vpop.f32.mrb[0].mxu0
    %v3200 = vadd.f32 0.0, %v3199
    %v3201 = vpop.f32.mrb[0].mxu0
    %3202 = vmatprep.mubr.f32.mxu0 0.0
    %3203 = vmatmul.mubr.f32.gmra.mrb[0].mxu0 %v3103
    %v3204 = vpop.f32.mrb[0].mxu0
    %v3205 = vadd.f32 0.0, %v3204
    %v3206 = vpop.f32.mrb[0].mxu0
    %3207 = vmatprep.mubr.f32.mxu0 0.0
    %3208 = vmatmul.mubr.f32.gmra.mrb[0].mxu0 %v3106
    %v3209 = vpop.f32.mrb[0].mxu0
    %v3210 = vadd.f32 0.0, %v3209
    %v3211 = vpop.f32.mrb[0].mxu0
    %3212 = vdwg.mxu0
    %v3213 = vadd.f32 %v3076, %v3175
    %v3214 = vadd.f32 %v3077, %v3180
    %v3215 = vadd.f32 %v3078, %v3185
    %v3216 = vadd.f32 %v3079, %v3190
    %v3217 = vadd.f32 %v3080, %v3195
    %v3218 = vadd.f32 %v3081, %v3200
    %v3219 = vadd.f32 %v3082, %v3205
    %v3220 = vadd.f32 %v3083, %v3210
    %v3222 = vsel %vm877, %v2200, 0
    %v3225 = vsel %vm877, %v2205, 0
    %v3228 = vsel %vm877, %v2210, 0
    %v3231 = vsel %vm877, %v2215, 0
    %v3234 = vsel %vm877, %v2220, 0
    %v3237 = vsel %vm877, %v2225, 0
    %v3240 = vsel %vm877, %v2230, 0
    %v3243 = vsel %vm877, %v2235, 0
    %3245 = vmatprep.subr.mxu0 0.0
    %3246 = vmatpush1.msra.mxu0 %v1845
    %3247 = vmatprep.subr.mxu0 0.0
    %3248 = vmatpush1.msra.mxu0 %v1846
    %3249 = vmatprep.subr.mxu0 0.0
    %3250 = vmatpush1.msra.mxu0 %v1847
    %3251 = vmatprep.subr.mxu0 0.0
    %3252 = vmatpush1.msra.mxu0 %v1848
    %3253 = vmatprep.subr.mxu0 0.0
    %3254 = vmatpush1.msra.mxu0 0.0
    %3255 = vmatprep.subr.mxu0 0.0
    %3256 = vmatpush1.msra.mxu0 0.0
    %3257 = vmatprep.subr.mxu0 0.0
    %3258 = vmatpush1.msra.mxu0 0.0
    %3259 = vmatprep.subr.mxu0 0.0
    %3260 = vmatpush1.msra.mxu0 0.0
    %3261 = vmatprep.subr.mxu0 0.0
    %3262 = vmatpush1.msra.mxu0 0.0
    %3263 = vmatprep.subr.mxu0 0.0
    %3264 = vmatpush1.msra.mxu0 0.0
    %3265 = vmatprep.subr.mxu0 0.0
    %3266 = vmatpush1.msra.mxu0 0.0
    %3267 = vmatprep.subr.mxu0 0.0
    %3268 = vmatpush1.msra.mxu0 0.0
    %3269 = vmatprep.subr.mxu0 0.0
    %3270 = vmatpush1.msra.mxu0 0.0
    %3271 = vmatprep.subr.mxu0 0.0
    %3272 = vmatpush1.msra.mxu0 0.0
    %3273 = vmatprep.subr.mxu0 0.0
    %3274 = vmatpush1.msra.mxu0 0.0
    %3275 = vmatprep.subr.mxu0 0.0
    %3276 = vmatpush1.msra.mxu0 0.0
    %3277 = vmatprep.subr.mxu0 0.0
    %3278 = vmatpush1.msra.mxu0 0.0
    %3279 = vmatprep.subr.mxu0 0.0
    %3280 = vmatpush1.msra.mxu0 0.0
    %3281 = vmatprep.subr.mxu0 0.0
    %3282 = vmatpush1.msra.mxu0 0.0
    %3283 = vmatprep.subr.mxu0 0.0
    %3284 = vmatpush1.msra.mxu0 0.0
    %3285 = vmatprep.subr.mxu0 0.0
    %3286 = vmatpush1.msra.mxu0 0.0
    %3287 = vmatprep.subr.mxu0 0.0
    %3288 = vmatpush1.msra.mxu0 0.0
    %3289 = vmatprep.subr.mxu0 0.0
    %3290 = vmatpush1.msra.mxu0 0.0
    %3291 = vmatprep.subr.mxu0 0.0
    %3292 = vmatpush1.msra.mxu0 0.0
    %3293 = vmatprep.subr.mxu0 0.0
    %3294 = vmatpush1.msra.mxu0 0.0
    %3295 = vmatprep.subr.mxu0 0.0
    %3296 = vmatpush1.msra.mxu0 0.0
    %3297 = vmatprep.subr.mxu0 0.0
    %3298 = vmatpush1.msra.mxu0 0.0
    %3299 = vmatprep.subr.mxu0 0.0
    %3300 = vmatpush1.msra.mxu0 0.0
    %3301 = vmatprep.subr.mxu0 0.0
    %3302 = vmatpush1.msra.mxu0 0.0
    %3303 = vmatprep.subr.mxu0 0.0
    %3304 = vmatpush1.msra.mxu0 0.0
    %3305 = vmatprep.subr.mxu0 0.0
    %3306 = vmatpush1.msra.mxu0 0.0
    %3307 = vmatprep.subr.mxu0 0.0
    %3308 = vmatpush1.msra.mxu0 0.0
    %3309 = vmatprep.mubr.f32.mxu0 0.0
    %3310 = vmatmul.mubr.f32.gmra.mrb[0].mxu0 %v3222
    %v3311 = vpop.f32.mrb[0].mxu0
    %v3312 = vadd.f32 0.0, %v3311
    %v3313 = vpop.f32.mrb[0].mxu0
    %3314 = vmatprep.mubr.f32.mxu0 0.0
    %3315 = vmatmul.mubr.f32.gmra.mrb[0].mxu0 %v3225
    %v3316 = vpop.f32.mrb[0].mxu0
    %v3317 = vadd.f32 0.0, %v3316
    %v3318 = vpop.f32.mrb[0].mxu0
    %3319 = vmatprep.mubr.f32.mxu0 0.0
    %3320 = vmatmul.mubr.f32.gmra.mrb[0].mxu0 %v3228
    %v3321 = vpop.f32.mrb[0].mxu0
    %v3322 = vadd.f32 0.0, %v3321
    %v3323 = vpop.f32.mrb[0].mxu0
    %3324 = vmatprep.mubr.f32.mxu0 0.0
    %3325 = vmatmul.mubr.f32.gmra.mrb[0].mxu0 %v3231
    %v3326 = vpop.f32.mrb[0].mxu0
    %v3327 = vadd.f32 0.0, %v3326
    %v3328 = vpop.f32.mrb[0].mxu0
    %3329 = vmatprep.mubr.f32.mxu0 0.0
    %3330 = vmatmul.mubr.f32.gmra.mrb[0].mxu0 %v3234
    %v3331 = vpop.f32.mrb[0].mxu0
    %v3332 = vadd.f32 0.0, %v3331
    %v3333 = vpop.f32.mrb[0].mxu0
    %3334 = vmatprep.mubr.f32.mxu0 0.0
    %3335 = vmatmul.mubr.f32.gmra.mrb[0].mxu0 %v3237
    %v3336 = vpop.f32.mrb[0].mxu0
    %v3337 = vadd.f32 0.0, %v3336
    %v3338 = vpop.f32.mrb[0].mxu0
    %3339 = vmatprep.mubr.f32.mxu0 0.0
    %3340 = vmatmul.mubr.f32.gmra.mrb[0].mxu0 %v3240
    %v3341 = vpop.f32.mrb[0].mxu0
    %v3342 = vadd.f32 0.0, %v3341
    %v3343 = vpop.f32.mrb[0].mxu0
    %3344 = vmatprep.mubr.f32.mxu0 0.0
    %3345 = vmatmul.mubr.f32.gmra.mrb[0].mxu0 %v3243
    %v3346 = vpop.f32.mrb[0].mxu0
    %v3347 = vadd.f32 0.0, %v3346
    %v3348 = vpop.f32.mrb[0].mxu0
    %3349 = vdwg.mxu0
    %v3350 = vadd.f32 %v3213, %v3312
    %v3351 = vadd.f32 %v3214, %v3317
    %v3352 = vadd.f32 %v3215, %v3322
    %v3353 = vadd.f32 %v3216, %v3327
    %v3354 = vadd.f32 %v3217, %v3332
    %v3355 = vadd.f32 %v3218, %v3337
    %v3356 = vadd.f32 %v3219, %v3342
    %v3357 = vadd.f32 %v3220, %v3347
    %v3359 = vsel %vm877, %v2240, 0
    %v3362 = vsel %vm877, %v2245, 0
    %v3365 = vsel %vm877, %v2250, 0
    %v3368 = vsel %vm877, %v2255, 0
    %v3371 = vsel %vm877, %v2260, 0
    %v3374 = vsel %vm877, %v2265, 0
    %v3377 = vsel %vm877, %v2270, 0
    %v3380 = vsel %vm877, %v2275, 0
    %3382 = vmatprep.subr.mxu0 0.0
    %3383 = vmatpush1.msra.mxu0 %v1849
    %3384 = vmatprep.subr.mxu0 0.0
    %3385 = vmatpush1.msra.mxu0 %v1850
    %3386 = vmatprep.subr.mxu0 0.0
    %3387 = vmatpush1.msra.mxu0 %v1851
    %3388 = vmatprep.subr.mxu0 0.0
    %3389 = vmatpush1.msra.mxu0 %v1852
    %3390 = vmatprep.subr.mxu0 0.0
    %3391 = vmatpush1.msra.mxu0 0.0
    %3392 = vmatprep.subr.mxu0 0.0
    %3393 = vmatpush1.msra.mxu0 0.0
    %3394 = vmatprep.subr.mxu0 0.0
    %3395 = vmatpush1.msra.mxu0 0.0
    %3396 = vmatprep.subr.mxu0 0.0
    %3397 = vmatpush1.msra.mxu0 0.0
    %3398 = vmatprep.subr.mxu0 0.0
    %3399 = vmatpush1.msra.mxu0 0.0
    %3400 = vmatprep.subr.mxu0 0.0
    %3401 = vmatpush1.msra.mxu0 0.0
    %3402 = vmatprep.subr.mxu0 0.0
    %3403 = vmatpush1.msra.mxu0 0.0
    %3404 = vmatprep.subr.mxu0 0.0
    %3405 = vmatpush1.msra.mxu0 0.0
    %3406 = vmatprep.subr.mxu0 0.0
    %3407 = vmatpush1.msra.mxu0 0.0
    %3408 = vmatprep.subr.mxu0 0.0
    %3409 = vmatpush1.msra.mxu0 0.0
    %3410 = vmatprep.subr.mxu0 0.0
    %3411 = vmatpush1.msra.mxu0 0.0
    %3412 = vmatprep.subr.mxu0 0.0
    %3413 = vmatpush1.msra.mxu0 0.0
    %3414 = vmatprep.subr.mxu0 0.0
    %3415 = vmatpush1.msra.mxu0 0.0
    %3416 = vmatprep.subr.mxu0 0.0
    %3417 = vmatpush1.msra.mxu0 0.0
    %3418 = vmatprep.subr.mxu0 0.0
    %3419 = vmatpush1.msra.mxu0 0.0
    %3420 = vmatprep.subr.mxu0 0.0
    %3421 = vmatpush1.msra.mxu0 0.0
    %3422 = vmatprep.subr.mxu0 0.0
    %3423 = vmatpush1.msra.mxu0 0.0
    %3424 = vmatprep.subr.mxu0 0.0
    %3425 = vmatpush1.msra.mxu0 0.0
    %3426 = vmatprep.subr.mxu0 0.0
    %3427 = vmatpush1.msra.mxu0 0.0
    %3428 = vmatprep.subr.mxu0 0.0
    %3429 = vmatpush1.msra.mxu0 0.0
    %3430 = vmatprep.subr.mxu0 0.0
    %3431 = vmatpush1.msra.mxu0 0.0
    %3432 = vmatprep.subr.mxu0 0.0
    %3433 = vmatpush1.msra.mxu0 0.0
    %3434 = vmatprep.subr.mxu0 0.0
    %3435 = vmatpush1.msra.mxu0 0.0
    %3436 = vmatprep.subr.mxu0 0.0
    %3437 = vmatpush1.msra.mxu0 0.0
    %3438 = vmatprep.subr.mxu0 0.0
    %3439 = vmatpush1.msra.mxu0 0.0
    %3440 = vmatprep.subr.mxu0 0.0
    %3441 = vmatpush1.msra.mxu0 0.0
    %3442 = vmatprep.subr.mxu0 0.0
    %3443 = vmatpush1.msra.mxu0 0.0
    %3444 = vmatprep.subr.mxu0 0.0
    %3445 = vmatpush1.msra.mxu0 0.0
    %3446 = vmatprep.mubr.f32.mxu0 0.0
    %3447 = vmatmul.mubr.f32.gmra.mrb[0].mxu0 %v3359
    %v3448 = vpop.f32.mrb[0].mxu0
    %v3449 = vadd.f32 0.0, %v3448
    %v3450 = vpop.f32.mrb[0].mxu0
    %3451 = vmatprep.mubr.f32.mxu0 0.0
    %3452 = vmatmul.mubr.f32.gmra.mrb[0].mxu0 %v3362
    %v3453 = vpop.f32.mrb[0].mxu0
    %v3454 = vadd.f32 0.0, %v3453
    %v3455 = vpop.f32.mrb[0].mxu0
    %3456 = vmatprep.mubr.f32.mxu0 0.0
    %3457 = vmatmul.mubr.f32.gmra.mrb[0].mxu0 %v3365
    %v3458 = vpop.f32.mrb[0].mxu0
    %v3459 = vadd.f32 0.0, %v3458
    %v3460 = vpop.f32.mrb[0].mxu0
    %3461 = vmatprep.mubr.f32.mxu0 0.0
    %3462 = vmatmul.mubr.f32.gmra.mrb[0].mxu0 %v3368
    %v3463 = vpop.f32.mrb[0].mxu0
    %v3464 = vadd.f32 0.0, %v3463
    %v3465 = vpop.f32.mrb[0].mxu0
    %3466 = vmatprep.mubr.f32.mxu0 0.0
    %3467 = vmatmul.mubr.f32.gmra.mrb[0].mxu0 %v3371
    %v3468 = vpop.f32.mrb[0].mxu0
    %v3469 = vadd.f32 0.0, %v3468
    %v3470 = vpop.f32.mrb[0].mxu0
    %3471 = vmatprep.mubr.f32.mxu0 0.0
    %3472 = vmatmul.mubr.f32.gmra.mrb[0].mxu0 %v3374
    %v3473 = vpop.f32.mrb[0].mxu0
    %v3474 = vadd.f32 0.0, %v3473
    %v3475 = vpop.f32.mrb[0].mxu0
    %3476 = vmatprep.mubr.f32.mxu0 0.0
    %3477 = vmatmul.mubr.f32.gmra.mrb[0].mxu0 %v3377
    %v3478 = vpop.f32.mrb[0].mxu0
    %v3479 = vadd.f32 0.0, %v3478
    %v3480 = vpop.f32.mrb[0].mxu0
    %3481 = vmatprep.mubr.f32.mxu0 0.0
    %3482 = vmatmul.mubr.f32.gmra.mrb[0].mxu0 %v3380
    %v3483 = vpop.f32.mrb[0].mxu0
    %v3484 = vadd.f32 0.0, %v3483
    %v3485 = vpop.f32.mrb[0].mxu0
    %3486 = vdwg.mxu0
    %v3487 = vadd.f32 %v3350, %v3449
    %v3488 = vadd.f32 %v3351, %v3454
    %v3489 = vadd.f32 %v3352, %v3459
    %v3490 = vadd.f32 %v3353, %v3464
    %v3491 = vadd.f32 %v3354, %v3469
    %v3492 = vadd.f32 %v3355, %v3474
    %v3493 = vadd.f32 %v3356, %v3479
    %v3494 = vadd.f32 %v3357, %v3484
    %3495 = vst.msk [vmem:[#allocation2] sm:$0xff] %vm877, %v3487
    %3496 = vst.msk [vmem:[#allocation2 + $0x8] sm:$0xff] %vm877, %v3488
    %3497 = vst.msk [vmem:[#allocation2 + $0x10] sm:$0xff] %vm877, %v3489
    %3498 = vst.msk [vmem:[#allocation2 + $0x18] sm:$0xff] %vm877, %v3490
    %3499 = vst.msk [vmem:[#allocation2 + $0x20] sm:$0xff] %vm877, %v3491
    %3500 = vst.msk [vmem:[#allocation2 + $0x28] sm:$0xff] %vm877, %v3492
    %3501 = vst.msk [vmem:[#allocation2 + $0x30] sm:$0xff] %vm877, %v3493
    %3502 = vst.msk [vmem:[#allocation2 + $0x38] sm:$0xff] %vm877, %v3494
    %3503 = vmatprep.subr.mxu0 0.0
    %3504 = vmatpush1.msra.mxu0 %v1641
    %3505 = vmatprep.subr.mxu0 0.0
    %3506 = vmatpush1.msra.mxu0 %v1642
    %3507 = vmatprep.subr.mxu0 0.0
    %3508 = vmatpush1.msra.mxu0 %v1643
    %3509 = vmatprep.subr.mxu0 0.0
    %3510 = vmatpush1.msra.mxu0 %v1644
    %3511 = vmatprep.subr.mxu0 0.0
    %3512 = vmatpush1.msra.mxu0 %v1645
    %3513 = vmatprep.subr.mxu0 0.0
    %3514 = vmatpush1.msra.mxu0 %v1646
    %3515 = vmatprep.subr.mxu0 0.0
    %3516 = vmatpush1.msra.mxu0 %v1647
    %3517 = vmatprep.subr.mxu0 0.0
    %3518 = vmatpush1.msra.mxu0 %v1648
    %3519 = vmatprep.subr.mxu0 0.0
    %3520 = vmatpush1.msra.mxu0 %v1649
    %3521 = vmatprep.subr.mxu0 0.0
    %3522 = vmatpush1.msra.mxu0 %v1650
    %3523 = vmatprep.subr.mxu0 0.0
    %3524 = vmatpush1.msra.mxu0 %v1651
    %3525 = vmatprep.subr.mxu0 0.0
    %3526 = vmatpush1.msra.mxu0 %v1652
    %3527 = vmatprep.subr.mxu0 0.0
    %3528 = vmatpush1.msra.mxu0 %v1653
    %3529 = vmatprep.subr.mxu0 0.0
    %3530 = vmatpush1.msra.mxu0 %v1654
    %3531 = vmatprep.subr.mxu0 0.0
    %3532 = vmatpush1.msra.mxu0 %v1655
    %3533 = vmatprep.subr.mxu0 0.0
    %3534 = vmatpush1.msra.mxu0 %v1656
    %3535 = vmatprep.subr.mxu0 0.0
    %3536 = vmatpush1.msra.mxu0 %v1657
    %3537 = vmatprep.subr.mxu0 0.0
    %3538 = vmatpush1.msra.mxu0 %v1658
    %3539 = vmatprep.subr.mxu0 0.0
    %3540 = vmatpush1.msra.mxu0 %v1659
    %3541 = vmatprep.subr.mxu0 0.0
    %3542 = vmatpush1.msra.mxu0 %v1660
    %3543 = vmatprep.subr.mxu0 0.0
    %3544 = vmatpush1.msra.mxu0 %v1661
    %3545 = vmatprep.subr.mxu0 0.0
    %3546 = vmatpush1.msra.mxu0 %v1662
    %3547 = vmatprep.subr.mxu0 0.0
    %3548 = vmatpush1.msra.mxu0 %v1663
    %3549 = vmatprep.subr.mxu0 0.0
    %3550 = vmatpush1.msra.mxu0 %v1664
    %3551 = vmatprep.subr.mxu0 0.0
    %3552 = vmatpush1.msra.mxu0 %v1665
    %3553 = vmatprep.subr.mxu0 0.0
    %3554 = vmatpush1.msra.mxu0 %v1666
    %3555 = vmatprep.subr.mxu0 0.0
    %3556 = vmatpush1.msra.mxu0 %v1667
    %3557 = vmatprep.subr.mxu0 0.0
    %3558 = vmatpush1.msra.mxu0 %v1668
    %3559 = vmatprep.subr.mxu0 0.0
    %3560 = vmatpush1.msra.mxu0 %v1669
    %3561 = vmatprep.subr.mxu0 0.0
    %3562 = vmatpush1.msra.mxu0 %v1670
    %3563 = vmatprep.subr.mxu0 0.0
    %3564 = vmatpush1.msra.mxu0 %v1671
    %3565 = vmatprep.subr.mxu0 0.0
    %3566 = vmatpush1.msra.mxu0 %v1672
    %3567 = vmatprep.mubr.f32.mxu0 %v1674
    %3568 = vmatmul.mubr.f32.gmra.mrb[0].mxu0 %v1673
    %v3569 = vpop.f32.mrb[0].mxu0
    %v3570 = vadd.f32 0.0, %v3569
    %v3571 = vpop.f32.mrb[0].mxu0
    %3572 = vmatprep.mubr.f32.mxu0 %v1676
    %3573 = vmatmul.mubr.f32.gmra.mrb[0].mxu0 %v1675
    %v3574 = vpop.f32.mrb[0].mxu0
    %v3575 = vadd.f32 0.0, %v3574
    %v3576 = vpop.f32.mrb[0].mxu0
    %3577 = vmatprep.mubr.f32.mxu0 %v1678
    %3578 = vmatmul.mubr.f32.gmra.mrb[0].mxu0 %v1677
    %v3579 = vpop.f32.mrb[0].mxu0
    %v3580 = vadd.f32 0.0, %v3579
    %v3581 = vpop.f32.mrb[0].mxu0
    %3582 = vmatprep.mubr.f32.mxu0 %v1680
    %3583 = vmatmul.mubr.f32.gmra.mrb[0].mxu0 %v1679
    %v3584 = vpop.f32.mrb[0].mxu0
    %v3585 = vadd.f32 0.0, %v3584
    %v3586 = vpop.f32.mrb[0].mxu0
    %3587 = vmatprep.mubr.f32.mxu0 %v1682
    %3588 = vmatmul.mubr.f32.gmra.mrb[0].mxu0 %v1681
    %v3589 = vpop.f32.mrb[0].mxu0
    %v3590 = vadd.f32 0.0, %v3589
    %v3591 = vpop.f32.mrb[0].mxu0
    %3592 = vmatprep.mubr.f32.mxu0 %v1684
    %3593 = vmatmul.mubr.f32.gmra.mrb[0].mxu0 %v1683
    %v3594 = vpop.f32.mrb[0].mxu0
    %v3595 = vadd.f32 0.0, %v3594
    %v3596 = vpop.f32.mrb[0].mxu0
    %3597 = vmatprep.mubr.f32.mxu0 %v1686
    %3598 = vmatmul.mubr.f32.gmra.mrb[0].mxu0 %v1685
    %v3599 = vpop.f32.mrb[0].mxu0
    %v3600 = vadd.f32 0.0, %v3599
    %v3601 = vpop.f32.mrb[0].mxu0
    %3602 = vmatprep.mubr.f32.mxu0 %v1688
    %3603 = vmatmul.mubr.f32.gmra.mrb[0].mxu0 %v1687
    %v3604 = vpop.f32.mrb[0].mxu0
    %v3605 = vadd.f32 0.0, %v3604
    %v3606 = vpop.f32.mrb[0].mxu0
    %3607 = vmatprep.mubr.f32.mxu0 %v1690
    %3608 = vmatmul.mubr.f32.gmra.mrb[0].mxu0 %v1689
    %v3609 = vpop.f32.mrb[0].mxu0
    %v3610 = vadd.f32 0.0, %v3609
    %v3611 = vpop.f32.mrb[0].mxu0
    %3612 = vmatprep.mubr.f32.mxu0 %v1692
    %3613 = vmatmul.mubr.f32.gmra.mrb[0].mxu0 %v1691
    %v3614 = vpop.f32.mrb[0].mxu0
    %v3615 = vadd.f32 0.0, %v3614
    %v3616 = vpop.f32.mrb[0].mxu0
    %3617 = vmatprep.mubr.f32.mxu0 %v1694
    %3618 = vmatmul.mubr.f32.gmra.mrb[0].mxu0 %v1693
    %v3619 = vpop.f32.mrb[0].mxu0
    %v3620 = vadd.f32 0.0, %v3619
    %v3621 = vpop.f32.mrb[0].mxu0
    %3622 = vmatprep.mubr.f32.mxu0 %v1696
    %3623 = vmatmul.mubr.f32.gmra.mrb[0].mxu0 %v1695
    %v3624 = vpop.f32.mrb[0].mxu0
    %v3625 = vadd.f32 0.0, %v3624
    %v3626 = vpop.f32.mrb[0].mxu0
    %3627 = vmatprep.mubr.f32.mxu0 %v1698
    %3628 = vmatmul.mubr.f32.gmra.mrb[0].mxu0 %v1697
    %v3629 = vpop.f32.mrb[0].mxu0
    %v3630 = vadd.f32 0.0, %v3629
    %v3631 = vpop.f32.mrb[0].mxu0
    %3632 = vmatprep.mubr.f32.mxu0 %v1700
    %3633 = vmatmul.mubr.f32.gmra.mrb[0].mxu0 %v1699
    %v3634 = vpop.f32.mrb[0].mxu0
    %v3635 = vadd.f32 0.0, %v3634
    %v3636 = vpop.f32.mrb[0].mxu0
    %3637 = vmatprep.mubr.f32.mxu0 %v1702
    %3638 = vmatmul.mubr.f32.gmra.mrb[0].mxu0 %v1701
    %v3639 = vpop.f32.mrb[0].mxu0
    %v3640 = vadd.f32 0.0, %v3639
    %v3641 = vpop.f32.mrb[0].mxu0
    %3642 = vmatprep.mubr.f32.mxu0 %v1704
    %3643 = vmatmul.mubr.f32.gmra.mrb[0].mxu0 %v1703
    %v3644 = vpop.f32.mrb[0].mxu0
    %v3645 = vadd.f32 0.0, %v3644
    %v3646 = vpop.f32.mrb[0].mxu0
    %3647 = vmatprep.mubr.f32.mxu0 %v1706
    %3648 = vmatmul.mubr.f32.gmra.mrb[0].mxu0 %v1705
    %v3649 = vpop.f32.mrb[0].mxu0
    %v3650 = vadd.f32 0.0, %v3649
    %v3651 = vpop.f32.mrb[0].mxu0
    %3652 = vmatprep.mubr.f32.mxu0 %v1708
    %3653 = vmatmul.mubr.f32.gmra.mrb[0].mxu0 %v1707
    %v3654 = vpop.f32.mrb[0].mxu0
    %v3655 = vadd.f32 0.0, %v3654
    %v3656 = vpop.f32.mrb[0].mxu0
    %3657 = vmatprep.mubr.f32.mxu0 %v1710
    %3658 = vmatmul.mubr.f32.gmra.mrb[0].mxu0 %v1709
    %v3659 = vpop.f32.mrb[0].mxu0
    %v3660 = vadd.f32 0.0, %v3659
    %v3661 = vpop.f32.mrb[0].mxu0
    %3662 = vmatprep.mubr.f32.mxu0 %v1712
    %3663 = vmatmul.mubr.f32.gmra.mrb[0].mxu0 %v1711
    %v3664 = vpop.f32.mrb[0].mxu0
    %v3665 = vadd.f32 0.0, %v3664
    %v3666 = vpop.f32.mrb[0].mxu0
    %3667 = vmatprep.mubr.f32.mxu0 %v1714
    %3668 = vmatmul.mubr.f32.gmra.mrb[0].mxu0 %v1713
    %v3669 = vpop.f32.mrb[0].mxu0
    %v3670 = vadd.f32 0.0, %v3669
    %v3671 = vpop.f32.mrb[0].mxu0
    %3672 = vmatprep.mubr.f32.mxu0 %v1716
    %3673 = vmatmul.mubr.f32.gmra.mrb[0].mxu0 %v1715
    %v3674 = vpop.f32.mrb[0].mxu0
    %v3675 = vadd.f32 0.0, %v3674
    %v3676 = vpop.f32.mrb[0].mxu0
    %3677 = vmatprep.mubr.f32.mxu0 %v1718
    %3678 = vmatmul.mubr.f32.gmra.mrb[0].mxu0 %v1717
    %v3679 = vpop.f32.mrb[0].mxu0
    %v3680 = vadd.f32 0.0, %v3679
    %v3681 = vpop.f32.mrb[0].mxu0
    %3682 = vmatprep.mubr.f32.mxu0 %v1720
    %3683 = vmatmul.mubr.f32.gmra.mrb[0].mxu0 %v1719
    %v3684 = vpop.f32.mrb[0].mxu0
    %v3685 = vadd.f32 0.0, %v3684
    %v3686 = vpop.f32.mrb[0].mxu0
    %3687 = vmatprep.mubr.f32.mxu0 %v1722
    %3688 = vmatmul.mubr.f32.gmra.mrb[0].mxu0 %v1721
    %v3689 = vpop.f32.mrb[0].mxu0
    %v3690 = vadd.f32 0.0, %v3689
    %v3691 = vpop.f32.mrb[0].mxu0
    %3692 = vmatprep.mubr.f32.mxu0 %v1724
    %3693 = vmatmul.mubr.f32.gmra.mrb[0].mxu0 %v1723
    %v3694 = vpop.f32.mrb[0].mxu0
    %v3695 = vadd.f32 0.0, %v3694
    %v3696 = vpop.f32.mrb[0].mxu0
    %3697 = vmatprep.mubr.f32.mxu0 %v1726
    %3698 = vmatmul.mubr.f32.gmra.mrb[0].mxu0 %v1725
    %v3699 = vpop.f32.mrb[0].mxu0
    %v3700 = vadd.f32 0.0, %v3699
    %v3701 = vpop.f32.mrb[0].mxu0
    %3702 = vmatprep.mubr.f32.mxu0 %v1728
    %3703 = vmatmul.mubr.f32.gmra.mrb[0].mxu0 %v1727
    %v3704 = vpop.f32.mrb[0].mxu0
    %v3705 = vadd.f32 0.0, %v3704
    %v3706 = vpop.f32.mrb[0].mxu0
    %3707 = vmatprep.mubr.f32.mxu0 %v1730
    %3708 = vmatmul.mubr.f32.gmra.mrb[0].mxu0 %v1729
    %v3709 = vpop.f32.mrb[0].mxu0
    %v3710 = vadd.f32 0.0, %v3709
    %v3711 = vpop.f32.mrb[0].mxu0
    %3712 = vmatprep.mubr.f32.mxu0 %v1732
    %3713 = vmatmul.mubr.f32.gmra.mrb[0].mxu0 %v1731
    %v3714 = vpop.f32.mrb[0].mxu0
    %v3715 = vadd.f32 0.0, %v3714
    %v3716 = vpop.f32.mrb[0].mxu0
    %3717 = vmatprep.mubr.f32.mxu0 %v1734
    %3718 = vmatmul.mubr.f32.gmra.mrb[0].mxu0 %v1733
    %v3719 = vpop.f32.mrb[0].mxu0
    %v3720 = vadd.f32 0.0, %v3719
    %v3721 = vpop.f32.mrb[0].mxu0
    %3722 = vmatprep.mubr.f32.mxu0 %v1736
    %3723 = vmatmul.mubr.f32.gmra.mrb[0].mxu0 %v1735
    %v3724 = vpop.f32.mrb[0].mxu0
    %v3725 = vadd.f32 0.0, %v3724
    %v3726 = vpop.f32.mrb[0].mxu0
    %3727 = vmatprep.mubr.f32.mxu0 %v1738
    %3728 = vmatmul.mubr.f32.gmra.mrb[0].mxu0 %v1737
    %v3729 = vpop.f32.mrb[0].mxu0
    %v3730 = vadd.f32 0.0, %v3729
    %v3731 = vpop.f32.mrb[0].mxu0
    %3732 = vmatprep.mubr.f32.mxu0 %v1740
    %3733 = vmatmul.mubr.f32.gmra.mrb[0].mxu0 %v1739
    %v3734 = vpop.f32.mrb[0].mxu0
    %v3735 = vadd.f32 0.0, %v3734
    %v3736 = vpop.f32.mrb[0].mxu0
    %3737 = vmatprep.mubr.f32.mxu0 %v1742
    %3738 = vmatmul.mubr.f32.gmra.mrb[0].mxu0 %v1741
    %v3739 = vpop.f32.mrb[0].mxu0
    %v3740 = vadd.f32 0.0, %v3739
    %v3741 = vpop.f32.mrb[0].mxu0
    %3742 = vmatprep.mubr.f32.mxu0 %v1744
    %3743 = vmatmul.mubr.f32.gmra.mrb[0].mxu0 %v1743
    %v3744 = vpop.f32.mrb[0].mxu0
    %v3745 = vadd.f32 0.0, %v3744
    %v3746 = vpop.f32.mrb[0].mxu0
    %3747 = vmatprep.mubr.f32.mxu0 %v1746
    %3748 = vmatmul.mubr.f32.gmra.mrb[0].mxu0 %v1745
    %v3749 = vpop.f32.mrb[0].mxu0
    %v3750 = vadd.f32 0.0, %v3749
    %v3751 = vpop.f32.mrb[0].mxu0
    %3752 = vmatprep.mubr.f32.mxu0 %v1748
    %3753 = vmatmul.mubr.f32.gmra.mrb[0].mxu0 %v1747
    %v3754 = vpop.f32.mrb[0].mxu0
    %v3755 = vadd.f32 0.0, %v3754
    %v3756 = vpop.f32.mrb[0].mxu0
    %3757 = vmatprep.mubr.f32.mxu0 %v1750
    %3758 = vmatmul.mubr.f32.gmra.mrb[0].mxu0 %v1749
    %v3759 = vpop.f32.mrb[0].mxu0
    %v3760 = vadd.f32 0.0, %v3759
    %v3761 = vpop.f32.mrb[0].mxu0
    %3762 = vmatprep.mubr.f32.mxu0 %v1752
    %3763 = vmatmul.mubr.f32.gmra.mrb[0].mxu0 %v1751
    %v3764 = vpop.f32.mrb[0].mxu0
    %v3765 = vadd.f32 0.0, %v3764
    %v3766 = vpop.f32.mrb[0].mxu0
    %3767 = vmatprep.mubr.f32.mxu0 %v1754
    %3768 = vmatmul.mubr.f32.gmra.mrb[0].mxu0 %v1753
    %v3769 = vpop.f32.mrb[0].mxu0
    %v3770 = vadd.f32 0.0, %v3769
    %v3771 = vpop.f32.mrb[0].mxu0
    %3772 = vmatprep.mubr.f32.mxu0 %v1756
    %3773 = vmatmul.mubr.f32.gmra.mrb[0].mxu0 %v1755
    %v3774 = vpop.f32.mrb[0].mxu0
    %v3775 = vadd.f32 0.0, %v3774
    %v3776 = vpop.f32.mrb[0].mxu0
    %3777 = vmatprep.mubr.f32.mxu0 %v1758
    %3778 = vmatmul.mubr.f32.gmra.mrb[0].mxu0 %v1757
    %v3779 = vpop.f32.mrb[0].mxu0
    %v3780 = vadd.f32 0.0, %v3779
    %v3781 = vpop.f32.mrb[0].mxu0
    %3782 = vmatprep.mubr.f32.mxu0 %v1760
    %3783 = vmatmul.mubr.f32.gmra.mrb[0].mxu0 %v1759
    %v3784 = vpop.f32.mrb[0].mxu0
    %v3785 = vadd.f32 0.0, %v3784
    %v3786 = vpop.f32.mrb[0].mxu0
    %3787 = vmatprep.mubr.f32.mxu0 %v1762
    %3788 = vmatmul.mubr.f32.gmra.mrb[0].mxu0 %v1761
    %v3789 = vpop.f32.mrb[0].mxu0
    %v3790 = vadd.f32 0.0, %v3789
    %v3791 = vpop.f32.mrb[0].mxu0
    %3792 = vmatprep.mubr.f32.mxu0 %v1764
    %3793 = vmatmul.mubr.f32.gmra.mrb[0].mxu0 %v1763
    %v3794 = vpop.f32.mrb[0].mxu0
    %v3795 = vadd.f32 0.0, %v3794
    %v3796 = vpop.f32.mrb[0].mxu0
    %3797 = vmatprep.mubr.f32.mxu0 %v1766
    %3798 = vmatmul.mubr.f32.gmra.mrb[0].mxu0 %v1765
    %v3799 = vpop.f32.mrb[0].mxu0
    %v3800 = vadd.f32 0.0, %v3799
    %v3801 = vpop.f32.mrb[0].mxu0
    %3802 = vmatprep.mubr.f32.mxu0 %v1768
    %3803 = vmatmul.mubr.f32.gmra.mrb[0].mxu0 %v1767
    %v3804 = vpop.f32.mrb[0].mxu0
    %v3805 = vadd.f32 0.0, %v3804
    %v3806 = vpop.f32.mrb[0].mxu0
    %3807 = vmatprep.mubr.f32.mxu0 %v1770
    %3808 = vmatmul.mubr.f32.gmra.mrb[0].mxu0 %v1769
    %v3809 = vpop.f32.mrb[0].mxu0
    %v3810 = vadd.f32 0.0, %v3809
    %v3811 = vpop.f32.mrb[0].mxu0
    %3812 = vmatprep.mubr.f32.mxu0 %v1772
    %3813 = vmatmul.mubr.f32.gmra.mrb[0].mxu0 %v1771
    %v3814 = vpop.f32.mrb[0].mxu0
    %v3815 = vadd.f32 0.0, %v3814
    %v3816 = vpop.f32.mrb[0].mxu0
    %3817 = vmatprep.mubr.f32.mxu0 %v1774
    %3818 = vmatmul.mubr.f32.gmra.mrb[0].mxu0 %v1773
    %v3819 = vpop.f32.mrb[0].mxu0
    %v3820 = vadd.f32 0.0, %v3819
    %v3821 = vpop.f32.mrb[0].mxu0
    %3822 = vmatprep.mubr.f32.mxu0 %v1776
    %3823 = vmatmul.mubr.f32.gmra.mrb[0].mxu0 %v1775
    %v3824 = vpop.f32.mrb[0].mxu0
    %v3825 = vadd.f32 0.0, %v3824
    %v3826 = vpop.f32.mrb[0].mxu0
    %3827 = vmatprep.mubr.f32.mxu0 %v1778
    %3828 = vmatmul.mubr.f32.gmra.mrb[0].mxu0 %v1777
    %v3829 = vpop.f32.mrb[0].mxu0
    %v3830 = vadd.f32 0.0, %v3829
    %v3831 = vpop.f32.mrb[0].mxu0
    %3832 = vmatprep.mubr.f32.mxu0 %v1780
    %3833 = vmatmul.mubr.f32.gmra.mrb[0].mxu0 %v1779
    %v3834 = vpop.f32.mrb[0].mxu0
    %v3835 = vadd.f32 0.0, %v3834
    %v3836 = vpop.f32.mrb[0].mxu0
    %3837 = vmatprep.mubr.f32.mxu0 %v1782
    %3838 = vmatmul.mubr.f32.gmra.mrb[0].mxu0 %v1781
    %v3839 = vpop.f32.mrb[0].mxu0
    %v3840 = vadd.f32 0.0, %v3839
    %v3841 = vpop.f32.mrb[0].mxu0
    %3842 = vmatprep.mubr.f32.mxu0 %v1784
    %3843 = vmatmul.mubr.f32.gmra.mrb[0].mxu0 %v1783
    %v3844 = vpop.f32.mrb[0].mxu0
    %v3845 = vadd.f32 0.0, %v3844
    %v3846 = vpop.f32.mrb[0].mxu0
    %3847 = vmatprep.mubr.f32.mxu0 %v1786
    %3848 = vmatmul.mubr.f32.gmra.mrb[0].mxu0 %v1785
    %v3849 = vpop.f32.mrb[0].mxu0
    %v3850 = vadd.f32 0.0, %v3849
    %v3851 = vpop.f32.mrb[0].mxu0
    %3852 = vmatprep.mubr.f32.mxu0 %v1788
    %3853 = vmatmul.mubr.f32.gmra.mrb[0].mxu0 %v1787
    %v3854 = vpop.f32.mrb[0].mxu0
    %v3855 = vadd.f32 0.0, %v3854
    %v3856 = vpop.f32.mrb[0].mxu0
    %3857 = vmatprep.mubr.f32.mxu0 %v1790
    %3858 = vmatmul.mubr.f32.gmra.mrb[0].mxu0 %v1789
    %v3859 = vpop.f32.mrb[0].mxu0
    %v3860 = vadd.f32 0.0, %v3859
    %v3861 = vpop.f32.mrb[0].mxu0
    %3862 = vmatprep.mubr.f32.mxu0 %v1792
    %3863 = vmatmul.mubr.f32.gmra.mrb[0].mxu0 %v1791
    %v3864 = vpop.f32.mrb[0].mxu0
    %v3865 = vadd.f32 0.0, %v3864
    %v3866 = vpop.f32.mrb[0].mxu0
    %3867 = vmatprep.mubr.f32.mxu0 %v1794
    %3868 = vmatmul.mubr.f32.gmra.mrb[0].mxu0 %v1793
    %v3869 = vpop.f32.mrb[0].mxu0
    %v3870 = vadd.f32 0.0, %v3869
    %v3871 = vpop.f32.mrb[0].mxu0
    %3872 = vmatprep.mubr.f32.mxu0 %v1796
    %3873 = vmatmul.mubr.f32.gmra.mrb[0].mxu0 %v1795
    %v3874 = vpop.f32.mrb[0].mxu0
    %v3875 = vadd.f32 0.0, %v3874
    %v3876 = vpop.f32.mrb[0].mxu0
    %3877 = vmatprep.mubr.f32.mxu0 %v1798
    %3878 = vmatmul.mubr.f32.gmra.mrb[0].mxu0 %v1797
    %v3879 = vpop.f32.mrb[0].mxu0
    %v3880 = vadd.f32 0.0, %v3879
    %v3881 = vpop.f32.mrb[0].mxu0
    %3882 = vmatprep.mubr.f32.mxu0 %v1800
    %3883 = vmatmul.mubr.f32.gmra.mrb[0].mxu0 %v1799
    %v3884 = vpop.f32.mrb[0].mxu0
    %v3885 = vadd.f32 0.0, %v3884
    %v3886 = vpop.f32.mrb[0].mxu0
    %3887 = vmatprep.mubr.f32.mxu0 %v1802
    %3888 = vmatmul.mubr.f32.gmra.mrb[0].mxu0 %v1801
    %v3889 = vpop.f32.mrb[0].mxu0
    %v3890 = vadd.f32 0.0, %v3889
    %v3891 = vpop.f32.mrb[0].mxu0
    %3892 = vmatprep.mubr.f32.mxu0 %v1804
    %3893 = vmatmul.mubr.f32.gmra.mrb[0].mxu0 %v1803
    %v3894 = vpop.f32.mrb[0].mxu0
    %v3895 = vadd.f32 0.0, %v3894
    %v3896 = vpop.f32.mrb[0].mxu0
    %3897 = vmatprep.mubr.f32.mxu0 %v1806
    %3898 = vmatmul.mubr.f32.gmra.mrb[0].mxu0 %v1805
    %v3899 = vpop.f32.mrb[0].mxu0
    %v3900 = vadd.f32 0.0, %v3899
    %v3901 = vpop.f32.mrb[0].mxu0
    %3902 = vmatprep.mubr.f32.mxu0 %v1808
    %3903 = vmatmul.mubr.f32.gmra.mrb[0].mxu0 %v1807
    %v3904 = vpop.f32.mrb[0].mxu0
    %v3905 = vadd.f32 0.0, %v3904
    %v3906 = vpop.f32.mrb[0].mxu0
    %3907 = vmatprep.mubr.f32.mxu0 %v1810
    %3908 = vmatmul.mubr.f32.gmra.mrb[0].mxu0 %v1809
    %v3909 = vpop.f32.mrb[0].mxu0
    %v3910 = vadd.f32 0.0, %v3909
    %v3911 = vpop.f32.mrb[0].mxu0
    %3912 = vmatprep.mubr.f32.mxu0 %v1812
    %3913 = vmatmul.mubr.f32.gmra.mrb[0].mxu0 %v1811
    %v3914 = vpop.f32.mrb[0].mxu0
    %v3915 = vadd.f32 0.0, %v3914
    %v3916 = vpop.f32.mrb[0].mxu0
    %3917 = vmatprep.mubr.f32.mxu0 %v1814
    %3918 = vmatmul.mubr.f32.gmra.mrb[0].mxu0 %v1813
    %v3919 = vpop.f32.mrb[0].mxu0
    %v3920 = vadd.f32 0.0, %v3919
    %v3921 = vpop.f32.mrb[0].mxu0
    %3922 = vmatprep.mubr.f32.mxu0 %v1816
    %3923 = vmatmul.mubr.f32.gmra.mrb[0].mxu0 %v1815
    %v3924 = vpop.f32.mrb[0].mxu0
    %v3925 = vadd.f32 0.0, %v3924
    %v3926 = vpop.f32.mrb[0].mxu0
    %3927 = vdwg.mxu0
    %v3929 = vsel %vm877, %v3610, 0
    %v3932 = vsel %vm877, %v3615, 0
    %v3935 = vsel %vm877, %v3620, 0
    %v3938 = vsel %vm877, %v3625, 0
    %v3941 = vsel %vm877, %v3630, 0
    %v3944 = vsel %vm877, %v3635, 0
    %v3947 = vsel %vm877, %v3640, 0
    %v3950 = vsel %vm877, %v3645, 0
    %3952 = vmatprep.subr.mxu0 0.0
    %3953 = vmatpush1.msra.mxu0 %v1821
    %3954 = vmatprep.subr.mxu0 0.0
    %3955 = vmatpush1.msra.mxu0 %v1822
    %3956 = vmatprep.subr.mxu0 0.0
    %3957 = vmatpush1.msra.mxu0 %v1823
    %3958 = vmatprep.subr.mxu0 0.0
    %3959 = vmatpush1.msra.mxu0 %v1824
    %3960 = vmatprep.subr.mxu0 0.0
    %3961 = vmatpush1.msra.mxu0 0.0
    %3962 = vmatprep.subr.mxu0 0.0
    %3963 = vmatpush1.msra.mxu0 0.0
    %3964 = vmatprep.subr.mxu0 0.0
    %3965 = vmatpush1.msra.mxu0 0.0
    %3966 = vmatprep.subr.mxu0 0.0
    %3967 = vmatpush1.msra.mxu0 0.0
    %3968 = vmatprep.subr.mxu0 0.0
    %3969 = vmatpush1.msra.mxu0 0.0
    %3970 = vmatprep.subr.mxu0 0.0
    %3971 = vmatpush1.msra.mxu0 0.0
    %3972 = vmatprep.subr.mxu0 0.0
    %3973 = vmatpush1.msra.mxu0 0.0
    %3974 = vmatprep.subr.mxu0 0.0
    %3975 = vmatpush1.msra.mxu0 0.0
    %3976 = vmatprep.subr.mxu0 0.0
    %3977 = vmatpush1.msra.mxu0 0.0
    %3978 = vmatprep.subr.mxu0 0.0
    %3979 = vmatpush1.msra.mxu0 0.0
    %3980 = vmatprep.subr.mxu0 0.0
    %3981 = vmatpush1.msra.mxu0 0.0
    %3982 = vmatprep.subr.mxu0 0.0
    %3983 = vmatpush1.msra.mxu0 0.0
    %3984 = vmatprep.subr.mxu0 0.0
    %3985 = vmatpush1.msra.mxu0 0.0
    %3986 = vmatprep.subr.mxu0 0.0
    %3987 = vmatpush1.msra.mxu0 0.0
    %3988 = vmatprep.subr.mxu0 0.0
    %3989 = vmatpush1.msra.mxu0 0.0
    %3990 = vmatprep.subr.mxu0 0.0
    %3991 = vmatpush1.msra.mxu0 0.0
    %3992 = vmatprep.subr.mxu0 0.0
    %3993 = vmatpush1.msra.mxu0 0.0
    %3994 = vmatprep.subr.mxu0 0.0
    %3995 = vmatpush1.msra.mxu0 0.0
    %3996 = vmatprep.subr.mxu0 0.0
    %3997 = vmatpush1.msra.mxu0 0.0
    %3998 = vmatprep.subr.mxu0 0.0
    %3999 = vmatpush1.msra.mxu0 0.0
    %4000 = vmatprep.subr.mxu0 0.0
    %4001 = vmatpush1.msra.mxu0 0.0
    %4002 = vmatprep.subr.mxu0 0.0
    %4003 = vmatpush1.msra.mxu0 0.0
    %4004 = vmatprep.subr.mxu0 0.0
    %4005 = vmatpush1.msra.mxu0 0.0
    %4006 = vmatprep.subr.mxu0 0.0
    %4007 = vmatpush1.msra.mxu0 0.0
    %4008 = vmatprep.subr.mxu0 0.0
    %4009 = vmatpush1.msra.mxu0 0.0
    %4010 = vmatprep.subr.mxu0 0.0
    %4011 = vmatpush1.msra.mxu0 0.0
    %4012 = vmatprep.subr.mxu0 0.0
    %4013 = vmatpush1.msra.mxu0 0.0
    %4014 = vmatprep.subr.mxu0 0.0
    %4015 = vmatpush1.msra.mxu0 0.0
    %4016 = vmatprep.mubr.f32.mxu0 0.0
    %4017 = vmatmul.mubr.f32.gmra.mrb[0].mxu0 %v3929
    %v4018 = vpop.f32.mrb[0].mxu0
    %v4019 = vadd.f32 0.0, %v4018
    %v4020 = vpop.f32.mrb[0].mxu0
    %4021 = vmatprep.mubr.f32.mxu0 0.0
    %4022 = vmatmul.mubr.f32.gmra.mrb[0].mxu0 %v3932
    %v4023 = vpop.f32.mrb[0].mxu0
    %v4024 = vadd.f32 0.0, %v4023
    %v4025 = vpop.f32.mrb[0].mxu0
    %4026 = vmatprep.mubr.f32.mxu0 0.0
    %4027 = vmatmul.mubr.f32.gmra.mrb[0].mxu0 %v3935
    %v4028 = vpop.f32.mrb[0].mxu0
    %v4029 = vadd.f32 0.0, %v4028
    %v4030 = vpop.f32.mrb[0].mxu0
    %4031 = vmatprep.mubr.f32.mxu0 0.0
    %4032 = vmatmul.mubr.f32.gmra.mrb[0].mxu0 %v3938
    %v4033 = vpop.f32.mrb[0].mxu0
    %v4034 = vadd.f32 0.0, %v4033
    %v4035 = vpop.f32.mrb[0].mxu0
    %4036 = vmatprep.mubr.f32.mxu0 0.0
    %4037 = vmatmul.mubr.f32.gmra.mrb[0].mxu0 %v3941
    %v4038 = vpop.f32.mrb[0].mxu0
    %v4039 = vadd.f32 0.0, %v4038
    %v4040 = vpop.f32.mrb[0].mxu0
    %4041 = vmatprep.mubr.f32.mxu0 0.0
    %4042 = vmatmul.mubr.f32.gmra.mrb[0].mxu0 %v3944
    %v4043 = vpop.f32.mrb[0].mxu0
    %v4044 = vadd.f32 0.0, %v4043
    %v4045 = vpop.f32.mrb[0].mxu0
    %4046 = vmatprep.mubr.f32.mxu0 0.0
    %4047 = vmatmul.mubr.f32.gmra.mrb[0].mxu0 %v3947
    %v4048 = vpop.f32.mrb[0].mxu0
    %v4049 = vadd.f32 0.0, %v4048
    %v4050 = vpop.f32.mrb[0].mxu0
    %4051 = vmatprep.mubr.f32.mxu0 0.0
    %4052 = vmatmul.mubr.f32.gmra.mrb[0].mxu0 %v3950
    %v4053 = vpop.f32.mrb[0].mxu0
    %v4054 = vadd.f32 0.0, %v4053
    %v4055 = vpop.f32.mrb[0].mxu0
    %4056 = vdwg.mxu0
    %v4058 = vsel %vm877, %v3570, 0
    %v4061 = vsel %vm877, %v3575, 0
    %v4064 = vsel %vm877, %v3580, 0
    %v4067 = vsel %vm877, %v3585, 0
    %v4070 = vsel %vm877, %v3590, 0
    %v4073 = vsel %vm877, %v3595, 0
    %v4076 = vsel %vm877, %v3600, 0
    %v4079 = vsel %vm877, %v3605, 0
    %4081 = vmatprep.subr.mxu0 0.0
    %4082 = vmatpush1.msra.mxu0 %v1817
    %4083 = vmatprep.subr.mxu0 0.0
    %4084 = vmatpush1.msra.mxu0 %v1818
    %4085 = vmatprep.subr.mxu0 0.0
    %4086 = vmatpush1.msra.mxu0 %v1819
    %4087 = vmatprep.subr.mxu0 0.0
    %4088 = vmatpush1.msra.mxu0 %v1820
    %4089 = vmatprep.subr.mxu0 0.0
    %4090 = vmatpush1.msra.mxu0 0.0
    %4091 = vmatprep.subr.mxu0 0.0
    %4092 = vmatpush1.msra.mxu0 0.0
    %4093 = vmatprep.subr.mxu0 0.0
    %4094 = vmatpush1.msra.mxu0 0.0
    %4095 = vmatprep.subr.mxu0 0.0
    %4096 = vmatpush1.msra.mxu0 0.0
    %4097 = vmatprep.subr.mxu0 0.0
    %4098 = vmatpush1.msra.mxu0 0.0
    %4099 = vmatprep.subr.mxu0 0.0
    %4100 = vmatpush1.msra.mxu0 0.0
    %4101 = vmatprep.subr.mxu0 0.0
    %4102 = vmatpush1.msra.mxu0 0.0
    %4103 = vmatprep.subr.mxu0 0.0
    %4104 = vmatpush1.msra.mxu0 0.0
    %4105 = vmatprep.subr.mxu0 0.0
    %4106 = vmatpush1.msra.mxu0 0.0
    %4107 = vmatprep.subr.mxu0 0.0
    %4108 = vmatpush1.msra.mxu0 0.0
    %4109 = vmatprep.subr.mxu0 0.0
    %4110 = vmatpush1.msra.mxu0 0.0
    %4111 = vmatprep.subr.mxu0 0.0
    %4112 = vmatpush1.msra.mxu0 0.0
    %4113 = vmatprep.subr.mxu0 0.0
    %4114 = vmatpush1.msra.mxu0 0.0
    %4115 = vmatprep.subr.mxu0 0.0
    %4116 = vmatpush1.msra.mxu0 0.0
    %4117 = vmatprep.subr.mxu0 0.0
    %4118 = vmatpush1.msra.mxu0 0.0
    %4119 = vmatprep.subr.mxu0 0.0
    %4120 = vmatpush1.msra.mxu0 0.0
    %4121 = vmatprep.subr.mxu0 0.0
    %4122 = vmatpush1.msra.mxu0 0.0
    %4123 = vmatprep.subr.mxu0 0.0
    %4124 = vmatpush1.msra.mxu0 0.0
    %4125 = vmatprep.subr.mxu0 0.0
    %4126 = vmatpush1.msra.mxu0 0.0
    %4127 = vmatprep.subr.mxu0 0.0
    %4128 = vmatpush1.msra.mxu0 0.0
    %4129 = vmatprep.subr.mxu0 0.0
    %4130 = vmatpush1.msra.mxu0 0.0
    %4131 = vmatprep.subr.mxu0 0.0
    %4132 = vmatpush1.msra.mxu0 0.0
    %4133 = vmatprep.subr.mxu0 0.0
    %4134 = vmatpush1.msra.mxu0 0.0
    %4135 = vmatprep.subr.mxu0 0.0
    %4136 = vmatpush1.msra.mxu0 0.0
    %4137 = vmatprep.subr.mxu0 0.0
    %4138 = vmatpush1.msra.mxu0 0.0
    %4139 = vmatprep.subr.mxu0 0.0
    %4140 = vmatpush1.msra.mxu0 0.0
    %4141 = vmatprep.subr.mxu0 0.0
    %4142 = vmatpush1.msra.mxu0 0.0
    %4143 = vmatprep.subr.mxu0 0.0
    %4144 = vmatpush1.msra.mxu0 0.0
    %4145 = vmatprep.mubr.f32.mxu0 0.0
    %4146 = vmatmul.mubr.f32.gmra.mrb[0].mxu0 %v4058
    %v4147 = vpop.f32.mrb[0].mxu0
    %v4148 = vadd.f32 %v4019, %v4147
    %v4149 = vpop.f32.mrb[0].mxu0
    %4150 = vmatprep.mubr.f32.mxu0 0.0
    %4151 = vmatmul.mubr.f32.gmra.mrb[0].mxu0 %v4061
    %v4152 = vpop.f32.mrb[0].mxu0
    %v4153 = vadd.f32 %v4024, %v4152
    %v4154 = vpop.f32.mrb[0].mxu0
    %4155 = vmatprep.mubr.f32.mxu0 0.0
    %4156 = vmatmul.mubr.f32.gmra.mrb[0].mxu0 %v4064
    %v4157 = vpop.f32.mrb[0].mxu0
    %v4158 = vadd.f32 %v4029, %v4157
    %v4159 = vpop.f32.mrb[0].mxu0
    %4160 = vmatprep.mubr.f32.mxu0 0.0
    %4161 = vmatmul.mubr.f32.gmra.mrb[0].mxu0 %v4067
    %v4162 = vpop.f32.mrb[0].mxu0
    %v4163 = vadd.f32 %v4034, %v4162
    %v4164 = vpop.f32.mrb[0].mxu0
    %4165 = vmatprep.mubr.f32.mxu0 0.0
    %4166 = vmatmul.mubr.f32.gmra.mrb[0].mxu0 %v4070
    %v4167 = vpop.f32.mrb[0].mxu0
    %v4168 = vadd.f32 %v4039, %v4167
    %v4169 = vpop.f32.mrb[0].mxu0
    %4170 = vmatprep.mubr.f32.mxu0 0.0
    %4171 = vmatmul.mubr.f32.gmra.mrb[0].mxu0 %v4073
    %v4172 = vpop.f32.mrb[0].mxu0
    %v4173 = vadd.f32 %v4044, %v4172
    %v4174 = vpop.f32.mrb[0].mxu0
    %4175 = vmatprep.mubr.f32.mxu0 0.0
    %4176 = vmatmul.mubr.f32.gmra.mrb[0].mxu0 %v4076
    %v4177 = vpop.f32.mrb[0].mxu0
    %v4178 = vadd.f32 %v4049, %v4177
    %v4179 = vpop.f32.mrb[0].mxu0
    %4180 = vmatprep.mubr.f32.mxu0 0.0
    %4181 = vmatmul.mubr.f32.gmra.mrb[0].mxu0 %v4079
    %v4182 = vpop.f32.mrb[0].mxu0
    %v4183 = vadd.f32 %v4054, %v4182
    %v4184 = vpop.f32.mrb[0].mxu0
    %4185 = vdwg.mxu0
    %v4187 = vsel %vm877, %v3650, 0
    %v4190 = vsel %vm877, %v3655, 0
    %v4193 = vsel %vm877, %v3660, 0
    %v4196 = vsel %vm877, %v3665, 0
    %v4199 = vsel %vm877, %v3670, 0
    %v4202 = vsel %vm877, %v3675, 0
    %v4205 = vsel %vm877, %v3680, 0
    %v4208 = vsel %vm877, %v3685, 0
    %4210 = vmatprep.subr.mxu0 0.0
    %4211 = vmatpush1.msra.mxu0 %v1825
    %4212 = vmatprep.subr.mxu0 0.0
    %4213 = vmatpush1.msra.mxu0 %v1826
    %4214 = vmatprep.subr.mxu0 0.0
    %4215 = vmatpush1.msra.mxu0 %v1827
    %4216 = vmatprep.subr.mxu0 0.0
    %4217 = vmatpush1.msra.mxu0 %v1828
    %4218 = vmatprep.subr.mxu0 0.0
    %4219 = vmatpush1.msra.mxu0 0.0
    %4220 = vmatprep.subr.mxu0 0.0
    %4221 = vmatpush1.msra.mxu0 0.0
    %4222 = vmatprep.subr.mxu0 0.0
    %4223 = vmatpush1.msra.mxu0 0.0
    %4224 = vmatprep.subr.mxu0 0.0
    %4225 = vmatpush1.msra.mxu0 0.0
    %4226 = vmatprep.subr.mxu0 0.0
    %4227 = vmatpush1.msra.mxu0 0.0
    %4228 = vmatprep.subr.mxu0 0.0
    %4229 = vmatpush1.msra.mxu0 0.0
    %4230 = vmatprep.subr.mxu0 0.0
    %4231 = vmatpush1.msra.mxu0 0.0
    %4232 = vmatprep.subr.mxu0 0.0
    %4233 = vmatpush1.msra.mxu0 0.0
    %4234 = vmatprep.subr.mxu0 0.0
    %4235 = vmatpush1.msra.mxu0 0.0
    %4236 = vmatprep.subr.mxu0 0.0
    %4237 = vmatpush1.msra.mxu0 0.0
    %4238 = vmatprep.subr.mxu0 0.0
    %4239 = vmatpush1.msra.mxu0 0.0
    %4240 = vmatprep.subr.mxu0 0.0
    %4241 = vmatpush1.msra.mxu0 0.0
    %4242 = vmatprep.subr.mxu0 0.0
    %4243 = vmatpush1.msra.mxu0 0.0
    %4244 = vmatprep.subr.mxu0 0.0
    %4245 = vmatpush1.msra.mxu0 0.0
    %4246 = vmatprep.subr.mxu0 0.0
    %4247 = vmatpush1.msra.mxu0 0.0
    %4248 = vmatprep.subr.mxu0 0.0
    %4249 = vmatpush1.msra.mxu0 0.0
    %4250 = vmatprep.subr.mxu0 0.0
    %4251 = vmatpush1.msra.mxu0 0.0
    %4252 = vmatprep.subr.mxu0 0.0
    %4253 = vmatpush1.msra.mxu0 0.0
    %4254 = vmatprep.subr.mxu0 0.0
    %4255 = vmatpush1.msra.mxu0 0.0
    %4256 = vmatprep.subr.mxu0 0.0
    %4257 = vmatpush1.msra.mxu0 0.0
    %4258 = vmatprep.subr.mxu0 0.0
    %4259 = vmatpush1.msra.mxu0 0.0
    %4260 = vmatprep.subr.mxu0 0.0
    %4261 = vmatpush1.msra.mxu0 0.0
    %4262 = vmatprep.subr.mxu0 0.0
    %4263 = vmatpush1.msra.mxu0 0.0
    %4264 = vmatprep.subr.mxu0 0.0
    %4265 = vmatpush1.msra.mxu0 0.0
    %4266 = vmatprep.subr.mxu0 0.0
    %4267 = vmatpush1.msra.mxu0 0.0
    %4268 = vmatprep.subr.mxu0 0.0
    %4269 = vmatpush1.msra.mxu0 0.0
    %4270 = vmatprep.subr.mxu0 0.0
    %4271 = vmatpush1.msra.mxu0 0.0
    %4272 = vmatprep.subr.mxu0 0.0
    %4273 = vmatpush1.msra.mxu0 0.0
    %4274 = vmatprep.mubr.f32.mxu0 0.0
    %4275 = vmatmul.mubr.f32.gmra.mrb[0].mxu0 %v4187
    %v4276 = vpop.f32.mrb[0].mxu0
    %v4277 = vadd.f32 0.0, %v4276
    %v4278 = vpop.f32.mrb[0].mxu0
    %4279 = vmatprep.mubr.f32.mxu0 0.0
    %4280 = vmatmul.mubr.f32.gmra.mrb[0].mxu0 %v4190
    %v4281 = vpop.f32.mrb[0].mxu0
    %v4282 = vadd.f32 0.0, %v4281
    %v4283 = vpop.f32.mrb[0].mxu0
    %4284 = vmatprep.mubr.f32.mxu0 0.0
    %4285 = vmatmul.mubr.f32.gmra.mrb[0].mxu0 %v4193
    %v4286 = vpop.f32.mrb[0].mxu0
    %v4287 = vadd.f32 0.0, %v4286
    %v4288 = vpop.f32.mrb[0].mxu0
    %4289 = vmatprep.mubr.f32.mxu0 0.0
    %4290 = vmatmul.mubr.f32.gmra.mrb[0].mxu0 %v4196
    %v4291 = vpop.f32.mrb[0].mxu0
    %v4292 = vadd.f32 0.0, %v4291
    %v4293 = vpop.f32.mrb[0].mxu0
    %4294 = vmatprep.mubr.f32.mxu0 0.0
    %4295 = vmatmul.mubr.f32.gmra.mrb[0].mxu0 %v4199
    %v4296 = vpop.f32.mrb[0].mxu0
    %v4297 = vadd.f32 0.0, %v4296
    %v4298 = vpop.f32.mrb[0].mxu0
    %4299 = vmatprep.mubr.f32.mxu0 0.0
    %4300 = vmatmul.mubr.f32.gmra.mrb[0].mxu0 %v4202
    %v4301 = vpop.f32.mrb[0].mxu0
    %v4302 = vadd.f32 0.0, %v4301
    %v4303 = vpop.f32.mrb[0].mxu0
    %4304 = vmatprep.mubr.f32.mxu0 0.0
    %4305 = vmatmul.mubr.f32.gmra.mrb[0].mxu0 %v4205
    %v4306 = vpop.f32.mrb[0].mxu0
    %v4307 = vadd.f32 0.0, %v4306
    %v4308 = vpop.f32.mrb[0].mxu0
    %4309 = vmatprep.mubr.f32.mxu0 0.0
    %4310 = vmatmul.mubr.f32.gmra.mrb[0].mxu0 %v4208
    %v4311 = vpop.f32.mrb[0].mxu0
    %v4312 = vadd.f32 0.0, %v4311
    %v4313 = vpop.f32.mrb[0].mxu0
    %4314 = vdwg.mxu0
    %v4315 = vadd.f32 %v4148, %v4277
    %v4316 = vadd.f32 %v4153, %v4282
    %v4317 = vadd.f32 %v4158, %v4287
    %v4318 = vadd.f32 %v4163, %v4292
    %v4319 = vadd.f32 %v4168, %v4297
    %v4320 = vadd.f32 %v4173, %v4302
    %v4321 = vadd.f32 %v4178, %v4307
    %v4322 = vadd.f32 %v4183, %v4312
    %v4324 = vsel %vm877, %v3690, 0
    %v4327 = vsel %vm877, %v3695, 0
    %v4330 = vsel %vm877, %v3700, 0
    %v4333 = vsel %vm877, %v3705, 0
    %v4336 = vsel %vm877, %v3710, 0
    %v4339 = vsel %vm877, %v3715, 0
    %v4342 = vsel %vm877, %v3720, 0
    %v4345 = vsel %vm877, %v3725, 0
    %4347 = vmatprep.subr.mxu0 0.0
    %4348 = vmatpush1.msra.mxu0 %v1829
    %4349 = vmatprep.subr.mxu0 0.0
    %4350 = vmatpush1.msra.mxu0 %v1830
    %4351 = vmatprep.subr.mxu0 0.0
    %4352 = vmatpush1.msra.mxu0 %v1831
    %4353 = vmatprep.subr.mxu0 0.0
    %4354 = vmatpush1.msra.mxu0 %v1832
    %4355 = vmatprep.subr.mxu0 0.0
    %4356 = vmatpush1.msra.mxu0 0.0
    %4357 = vmatprep.subr.mxu0 0.0
    %4358 = vmatpush1.msra.mxu0 0.0
    %4359 = vmatprep.subr.mxu0 0.0
    %4360 = vmatpush1.msra.mxu0 0.0
    %4361 = vmatprep.subr.mxu0 0.0
    %4362 = vmatpush1.msra.mxu0 0.0
    %4363 = vmatprep.subr.mxu0 0.0
    %4364 = vmatpush1.msra.mxu0 0.0
    %4365 = vmatprep.subr.mxu0 0.0
    %4366 = vmatpush1.msra.mxu0 0.0
    %4367 = vmatprep.subr.mxu0 0.0
    %4368 = vmatpush1.msra.mxu0 0.0
    %4369 = vmatprep.subr.mxu0 0.0
    %4370 = vmatpush1.msra.mxu0 0.0
    %4371 = vmatprep.subr.mxu0 0.0
    %4372 = vmatpush1.msra.mxu0 0.0
    %4373 = vmatprep.subr.mxu0 0.0
    %4374 = vmatpush1.msra.mxu0 0.0
    %4375 = vmatprep.subr.mxu0 0.0
    %4376 = vmatpush1.msra.mxu0 0.0
    %4377 = vmatprep.subr.mxu0 0.0
    %4378 = vmatpush1.msra.mxu0 0.0
    %4379 = vmatprep.subr.mxu0 0.0
    %4380 = vmatpush1.msra.mxu0 0.0
    %4381 = vmatprep.subr.mxu0 0.0
    %4382 = vmatpush1.msra.mxu0 0.0
    %4383 = vmatprep.subr.mxu0 0.0
    %4384 = vmatpush1.msra.mxu0 0.0
    %4385 = vmatprep.subr.mxu0 0.0
    %4386 = vmatpush1.msra.mxu0 0.0
    %4387 = vmatprep.subr.mxu0 0.0
    %4388 = vmatpush1.msra.mxu0 0.0
    %4389 = vmatprep.subr.mxu0 0.0
    %4390 = vmatpush1.msra.mxu0 0.0
    %4391 = vmatprep.subr.mxu0 0.0
    %4392 = vmatpush1.msra.mxu0 0.0
    %4393 = vmatprep.subr.mxu0 0.0
    %4394 = vmatpush1.msra.mxu0 0.0
    %4395 = vmatprep.subr.mxu0 0.0
    %4396 = vmatpush1.msra.mxu0 0.0
    %4397 = vmatprep.subr.mxu0 0.0
    %4398 = vmatpush1.msra.mxu0 0.0
    %4399 = vmatprep.subr.mxu0 0.0
    %4400 = vmatpush1.msra.mxu0 0.0
    %4401 = vmatprep.subr.mxu0 0.0
    %4402 = vmatpush1.msra.mxu0 0.0
    %4403 = vmatprep.subr.mxu0 0.0
    %4404 = vmatpush1.msra.mxu0 0.0
    %4405 = vmatprep.subr.mxu0 0.0
    %4406 = vmatpush1.msra.mxu0 0.0
    %4407 = vmatprep.subr.mxu0 0.0
    %4408 = vmatpush1.msra.mxu0 0.0
    %4409 = vmatprep.subr.mxu0 0.0
    %4410 = vmatpush1.msra.mxu0 0.0
    %4411 = vmatprep.mubr.f32.mxu0 0.0
    %4412 = vmatmul.mubr.f32.gmra.mrb[0].mxu0 %v4324
    %v4413 = vpop.f32.mrb[0].mxu0
    %v4414 = vadd.f32 0.0, %v4413
    %v4415 = vpop.f32.mrb[0].mxu0
    %4416 = vmatprep.mubr.f32.mxu0 0.0
    %4417 = vmatmul.mubr.f32.gmra.mrb[0].mxu0 %v4327
    %v4418 = vpop.f32.mrb[0].mxu0
    %v4419 = vadd.f32 0.0, %v4418
    %v4420 = vpop.f32.mrb[0].mxu0
    %4421 = vmatprep.mubr.f32.mxu0 0.0
    %4422 = vmatmul.mubr.f32.gmra.mrb[0].mxu0 %v4330
    %v4423 = vpop.f32.mrb[0].mxu0
    %v4424 = vadd.f32 0.0, %v4423
    %v4425 = vpop.f32.mrb[0].mxu0
    %4426 = vmatprep.mubr.f32.mxu0 0.0
    %4427 = vmatmul.mubr.f32.gmra.mrb[0].mxu0 %v4333
    %v4428 = vpop.f32.mrb[0].mxu0
    %v4429 = vadd.f32 0.0, %v4428
    %v4430 = vpop.f32.mrb[0].mxu0
    %4431 = vmatprep.mubr.f32.mxu0 0.0
    %4432 = vmatmul.mubr.f32.gmra.mrb[0].mxu0 %v4336
    %v4433 = vpop.f32.mrb[0].mxu0
    %v4434 = vadd.f32 0.0, %v4433
    %v4435 = vpop.f32.mrb[0].mxu0
    %4436 = vmatprep.mubr.f32.mxu0 0.0
    %4437 = vmatmul.mubr.f32.gmra.mrb[0].mxu0 %v4339
    %v4438 = vpop.f32.mrb[0].mxu0
    %v4439 = vadd.f32 0.0, %v4438
    %v4440 = vpop.f32.mrb[0].mxu0
    %4441 = vmatprep.mubr.f32.mxu0 0.0
    %4442 = vmatmul.mubr.f32.gmra.mrb[0].mxu0 %v4342
    %v4443 = vpop.f32.mrb[0].mxu0
    %v4444 = vadd.f32 0.0, %v4443
    %v4445 = vpop.f32.mrb[0].mxu0
    %4446 = vmatprep.mubr.f32.mxu0 0.0
    %4447 = vmatmul.mubr.f32.gmra.mrb[0].mxu0 %v4345
    %v4448 = vpop.f32.mrb[0].mxu0
    %v4449 = vadd.f32 0.0, %v4448
    %v4450 = vpop.f32.mrb[0].mxu0
    %4451 = vdwg.mxu0
    %v4452 = vadd.f32 %v4315, %v4414
    %v4453 = vadd.f32 %v4316, %v4419
    %v4454 = vadd.f32 %v4317, %v4424
    %v4455 = vadd.f32 %v4318, %v4429
    %v4456 = vadd.f32 %v4319, %v4434
    %v4457 = vadd.f32 %v4320, %v4439
    %v4458 = vadd.f32 %v4321, %v4444
    %v4459 = vadd.f32 %v4322, %v4449
    %v4461 = vsel %vm877, %v3730, 0
    %v4464 = vsel %vm877, %v3735, 0
    %v4467 = vsel %vm877, %v3740, 0
    %v4470 = vsel %vm877, %v3745, 0
    %v4473 = vsel %vm877, %v3750, 0
    %v4476 = vsel %vm877, %v3755, 0
    %v4479 = vsel %vm877, %v3760, 0
    %v4482 = vsel %vm877, %v3765, 0
    %4484 = vmatprep.subr.mxu0 0.0
    %4485 = vmatpush1.msra.mxu0 %v1833
    %4486 = vmatprep.subr.mxu0 0.0
    %4487 = vmatpush1.msra.mxu0 %v1834
    %4488 = vmatprep.subr.mxu0 0.0
    %4489 = vmatpush1.msra.mxu0 %v1835
    %4490 = vmatprep.subr.mxu0 0.0
    %4491 = vmatpush1.msra.mxu0 %v1836
    %4492 = vmatprep.subr.mxu0 0.0
    %4493 = vmatpush1.msra.mxu0 0.0
    %4494 = vmatprep.subr.mxu0 0.0
    %4495 = vmatpush1.msra.mxu0 0.0
    %4496 = vmatprep.subr.mxu0 0.0
    %4497 = vmatpush1.msra.mxu0 0.0
    %4498 = vmatprep.subr.mxu0 0.0
    %4499 = vmatpush1.msra.mxu0 0.0
    %4500 = vmatprep.subr.mxu0 0.0
    %4501 = vmatpush1.msra.mxu0 0.0
    %4502 = vmatprep.subr.mxu0 0.0
    %4503 = vmatpush1.msra.mxu0 0.0
    %4504 = vmatprep.subr.mxu0 0.0
    %4505 = vmatpush1.msra.mxu0 0.0
    %4506 = vmatprep.subr.mxu0 0.0
    %4507 = vmatpush1.msra.mxu0 0.0
    %4508 = vmatprep.subr.mxu0 0.0
    %4509 = vmatpush1.msra.mxu0 0.0
    %4510 = vmatprep.subr.mxu0 0.0
    %4511 = vmatpush1.msra.mxu0 0.0
    %4512 = vmatprep.subr.mxu0 0.0
    %4513 = vmatpush1.msra.mxu0 0.0
    %4514 = vmatprep.subr.mxu0 0.0
    %4515 = vmatpush1.msra.mxu0 0.0
    %4516 = vmatprep.subr.mxu0 0.0
    %4517 = vmatpush1.msra.mxu0 0.0
    %4518 = vmatprep.subr.mxu0 0.0
    %4519 = vmatpush1.msra.mxu0 0.0
    %4520 = vmatprep.subr.mxu0 0.0
    %4521 = vmatpush1.msra.mxu0 0.0
    %4522 = vmatprep.subr.mxu0 0.0
    %4523 = vmatpush1.msra.mxu0 0.0
    %4524 = vmatprep.subr.mxu0 0.0
    %4525 = vmatpush1.msra.mxu0 0.0
    %4526 = vmatprep.subr.mxu0 0.0
    %4527 = vmatpush1.msra.mxu0 0.0
    %4528 = vmatprep.subr.mxu0 0.0
    %4529 = vmatpush1.msra.mxu0 0.0
    %4530 = vmatprep.subr.mxu0 0.0
    %4531 = vmatpush1.msra.mxu0 0.0
    %4532 = vmatprep.subr.mxu0 0.0
    %4533 = vmatpush1.msra.mxu0 0.0
    %4534 = vmatprep.subr.mxu0 0.0
    %4535 = vmatpush1.msra.mxu0 0.0
    %4536 = vmatprep.subr.mxu0 0.0
    %4537 = vmatpush1.msra.mxu0 0.0
    %4538 = vmatprep.subr.mxu0 0.0
    %4539 = vmatpush1.msra.mxu0 0.0
    %4540 = vmatprep.subr.mxu0 0.0
    %4541 = vmatpush1.msra.mxu0 0.0
    %4542 = vmatprep.subr.mxu0 0.0
    %4543 = vmatpush1.msra.mxu0 0.0
    %4544 = vmatprep.subr.mxu0 0.0
    %4545 = vmatpush1.msra.mxu0 0.0
    %4546 = vmatprep.subr.mxu0 0.0
    %4547 = vmatpush1.msra.mxu0 0.0
    %4548 = vmatprep.mubr.f32.mxu0 0.0
    %4549 = vmatmul.mubr.f32.gmra.mrb[0].mxu0 %v4461
    %v4550 = vpop.f32.mrb[0].mxu0
    %v4551 = vadd.f32 0.0, %v4550
    %v4552 = vpop.f32.mrb[0].mxu0
    %4553 = vmatprep.mubr.f32.mxu0 0.0
    %4554 = vmatmul.mubr.f32.gmra.mrb[0].mxu0 %v4464
    %v4555 = vpop.f32.mrb[0].mxu0
    %v4556 = vadd.f32 0.0, %v4555
    %v4557 = vpop.f32.mrb[0].mxu0
    %4558 = vmatprep.mubr.f32.mxu0 0.0
    %4559 = vmatmul.mubr.f32.gmra.mrb[0].mxu0 %v4467
    %v4560 = vpop.f32.mrb[0].mxu0
    %v4561 = vadd.f32 0.0, %v4560
    %v4562 = vpop.f32.mrb[0].mxu0
    %4563 = vmatprep.mubr.f32.mxu0 0.0
    %4564 = vmatmul.mubr.f32.gmra.mrb[0].mxu0 %v4470
    %v4565 = vpop.f32.mrb[0].mxu0
    %v4566 = vadd.f32 0.0, %v4565
    %v4567 = vpop.f32.mrb[0].mxu0
    %4568 = vmatprep.mubr.f32.mxu0 0.0
    %4569 = vmatmul.mubr.f32.gmra.mrb[0].mxu0 %v4473
    %v4570 = vpop.f32.mrb[0].mxu0
    %v4571 = vadd.f32 0.0, %v4570
    %v4572 = vpop.f32.mrb[0].mxu0
    %4573 = vmatprep.mubr.f32.mxu0 0.0
    %4574 = vmatmul.mubr.f32.gmra.mrb[0].mxu0 %v4476
    %v4575 = vpop.f32.mrb[0].mxu0
    %v4576 = vadd.f32 0.0, %v4575
    %v4577 = vpop.f32.mrb[0].mxu0
    %4578 = vmatprep.mubr.f32.mxu0 0.0
    %4579 = vmatmul.mubr.f32.gmra.mrb[0].mxu0 %v4479
    %v4580 = vpop.f32.mrb[0].mxu0
    %v4581 = vadd.f32 0.0, %v4580
    %v4582 = vpop.f32.mrb[0].mxu0
    %4583 = vmatprep.mubr.f32.mxu0 0.0
    %4584 = vmatmul.mubr.f32.gmra.mrb[0].mxu0 %v4482
    %v4585 = vpop.f32.mrb[0].mxu0
    %v4586 = vadd.f32 0.0, %v4585
    %v4587 = vpop.f32.mrb[0].mxu0
    %4588 = vdwg.mxu0
    %v4589 = vadd.f32 %v4452, %v4551
    %v4590 = vadd.f32 %v4453, %v4556
    %v4591 = vadd.f32 %v4454, %v4561
    %v4592 = vadd.f32 %v4455, %v4566
    %v4593 = vadd.f32 %v4456, %v4571
    %v4594 = vadd.f32 %v4457, %v4576
    %v4595 = vadd.f32 %v4458, %v4581
    %v4596 = vadd.f32 %v4459, %v4586
    %v4598 = vsel %vm877, %v3770, 0
    %v4601 = vsel %vm877, %v3775, 0
    %v4604 = vsel %vm877, %v3780, 0
    %v4607 = vsel %vm877, %v3785, 0
    %v4610 = vsel %vm877, %v3790, 0
    %v4613 = vsel %vm877, %v3795, 0
    %v4616 = vsel %vm877, %v3800, 0
    %v4619 = vsel %vm877, %v3805, 0
    %4621 = vmatprep.subr.mxu0 0.0
    %4622 = vmatpush1.msra.mxu0 %v1837
    %4623 = vmatprep.subr.mxu0 0.0
    %4624 = vmatpush1.msra.mxu0 %v1838
    %4625 = vmatprep.subr.mxu0 0.0
    %4626 = vmatpush1.msra.mxu0 %v1839
    %4627 = vmatprep.subr.mxu0 0.0
    %4628 = vmatpush1.msra.mxu0 %v1840
    %4629 = vmatprep.subr.mxu0 0.0
    %4630 = vmatpush1.msra.mxu0 0.0
    %4631 = vmatprep.subr.mxu0 0.0
    %4632 = vmatpush1.msra.mxu0 0.0
    %4633 = vmatprep.subr.mxu0 0.0
    %4634 = vmatpush1.msra.mxu0 0.0
    %4635 = vmatprep.subr.mxu0 0.0
    %4636 = vmatpush1.msra.mxu0 0.0
    %4637 = vmatprep.subr.mxu0 0.0
    %4638 = vmatpush1.msra.mxu0 0.0
    %4639 = vmatprep.subr.mxu0 0.0
    %4640 = vmatpush1.msra.mxu0 0.0
    %4641 = vmatprep.subr.mxu0 0.0
    %4642 = vmatpush1.msra.mxu0 0.0
    %4643 = vmatprep.subr.mxu0 0.0
    %4644 = vmatpush1.msra.mxu0 0.0
    %4645 = vmatprep.subr.mxu0 0.0
    %4646 = vmatpush1.msra.mxu0 0.0
    %4647 = vmatprep.subr.mxu0 0.0
    %4648 = vmatpush1.msra.mxu0 0.0
    %4649 = vmatprep.subr.mxu0 0.0
    %4650 = vmatpush1.msra.mxu0 0.0
    %4651 = vmatprep.subr.mxu0 0.0
    %4652 = vmatpush1.msra.mxu0 0.0
    %4653 = vmatprep.subr.mxu0 0.0
    %4654 = vmatpush1.msra.mxu0 0.0
    %4655 = vmatprep.subr.mxu0 0.0
    %4656 = vmatpush1.msra.mxu0 0.0
    %4657 = vmatprep.subr.mxu0 0.0
    %4658 = vmatpush1.msra.mxu0 0.0
    %4659 = vmatprep.subr.mxu0 0.0
    %4660 = vmatpush1.msra.mxu0 0.0
    %4661 = vmatprep.subr.mxu0 0.0
    %4662 = vmatpush1.msra.mxu0 0.0
    %4663 = vmatprep.subr.mxu0 0.0
    %4664 = vmatpush1.msra.mxu0 0.0
    %4665 = vmatprep.subr.mxu0 0.0
    %4666 = vmatpush1.msra.mxu0 0.0
    %4667 = vmatprep.subr.mxu0 0.0
    %4668 = vmatpush1.msra.mxu0 0.0
    %4669 = vmatprep.subr.mxu0 0.0
    %4670 = vmatpush1.msra.mxu0 0.0
    %4671 = vmatprep.subr.mxu0 0.0
    %4672 = vmatpush1.msra.mxu0 0.0
    %4673 = vmatprep.subr.mxu0 0.0
    %4674 = vmatpush1.msra.mxu0 0.0
    %4675 = vmatprep.subr.mxu0 0.0
    %4676 = vmatpush1.msra.mxu0 0.0
    %4677 = vmatprep.subr.mxu0 0.0
    %4678 = vmatpush1.msra.mxu0 0.0
    %4679 = vmatprep.subr.mxu0 0.0
    %4680 = vmatpush1.msra.mxu0 0.0
    %4681 = vmatprep.subr.mxu0 0.0
    %4682 = vmatpush1.msra.mxu0 0.0
    %4683 = vmatprep.subr.mxu0 0.0
    %4684 = vmatpush1.msra.mxu0 0.0
    %4685 = vmatprep.mubr.f32.mxu0 0.0
    %4686 = vmatmul.mubr.f32.gmra.mrb[0].mxu0 %v4598
    %v4687 = vpop.f32.mrb[0].mxu0
    %v4688 = vadd.f32 0.0, %v4687
    %v4689 = vpop.f32.mrb[0].mxu0
    %4690 = vmatprep.mubr.f32.mxu0 0.0
    %4691 = vmatmul.mubr.f32.gmra.mrb[0].mxu0 %v4601
    %v4692 = vpop.f32.mrb[0].mxu0
    %v4693 = vadd.f32 0.0, %v4692
    %v4694 = vpop.f32.mrb[0].mxu0
    %4695 = vmatprep.mubr.f32.mxu0 0.0
    %4696 = vmatmul.mubr.f32.gmra.mrb[0].mxu0 %v4604
    %v4697 = vpop.f32.mrb[0].mxu0
    %v4698 = vadd.f32 0.0, %v4697
    %v4699 = vpop.f32.mrb[0].mxu0
    %4700 = vmatprep.mubr.f32.mxu0 0.0
    %4701 = vmatmul.mubr.f32.gmra.mrb[0].mxu0 %v4607
    %v4702 = vpop.f32.mrb[0].mxu0
    %v4703 = vadd.f32 0.0, %v4702
    %v4704 = vpop.f32.mrb[0].mxu0
    %4705 = vmatprep.mubr.f32.mxu0 0.0
    %4706 = vmatmul.mubr.f32.gmra.mrb[0].mxu0 %v4610
    %v4707 = vpop.f32.mrb[0].mxu0
    %v4708 = vadd.f32 0.0, %v4707
    %v4709 = vpop.f32.mrb[0].mxu0
    %4710 = vmatprep.mubr.f32.mxu0 0.0
    %4711 = vmatmul.mubr.f32.gmra.mrb[0].mxu0 %v4613
    %v4712 = vpop.f32.mrb[0].mxu0
    %v4713 = vadd.f32 0.0, %v4712
    %v4714 = vpop.f32.mrb[0].mxu0
    %4715 = vmatprep.mubr.f32.mxu0 0.0
    %4716 = vmatmul.mubr.f32.gmra.mrb[0].mxu0 %v4616
    %v4717 = vpop.f32.mrb[0].mxu0
    %v4718 = vadd.f32 0.0, %v4717
    %v4719 = vpop.f32.mrb[0].mxu0
    %4720 = vmatprep.mubr.f32.mxu0 0.0
    %4721 = vmatmul.mubr.f32.gmra.mrb[0].mxu0 %v4619
    %v4722 = vpop.f32.mrb[0].mxu0
    %v4723 = vadd.f32 0.0, %v4722
    %v4724 = vpop.f32.mrb[0].mxu0
    %4725 = vdwg.mxu0
    %v4726 = vadd.f32 %v4589, %v4688
    %v4727 = vadd.f32 %v4590, %v4693
    %v4728 = vadd.f32 %v4591, %v4698
    %v4729 = vadd.f32 %v4592, %v4703
    %v4730 = vadd.f32 %v4593, %v4708
    %v4731 = vadd.f32 %v4594, %v4713
    %v4732 = vadd.f32 %v4595, %v4718
    %v4733 = vadd.f32 %v4596, %v4723
    %v4735 = vsel %vm877, %v3810, 0
    %v4738 = vsel %vm877, %v3815, 0
    %v4741 = vsel %vm877, %v3820, 0
    %v4744 = vsel %vm877, %v3825, 0
    %v4747 = vsel %vm877, %v3830, 0
    %v4750 = vsel %vm877, %v3835, 0
    %v4753 = vsel %vm877, %v3840, 0
    %v4756 = vsel %vm877, %v3845, 0
    %4758 = vmatprep.subr.mxu0 0.0
    %4759 = vmatpush1.msra.mxu0 %v1841
    %4760 = vmatprep.subr.mxu0 0.0
    %4761 = vmatpush1.msra.mxu0 %v1842
    %4762 = vmatprep.subr.mxu0 0.0
    %4763 = vmatpush1.msra.mxu0 %v1843
    %4764 = vmatprep.subr.mxu0 0.0
    %4765 = vmatpush1.msra.mxu0 %v1844
    %4766 = vmatprep.subr.mxu0 0.0
    %4767 = vmatpush1.msra.mxu0 0.0
    %4768 = vmatprep.subr.mxu0 0.0
    %4769 = vmatpush1.msra.mxu0 0.0
    %4770 = vmatprep.subr.mxu0 0.0
    %4771 = vmatpush1.msra.mxu0 0.0
    %4772 = vmatprep.subr.mxu0 0.0
    %4773 = vmatpush1.msra.mxu0 0.0
    %4774 = vmatprep.subr.mxu0 0.0
    %4775 = vmatpush1.msra.mxu0 0.0
    %4776 = vmatprep.subr.mxu0 0.0
    %4777 = vmatpush1.msra.mxu0 0.0
    %4778 = vmatprep.subr.mxu0 0.0
    %4779 = vmatpush1.msra.mxu0 0.0
    %4780 = vmatprep.subr.mxu0 0.0
    %4781 = vmatpush1.msra.mxu0 0.0
    %4782 = vmatprep.subr.mxu0 0.0
    %4783 = vmatpush1.msra.mxu0 0.0
    %4784 = vmatprep.subr.mxu0 0.0
    %4785 = vmatpush1.msra.mxu0 0.0
    %4786 = vmatprep.subr.mxu0 0.0
    %4787 = vmatpush1.msra.mxu0 0.0
    %4788 = vmatprep.subr.mxu0 0.0
    %4789 = vmatpush1.msra.mxu0 0.0
    %4790 = vmatprep.subr.mxu0 0.0
    %4791 = vmatpush1.msra.mxu0 0.0
    %4792 = vmatprep.subr.mxu0 0.0
    %4793 = vmatpush1.msra.mxu0 0.0
    %4794 = vmatprep.subr.mxu0 0.0
    %4795 = vmatpush1.msra.mxu0 0.0
    %4796 = vmatprep.subr.mxu0 0.0
    %4797 = vmatpush1.msra.mxu0 0.0
    %4798 = vmatprep.subr.mxu0 0.0
    %4799 = vmatpush1.msra.mxu0 0.0
    %4800 = vmatprep.subr.mxu0 0.0
    %4801 = vmatpush1.msra.mxu0 0.0
    %4802 = vmatprep.subr.mxu0 0.0
    %4803 = vmatpush1.msra.mxu0 0.0
    %4804 = vmatprep.subr.mxu0 0.0
    %4805 = vmatpush1.msra.mxu0 0.0
    %4806 = vmatprep.subr.mxu0 0.0
    %4807 = vmatpush1.msra.mxu0 0.0
    %4808 = vmatprep.subr.mxu0 0.0
    %4809 = vmatpush1.msra.mxu0 0.0
    %4810 = vmatprep.subr.mxu0 0.0
    %4811 = vmatpush1.msra.mxu0 0.0
    %4812 = vmatprep.subr.mxu0 0.0
    %4813 = vmatpush1.msra.mxu0 0.0
    %4814 = vmatprep.subr.mxu0 0.0
    %4815 = vmatpush1.msra.mxu0 0.0
    %4816 = vmatprep.subr.mxu0 0.0
    %4817 = vmatpush1.msra.mxu0 0.0
    %4818 = vmatprep.subr.mxu0 0.0
    %4819 = vmatpush1.msra.mxu0 0.0
    %4820 = vmatprep.subr.mxu0 0.0
    %4821 = vmatpush1.msra.mxu0 0.0
    %4822 = vmatprep.mubr.f32.mxu0 0.0
    %4823 = vmatmul.mubr.f32.gmra.mrb[0].mxu0 %v4735
    %v4824 = vpop.f32.mrb[0].mxu0
    %v4825 = vadd.f32 0.0, %v4824
    %v4826 = vpop.f32.mrb[0].mxu0
    %4827 = vmatprep.mubr.f32.mxu0 0.0
    %4828 = vmatmul.mubr.f32.gmra.mrb[0].mxu0 %v4738
    %v4829 = vpop.f32.mrb[0].mxu0
    %v4830 = vadd.f32 0.0, %v4829
    %v4831 = vpop.f32.mrb[0].mxu0
    %4832 = vmatprep.mubr.f32.mxu0 0.0
    %4833 = vmatmul.mubr.f32.gmra.mrb[0].mxu0 %v4741
    %v4834 = vpop.f32.mrb[0].mxu0
    %v4835 = vadd.f32 0.0, %v4834
    %v4836 = vpop.f32.mrb[0].mxu0
    %4837 = vmatprep.mubr.f32.mxu0 0.0
    %4838 = vmatmul.mubr.f32.gmra.mrb[0].mxu0 %v4744
    %v4839 = vpop.f32.mrb[0].mxu0
    %v4840 = vadd.f32 0.0, %v4839
    %v4841 = vpop.f32.mrb[0].mxu0
    %4842 = vmatprep.mubr.f32.mxu0 0.0
    %4843 = vmatmul.mubr.f32.gmra.mrb[0].mxu0 %v4747
    %v4844 = vpop.f32.mrb[0].mxu0
    %v4845 = vadd.f32 0.0, %v4844
    %v4846 = vpop.f32.mrb[0].mxu0
    %4847 = vmatprep.mubr.f32.mxu0 0.0
    %4848 = vmatmul.mubr.f32.gmra.mrb[0].mxu0 %v4750
    %v4849 = vpop.f32.mrb[0].mxu0
    %v4850 = vadd.f32 0.0, %v4849
    %v4851 = vpop.f32.mrb[0].mxu0
    %4852 = vmatprep.mubr.f32.mxu0 0.0
    %4853 = vmatmul.mubr.f32.gmra.mrb[0].mxu0 %v4753
    %v4854 = vpop.f32.mrb[0].mxu0
    %v4855 = vadd.f32 0.0, %v4854
    %v4856 = vpop.f32.mrb[0].mxu0
    %4857 = vmatprep.mubr.f32.mxu0 0.0
    %4858 = vmatmul.mubr.f32.gmra.mrb[0].mxu0 %v4756
    %v4859 = vpop.f32.mrb[0].mxu0
    %v4860 = vadd.f32 0.0, %v4859
    %v4861 = vpop.f32.mrb[0].mxu0
    %4862 = vdwg.mxu0
    %v4863 = vadd.f32 %v4726, %v4825
    %v4864 = vadd.f32 %v4727, %v4830
    %v4865 = vadd.f32 %v4728, %v4835
    %v4866 = vadd.f32 %v4729, %v4840
    %v4867 = vadd.f32 %v4730, %v4845
    %v4868 = vadd.f32 %v4731, %v4850
    %v4869 = vadd.f32 %v4732, %v4855
    %v4870 = vadd.f32 %v4733, %v4860
    %v4872 = vsel %vm877, %v3850, 0
    %v4875 = vsel %vm877, %v3855, 0
    %v4878 = vsel %vm877, %v3860, 0
    %v4881 = vsel %vm877, %v3865, 0
    %v4884 = vsel %vm877, %v3870, 0
    %v4887 = vsel %vm877, %v3875, 0
    %v4890 = vsel %vm877, %v3880, 0
    %v4893 = vsel %vm877, %v3885, 0
    %4895 = vmatprep.subr.mxu0 0.0
    %4896 = vmatpush1.msra.mxu0 %v1845
    %4897 = vmatprep.subr.mxu0 0.0
    %4898 = vmatpush1.msra.mxu0 %v1846
    %4899 = vmatprep.subr.mxu0 0.0
    %4900 = vmatpush1.msra.mxu0 %v1847
    %4901 = vmatprep.subr.mxu0 0.0
    %4902 = vmatpush1.msra.mxu0 %v1848
    %4903 = vmatprep.subr.mxu0 0.0
    %4904 = vmatpush1.msra.mxu0 0.0
    %4905 = vmatprep.subr.mxu0 0.0
    %4906 = vmatpush1.msra.mxu0 0.0
    %4907 = vmatprep.subr.mxu0 0.0
    %4908 = vmatpush1.msra.mxu0 0.0
    %4909 = vmatprep.subr.mxu0 0.0
    %4910 = vmatpush1.msra.mxu0 0.0
    %4911 = vmatprep.subr.mxu0 0.0
    %4912 = vmatpush1.msra.mxu0 0.0
    %4913 = vmatprep.subr.mxu0 0.0
    %4914 = vmatpush1.msra.mxu0 0.0
    %4915 = vmatprep.subr.mxu0 0.0
    %4916 = vmatpush1.msra.mxu0 0.0
    %4917 = vmatprep.subr.mxu0 0.0
    %4918 = vmatpush1.msra.mxu0 0.0
    %4919 = vmatprep.subr.mxu0 0.0
    %4920 = vmatpush1.msra.mxu0 0.0
    %4921 = vmatprep.subr.mxu0 0.0
    %4922 = vmatpush1.msra.mxu0 0.0
    %4923 = vmatprep.subr.mxu0 0.0
    %4924 = vmatpush1.msra.mxu0 0.0
    %4925 = vmatprep.subr.mxu0 0.0
    %4926 = vmatpush1.msra.mxu0 0.0
    %4927 = vmatprep.subr.mxu0 0.0
    %4928 = vmatpush1.msra.mxu0 0.0
    %4929 = vmatprep.subr.mxu0 0.0
    %4930 = vmatpush1.msra.mxu0 0.0
    %4931 = vmatprep.subr.mxu0 0.0
    %4932 = vmatpush1.msra.mxu0 0.0
    %4933 = vmatprep.subr.mxu0 0.0
    %4934 = vmatpush1.msra.mxu0 0.0
    %4935 = vmatprep.subr.mxu0 0.0
    %4936 = vmatpush1.msra.mxu0 0.0
    %4937 = vmatprep.subr.mxu0 0.0
    %4938 = vmatpush1.msra.mxu0 0.0
    %4939 = vmatprep.subr.mxu0 0.0
    %4940 = vmatpush1.msra.mxu0 0.0
    %4941 = vmatprep.subr.mxu0 0.0
    %4942 = vmatpush1.msra.mxu0 0.0
    %4943 = vmatprep.subr.mxu0 0.0
    %4944 = vmatpush1.msra.mxu0 0.0
    %4945 = vmatprep.subr.mxu0 0.0
    %4946 = vmatpush1.msra.mxu0 0.0
    %4947 = vmatprep.subr.mxu0 0.0
    %4948 = vmatpush1.msra.mxu0 0.0
    %4949 = vmatprep.subr.mxu0 0.0
    %4950 = vmatpush1.msra.mxu0 0.0
    %4951 = vmatprep.subr.mxu0 0.0
    %4952 = vmatpush1.msra.mxu0 0.0
    %4953 = vmatprep.subr.mxu0 0.0
    %4954 = vmatpush1.msra.mxu0 0.0
    %4955 = vmatprep.subr.mxu0 0.0
    %4956 = vmatpush1.msra.mxu0 0.0
    %4957 = vmatprep.subr.mxu0 0.0
    %4958 = vmatpush1.msra.mxu0 0.0
    %4959 = vmatprep.mubr.f32.mxu0 0.0
    %4960 = vmatmul.mubr.f32.gmra.mrb[0].mxu0 %v4872
    %v4961 = vpop.f32.mrb[0].mxu0
    %v4962 = vadd.f32 0.0, %v4961
    %v4963 = vpop.f32.mrb[0].mxu0
    %4964 = vmatprep.mubr.f32.mxu0 0.0
    %4965 = vmatmul.mubr.f32.gmra.mrb[0].mxu0 %v4875
    %v4966 = vpop.f32.mrb[0].mxu0
    %v4967 = vadd.f32 0.0, %v4966
    %v4968 = vpop.f32.mrb[0].mxu0
    %4969 = vmatprep.mubr.f32.mxu0 0.0
    %4970 = vmatmul.mubr.f32.gmra.mrb[0].mxu0 %v4878
    %v4971 = vpop.f32.mrb[0].mxu0
    %v4972 = vadd.f32 0.0, %v4971
    %v4973 = vpop.f32.mrb[0].mxu0
    %4974 = vmatprep.mubr.f32.mxu0 0.0
    %4975 = vmatmul.mubr.f32.gmra.mrb[0].mxu0 %v4881
    %v4976 = vpop.f32.mrb[0].mxu0
    %v4977 = vadd.f32 0.0, %v4976
    %v4978 = vpop.f32.mrb[0].mxu0
    %4979 = vmatprep.mubr.f32.mxu0 0.0
    %4980 = vmatmul.mubr.f32.gmra.mrb[0].mxu0 %v4884
    %v4981 = vpop.f32.mrb[0].mxu0
    %v4982 = vadd.f32 0.0, %v4981
    %v4983 = vpop.f32.mrb[0].mxu0
    %4984 = vmatprep.mubr.f32.mxu0 0.0
    %4985 = vmatmul.mubr.f32.gmra.mrb[0].mxu0 %v4887
    %v4986 = vpop.f32.mrb[0].mxu0
    %v4987 = vadd.f32 0.0, %v4986
    %v4988 = vpop.f32.mrb[0].mxu0
    %4989 = vmatprep.mubr.f32.mxu0 0.0
    %4990 = vmatmul.mubr.f32.gmra.mrb[0].mxu0 %v4890
    %v4991 = vpop.f32.mrb[0].mxu0
    %v4992 = vadd.f32 0.0, %v4991
    %v4993 = vpop.f32.mrb[0].mxu0
    %4994 = vmatprep.mubr.f32.mxu0 0.0
    %4995 = vmatmul.mubr.f32.gmra.mrb[0].mxu0 %v4893
    %v4996 = vpop.f32.mrb[0].mxu0
    %v4997 = vadd.f32 0.0, %v4996
    %v4998 = vpop.f32.mrb[0].mxu0
    %4999 = vdwg.mxu0
    %v5000 = vadd.f32 %v4863, %v4962
    %v5001 = vadd.f32 %v4864, %v4967
    %v5002 = vadd.f32 %v4865, %v4972
    %v5003 = vadd.f32 %v4866, %v4977
    %v5004 = vadd.f32 %v4867, %v4982
    %v5005 = vadd.f32 %v4868, %v4987
    %v5006 = vadd.f32 %v4869, %v4992
    %v5007 = vadd.f32 %v4870, %v4997
    %v5009 = vsel %vm877, %v3890, 0
    %v5012 = vsel %vm877, %v3895, 0
    %v5015 = vsel %vm877, %v3900, 0
    %v5018 = vsel %vm877, %v3905, 0
    %v5021 = vsel %vm877, %v3910, 0
    %v5024 = vsel %vm877, %v3915, 0
    %v5027 = vsel %vm877, %v3920, 0
    %v5030 = vsel %vm877, %v3925, 0
    %5032 = vmatprep.subr.mxu0 0.0
    %5033 = vmatpush1.msra.mxu0 %v1849
    %5034 = vmatprep.subr.mxu0 0.0
    %5035 = vmatpush1.msra.mxu0 %v1850
    %5036 = vmatprep.subr.mxu0 0.0
    %5037 = vmatpush1.msra.mxu0 %v1851
    %5038 = vmatprep.subr.mxu0 0.0
    %5039 = vmatpush1.msra.mxu0 %v1852
    %5040 = vmatprep.subr.mxu0 0.0
    %5041 = vmatpush1.msra.mxu0 0.0
    %5042 = vmatprep.subr.mxu0 0.0
    %5043 = vmatpush1.msra.mxu0 0.0
    %5044 = vmatprep.subr.mxu0 0.0
    %5045 = vmatpush1.msra.mxu0 0.0
    %5046 = vmatprep.subr.mxu0 0.0
    %5047 = vmatpush1.msra.mxu0 0.0
    %5048 = vmatprep.subr.mxu0 0.0
    %5049 = vmatpush1.msra.mxu0 0.0
    %5050 = vmatprep.subr.mxu0 0.0
    %5051 = vmatpush1.msra.mxu0 0.0
    %5052 = vmatprep.subr.mxu0 0.0
    %5053 = vmatpush1.msra.mxu0 0.0
    %5054 = vmatprep.subr.mxu0 0.0
    %5055 = vmatpush1.msra.mxu0 0.0
    %5056 = vmatprep.subr.mxu0 0.0
    %5057 = vmatpush1.msra.mxu0 0.0
    %5058 = vmatprep.subr.mxu0 0.0
    %5059 = vmatpush1.msra.mxu0 0.0
    %5060 = vmatprep.subr.mxu0 0.0
    %5061 = vmatpush1.msra.mxu0 0.0
    %5062 = vmatprep.subr.mxu0 0.0
    %5063 = vmatpush1.msra.mxu0 0.0
    %5064 = vmatprep.subr.mxu0 0.0
    %5065 = vmatpush1.msra.mxu0 0.0
    %5066 = vmatprep.subr.mxu0 0.0
    %5067 = vmatpush1.msra.mxu0 0.0
    %5068 = vmatprep.subr.mxu0 0.0
    %5069 = vmatpush1.msra.mxu0 0.0
    %5070 = vmatprep.subr.mxu0 0.0
    %5071 = vmatpush1.msra.mxu0 0.0
    %5072 = vmatprep.subr.mxu0 0.0
    %5073 = vmatpush1.msra.mxu0 0.0
    %5074 = vmatprep.subr.mxu0 0.0
    %5075 = vmatpush1.msra.mxu0 0.0
    %5076 = vmatprep.subr.mxu0 0.0
    %5077 = vmatpush1.msra.mxu0 0.0
    %5078 = vmatprep.subr.mxu0 0.0
    %5079 = vmatpush1.msra.mxu0 0.0
    %5080 = vmatprep.subr.mxu0 0.0
    %5081 = vmatpush1.msra.mxu0 0.0
    %5082 = vmatprep.subr.mxu0 0.0
    %5083 = vmatpush1.msra.mxu0 0.0
    %5084 = vmatprep.subr.mxu0 0.0
    %5085 = vmatpush1.msra.mxu0 0.0
    %5086 = vmatprep.subr.mxu0 0.0
    %5087 = vmatpush1.msra.mxu0 0.0
    %5088 = vmatprep.subr.mxu0 0.0
    %5089 = vmatpush1.msra.mxu0 0.0
    %5090 = vmatprep.subr.mxu0 0.0
    %5091 = vmatpush1.msra.mxu0 0.0
    %5092 = vmatprep.subr.mxu0 0.0
    %5093 = vmatpush1.msra.mxu0 0.0
    %5094 = vmatprep.subr.mxu0 0.0
    %5095 = vmatpush1.msra.mxu0 0.0
    %5096 = vmatprep.mubr.f32.mxu0 0.0
    %5097 = vmatmul.mubr.f32.gmra.mrb[0].mxu0 %v5009
    %v5098 = vpop.f32.mrb[0].mxu0
    %v5099 = vadd.f32 0.0, %v5098
    %v5100 = vpop.f32.mrb[0].mxu0
    %5101 = vmatprep.mubr.f32.mxu0 0.0
    %5102 = vmatmul.mubr.f32.gmra.mrb[0].mxu0 %v5012
    %v5103 = vpop.f32.mrb[0].mxu0
    %v5104 = vadd.f32 0.0, %v5103
    %v5105 = vpop.f32.mrb[0].mxu0
    %5106 = vmatprep.mubr.f32.mxu0 0.0
    %5107 = vmatmul.mubr.f32.gmra.mrb[0].mxu0 %v5015
    %v5108 = vpop.f32.mrb[0].mxu0
    %v5109 = vadd.f32 0.0, %v5108
    %v5110 = vpop.f32.mrb[0].mxu0
    %5111 = vmatprep.mubr.f32.mxu0 0.0
    %5112 = vmatmul.mubr.f32.gmra.mrb[0].mxu0 %v5018
    %v5113 = vpop.f32.mrb[0].mxu0
    %v5114 = vadd.f32 0.0, %v5113
    %v5115 = vpop.f32.mrb[0].mxu0
    %5116 = vmatprep.mubr.f32.mxu0 0.0
    %5117 = vmatmul.mubr.f32.gmra.mrb[0].mxu0 %v5021
    %v5118 = vpop.f32.mrb[0].mxu0
    %v5119 = vadd.f32 0.0, %v5118
    %v5120 = vpop.f32.mrb[0].mxu0
    %5121 = vmatprep.mubr.f32.mxu0 0.0
    %5122 = vmatmul.mubr.f32.gmra.mrb[0].mxu0 %v5024
    %v5123 = vpop.f32.mrb[0].mxu0
    %v5124 = vadd.f32 0.0, %v5123
    %v5125 = vpop.f32.mrb[0].mxu0
    %5126 = vmatprep.mubr.f32.mxu0 0.0
    %5127 = vmatmul.mubr.f32.gmra.mrb[0].mxu0 %v5027
    %v5128 = vpop.f32.mrb[0].mxu0
    %v5129 = vadd.f32 0.0, %v5128
    %v5130 = vpop.f32.mrb[0].mxu0
    %5131 = vmatprep.mubr.f32.mxu0 0.0
    %5132 = vmatmul.mubr.f32.gmra.mrb[0].mxu0 %v5030
    %v5133 = vpop.f32.mrb[0].mxu0
    %v5134 = vadd.f32 0.0, %v5133
    %v5135 = vpop.f32.mrb[0].mxu0
    %5136 = vdwg.mxu0
    %v5137 = vadd.f32 %v5000, %v5099
    %v5138 = vadd.f32 %v5001, %v5104
    %v5139 = vadd.f32 %v5002, %v5109
    %v5140 = vadd.f32 %v5003, %v5114
    %v5141 = vadd.f32 %v5004, %v5119
    %v5142 = vadd.f32 %v5005, %v5124
    %v5143 = vadd.f32 %v5006, %v5129
    %v5144 = vadd.f32 %v5007, %v5134
    %5145 = vst.msk [vmem:[#allocation2 + $0x40] sm:$0xff] %vm877, %v5137
    %5146 = vst.msk [vmem:[#allocation2 + $0x48] sm:$0xff] %vm877, %v5138
    %5147 = vst.msk [vmem:[#allocation2 + $0x50] sm:$0xff] %vm877, %v5139
    %5148 = vst.msk [vmem:[#allocation2 + $0x58] sm:$0xff] %vm877, %v5140
    %5149 = vst.msk [vmem:[#allocation2 + $0x60] sm:$0xff] %vm877, %v5141
    %5150 = vst.msk [vmem:[#allocation2 + $0x68] sm:$0xff] %vm877, %v5142
    %5151 = vst.msk [vmem:[#allocation2 + $0x70] sm:$0xff] %vm877, %v5143
    %5152 = vst.msk [vmem:[#allocation2 + $0x78] sm:$0xff] %vm877, %v5144
    %v5153 = vld [vmem:[#allocation2] sm:$0xff]
    %v5154 = vld [vmem:[#allocation2 + $0x8] sm:$0xff]
    %v5155 = vld [vmem:[#allocation2 + $0x10] sm:$0xff]
    %v5156 = vld [vmem:[#allocation2 + $0x18] sm:$0xff]
    %v5157 = vld [vmem:[#allocation2 + $0x20] sm:$0xff]
    %v5158 = vld [vmem:[#allocation2 + $0x28] sm:$0xff]
    %v5159 = vld [vmem:[#allocation2 + $0x30] sm:$0xff]
    %v5160 = vld [vmem:[#allocation2 + $0x38] sm:$0xff]
    %v5161 = vld [vmem:[#allocation2 + $0x40] sm:$0xff]
    %v5162 = vld [vmem:[#allocation2 + $0x48] sm:$0xff]
    %v5163 = vld [vmem:[#allocation2 + $0x50] sm:$0xff]
    %v5164 = vld [vmem:[#allocation2 + $0x58] sm:$0xff]
    %v5165 = vld [vmem:[#allocation2 + $0x60] sm:$0xff]
    %v5166 = vld [vmem:[#allocation2 + $0x68] sm:$0xff]
    %v5167 = vld [vmem:[#allocation2 + $0x70] sm:$0xff]
    %v5168 = vld [vmem:[#allocation2 + $0x78] sm:$0xff]
    %v5169 = vld [vmem:[#allocation10] sm:$0x1]
    %v5170 = vld [vmem:[#allocation12] sm:$0x1]
    %v5171 = vsel %vm877, %v5153, 0.0
    %v5172 = vsel %vm877, %v5154, 0.0
    %v5173 = vadd.f32 %v5171, %v5172
    %v5174 = vsel %vm877, %v5155, 0.0
    %v5175 = vadd.f32 %v5173, %v5174
    %v5176 = vsel %vm877, %v5156, 0.0
    %v5177 = vadd.f32 %v5175, %v5176
    %v5178 = vsel %vm877, %v5157, 0.0
    %v5179 = vadd.f32 %v5177, %v5178
    %v5180 = vsel %vm877, %v5158, 0.0
    %v5181 = vadd.f32 %v5179, %v5180
    %v5182 = vsel %vm877, %v5159, 0.0
    %v5183 = vadd.f32 %v5181, %v5182
    %v5184 = vsel %vm877, %v5160, 0.0
    %v5185 = vadd.f32 %v5183, %v5184
    %v5186 = vsel %vm877, %v5161, 0.0
    %v5187 = vadd.f32 %v5185, %v5186
    %v5188 = vsel %vm877, %v5162, 0.0
    %v5189 = vadd.f32 %v5187, %v5188
    %v5190 = vsel %vm877, %v5163, 0.0
    %v5191 = vadd.f32 %v5189, %v5190
    %v5192 = vsel %vm877, %v5164, 0.0
    %v5193 = vadd.f32 %v5191, %v5192
    %v5194 = vsel %vm877, %v5165, 0.0
    %v5195 = vadd.f32 %v5193, %v5194
    %v5196 = vsel %vm877, %v5166, 0.0
    %v5197 = vadd.f32 %v5195, %v5196
    %v5198 = vsel %vm877, %v5167, 0.0
    %v5199 = vadd.f32 %v5197, %v5198
    %v5200 = vsel %vm877, %v5168, 0.0
    %v5201 = vadd.f32 %v5199, %v5200
    %v5202 = vrot.slane %v5201, 4
    %v5203 = vadd.f32 %v5201, %v5202
    %v5204 = vrot.slane %v5203, 2
    %v5205 = vadd.f32 %v5203, %v5204
    %v5206 = vrot.slane %v5205, 1
    %v5207 = vadd.f32 %v5205, %v5206
    %v5208 = vrcp.pop 128.0
    %v5209 = vmul.f32 %v5207, %v5208
    %v5210 = vsub.f32 %v5153, %v5209
    %v5211 = vsub.f32 %v5154, %v5209
    %v5212 = vsub.f32 %v5155, %v5209
    %v5213 = vsub.f32 %v5156, %v5209
    %v5214 = vsub.f32 %v5157, %v5209
    %v5215 = vsub.f32 %v5158, %v5209
    %v5216 = vsub.f32 %v5159, %v5209
    %v5217 = vsub.f32 %v5160, %v5209
    %v5218 = vsub.f32 %v5161, %v5209
    %v5219 = vsub.f32 %v5162, %v5209
    %v5220 = vsub.f32 %v5163, %v5209
    %v5221 = vsub.f32 %v5164, %v5209
    %v5222 = vsub.f32 %v5165, %v5209
    %v5223 = vsub.f32 %v5166, %v5209
    %v5224 = vsub.f32 %v5167, %v5209
    %v5225 = vsub.f32 %v5168, %v5209
    %v5226 = vmul.f32 %v5210, %v5210
    %v5227 = vmul.f32 %v5211, %v5211
    %v5228 = vmul.f32 %v5212, %v5212
    %v5229 = vmul.f32 %v5213, %v5213
    %v5230 = vmul.f32 %v5214, %v5214
    %v5231 = vmul.f32 %v5215, %v5215
    %v5232 = vmul.f32 %v5216, %v5216
    %v5233 = vmul.f32 %v5217, %v5217
    %v5234 = vmul.f32 %v5218, %v5218
    %v5235 = vmul.f32 %v5219, %v5219
    %v5236 = vmul.f32 %v5220, %v5220
    %v5237 = vmul.f32 %v5221, %v5221
    %v5238 = vmul.f32 %v5222, %v5222
    %v5239 = vmul.f32 %v5223, %v5223
    %v5240 = vmul.f32 %v5224, %v5224
    %v5241 = vmul.f32 %v5225, %v5225
    %v5242 = vsel %vm877, %v5226, 0.0
    %v5243 = vsel %vm877, %v5227, 0.0
    %v5244 = vadd.f32 %v5242, %v5243
    %v5245 = vsel %vm877, %v5228, 0.0
    %v5246 = vadd.f32 %v5244, %v5245
    %v5247 = vsel %vm877, %v5229, 0.0
    %v5248 = vadd.f32 %v5246, %v5247
    %v5249 = vsel %vm877, %v5230, 0.0
    %v5250 = vadd.f32 %v5248, %v5249
    %v5251 = vsel %vm877, %v5231, 0.0
    %v5252 = vadd.f32 %v5250, %v5251
    %v5253 = vsel %vm877, %v5232, 0.0
    %v5254 = vadd.f32 %v5252, %v5253
    %v5255 = vsel %vm877, %v5233, 0.0
    %v5256 = vadd.f32 %v5254, %v5255
    %v5257 = vsel %vm877, %v5234, 0.0
    %v5258 = vadd.f32 %v5256, %v5257
    %v5259 = vsel %vm877, %v5235, 0.0
    %v5260 = vadd.f32 %v5258, %v5259
    %v5261 = vsel %vm877, %v5236, 0.0
    %v5262 = vadd.f32 %v5260, %v5261
    %v5263 = vsel %vm877, %v5237, 0.0
    %v5264 = vadd.f32 %v5262, %v5263
    %v5265 = vsel %vm877, %v5238, 0.0
    %v5266 = vadd.f32 %v5264, %v5265
    %v5267 = vsel %vm877, %v5239, 0.0
    %v5268 = vadd.f32 %v5266, %v5267
    %v5269 = vsel %vm877, %v5240, 0.0
    %v5270 = vadd.f32 %v5268, %v5269
    %v5271 = vsel %vm877, %v5241, 0.0
    %v5272 = vadd.f32 %v5270, %v5271
    %v5273 = vrot.slane %v5272, 4
    %v5274 = vadd.f32 %v5272, %v5273
    %v5275 = vrot.slane %v5274, 2
    %v5276 = vadd.f32 %v5274, %v5275
    %v5277 = vrot.slane %v5276, 1
    %v5278 = vadd.f32 %v5276, %v5277
    %v5279 = vmul.f32 %v5278, %v5208
    %v5280 = vadd.f32 %v5279, 1e-05
    %v5281 = vrsqrt.pop %v5280
    %v5282 = vmul.f32 %v5210, %v5281
    %v5283 = vmul.f32 %v5211, %v5281
    %v5284 = vmul.f32 %v5212, %v5281
    %v5285 = vmul.f32 %v5213, %v5281
    %v5286 = vmul.f32 %v5214, %v5281
    %v5287 = vmul.f32 %v5215, %v5281
    %v5288 = vmul.f32 %v5216, %v5281
    %v5289 = vmul.f32 %v5217, %v5281
    %v5290 = vmul.f32 %v5218, %v5281
    %v5291 = vmul.f32 %v5219, %v5281
    %v5292 = vmul.f32 %v5220, %v5281
    %v5293 = vmul.f32 %v5221, %v5281
    %v5294 = vmul.f32 %v5222, %v5281
    %v5295 = vmul.f32 %v5223, %v5281
    %v5296 = vmul.f32 %v5224, %v5281
    %v5297 = vmul.f32 %v5225, %v5281
    %v5299 = vlaneseq
    %v5300 = vshrl.u32 %v5299, 7
    %v5301 = vsub.s32 0, %v5300
    %v5302 = vrot.slane %v5169, %v5301
    %v5304 = vmul.f32 %v5282, %v5302
    %v5305 = vmul.f32 %v5283, %v5302
    %v5306 = vmul.f32 %v5284, %v5302
    %v5307 = vmul.f32 %v5285, %v5302
    %v5308 = vmul.f32 %v5286, %v5302
    %v5309 = vmul.f32 %v5287, %v5302
    %v5310 = vmul.f32 %v5288, %v5302
    %v5311 = vmul.f32 %v5289, %v5302
    %v5312 = vmul.f32 %v5290, %v5302
    %v5313 = vmul.f32 %v5291, %v5302
    %v5314 = vmul.f32 %v5292, %v5302
    %v5315 = vmul.f32 %v5293, %v5302
    %v5316 = vmul.f32 %v5294, %v5302
    %v5317 = vmul.f32 %v5295, %v5302
    %v5318 = vmul.f32 %v5296, %v5302
    %v5319 = vmul.f32 %v5297, %v5302
    %v5321 = vlaneseq
    %v5322 = vshrl.u32 %v5321, 7
    %v5323 = vsub.s32 0, %v5322
    %v5324 = vrot.slane %v5170, %v5323
    %v5326 = vadd.f32 %v5304, %v5324
    %v5327 = vadd.f32 %v5305, %v5324
    %v5328 = vadd.f32 %v5306, %v5324
    %v5329 = vadd.f32 %v5307, %v5324
    %v5330 = vadd.f32 %v5308, %v5324
    %v5331 = vadd.f32 %v5309, %v5324
    %v5332 = vadd.f32 %v5310, %v5324
    %v5333 = vadd.f32 %v5311, %v5324
    %v5334 = vadd.f32 %v5312, %v5324
    %v5335 = vadd.f32 %v5313, %v5324
    %v5336 = vadd.f32 %v5314, %v5324
    %v5337 = vadd.f32 %v5315, %v5324
    %v5338 = vadd.f32 %v5316, %v5324
    %v5339 = vadd.f32 %v5317, %v5324
    %v5340 = vadd.f32 %v5318, %v5324
    %v5341 = vadd.f32 %v5319, %v5324
    %vm5342 = vcmp.gt.f32.partialorder %v5326, 0.0
    %vm5343 = vcmp.gt.f32.partialorder %v5327, 0.0
    %vm5344 = vcmp.gt.f32.partialorder %v5328, 0.0
    %vm5345 = vcmp.gt.f32.partialorder %v5329, 0.0
    %vm5346 = vcmp.gt.f32.partialorder %v5330, 0.0
    %vm5347 = vcmp.gt.f32.partialorder %v5331, 0.0
    %vm5348 = vcmp.gt.f32.partialorder %v5332, 0.0
    %vm5349 = vcmp.gt.f32.partialorder %v5333, 0.0
    %vm5350 = vcmp.gt.f32.partialorder %v5334, 0.0
    %vm5351 = vcmp.gt.f32.partialorder %v5335, 0.0
    %vm5352 = vcmp.gt.f32.partialorder %v5336, 0.0
    %vm5353 = vcmp.gt.f32.partialorder %v5337, 0.0
    %vm5354 = vcmp.gt.f32.partialorder %v5338, 0.0
    %vm5355 = vcmp.gt.f32.partialorder %v5339, 0.0
    %vm5356 = vcmp.gt.f32.partialorder %v5340, 0.0
    %vm5357 = vcmp.gt.f32.partialorder %v5341, 0.0
    %v5358 = vmul.f32 %v5326, 0.01
    %v5359 = vmul.f32 %v5327, 0.01
    %v5360 = vmul.f32 %v5328, 0.01
    %v5361 = vmul.f32 %v5329, 0.01
    %v5362 = vmul.f32 %v5330, 0.01
    %v5363 = vmul.f32 %v5331, 0.01
    %v5364 = vmul.f32 %v5332, 0.01
    %v5365 = vmul.f32 %v5333, 0.01
    %v5366 = vmul.f32 %v5334, 0.01
    %v5367 = vmul.f32 %v5335, 0.01
    %v5368 = vmul.f32 %v5336, 0.01
    %v5369 = vmul.f32 %v5337, 0.01
    %v5370 = vmul.f32 %v5338, 0.01
    %v5371 = vmul.f32 %v5339, 0.01
    %v5372 = vmul.f32 %v5340, 0.01
    %v5373 = vmul.f32 %v5341, 0.01
    %v5374 = vsel %vm5342, %v5326, %v5358
    %v5375 = vsel %vm5343, %v5327, %v5359
    %v5376 = vsel %vm5344, %v5328, %v5360
    %v5377 = vsel %vm5345, %v5329, %v5361
    %v5378 = vsel %vm5346, %v5330, %v5362
    %v5379 = vsel %vm5347, %v5331, %v5363
    %v5380 = vsel %vm5348, %v5332, %v5364
    %v5381 = vsel %vm5349, %v5333, %v5365
    %v5382 = vsel %vm5350, %v5334, %v5366
    %v5383 = vsel %vm5351, %v5335, %v5367
    %v5384 = vsel %vm5352, %v5336, %v5368
    %v5385 = vsel %vm5353, %v5337, %v5369
    %v5386 = vsel %vm5354, %v5338, %v5370
    %v5387 = vsel %vm5355, %v5339, %v5371
    %v5388 = vsel %vm5356, %v5340, %v5372
    %v5389 = vsel %vm5357, %v5341, %v5373
    %v5390 = vld [vmem:[%s8] sm:$0xff]
    %v5391 = vld [vmem:[%s8 + $0x8] sm:$0xff]
    %v5392 = vld [vmem:[%s8 + $0x10] sm:$0xff]
    %v5393 = vld [vmem:[%s8 + $0x18] sm:$0xff]
    %v5394 = vld [vmem:[%s8 + $0x20] sm:$0xff]
    %v5395 = vld [vmem:[%s8 + $0x28] sm:$0xff]
    %v5396 = vld [vmem:[%s8 + $0x30] sm:$0xff]
    %v5397 = vld [vmem:[%s8 + $0x38] sm:$0xff]
    %v5398 = vld [vmem:[%s8 + $0x40] sm:$0xff]
    %v5399 = vld [vmem:[%s8 + $0x48] sm:$0xff]
    %v5400 = vld [vmem:[%s8 + $0x50] sm:$0xff]
    %v5401 = vld [vmem:[%s8 + $0x58] sm:$0xff]
    %v5402 = vld [vmem:[%s8 + $0x60] sm:$0xff]
    %v5403 = vld [vmem:[%s8 + $0x68] sm:$0xff]
    %v5404 = vld [vmem:[%s8 + $0x70] sm:$0xff]
    %v5405 = vld [vmem:[%s8 + $0x78] sm:$0xff]
    %v5406 = vld [vmem:[%s8 + $0x80] sm:$0xff]
    %v5407 = vld [vmem:[%s8 + $0x88] sm:$0xff]
    %v5408 = vld [vmem:[%s9] sm:$0xff]
    %v5409 = vld [vmem:[%s9 + $0x8] sm:$0xff]
    %v5410 = vld [vmem:[%s9 + $0x10] sm:$0xff]
    %v5411 = vld [vmem:[%s9 + $0x18] sm:$0xff]
    %v5412 = vld [vmem:[%s9 + $0x20] sm:$0xff]
    %v5413 = vld [vmem:[%s9 + $0x28] sm:$0xff]
    %v5414 = vld [vmem:[%s9 + $0x30] sm:$0xff]
    %v5415 = vld [vmem:[%s9 + $0x38] sm:$0xff]
    %v5416 = vld [vmem:[%s9 + $0x40] sm:$0xff]
    %v5417 = vld [vmem:[%s9 + $0x48] sm:$0xff]
    %v5418 = vld [vmem:[%s9 + $0x50] sm:$0xff]
    %v5419 = vld [vmem:[%s9 + $0x58] sm:$0xff]
    %v5420 = vld [vmem:[%s9 + $0x60] sm:$0xff]
    %v5421 = vld [vmem:[%s9 + $0x68] sm:$0xff]
    %v5422 = vld [vmem:[%s9 + $0x70] sm:$0xff]
    %v5423 = vld [vmem:[%s9 + $0x78] sm:$0xff]
    %v5424 = vld [vmem:[%s9 + $0x80] sm:$0xff]
    %v5425 = vld [vmem:[%s9 + $0x88] sm:$0xff]
    %v5426 = vld [vmem:[%s9 + $0x90] sm:$0xff]
    %v5427 = vld [vmem:[%s9 + $0x98] sm:$0xff]
    %v5428 = vld [vmem:[%s9 + $0xa0] sm:$0xff]
    %v5429 = vld [vmem:[%s9 + $0xa8] sm:$0xff]
    %v5430 = vld [vmem:[%s9 + $0xb0] sm:$0xff]
    %v5431 = vld [vmem:[%s9 + $0xb8] sm:$0xff]
    %v5432 = vld [vmem:[%s9 + $0xc0] sm:$0xff]
    %v5433 = vld [vmem:[%s9 + $0xc8] sm:$0xff]
    %v5434 = vld [vmem:[%s9 + $0xd0] sm:$0xff]
    %v5435 = vld [vmem:[%s9 + $0xd8] sm:$0xff]
    %v5436 = vld [vmem:[%s9 + $0xe0] sm:$0xff]
    %v5437 = vld [vmem:[%s9 + $0xe8] sm:$0xff]
    %v5438 = vld [vmem:[%s9 + $0xf0] sm:$0xff]
    %v5439 = vld [vmem:[%s9 + $0xf8] sm:$0xff]
    %v5440 = vld [vmem:[%s9 + $0x100] sm:$0xff]
    %v5441 = vld [vmem:[%s9 + $0x108] sm:$0xff]
    %v5442 = vld [vmem:[%s9 + $0x110] sm:$0xff]
    %v5443 = vld [vmem:[%s9 + $0x118] sm:$0xff]
    %vm5444 = vcmask 523264
    %v5446 = vsel %vm5444, %v5390, 0
    %v5449 = vsel %vm5444, %v5391, 0
    %v5452 = vsel %vm5444, %v5392, 0
    %v5455 = vsel %vm5444, %v5393, 0
    %v5458 = vsel %vm5444, %v5394, 0
    %v5461 = vsel %vm5444, %v5395, 0
    %v5464 = vsel %vm5444, %v5396, 0
    %v5467 = vsel %vm5444, %v5397, 0
    %v5470 = vsel %vm5444, %v5398, 0
    %v5473 = vsel %vm5444, %v5399, 0
    %v5476 = vsel %vm5444, %v5400, 0
    %v5479 = vsel %vm5444, %v5401, 0
    %v5482 = vsel %vm5444, %v5402, 0
    %v5485 = vsel %vm5444, %v5403, 0
    %v5488 = vsel %vm5444, %v5404, 0
    %v5491 = vsel %vm5444, %v5405, 0
    %v5494 = vsel %vm5444, %v5406, 0
    %v5497 = vsel %vm5444, %v5407, 0
    %5499 = vmatprep.subr.mxu0 0.0
    %5500 = vmatpush1.msra.mxu0 %v5374
    %5501 = vmatprep.subr.mxu0 0.0
    %5502 = vmatpush1.msra.mxu0 %v5375
    %5503 = vmatprep.subr.mxu0 0.0
    %5504 = vmatpush1.msra.mxu0 %v5376
    %5505 = vmatprep.subr.mxu0 0.0
    %5506 = vmatpush1.msra.mxu0 %v5377
    %5507 = vmatprep.subr.mxu0 0.0
    %5508 = vmatpush1.msra.mxu0 %v5378
    %5509 = vmatprep.subr.mxu0 0.0
    %5510 = vmatpush1.msra.mxu0 %v5379
    %5511 = vmatprep.subr.mxu0 0.0
    %5512 = vmatpush1.msra.mxu0 %v5380
    %5513 = vmatprep.subr.mxu0 0.0
    %5514 = vmatpush1.msra.mxu0 %v5381
    %5515 = vmatprep.subr.mxu0 0.0
    %5516 = vmatpush1.msra.mxu0 0.0
    %5517 = vmatprep.subr.mxu0 0.0
    %5518 = vmatpush1.msra.mxu0 0.0
    %5519 = vmatprep.subr.mxu0 0.0
    %5520 = vmatpush1.msra.mxu0 0.0
    %5521 = vmatprep.subr.mxu0 0.0
    %5522 = vmatpush1.msra.mxu0 0.0
    %5523 = vmatprep.subr.mxu0 0.0
    %5524 = vmatpush1.msra.mxu0 0.0
    %5525 = vmatprep.subr.mxu0 0.0
    %5526 = vmatpush1.msra.mxu0 0.0
    %5527 = vmatprep.subr.mxu0 0.0
    %5528 = vmatpush1.msra.mxu0 0.0
    %5529 = vmatprep.subr.mxu0 0.0
    %5530 = vmatpush1.msra.mxu0 0.0
    %5531 = vmatprep.subr.mxu0 0.0
    %5532 = vmatpush1.msra.mxu0 0.0
    %5533 = vmatprep.subr.mxu0 0.0
    %5534 = vmatpush1.msra.mxu0 0.0
    %5535 = vmatprep.subr.mxu0 0.0
    %5536 = vmatpush1.msra.mxu0 0.0
    %5537 = vmatprep.subr.mxu0 0.0
    %5538 = vmatpush1.msra.mxu0 0.0
    %5539 = vmatprep.subr.mxu0 0.0
    %5540 = vmatpush1.msra.mxu0 0.0
    %5541 = vmatprep.subr.mxu0 0.0
    %5542 = vmatpush1.msra.mxu0 0.0
    %5543 = vmatprep.subr.mxu0 0.0
    %5544 = vmatpush1.msra.mxu0 0.0
    %5545 = vmatprep.subr.mxu0 0.0
    %5546 = vmatpush1.msra.mxu0 0.0
    %5547 = vmatprep.subr.mxu0 0.0
    %5548 = vmatpush1.msra.mxu0 0.0
    %5549 = vmatprep.subr.mxu0 0.0
    %5550 = vmatpush1.msra.mxu0 0.0
    %5551 = vmatprep.subr.mxu0 0.0
    %5552 = vmatpush1.msra.mxu0 0.0
    %5553 = vmatprep.subr.mxu0 0.0
    %5554 = vmatpush1.msra.mxu0 0.0
    %5555 = vmatprep.subr.mxu0 0.0
    %5556 = vmatpush1.msra.mxu0 0.0
    %5557 = vmatprep.subr.mxu0 0.0
    %5558 = vmatpush1.msra.mxu0 0.0
    %5559 = vmatprep.subr.mxu0 0.0
    %5560 = vmatpush1.msra.mxu0 0.0
    %5561 = vmatprep.subr.mxu0 0.0
    %5562 = vmatpush1.msra.mxu0 0.0
    %5563 = vmatprep.mubr.f32.mxu0 0.0
    %5564 = vmatmul.mubr.f32.gmra.mrb[0].mxu0 %v5446
    %v5565 = vpop.f32.mrb[0].mxu0
    %v5566 = vadd.f32 0.0, %v5565
    %v5567 = vpop.f32.mrb[0].mxu0
    %5568 = vmatprep.mubr.f32.mxu0 0.0
    %5569 = vmatmul.mubr.f32.gmra.mrb[0].mxu0 %v5449
    %v5570 = vpop.f32.mrb[0].mxu0
    %v5571 = vadd.f32 0.0, %v5570
    %v5572 = vpop.f32.mrb[0].mxu0
    %5573 = vmatprep.mubr.f32.mxu0 0.0
    %5574 = vmatmul.mubr.f32.gmra.mrb[0].mxu0 %v5452
    %v5575 = vpop.f32.mrb[0].mxu0
    %v5576 = vadd.f32 0.0, %v5575
    %v5577 = vpop.f32.mrb[0].mxu0
    %5578 = vmatprep.mubr.f32.mxu0 0.0
    %5579 = vmatmul.mubr.f32.gmra.mrb[0].mxu0 %v5455
    %v5580 = vpop.f32.mrb[0].mxu0
    %v5581 = vadd.f32 0.0, %v5580
    %v5582 = vpop.f32.mrb[0].mxu0
    %5583 = vmatprep.mubr.f32.mxu0 0.0
    %5584 = vmatmul.mubr.f32.gmra.mrb[0].mxu0 %v5458
    %v5585 = vpop.f32.mrb[0].mxu0
    %v5586 = vadd.f32 0.0, %v5585
    %v5587 = vpop.f32.mrb[0].mxu0
    %5588 = vmatprep.mubr.f32.mxu0 0.0
    %5589 = vmatmul.mubr.f32.gmra.mrb[0].mxu0 %v5461
    %v5590 = vpop.f32.mrb[0].mxu0
    %v5591 = vadd.f32 0.0, %v5590
    %v5592 = vpop.f32.mrb[0].mxu0
    %5593 = vmatprep.mubr.f32.mxu0 0.0
    %5594 = vmatmul.mubr.f32.gmra.mrb[0].mxu0 %v5464
    %v5595 = vpop.f32.mrb[0].mxu0
    %v5596 = vadd.f32 0.0, %v5595
    %v5597 = vpop.f32.mrb[0].mxu0
    %5598 = vmatprep.mubr.f32.mxu0 0.0
    %5599 = vmatmul.mubr.f32.gmra.mrb[0].mxu0 %v5467
    %v5600 = vpop.f32.mrb[0].mxu0
    %v5601 = vadd.f32 0.0, %v5600
    %v5602 = vpop.f32.mrb[0].mxu0
    %5603 = vmatprep.mubr.f32.mxu0 0.0
    %5604 = vmatmul.mubr.f32.gmra.mrb[0].mxu0 %v5470
    %v5605 = vpop.f32.mrb[0].mxu0
    %v5606 = vadd.f32 0.0, %v5605
    %v5607 = vpop.f32.mrb[0].mxu0
    %5608 = vmatprep.mubr.f32.mxu0 0.0
    %5609 = vmatmul.mubr.f32.gmra.mrb[0].mxu0 %v5473
    %v5610 = vpop.f32.mrb[0].mxu0
    %v5611 = vadd.f32 0.0, %v5610
    %v5612 = vpop.f32.mrb[0].mxu0
    %5613 = vmatprep.mubr.f32.mxu0 0.0
    %5614 = vmatmul.mubr.f32.gmra.mrb[0].mxu0 %v5476
    %v5615 = vpop.f32.mrb[0].mxu0
    %v5616 = vadd.f32 0.0, %v5615
    %v5617 = vpop.f32.mrb[0].mxu0
    %5618 = vmatprep.mubr.f32.mxu0 0.0
    %5619 = vmatmul.mubr.f32.gmra.mrb[0].mxu0 %v5479
    %v5620 = vpop.f32.mrb[0].mxu0
    %v5621 = vadd.f32 0.0, %v5620
    %v5622 = vpop.f32.mrb[0].mxu0
    %5623 = vmatprep.mubr.f32.mxu0 0.0
    %5624 = vmatmul.mubr.f32.gmra.mrb[0].mxu0 %v5482
    %v5625 = vpop.f32.mrb[0].mxu0
    %v5626 = vadd.f32 0.0, %v5625
    %v5627 = vpop.f32.mrb[0].mxu0
    %5628 = vmatprep.mubr.f32.mxu0 0.0
    %5629 = vmatmul.mubr.f32.gmra.mrb[0].mxu0 %v5485
    %v5630 = vpop.f32.mrb[0].mxu0
    %v5631 = vadd.f32 0.0, %v5630
    %v5632 = vpop.f32.mrb[0].mxu0
    %5633 = vmatprep.mubr.f32.mxu0 0.0
    %5634 = vmatmul.mubr.f32.gmra.mrb[0].mxu0 %v5488
    %v5635 = vpop.f32.mrb[0].mxu0
    %v5636 = vadd.f32 0.0, %v5635
    %v5637 = vpop.f32.mrb[0].mxu0
    %5638 = vmatprep.mubr.f32.mxu0 0.0
    %5639 = vmatmul.mubr.f32.gmra.mrb[0].mxu0 %v5491
    %v5640 = vpop.f32.mrb[0].mxu0
    %v5641 = vadd.f32 0.0, %v5640
    %v5642 = vpop.f32.mrb[0].mxu0
    %5643 = vmatprep.mubr.f32.mxu0 0.0
    %5644 = vmatmul.mubr.f32.gmra.mrb[0].mxu0 %v5494
    %v5645 = vpop.f32.mrb[0].mxu0
    %v5646 = vadd.f32 0.0, %v5645
    %v5647 = vpop.f32.mrb[0].mxu0
    %5648 = vmatprep.mubr.f32.mxu0 0.0
    %5649 = vmatmul.mubr.f32.gmra.mrb[0].mxu0 %v5497
    %v5650 = vpop.f32.mrb[0].mxu0
    %v5651 = vadd.f32 0.0, %v5650
    %v5652 = vpop.f32.mrb[0].mxu0
    %5653 = vdwg.mxu0
    %v5655 = vsel %vm877, %v5576, 0
    %v5658 = vsel %vm877, %v5581, 0
    %5660 = vmatprep.subr.mxu0 0.0
    %5661 = vmatpush1.msra.mxu0 %v5412
    %5662 = vmatprep.subr.mxu0 0.0
    %5663 = vmatpush1.msra.mxu0 %v5413
    %5664 = vmatprep.subr.mxu0 0.0
    %5665 = vmatpush1.msra.mxu0 %v5414
    %5666 = vmatprep.subr.mxu0 0.0
    %5667 = vmatpush1.msra.mxu0 %v5415
    %5668 = vmatprep.subr.mxu0 0.0
    %5669 = vmatpush1.msra.mxu0 0.0
    %5670 = vmatprep.subr.mxu0 0.0
    %5671 = vmatpush1.msra.mxu0 0.0
    %5672 = vmatprep.subr.mxu0 0.0
    %5673 = vmatpush1.msra.mxu0 0.0
    %5674 = vmatprep.subr.mxu0 0.0
    %5675 = vmatpush1.msra.mxu0 0.0
    %5676 = vmatprep.subr.mxu0 0.0
    %5677 = vmatpush1.msra.mxu0 0.0
    %5678 = vmatprep.subr.mxu0 0.0
    %5679 = vmatpush1.msra.mxu0 0.0
    %5680 = vmatprep.subr.mxu0 0.0
    %5681 = vmatpush1.msra.mxu0 0.0
    %5682 = vmatprep.subr.mxu0 0.0
    %5683 = vmatpush1.msra.mxu0 0.0
    %5684 = vmatprep.subr.mxu0 0.0
    %5685 = vmatpush1.msra.mxu0 0.0
    %5686 = vmatprep.subr.mxu0 0.0
    %5687 = vmatpush1.msra.mxu0 0.0
    %5688 = vmatprep.subr.mxu0 0.0
    %5689 = vmatpush1.msra.mxu0 0.0
    %5690 = vmatprep.subr.mxu0 0.0
    %5691 = vmatpush1.msra.mxu0 0.0
    %5692 = vmatprep.subr.mxu0 0.0
    %5693 = vmatpush1.msra.mxu0 0.0
    %5694 = vmatprep.subr.mxu0 0.0
    %5695 = vmatpush1.msra.mxu0 0.0
    %5696 = vmatprep.subr.mxu0 0.0
    %5697 = vmatpush1.msra.mxu0 0.0
    %5698 = vmatprep.subr.mxu0 0.0
    %5699 = vmatpush1.msra.mxu0 0.0
    %5700 = vmatprep.subr.mxu0 0.0
    %5701 = vmatpush1.msra.mxu0 0.0
    %5702 = vmatprep.subr.mxu0 0.0
    %5703 = vmatpush1.msra.mxu0 0.0
    %5704 = vmatprep.subr.mxu0 0.0
    %5705 = vmatpush1.msra.mxu0 0.0
    %5706 = vmatprep.subr.mxu0 0.0
    %5707 = vmatpush1.msra.mxu0 0.0
    %5708 = vmatprep.subr.mxu0 0.0
    %5709 = vmatpush1.msra.mxu0 0.0
    %5710 = vmatprep.subr.mxu0 0.0
    %5711 = vmatpush1.msra.mxu0 0.0
    %5712 = vmatprep.subr.mxu0 0.0
    %5713 = vmatpush1.msra.mxu0 0.0
    %5714 = vmatprep.subr.mxu0 0.0
    %5715 = vmatpush1.msra.mxu0 0.0
    %5716 = vmatprep.subr.mxu0 0.0
    %5717 = vmatpush1.msra.mxu0 0.0
    %5718 = vmatprep.subr.mxu0 0.0
    %5719 = vmatpush1.msra.mxu0 0.0
    %5720 = vmatprep.subr.mxu0 0.0
    %5721 = vmatpush1.msra.mxu0 0.0
    %5722 = vmatprep.subr.mxu0 0.0
    %5723 = vmatpush1.msra.mxu0 0.0
    %5724 = vmatprep.mubr.f32.mxu0 0.0
    %5725 = vmatmul.mubr.f32.gmra.mrb[0].mxu0 %v5655
    %v5726 = vpop.f32.mrb[0].mxu0
    %v5727 = vadd.f32 0.0, %v5726
    %v5728 = vpop.f32.mrb[0].mxu0
    %5729 = vmatprep.mubr.f32.mxu0 0.0
    %5730 = vmatmul.mubr.f32.gmra.mrb[0].mxu0 %v5658
    %v5731 = vpop.f32.mrb[0].mxu0
    %v5732 = vadd.f32 0.0, %v5731
    %v5733 = vpop.f32.mrb[0].mxu0
    %5734 = vdwg.mxu0
    %v5736 = vsel %vm877, %v5566, 0
    %v5739 = vsel %vm877, %v5571, 0
    %5741 = vmatprep.subr.mxu0 0.0
    %5742 = vmatpush1.msra.mxu0 %v5408
    %5743 = vmatprep.subr.mxu0 0.0
    %5744 = vmatpush1.msra.mxu0 %v5409
    %5745 = vmatprep.subr.mxu0 0.0
    %5746 = vmatpush1.msra.mxu0 %v5410
    %5747 = vmatprep.subr.mxu0 0.0
    %5748 = vmatpush1.msra.mxu0 %v5411
    %5749 = vmatprep.subr.mxu0 0.0
    %5750 = vmatpush1.msra.mxu0 0.0
    %5751 = vmatprep.subr.mxu0 0.0
    %5752 = vmatpush1.msra.mxu0 0.0
    %5753 = vmatprep.subr.mxu0 0.0
    %5754 = vmatpush1.msra.mxu0 0.0
    %5755 = vmatprep.subr.mxu0 0.0
    %5756 = vmatpush1.msra.mxu0 0.0
    %5757 = vmatprep.subr.mxu0 0.0
    %5758 = vmatpush1.msra.mxu0 0.0
    %5759 = vmatprep.subr.mxu0 0.0
    %5760 = vmatpush1.msra.mxu0 0.0
    %5761 = vmatprep.subr.mxu0 0.0
    %5762 = vmatpush1.msra.mxu0 0.0
    %5763 = vmatprep.subr.mxu0 0.0
    %5764 = vmatpush1.msra.mxu0 0.0
    %5765 = vmatprep.subr.mxu0 0.0
    %5766 = vmatpush1.msra.mxu0 0.0
    %5767 = vmatprep.subr.mxu0 0.0
    %5768 = vmatpush1.msra.mxu0 0.0
    %5769 = vmatprep.subr.mxu0 0.0
    %5770 = vmatpush1.msra.mxu0 0.0
    %5771 = vmatprep.subr.mxu0 0.0
    %5772 = vmatpush1.msra.mxu0 0.0
    %5773 = vmatprep.subr.mxu0 0.0
    %5774 = vmatpush1.msra.mxu0 0.0
    %5775 = vmatprep.subr.mxu0 0.0
    %5776 = vmatpush1.msra.mxu0 0.0
    %5777 = vmatprep.subr.mxu0 0.0
    %5778 = vmatpush1.msra.mxu0 0.0
    %5779 = vmatprep.subr.mxu0 0.0
    %5780 = vmatpush1.msra.mxu0 0.0
    %5781 = vmatprep.subr.mxu0 0.0
    %5782 = vmatpush1.msra.mxu0 0.0
    %5783 = vmatprep.subr.mxu0 0.0
    %5784 = vmatpush1.msra.mxu0 0.0
    %5785 = vmatprep.subr.mxu0 0.0
    %5786 = vmatpush1.msra.mxu0 0.0
    %5787 = vmatprep.subr.mxu0 0.0
    %5788 = vmatpush1.msra.mxu0 0.0
    %5789 = vmatprep.subr.mxu0 0.0
    %5790 = vmatpush1.msra.mxu0 0.0
    %5791 = vmatprep.subr.mxu0 0.0
    %5792 = vmatpush1.msra.mxu0 0.0
    %5793 = vmatprep.subr.mxu0 0.0
    %5794 = vmatpush1.msra.mxu0 0.0
    %5795 = vmatprep.subr.mxu0 0.0
    %5796 = vmatpush1.msra.mxu0 0.0
    %5797 = vmatprep.subr.mxu0 0.0
    %5798 = vmatpush1.msra.mxu0 0.0
    %5799 = vmatprep.subr.mxu0 0.0
    %5800 = vmatpush1.msra.mxu0 0.0
    %5801 = vmatprep.subr.mxu0 0.0
    %5802 = vmatpush1.msra.mxu0 0.0
    %5803 = vmatprep.subr.mxu0 0.0
    %5804 = vmatpush1.msra.mxu0 0.0
    %5805 = vmatprep.mubr.f32.mxu0 0.0
    %5806 = vmatmul.mubr.f32.gmra.mrb[0].mxu0 %v5736
    %v5807 = vpop.f32.mrb[0].mxu0
    %v5808 = vadd.f32 %v5727, %v5807
    %v5809 = vpop.f32.mrb[0].mxu0
    %5810 = vmatprep.mubr.f32.mxu0 0.0
    %5811 = vmatmul.mubr.f32.gmra.mrb[0].mxu0 %v5739
    %v5812 = vpop.f32.mrb[0].mxu0
    %v5813 = vadd.f32 %v5732, %v5812
    %v5814 = vpop.f32.mrb[0].mxu0
    %5815 = vdwg.mxu0
    %v5817 = vsel %vm877, %v5586, 0
    %v5820 = vsel %vm877, %v5591, 0
    %5822 = vmatprep.subr.mxu0 0.0
    %5823 = vmatpush1.msra.mxu0 %v5416
    %5824 = vmatprep.subr.mxu0 0.0
    %5825 = vmatpush1.msra.mxu0 %v5417
    %5826 = vmatprep.subr.mxu0 0.0
    %5827 = vmatpush1.msra.mxu0 %v5418
    %5828 = vmatprep.subr.mxu0 0.0
    %5829 = vmatpush1.msra.mxu0 %v5419
    %5830 = vmatprep.subr.mxu0 0.0
    %5831 = vmatpush1.msra.mxu0 0.0
    %5832 = vmatprep.subr.mxu0 0.0
    %5833 = vmatpush1.msra.mxu0 0.0
    %5834 = vmatprep.subr.mxu0 0.0
    %5835 = vmatpush1.msra.mxu0 0.0
    %5836 = vmatprep.subr.mxu0 0.0
    %5837 = vmatpush1.msra.mxu0 0.0
    %5838 = vmatprep.subr.mxu0 0.0
    %5839 = vmatpush1.msra.mxu0 0.0
    %5840 = vmatprep.subr.mxu0 0.0
    %5841 = vmatpush1.msra.mxu0 0.0
    %5842 = vmatprep.subr.mxu0 0.0
    %5843 = vmatpush1.msra.mxu0 0.0
    %5844 = vmatprep.subr.mxu0 0.0
    %5845 = vmatpush1.msra.mxu0 0.0
    %5846 = vmatprep.subr.mxu0 0.0
    %5847 = vmatpush1.msra.mxu0 0.0
    %5848 = vmatprep.subr.mxu0 0.0
    %5849 = vmatpush1.msra.mxu0 0.0
    %5850 = vmatprep.subr.mxu0 0.0
    %5851 = vmatpush1.msra.mxu0 0.0
    %5852 = vmatprep.subr.mxu0 0.0
    %5853 = vmatpush1.msra.mxu0 0.0
    %5854 = vmatprep.subr.mxu0 0.0
    %5855 = vmatpush1.msra.mxu0 0.0
    %5856 = vmatprep.subr.mxu0 0.0
    %5857 = vmatpush1.msra.mxu0 0.0
    %5858 = vmatprep.subr.mxu0 0.0
    %5859 = vmatpush1.msra.mxu0 0.0
    %5860 = vmatprep.subr.mxu0 0.0
    %5861 = vmatpush1.msra.mxu0 0.0
    %5862 = vmatprep.subr.mxu0 0.0
    %5863 = vmatpush1.msra.mxu0 0.0
    %5864 = vmatprep.subr.mxu0 0.0
    %5865 = vmatpush1.msra.mxu0 0.0
    %5866 = vmatprep.subr.mxu0 0.0
    %5867 = vmatpush1.msra.mxu0 0.0
    %5868 = vmatprep.subr.mxu0 0.0
    %5869 = vmatpush1.msra.mxu0 0.0
    %5870 = vmatprep.subr.mxu0 0.0
    %5871 = vmatpush1.msra.mxu0 0.0
    %5872 = vmatprep.subr.mxu0 0.0
    %5873 = vmatpush1.msra.mxu0 0.0
    %5874 = vmatprep.subr.mxu0 0.0
    %5875 = vmatpush1.msra.mxu0 0.0
    %5876 = vmatprep.subr.mxu0 0.0
    %5877 = vmatpush1.msra.mxu0 0.0
    %5878 = vmatprep.subr.mxu0 0.0
    %5879 = vmatpush1.msra.mxu0 0.0
    %5880 = vmatprep.subr.mxu0 0.0
    %5881 = vmatpush1.msra.mxu0 0.0
    %5882 = vmatprep.subr.mxu0 0.0
    %5883 = vmatpush1.msra.mxu0 0.0
    %5884 = vmatprep.subr.mxu0 0.0
    %5885 = vmatpush1.msra.mxu0 0.0
    %5886 = vmatprep.mubr.f32.mxu0 0.0
    %5887 = vmatmul.mubr.f32.gmra.mrb[0].mxu0 %v5817
    %v5888 = vpop.f32.mrb[0].mxu0
    %v5889 = vadd.f32 0.0, %v5888
    %v5890 = vpop.f32.mrb[0].mxu0
    %5891 = vmatprep.mubr.f32.mxu0 0.0
    %5892 = vmatmul.mubr.f32.gmra.mrb[0].mxu0 %v5820
    %v5893 = vpop.f32.mrb[0].mxu0
    %v5894 = vadd.f32 0.0, %v5893
    %v5895 = vpop.f32.mrb[0].mxu0
    %5896 = vdwg.mxu0
    %v5897 = vadd.f32 %v5808, %v5889
    %v5898 = vadd.f32 %v5813, %v5894
    %v5900 = vsel %vm877, %v5596, 0
    %v5903 = vsel %vm877, %v5601, 0
    %5905 = vmatprep.subr.mxu0 0.0
    %5906 = vmatpush1.msra.mxu0 %v5420
    %5907 = vmatprep.subr.mxu0 0.0
    %5908 = vmatpush1.msra.mxu0 %v5421
    %5909 = vmatprep.subr.mxu0 0.0
    %5910 = vmatpush1.msra.mxu0 %v5422
    %5911 = vmatprep.subr.mxu0 0.0
    %5912 = vmatpush1.msra.mxu0 %v5423
    %5913 = vmatprep.subr.mxu0 0.0
    %5914 = vmatpush1.msra.mxu0 0.0
    %5915 = vmatprep.subr.mxu0 0.0
    %5916 = vmatpush1.msra.mxu0 0.0
    %5917 = vmatprep.subr.mxu0 0.0
    %5918 = vmatpush1.msra.mxu0 0.0
    %5919 = vmatprep.subr.mxu0 0.0
    %5920 = vmatpush1.msra.mxu0 0.0
    %5921 = vmatprep.subr.mxu0 0.0
    %5922 = vmatpush1.msra.mxu0 0.0
    %5923 = vmatprep.subr.mxu0 0.0
    %5924 = vmatpush1.msra.mxu0 0.0
    %5925 = vmatprep.subr.mxu0 0.0
    %5926 = vmatpush1.msra.mxu0 0.0
    %5927 = vmatprep.subr.mxu0 0.0
    %5928 = vmatpush1.msra.mxu0 0.0
    %5929 = vmatprep.subr.mxu0 0.0
    %5930 = vmatpush1.msra.mxu0 0.0
    %5931 = vmatprep.subr.mxu0 0.0
    %5932 = vmatpush1.msra.mxu0 0.0
    %5933 = vmatprep.subr.mxu0 0.0
    %5934 = vmatpush1.msra.mxu0 0.0
    %5935 = vmatprep.subr.mxu0 0.0
    %5936 = vmatpush1.msra.mxu0 0.0
    %5937 = vmatprep.subr.mxu0 0.0
    %5938 = vmatpush1.msra.mxu0 0.0
    %5939 = vmatprep.subr.mxu0 0.0
    %5940 = vmatpush1.msra.mxu0 0.0
    %5941 = vmatprep.subr.mxu0 0.0
    %5942 = vmatpush1.msra.mxu0 0.0
    %5943 = vmatprep.subr.mxu0 0.0
    %5944 = vmatpush1.msra.mxu0 0.0
    %5945 = vmatprep.subr.mxu0 0.0
    %5946 = vmatpush1.msra.mxu0 0.0
    %5947 = vmatprep.subr.mxu0 0.0
    %5948 = vmatpush1.msra.mxu0 0.0
    %5949 = vmatprep.subr.mxu0 0.0
    %5950 = vmatpush1.msra.mxu0 0.0
    %5951 = vmatprep.subr.mxu0 0.0
    %5952 = vmatpush1.msra.mxu0 0.0
    %5953 = vmatprep.subr.mxu0 0.0
    %5954 = vmatpush1.msra.mxu0 0.0
    %5955 = vmatprep.subr.mxu0 0.0
    %5956 = vmatpush1.msra.mxu0 0.0
    %5957 = vmatprep.subr.mxu0 0.0
    %5958 = vmatpush1.msra.mxu0 0.0
    %5959 = vmatprep.subr.mxu0 0.0
    %5960 = vmatpush1.msra.mxu0 0.0
    %5961 = vmatprep.subr.mxu0 0.0
    %5962 = vmatpush1.msra.mxu0 0.0
    %5963 = vmatprep.subr.mxu0 0.0
    %5964 = vmatpush1.msra.mxu0 0.0
    %5965 = vmatprep.subr.mxu0 0.0
    %5966 = vmatpush1.msra.mxu0 0.0
    %5967 = vmatprep.subr.mxu0 0.0
    %5968 = vmatpush1.msra.mxu0 0.0
    %5969 = vmatprep.mubr.f32.mxu0 0.0
    %5970 = vmatmul.mubr.f32.gmra.mrb[0].mxu0 %v5900
    %v5971 = vpop.f32.mrb[0].mxu0
    %v5972 = vadd.f32 0.0, %v5971
    %v5973 = vpop.f32.mrb[0].mxu0
    %5974 = vmatprep.mubr.f32.mxu0 0.0
    %5975 = vmatmul.mubr.f32.gmra.mrb[0].mxu0 %v5903
    %v5976 = vpop.f32.mrb[0].mxu0
    %v5977 = vadd.f32 0.0, %v5976
    %v5978 = vpop.f32.mrb[0].mxu0
    %5979 = vdwg.mxu0
    %v5980 = vadd.f32 %v5897, %v5972
    %v5981 = vadd.f32 %v5898, %v5977
    %v5983 = vsel %vm877, %v5606, 0
    %v5986 = vsel %vm877, %v5611, 0
    %5988 = vmatprep.subr.mxu0 0.0
    %5989 = vmatpush1.msra.mxu0 %v5424
    %5990 = vmatprep.subr.mxu0 0.0
    %5991 = vmatpush1.msra.mxu0 %v5425
    %5992 = vmatprep.subr.mxu0 0.0
    %5993 = vmatpush1.msra.mxu0 %v5426
    %5994 = vmatprep.subr.mxu0 0.0
    %5995 = vmatpush1.msra.mxu0 %v5427
    %5996 = vmatprep.subr.mxu0 0.0
    %5997 = vmatpush1.msra.mxu0 0.0
    %5998 = vmatprep.subr.mxu0 0.0
    %5999 = vmatpush1.msra.mxu0 0.0
    %6000 = vmatprep.subr.mxu0 0.0
    %6001 = vmatpush1.msra.mxu0 0.0
    %6002 = vmatprep.subr.mxu0 0.0
    %6003 = vmatpush1.msra.mxu0 0.0
    %6004 = vmatprep.subr.mxu0 0.0
    %6005 = vmatpush1.msra.mxu0 0.0
    %6006 = vmatprep.subr.mxu0 0.0
    %6007 = vmatpush1.msra.mxu0 0.0
    %6008 = vmatprep.subr.mxu0 0.0
    %6009 = vmatpush1.msra.mxu0 0.0
    %6010 = vmatprep.subr.mxu0 0.0
    %6011 = vmatpush1.msra.mxu0 0.0
    %6012 = vmatprep.subr.mxu0 0.0
    %6013 = vmatpush1.msra.mxu0 0.0
    %6014 = vmatprep.subr.mxu0 0.0
    %6015 = vmatpush1.msra.mxu0 0.0
    %6016 = vmatprep.subr.mxu0 0.0
    %6017 = vmatpush1.msra.mxu0 0.0
    %6018 = vmatprep.subr.mxu0 0.0
    %6019 = vmatpush1.msra.mxu0 0.0
    %6020 = vmatprep.subr.mxu0 0.0
    %6021 = vmatpush1.msra.mxu0 0.0
    %6022 = vmatprep.subr.mxu0 0.0
    %6023 = vmatpush1.msra.mxu0 0.0
    %6024 = vmatprep.subr.mxu0 0.0
    %6025 = vmatpush1.msra.mxu0 0.0
    %6026 = vmatprep.subr.mxu0 0.0
    %6027 = vmatpush1.msra.mxu0 0.0
    %6028 = vmatprep.subr.mxu0 0.0
    %6029 = vmatpush1.msra.mxu0 0.0
    %6030 = vmatprep.subr.mxu0 0.0
    %6031 = vmatpush1.msra.mxu0 0.0
    %6032 = vmatprep.subr.mxu0 0.0
    %6033 = vmatpush1.msra.mxu0 0.0
    %6034 = vmatprep.subr.mxu0 0.0
    %6035 = vmatpush1.msra.mxu0 0.0
    %6036 = vmatprep.subr.mxu0 0.0
    %6037 = vmatpush1.msra.mxu0 0.0
    %6038 = vmatprep.subr.mxu0 0.0
    %6039 = vmatpush1.msra.mxu0 0.0
    %6040 = vmatprep.subr.mxu0 0.0
    %6041 = vmatpush1.msra.mxu0 0.0
    %6042 = vmatprep.subr.mxu0 0.0
    %6043 = vmatpush1.msra.mxu0 0.0
    %6044 = vmatprep.subr.mxu0 0.0
    %6045 = vmatpush1.msra.mxu0 0.0
    %6046 = vmatprep.subr.mxu0 0.0
    %6047 = vmatpush1.msra.mxu0 0.0
    %6048 = vmatprep.subr.mxu0 0.0
    %6049 = vmatpush1.msra.mxu0 0.0
    %6050 = vmatprep.subr.mxu0 0.0
    %6051 = vmatpush1.msra.mxu0 0.0
    %6052 = vmatprep.mubr.f32.mxu0 0.0
    %6053 = vmatmul.mubr.f32.gmra.mrb[0].mxu0 %v5983
    %v6054 = vpop.f32.mrb[0].mxu0
    %v6055 = vadd.f32 0.0, %v6054
    %v6056 = vpop.f32.mrb[0].mxu0
    %6057 = vmatprep.mubr.f32.mxu0 0.0
    %6058 = vmatmul.mubr.f32.gmra.mrb[0].mxu0 %v5986
    %v6059 = vpop.f32.mrb[0].mxu0
    %v6060 = vadd.f32 0.0, %v6059
    %v6061 = vpop.f32.mrb[0].mxu0
    %6062 = vdwg.mxu0
    %v6063 = vadd.f32 %v5980, %v6055
    %v6064 = vadd.f32 %v5981, %v6060
    %v6066 = vsel %vm877, %v5616, 0
    %v6069 = vsel %vm877, %v5621, 0
    %6071 = vmatprep.subr.mxu0 0.0
    %6072 = vmatpush1.msra.mxu0 %v5428
    %6073 = vmatprep.subr.mxu0 0.0
    %6074 = vmatpush1.msra.mxu0 %v5429
    %6075 = vmatprep.subr.mxu0 0.0
    %6076 = vmatpush1.msra.mxu0 %v5430
    %6077 = vmatprep.subr.mxu0 0.0
    %6078 = vmatpush1.msra.mxu0 %v5431
    %6079 = vmatprep.subr.mxu0 0.0
    %6080 = vmatpush1.msra.mxu0 0.0
    %6081 = vmatprep.subr.mxu0 0.0
    %6082 = vmatpush1.msra.mxu0 0.0
    %6083 = vmatprep.subr.mxu0 0.0
    %6084 = vmatpush1.msra.mxu0 0.0
    %6085 = vmatprep.subr.mxu0 0.0
    %6086 = vmatpush1.msra.mxu0 0.0
    %6087 = vmatprep.subr.mxu0 0.0
    %6088 = vmatpush1.msra.mxu0 0.0
    %6089 = vmatprep.subr.mxu0 0.0
    %6090 = vmatpush1.msra.mxu0 0.0
    %6091 = vmatprep.subr.mxu0 0.0
    %6092 = vmatpush1.msra.mxu0 0.0
    %6093 = vmatprep.subr.mxu0 0.0
    %6094 = vmatpush1.msra.mxu0 0.0
    %6095 = vmatprep.subr.mxu0 0.0
    %6096 = vmatpush1.msra.mxu0 0.0
    %6097 = vmatprep.subr.mxu0 0.0
    %6098 = vmatpush1.msra.mxu0 0.0
    %6099 = vmatprep.subr.mxu0 0.0
    %6100 = vmatpush1.msra.mxu0 0.0
    %6101 = vmatprep.subr.mxu0 0.0
    %6102 = vmatpush1.msra.mxu0 0.0
    %6103 = vmatprep.subr.mxu0 0.0
    %6104 = vmatpush1.msra.mxu0 0.0
    %6105 = vmatprep.subr.mxu0 0.0
    %6106 = vmatpush1.msra.mxu0 0.0
    %6107 = vmatprep.subr.mxu0 0.0
    %6108 = vmatpush1.msra.mxu0 0.0
    %6109 = vmatprep.subr.mxu0 0.0
    %6110 = vmatpush1.msra.mxu0 0.0
    %6111 = vmatprep.subr.mxu0 0.0
    %6112 = vmatpush1.msra.mxu0 0.0
    %6113 = vmatprep.subr.mxu0 0.0
    %6114 = vmatpush1.msra.mxu0 0.0
    %6115 = vmatprep.subr.mxu0 0.0
    %6116 = vmatpush1.msra.mxu0 0.0
    %6117 = vmatprep.subr.mxu0 0.0
    %6118 = vmatpush1.msra.mxu0 0.0
    %6119 = vmatprep.subr.mxu0 0.0
    %6120 = vmatpush1.msra.mxu0 0.0
    %6121 = vmatprep.subr.mxu0 0.0
    %6122 = vmatpush1.msra.mxu0 0.0
    %6123 = vmatprep.subr.mxu0 0.0
    %6124 = vmatpush1.msra.mxu0 0.0
    %6125 = vmatprep.subr.mxu0 0.0
    %6126 = vmatpush1.msra.mxu0 0.0
    %6127 = vmatprep.subr.mxu0 0.0
    %6128 = vmatpush1.msra.mxu0 0.0
    %6129 = vmatprep.subr.mxu0 0.0
    %6130 = vmatpush1.msra.mxu0 0.0
    %6131 = vmatprep.subr.mxu0 0.0
    %6132 = vmatpush1.msra.mxu0 0.0
    %6133 = vmatprep.subr.mxu0 0.0
    %6134 = vmatpush1.msra.mxu0 0.0
    %6135 = vmatprep.mubr.f32.mxu0 0.0
    %6136 = vmatmul.mubr.f32.gmra.mrb[0].mxu0 %v6066
    %v6137 = vpop.f32.mrb[0].mxu0
    %v6138 = vadd.f32 0.0, %v6137
    %v6139 = vpop.f32.mrb[0].mxu0
    %6140 = vmatprep.mubr.f32.mxu0 0.0
    %6141 = vmatmul.mubr.f32.gmra.mrb[0].mxu0 %v6069
    %v6142 = vpop.f32.mrb[0].mxu0
    %v6143 = vadd.f32 0.0, %v6142
    %v6144 = vpop.f32.mrb[0].mxu0
    %6145 = vdwg.mxu0
    %v6146 = vadd.f32 %v6063, %v6138
    %v6147 = vadd.f32 %v6064, %v6143
    %v6149 = vsel %vm877, %v5626, 0
    %v6152 = vsel %vm877, %v5631, 0
    %6154 = vmatprep.subr.mxu0 0.0
    %6155 = vmatpush1.msra.mxu0 %v5432
    %6156 = vmatprep.subr.mxu0 0.0
    %6157 = vmatpush1.msra.mxu0 %v5433
    %6158 = vmatprep.subr.mxu0 0.0
    %6159 = vmatpush1.msra.mxu0 %v5434
    %6160 = vmatprep.subr.mxu0 0.0
    %6161 = vmatpush1.msra.mxu0 %v5435
    %6162 = vmatprep.subr.mxu0 0.0
    %6163 = vmatpush1.msra.mxu0 0.0
    %6164 = vmatprep.subr.mxu0 0.0
    %6165 = vmatpush1.msra.mxu0 0.0
    %6166 = vmatprep.subr.mxu0 0.0
    %6167 = vmatpush1.msra.mxu0 0.0
    %6168 = vmatprep.subr.mxu0 0.0
    %6169 = vmatpush1.msra.mxu0 0.0
    %6170 = vmatprep.subr.mxu0 0.0
    %6171 = vmatpush1.msra.mxu0 0.0
    %6172 = vmatprep.subr.mxu0 0.0
    %6173 = vmatpush1.msra.mxu0 0.0
    %6174 = vmatprep.subr.mxu0 0.0
    %6175 = vmatpush1.msra.mxu0 0.0
    %6176 = vmatprep.subr.mxu0 0.0
    %6177 = vmatpush1.msra.mxu0 0.0
    %6178 = vmatprep.subr.mxu0 0.0
    %6179 = vmatpush1.msra.mxu0 0.0
    %6180 = vmatprep.subr.mxu0 0.0
    %6181 = vmatpush1.msra.mxu0 0.0
    %6182 = vmatprep.subr.mxu0 0.0
    %6183 = vmatpush1.msra.mxu0 0.0
    %6184 = vmatprep.subr.mxu0 0.0
    %6185 = vmatpush1.msra.mxu0 0.0
    %6186 = vmatprep.subr.mxu0 0.0
    %6187 = vmatpush1.msra.mxu0 0.0
    %6188 = vmatprep.subr.mxu0 0.0
    %6189 = vmatpush1.msra.mxu0 0.0
    %6190 = vmatprep.subr.mxu0 0.0
    %6191 = vmatpush1.msra.mxu0 0.0
    %6192 = vmatprep.subr.mxu0 0.0
    %6193 = vmatpush1.msra.mxu0 0.0
    %6194 = vmatprep.subr.mxu0 0.0
    %6195 = vmatpush1.msra.mxu0 0.0
    %6196 = vmatprep.subr.mxu0 0.0
    %6197 = vmatpush1.msra.mxu0 0.0
    %6198 = vmatprep.subr.mxu0 0.0
    %6199 = vmatpush1.msra.mxu0 0.0
    %6200 = vmatprep.subr.mxu0 0.0
    %6201 = vmatpush1.msra.mxu0 0.0
    %6202 = vmatprep.subr.mxu0 0.0
    %6203 = vmatpush1.msra.mxu0 0.0
    %6204 = vmatprep.subr.mxu0 0.0
    %6205 = vmatpush1.msra.mxu0 0.0
    %6206 = vmatprep.subr.mxu0 0.0
    %6207 = vmatpush1.msra.mxu0 0.0
    %6208 = vmatprep.subr.mxu0 0.0
    %6209 = vmatpush1.msra.mxu0 0.0
    %6210 = vmatprep.subr.mxu0 0.0
    %6211 = vmatpush1.msra.mxu0 0.0
    %6212 = vmatprep.subr.mxu0 0.0
    %6213 = vmatpush1.msra.mxu0 0.0
    %6214 = vmatprep.subr.mxu0 0.0
    %6215 = vmatpush1.msra.mxu0 0.0
    %6216 = vmatprep.subr.mxu0 0.0
    %6217 = vmatpush1.msra.mxu0 0.0
    %6218 = vmatprep.mubr.f32.mxu0 0.0
    %6219 = vmatmul.mubr.f32.gmra.mrb[0].mxu0 %v6149
    %v6220 = vpop.f32.mrb[0].mxu0
    %v6221 = vadd.f32 0.0, %v6220
    %v6222 = vpop.f32.mrb[0].mxu0
    %6223 = vmatprep.mubr.f32.mxu0 0.0
    %6224 = vmatmul.mubr.f32.gmra.mrb[0].mxu0 %v6152
    %v6225 = vpop.f32.mrb[0].mxu0
    %v6226 = vadd.f32 0.0, %v6225
    %v6227 = vpop.f32.mrb[0].mxu0
    %6228 = vdwg.mxu0
    %v6229 = vadd.f32 %v6146, %v6221
    %v6230 = vadd.f32 %v6147, %v6226
    %v6232 = vsel %vm877, %v5636, 0
    %v6235 = vsel %vm877, %v5641, 0
    %6237 = vmatprep.subr.mxu0 0.0
    %6238 = vmatpush1.msra.mxu0 %v5436
    %6239 = vmatprep.subr.mxu0 0.0
    %6240 = vmatpush1.msra.mxu0 %v5437
    %6241 = vmatprep.subr.mxu0 0.0
    %6242 = vmatpush1.msra.mxu0 %v5438
    %6243 = vmatprep.subr.mxu0 0.0
    %6244 = vmatpush1.msra.mxu0 %v5439
    %6245 = vmatprep.subr.mxu0 0.0
    %6246 = vmatpush1.msra.mxu0 0.0
    %6247 = vmatprep.subr.mxu0 0.0
    %6248 = vmatpush1.msra.mxu0 0.0
    %6249 = vmatprep.subr.mxu0 0.0
    %6250 = vmatpush1.msra.mxu0 0.0
    %6251 = vmatprep.subr.mxu0 0.0
    %6252 = vmatpush1.msra.mxu0 0.0
    %6253 = vmatprep.subr.mxu0 0.0
    %6254 = vmatpush1.msra.mxu0 0.0
    %6255 = vmatprep.subr.mxu0 0.0
    %6256 = vmatpush1.msra.mxu0 0.0
    %6257 = vmatprep.subr.mxu0 0.0
    %6258 = vmatpush1.msra.mxu0 0.0
    %6259 = vmatprep.subr.mxu0 0.0
    %6260 = vmatpush1.msra.mxu0 0.0
    %6261 = vmatprep.subr.mxu0 0.0
    %6262 = vmatpush1.msra.mxu0 0.0
    %6263 = vmatprep.subr.mxu0 0.0
    %6264 = vmatpush1.msra.mxu0 0.0
    %6265 = vmatprep.subr.mxu0 0.0
    %6266 = vmatpush1.msra.mxu0 0.0
    %6267 = vmatprep.subr.mxu0 0.0
    %6268 = vmatpush1.msra.mxu0 0.0
    %6269 = vmatprep.subr.mxu0 0.0
    %6270 = vmatpush1.msra.mxu0 0.0
    %6271 = vmatprep.subr.mxu0 0.0
    %6272 = vmatpush1.msra.mxu0 0.0
    %6273 = vmatprep.subr.mxu0 0.0
    %6274 = vmatpush1.msra.mxu0 0.0
    %6275 = vmatprep.subr.mxu0 0.0
    %6276 = vmatpush1.msra.mxu0 0.0
    %6277 = vmatprep.subr.mxu0 0.0
    %6278 = vmatpush1.msra.mxu0 0.0
    %6279 = vmatprep.subr.mxu0 0.0
    %6280 = vmatpush1.msra.mxu0 0.0
    %6281 = vmatprep.subr.mxu0 0.0
    %6282 = vmatpush1.msra.mxu0 0.0
    %6283 = vmatprep.subr.mxu0 0.0
    %6284 = vmatpush1.msra.mxu0 0.0
    %6285 = vmatprep.subr.mxu0 0.0
    %6286 = vmatpush1.msra.mxu0 0.0
    %6287 = vmatprep.subr.mxu0 0.0
    %6288 = vmatpush1.msra.mxu0 0.0
    %6289 = vmatprep.subr.mxu0 0.0
    %6290 = vmatpush1.msra.mxu0 0.0
    %6291 = vmatprep.subr.mxu0 0.0
    %6292 = vmatpush1.msra.mxu0 0.0
    %6293 = vmatprep.subr.mxu0 0.0
    %6294 = vmatpush1.msra.mxu0 0.0
    %6295 = vmatprep.subr.mxu0 0.0
    %6296 = vmatpush1.msra.mxu0 0.0
    %6297 = vmatprep.subr.mxu0 0.0
    %6298 = vmatpush1.msra.mxu0 0.0
    %6299 = vmatprep.subr.mxu0 0.0
    %6300 = vmatpush1.msra.mxu0 0.0
    %6301 = vmatprep.mubr.f32.mxu0 0.0
    %6302 = vmatmul.mubr.f32.gmra.mrb[0].mxu0 %v6232
    %v6303 = vpop.f32.mrb[0].mxu0
    %v6304 = vadd.f32 0.0, %v6303
    %v6305 = vpop.f32.mrb[0].mxu0
    %6306 = vmatprep.mubr.f32.mxu0 0.0
    %6307 = vmatmul.mubr.f32.gmra.mrb[0].mxu0 %v6235
    %v6308 = vpop.f32.mrb[0].mxu0
    %v6309 = vadd.f32 0.0, %v6308
    %v6310 = vpop.f32.mrb[0].mxu0
    %6311 = vdwg.mxu0
    %v6312 = vadd.f32 %v6229, %v6304
    %v6313 = vadd.f32 %v6230, %v6309
    %v6315 = vsel %vm877, %v5646, 0
    %v6318 = vsel %vm877, %v5651, 0
    %6320 = vmatprep.subr.mxu0 0.0
    %6321 = vmatpush1.msra.mxu0 %v5440
    %6322 = vmatprep.subr.mxu0 0.0
    %6323 = vmatpush1.msra.mxu0 %v5441
    %6324 = vmatprep.subr.mxu0 0.0
    %6325 = vmatpush1.msra.mxu0 %v5442
    %6326 = vmatprep.subr.mxu0 0.0
    %6327 = vmatpush1.msra.mxu0 %v5443
    %6328 = vmatprep.subr.mxu0 0.0
    %6329 = vmatpush1.msra.mxu0 0.0
    %6330 = vmatprep.subr.mxu0 0.0
    %6331 = vmatpush1.msra.mxu0 0.0
    %6332 = vmatprep.subr.mxu0 0.0
    %6333 = vmatpush1.msra.mxu0 0.0
    %6334 = vmatprep.subr.mxu0 0.0
    %6335 = vmatpush1.msra.mxu0 0.0
    %6336 = vmatprep.subr.mxu0 0.0
    %6337 = vmatpush1.msra.mxu0 0.0
    %6338 = vmatprep.subr.mxu0 0.0
    %6339 = vmatpush1.msra.mxu0 0.0
    %6340 = vmatprep.subr.mxu0 0.0
    %6341 = vmatpush1.msra.mxu0 0.0
    %6342 = vmatprep.subr.mxu0 0.0
    %6343 = vmatpush1.msra.mxu0 0.0
    %6344 = vmatprep.subr.mxu0 0.0
    %6345 = vmatpush1.msra.mxu0 0.0
    %6346 = vmatprep.subr.mxu0 0.0
    %6347 = vmatpush1.msra.mxu0 0.0
    %6348 = vmatprep.subr.mxu0 0.0
    %6349 = vmatpush1.msra.mxu0 0.0
    %6350 = vmatprep.subr.mxu0 0.0
    %6351 = vmatpush1.msra.mxu0 0.0
    %6352 = vmatprep.subr.mxu0 0.0
    %6353 = vmatpush1.msra.mxu0 0.0
    %6354 = vmatprep.subr.mxu0 0.0
    %6355 = vmatpush1.msra.mxu0 0.0
    %6356 = vmatprep.subr.mxu0 0.0
    %6357 = vmatpush1.msra.mxu0 0.0
    %6358 = vmatprep.subr.mxu0 0.0
    %6359 = vmatpush1.msra.mxu0 0.0
    %6360 = vmatprep.subr.mxu0 0.0
    %6361 = vmatpush1.msra.mxu0 0.0
    %6362 = vmatprep.subr.mxu0 0.0
    %6363 = vmatpush1.msra.mxu0 0.0
    %6364 = vmatprep.subr.mxu0 0.0
    %6365 = vmatpush1.msra.mxu0 0.0
    %6366 = vmatprep.subr.mxu0 0.0
    %6367 = vmatpush1.msra.mxu0 0.0
    %6368 = vmatprep.subr.mxu0 0.0
    %6369 = vmatpush1.msra.mxu0 0.0
    %6370 = vmatprep.subr.mxu0 0.0
    %6371 = vmatpush1.msra.mxu0 0.0
    %6372 = vmatprep.subr.mxu0 0.0
    %6373 = vmatpush1.msra.mxu0 0.0
    %6374 = vmatprep.subr.mxu0 0.0
    %6375 = vmatpush1.msra.mxu0 0.0
    %6376 = vmatprep.subr.mxu0 0.0
    %6377 = vmatpush1.msra.mxu0 0.0
    %6378 = vmatprep.subr.mxu0 0.0
    %6379 = vmatpush1.msra.mxu0 0.0
    %6380 = vmatprep.subr.mxu0 0.0
    %6381 = vmatpush1.msra.mxu0 0.0
    %6382 = vmatprep.subr.mxu0 0.0
    %6383 = vmatpush1.msra.mxu0 0.0
    %6384 = vmatprep.mubr.f32.mxu0 0.0
    %6385 = vmatmul.mubr.f32.gmra.mrb[0].mxu0 %v6315
    %v6386 = vpop.f32.mrb[0].mxu0
    %v6387 = vadd.f32 0.0, %v6386
    %v6388 = vpop.f32.mrb[0].mxu0
    %6389 = vmatprep.mubr.f32.mxu0 0.0
    %6390 = vmatmul.mubr.f32.gmra.mrb[0].mxu0 %v6318
    %v6391 = vpop.f32.mrb[0].mxu0
    %v6392 = vadd.f32 0.0, %v6391
    %v6393 = vpop.f32.mrb[0].mxu0
    %6394 = vdwg.mxu0
    %v6395 = vadd.f32 %v6312, %v6387
    %v6396 = vadd.f32 %v6313, %v6392
    %6397 = vst.msk [vmem:[#allocation3] sm:$0xff] %vm877, %v6395
    %6398 = vst.msk [vmem:[#allocation3 + $0x8] sm:$0xff] %vm877, %v6396
    %6399 = vmatprep.subr.mxu0 0.0
    %6400 = vmatpush1.msra.mxu0 %v5382
    %6401 = vmatprep.subr.mxu0 0.0
    %6402 = vmatpush1.msra.mxu0 %v5383
    %6403 = vmatprep.subr.mxu0 0.0
    %6404 = vmatpush1.msra.mxu0 %v5384
    %6405 = vmatprep.subr.mxu0 0.0
    %6406 = vmatpush1.msra.mxu0 %v5385
    %6407 = vmatprep.subr.mxu0 0.0
    %6408 = vmatpush1.msra.mxu0 %v5386
    %6409 = vmatprep.subr.mxu0 0.0
    %6410 = vmatpush1.msra.mxu0 %v5387
    %6411 = vmatprep.subr.mxu0 0.0
    %6412 = vmatpush1.msra.mxu0 %v5388
    %6413 = vmatprep.subr.mxu0 0.0
    %6414 = vmatpush1.msra.mxu0 %v5389
    %6415 = vmatprep.subr.mxu0 0.0
    %6416 = vmatpush1.msra.mxu0 0.0
    %6417 = vmatprep.subr.mxu0 0.0
    %6418 = vmatpush1.msra.mxu0 0.0
    %6419 = vmatprep.subr.mxu0 0.0
    %6420 = vmatpush1.msra.mxu0 0.0
    %6421 = vmatprep.subr.mxu0 0.0
    %6422 = vmatpush1.msra.mxu0 0.0
    %6423 = vmatprep.subr.mxu0 0.0
    %6424 = vmatpush1.msra.mxu0 0.0
    %6425 = vmatprep.subr.mxu0 0.0
    %6426 = vmatpush1.msra.mxu0 0.0
    %6427 = vmatprep.subr.mxu0 0.0
    %6428 = vmatpush1.msra.mxu0 0.0
    %6429 = vmatprep.subr.mxu0 0.0
    %6430 = vmatpush1.msra.mxu0 0.0
    %6431 = vmatprep.subr.mxu0 0.0
    %6432 = vmatpush1.msra.mxu0 0.0
    %6433 = vmatprep.subr.mxu0 0.0
    %6434 = vmatpush1.msra.mxu0 0.0
    %6435 = vmatprep.subr.mxu0 0.0
    %6436 = vmatpush1.msra.mxu0 0.0
    %6437 = vmatprep.subr.mxu0 0.0
    %6438 = vmatpush1.msra.mxu0 0.0
    %6439 = vmatprep.subr.mxu0 0.0
    %6440 = vmatpush1.msra.mxu0 0.0
    %6441 = vmatprep.subr.mxu0 0.0
    %6442 = vmatpush1.msra.mxu0 0.0
    %6443 = vmatprep.subr.mxu0 0.0
    %6444 = vmatpush1.msra.mxu0 0.0
    %6445 = vmatprep.subr.mxu0 0.0
    %6446 = vmatpush1.msra.mxu0 0.0
    %6447 = vmatprep.subr.mxu0 0.0
    %6448 = vmatpush1.msra.mxu0 0.0
    %6449 = vmatprep.subr.mxu0 0.0
    %6450 = vmatpush1.msra.mxu0 0.0
    %6451 = vmatprep.subr.mxu0 0.0
    %6452 = vmatpush1.msra.mxu0 0.0
    %6453 = vmatprep.subr.mxu0 0.0
    %6454 = vmatpush1.msra.mxu0 0.0
    %6455 = vmatprep.subr.mxu0 0.0
    %6456 = vmatpush1.msra.mxu0 0.0
    %6457 = vmatprep.subr.mxu0 0.0
    %6458 = vmatpush1.msra.mxu0 0.0
    %6459 = vmatprep.subr.mxu0 0.0
    %6460 = vmatpush1.msra.mxu0 0.0
    %6461 = vmatprep.subr.mxu0 0.0
    %6462 = vmatpush1.msra.mxu0 0.0
    %6463 = vmatprep.mubr.f32.mxu0 0.0
    %6464 = vmatmul.mubr.f32.gmra.mrb[0].mxu0 %v5446
    %v6465 = vpop.f32.mrb[0].mxu0
    %v6466 = vadd.f32 0.0, %v6465
    %v6467 = vpop.f32.mrb[0].mxu0
    %6468 = vmatprep.mubr.f32.mxu0 0.0
    %6469 = vmatmul.mubr.f32.gmra.mrb[0].mxu0 %v5449
    %v6470 = vpop.f32.mrb[0].mxu0
    %v6471 = vadd.f32 0.0, %v6470
    %v6472 = vpop.f32.mrb[0].mxu0
    %6473 = vmatprep.mubr.f32.mxu0 0.0
    %6474 = vmatmul.mubr.f32.gmra.mrb[0].mxu0 %v5452
    %v6475 = vpop.f32.mrb[0].mxu0
    %v6476 = vadd.f32 0.0, %v6475
    %v6477 = vpop.f32.mrb[0].mxu0
    %6478 = vmatprep.mubr.f32.mxu0 0.0
    %6479 = vmatmul.mubr.f32.gmra.mrb[0].mxu0 %v5455
    %v6480 = vpop.f32.mrb[0].mxu0
    %v6481 = vadd.f32 0.0, %v6480
    %v6482 = vpop.f32.mrb[0].mxu0
    %6483 = vmatprep.mubr.f32.mxu0 0.0
    %6484 = vmatmul.mubr.f32.gmra.mrb[0].mxu0 %v5458
    %v6485 = vpop.f32.mrb[0].mxu0
    %v6486 = vadd.f32 0.0, %v6485
    %v6487 = vpop.f32.mrb[0].mxu0
    %6488 = vmatprep.mubr.f32.mxu0 0.0
    %6489 = vmatmul.mubr.f32.gmra.mrb[0].mxu0 %v5461
    %v6490 = vpop.f32.mrb[0].mxu0
    %v6491 = vadd.f32 0.0, %v6490
    %v6492 = vpop.f32.mrb[0].mxu0
    %6493 = vmatprep.mubr.f32.mxu0 0.0
    %6494 = vmatmul.mubr.f32.gmra.mrb[0].mxu0 %v5464
    %v6495 = vpop.f32.mrb[0].mxu0
    %v6496 = vadd.f32 0.0, %v6495
    %v6497 = vpop.f32.mrb[0].mxu0
    %6498 = vmatprep.mubr.f32.mxu0 0.0
    %6499 = vmatmul.mubr.f32.gmra.mrb[0].mxu0 %v5467
    %v6500 = vpop.f32.mrb[0].mxu0
    %v6501 = vadd.f32 0.0, %v6500
    %v6502 = vpop.f32.mrb[0].mxu0
    %6503 = vmatprep.mubr.f32.mxu0 0.0
    %6504 = vmatmul.mubr.f32.gmra.mrb[0].mxu0 %v5470
    %v6505 = vpop.f32.mrb[0].mxu0
    %v6506 = vadd.f32 0.0, %v6505
    %v6507 = vpop.f32.mrb[0].mxu0
    %6508 = vmatprep.mubr.f32.mxu0 0.0
    %6509 = vmatmul.mubr.f32.gmra.mrb[0].mxu0 %v5473
    %v6510 = vpop.f32.mrb[0].mxu0
    %v6511 = vadd.f32 0.0, %v6510
    %v6512 = vpop.f32.mrb[0].mxu0
    %6513 = vmatprep.mubr.f32.mxu0 0.0
    %6514 = vmatmul.mubr.f32.gmra.mrb[0].mxu0 %v5476
    %v6515 = vpop.f32.mrb[0].mxu0
    %v6516 = vadd.f32 0.0, %v6515
    %v6517 = vpop.f32.mrb[0].mxu0
    %6518 = vmatprep.mubr.f32.mxu0 0.0
    %6519 = vmatmul.mubr.f32.gmra.mrb[0].mxu0 %v5479
    %v6520 = vpop.f32.mrb[0].mxu0
    %v6521 = vadd.f32 0.0, %v6520
    %v6522 = vpop.f32.mrb[0].mxu0
    %6523 = vmatprep.mubr.f32.mxu0 0.0
    %6524 = vmatmul.mubr.f32.gmra.mrb[0].mxu0 %v5482
    %v6525 = vpop.f32.mrb[0].mxu0
    %v6526 = vadd.f32 0.0, %v6525
    %v6527 = vpop.f32.mrb[0].mxu0
    %6528 = vmatprep.mubr.f32.mxu0 0.0
    %6529 = vmatmul.mubr.f32.gmra.mrb[0].mxu0 %v5485
    %v6530 = vpop.f32.mrb[0].mxu0
    %v6531 = vadd.f32 0.0, %v6530
    %v6532 = vpop.f32.mrb[0].mxu0
    %6533 = vmatprep.mubr.f32.mxu0 0.0
    %6534 = vmatmul.mubr.f32.gmra.mrb[0].mxu0 %v5488
    %v6535 = vpop.f32.mrb[0].mxu0
    %v6536 = vadd.f32 0.0, %v6535
    %v6537 = vpop.f32.mrb[0].mxu0
    %6538 = vmatprep.mubr.f32.mxu0 0.0
    %6539 = vmatmul.mubr.f32.gmra.mrb[0].mxu0 %v5491
    %v6540 = vpop.f32.mrb[0].mxu0
    %v6541 = vadd.f32 0.0, %v6540
    %v6542 = vpop.f32.mrb[0].mxu0
    %6543 = vmatprep.mubr.f32.mxu0 0.0
    %6544 = vmatmul.mubr.f32.gmra.mrb[0].mxu0 %v5494
    %v6545 = vpop.f32.mrb[0].mxu0
    %v6546 = vadd.f32 0.0, %v6545
    %v6547 = vpop.f32.mrb[0].mxu0
    %6548 = vmatprep.mubr.f32.mxu0 0.0
    %6549 = vmatmul.mubr.f32.gmra.mrb[0].mxu0 %v5497
    %v6550 = vpop.f32.mrb[0].mxu0
    %v6551 = vadd.f32 0.0, %v6550
    %v6552 = vpop.f32.mrb[0].mxu0
    %6553 = vdwg.mxu0
    %v6555 = vsel %vm877, %v6476, 0
    %v6558 = vsel %vm877, %v6481, 0
    %6560 = vmatprep.subr.mxu0 0.0
    %6561 = vmatpush1.msra.mxu0 %v5412
    %6562 = vmatprep.subr.mxu0 0.0
    %6563 = vmatpush1.msra.mxu0 %v5413
    %6564 = vmatprep.subr.mxu0 0.0
    %6565 = vmatpush1.msra.mxu0 %v5414
    %6566 = vmatprep.subr.mxu0 0.0
    %6567 = vmatpush1.msra.mxu0 %v5415
    %6568 = vmatprep.subr.mxu0 0.0
    %6569 = vmatpush1.msra.mxu0 0.0
    %6570 = vmatprep.subr.mxu0 0.0
    %6571 = vmatpush1.msra.mxu0 0.0
    %6572 = vmatprep.subr.mxu0 0.0
    %6573 = vmatpush1.msra.mxu0 0.0
    %6574 = vmatprep.subr.mxu0 0.0
    %6575 = vmatpush1.msra.mxu0 0.0
    %6576 = vmatprep.subr.mxu0 0.0
    %6577 = vmatpush1.msra.mxu0 0.0
    %6578 = vmatprep.subr.mxu0 0.0
    %6579 = vmatpush1.msra.mxu0 0.0
    %6580 = vmatprep.subr.mxu0 0.0
    %6581 = vmatpush1.msra.mxu0 0.0
    %6582 = vmatprep.subr.mxu0 0.0
    %6583 = vmatpush1.msra.mxu0 0.0
    %6584 = vmatprep.subr.mxu0 0.0
    %6585 = vmatpush1.msra.mxu0 0.0
    %6586 = vmatprep.subr.mxu0 0.0
    %6587 = vmatpush1.msra.mxu0 0.0
    %6588 = vmatprep.subr.mxu0 0.0
    %6589 = vmatpush1.msra.mxu0 0.0
    %6590 = vmatprep.subr.mxu0 0.0
    %6591 = vmatpush1.msra.mxu0 0.0
    %6592 = vmatprep.subr.mxu0 0.0
    %6593 = vmatpush1.msra.mxu0 0.0
    %6594 = vmatprep.subr.mxu0 0.0
    %6595 = vmatpush1.msra.mxu0 0.0
    %6596 = vmatprep.subr.mxu0 0.0
    %6597 = vmatpush1.msra.mxu0 0.0
    %6598 = vmatprep.subr.mxu0 0.0
    %6599 = vmatpush1.msra.mxu0 0.0
    %6600 = vmatprep.subr.mxu0 0.0
    %6601 = vmatpush1.msra.mxu0 0.0
    %6602 = vmatprep.subr.mxu0 0.0
    %6603 = vmatpush1.msra.mxu0 0.0
    %6604 = vmatprep.subr.mxu0 0.0
    %6605 = vmatpush1.msra.mxu0 0.0
    %6606 = vmatprep.subr.mxu0 0.0
    %6607 = vmatpush1.msra.mxu0 0.0
    %6608 = vmatprep.subr.mxu0 0.0
    %6609 = vmatpush1.msra.mxu0 0.0
    %6610 = vmatprep.subr.mxu0 0.0
    %6611 = vmatpush1.msra.mxu0 0.0
    %6612 = vmatprep.subr.mxu0 0.0
    %6613 = vmatpush1.msra.mxu0 0.0
    %6614 = vmatprep.subr.mxu0 0.0
    %6615 = vmatpush1.msra.mxu0 0.0
    %6616 = vmatprep.subr.mxu0 0.0
    %6617 = vmatpush1.msra.mxu0 0.0
    %6618 = vmatprep.subr.mxu0 0.0
    %6619 = vmatpush1.msra.mxu0 0.0
    %6620 = vmatprep.subr.mxu0 0.0
    %6621 = vmatpush1.msra.mxu0 0.0
    %6622 = vmatprep.subr.mxu0 0.0
    %6623 = vmatpush1.msra.mxu0 0.0
    %6624 = vmatprep.mubr.f32.mxu0 0.0
    %6625 = vmatmul.mubr.f32.gmra.mrb[0].mxu0 %v6555
    %v6626 = vpop.f32.mrb[0].mxu0
    %v6627 = vadd.f32 0.0, %v6626
    %v6628 = vpop.f32.mrb[0].mxu0
    %6629 = vmatprep.mubr.f32.mxu0 0.0
    %6630 = vmatmul.mubr.f32.gmra.mrb[0].mxu0 %v6558
    %v6631 = vpop.f32.mrb[0].mxu0
    %v6632 = vadd.f32 0.0, %v6631
    %v6633 = vpop.f32.mrb[0].mxu0
    %6634 = vdwg.mxu0
    %v6636 = vsel %vm877, %v6466, 0
    %v6639 = vsel %vm877, %v6471, 0
    %6641 = vmatprep.subr.mxu0 0.0
    %6642 = vmatpush1.msra.mxu0 %v5408
    %6643 = vmatprep.subr.mxu0 0.0
    %6644 = vmatpush1.msra.mxu0 %v5409
    %6645 = vmatprep.subr.mxu0 0.0
    %6646 = vmatpush1.msra.mxu0 %v5410
    %6647 = vmatprep.subr.mxu0 0.0
    %6648 = vmatpush1.msra.mxu0 %v5411
    %6649 = vmatprep.subr.mxu0 0.0
    %6650 = vmatpush1.msra.mxu0 0.0
    %6651 = vmatprep.subr.mxu0 0.0
    %6652 = vmatpush1.msra.mxu0 0.0
    %6653 = vmatprep.subr.mxu0 0.0
    %6654 = vmatpush1.msra.mxu0 0.0
    %6655 = vmatprep.subr.mxu0 0.0
    %6656 = vmatpush1.msra.mxu0 0.0
    %6657 = vmatprep.subr.mxu0 0.0
    %6658 = vmatpush1.msra.mxu0 0.0
    %6659 = vmatprep.subr.mxu0 0.0
    %6660 = vmatpush1.msra.mxu0 0.0
    %6661 = vmatprep.subr.mxu0 0.0
    %6662 = vmatpush1.msra.mxu0 0.0
    %6663 = vmatprep.subr.mxu0 0.0
    %6664 = vmatpush1.msra.mxu0 0.0
    %6665 = vmatprep.subr.mxu0 0.0
    %6666 = vmatpush1.msra.mxu0 0.0
    %6667 = vmatprep.subr.mxu0 0.0
    %6668 = vmatpush1.msra.mxu0 0.0
    %6669 = vmatprep.subr.mxu0 0.0
    %6670 = vmatpush1.msra.mxu0 0.0
    %6671 = vmatprep.subr.mxu0 0.0
    %6672 = vmatpush1.msra.mxu0 0.0
    %6673 = vmatprep.subr.mxu0 0.0
    %6674 = vmatpush1.msra.mxu0 0.0
    %6675 = vmatprep.subr.mxu0 0.0
    %6676 = vmatpush1.msra.mxu0 0.0
    %6677 = vmatprep.subr.mxu0 0.0
    %6678 = vmatpush1.msra.mxu0 0.0
    %6679 = vmatprep.subr.mxu0 0.0
    %6680 = vmatpush1.msra.mxu0 0.0
    %6681 = vmatprep.subr.mxu0 0.0
    %6682 = vmatpush1.msra.mxu0 0.0
    %6683 = vmatprep.subr.mxu0 0.0
    %6684 = vmatpush1.msra.mxu0 0.0
    %6685 = vmatprep.subr.mxu0 0.0
    %6686 = vmatpush1.msra.mxu0 0.0
    %6687 = vmatprep.subr.mxu0 0.0
    %6688 = vmatpush1.msra.mxu0 0.0
    %6689 = vmatprep.subr.mxu0 0.0
    %6690 = vmatpush1.msra.mxu0 0.0
    %6691 = vmatprep.subr.mxu0 0.0
    %6692 = vmatpush1.msra.mxu0 0.0
    %6693 = vmatprep.subr.mxu0 0.0
    %6694 = vmatpush1.msra.mxu0 0.0
    %6695 = vmatprep.subr.mxu0 0.0
    %6696 = vmatpush1.msra.mxu0 0.0
    %6697 = vmatprep.subr.mxu0 0.0
    %6698 = vmatpush1.msra.mxu0 0.0
    %6699 = vmatprep.subr.mxu0 0.0
    %6700 = vmatpush1.msra.mxu0 0.0
    %6701 = vmatprep.subr.mxu0 0.0
    %6702 = vmatpush1.msra.mxu0 0.0
    %6703 = vmatprep.subr.mxu0 0.0
    %6704 = vmatpush1.msra.mxu0 0.0
    %6705 = vmatprep.mubr.f32.mxu0 0.0
    %6706 = vmatmul.mubr.f32.gmra.mrb[0].mxu0 %v6636
    %v6707 = vpop.f32.mrb[0].mxu0
    %v6708 = vadd.f32 %v6627, %v6707
    %v6709 = vpop.f32.mrb[0].mxu0
    %6710 = vmatprep.mubr.f32.mxu0 0.0
    %6711 = vmatmul.mubr.f32.gmra.mrb[0].mxu0 %v6639
    %v6712 = vpop.f32.mrb[0].mxu0
    %v6713 = vadd.f32 %v6632, %v6712
    %v6714 = vpop.f32.mrb[0].mxu0
    %6715 = vdwg.mxu0
    %v6717 = vsel %vm877, %v6486, 0
    %v6720 = vsel %vm877, %v6491, 0
    %6722 = vmatprep.subr.mxu0 0.0
    %6723 = vmatpush1.msra.mxu0 %v5416
    %6724 = vmatprep.subr.mxu0 0.0
    %6725 = vmatpush1.msra.mxu0 %v5417
    %6726 = vmatprep.subr.mxu0 0.0
    %6727 = vmatpush1.msra.mxu0 %v5418
    %6728 = vmatprep.subr.mxu0 0.0
    %6729 = vmatpush1.msra.mxu0 %v5419
    %6730 = vmatprep.subr.mxu0 0.0
    %6731 = vmatpush1.msra.mxu0 0.0
    %6732 = vmatprep.subr.mxu0 0.0
    %6733 = vmatpush1.msra.mxu0 0.0
    %6734 = vmatprep.subr.mxu0 0.0
    %6735 = vmatpush1.msra.mxu0 0.0
    %6736 = vmatprep.subr.mxu0 0.0
    %6737 = vmatpush1.msra.mxu0 0.0
    %6738 = vmatprep.subr.mxu0 0.0
    %6739 = vmatpush1.msra.mxu0 0.0
    %6740 = vmatprep.subr.mxu0 0.0
    %6741 = vmatpush1.msra.mxu0 0.0
    %6742 = vmatprep.subr.mxu0 0.0
    %6743 = vmatpush1.msra.mxu0 0.0
    %6744 = vmatprep.subr.mxu0 0.0
    %6745 = vmatpush1.msra.mxu0 0.0
    %6746 = vmatprep.subr.mxu0 0.0
    %6747 = vmatpush1.msra.mxu0 0.0
    %6748 = vmatprep.subr.mxu0 0.0
    %6749 = vmatpush1.msra.mxu0 0.0
    %6750 = vmatprep.subr.mxu0 0.0
    %6751 = vmatpush1.msra.mxu0 0.0
    %6752 = vmatprep.subr.mxu0 0.0
    %6753 = vmatpush1.msra.mxu0 0.0
    %6754 = vmatprep.subr.mxu0 0.0
    %6755 = vmatpush1.msra.mxu0 0.0
    %6756 = vmatprep.subr.mxu0 0.0
    %6757 = vmatpush1.msra.mxu0 0.0
    %6758 = vmatprep.subr.mxu0 0.0
    %6759 = vmatpush1.msra.mxu0 0.0
    %6760 = vmatprep.subr.mxu0 0.0
    %6761 = vmatpush1.msra.mxu0 0.0
    %6762 = vmatprep.subr.mxu0 0.0
    %6763 = vmatpush1.msra.mxu0 0.0
    %6764 = vmatprep.subr.mxu0 0.0
    %6765 = vmatpush1.msra.mxu0 0.0
    %6766 = vmatprep.subr.mxu0 0.0
    %6767 = vmatpush1.msra.mxu0 0.0
    %6768 = vmatprep.subr.mxu0 0.0
    %6769 = vmatpush1.msra.mxu0 0.0
    %6770 = vmatprep.subr.mxu0 0.0
    %6771 = vmatpush1.msra.mxu0 0.0
    %6772 = vmatprep.subr.mxu0 0.0
    %6773 = vmatpush1.msra.mxu0 0.0
    %6774 = vmatprep.subr.mxu0 0.0
    %6775 = vmatpush1.msra.mxu0 0.0
    %6776 = vmatprep.subr.mxu0 0.0
    %6777 = vmatpush1.msra.mxu0 0.0
    %6778 = vmatprep.subr.mxu0 0.0
    %6779 = vmatpush1.msra.mxu0 0.0
    %6780 = vmatprep.subr.mxu0 0.0
    %6781 = vmatpush1.msra.mxu0 0.0
    %6782 = vmatprep.subr.mxu0 0.0
    %6783 = vmatpush1.msra.mxu0 0.0
    %6784 = vmatprep.subr.mxu0 0.0
    %6785 = vmatpush1.msra.mxu0 0.0
    %6786 = vmatprep.mubr.f32.mxu0 0.0
    %6787 = vmatmul.mubr.f32.gmra.mrb[0].mxu0 %v6717
    %v6788 = vpop.f32.mrb[0].mxu0
    %v6789 = vadd.f32 0.0, %v6788
    %v6790 = vpop.f32.mrb[0].mxu0
    %6791 = vmatprep.mubr.f32.mxu0 0.0
    %6792 = vmatmul.mubr.f32.gmra.mrb[0].mxu0 %v6720
    %v6793 = vpop.f32.mrb[0].mxu0
    %v6794 = vadd.f32 0.0, %v6793
    %v6795 = vpop.f32.mrb[0].mxu0
    %6796 = vdwg.mxu0
    %v6797 = vadd.f32 %v6708, %v6789
    %v6798 = vadd.f32 %v6713, %v6794
    %v6800 = vsel %vm877, %v6496, 0
    %v6803 = vsel %vm877, %v6501, 0
    %6805 = vmatprep.subr.mxu0 0.0
    %6806 = vmatpush1.msra.mxu0 %v5420
    %6807 = vmatprep.subr.mxu0 0.0
    %6808 = vmatpush1.msra.mxu0 %v5421
    %6809 = vmatprep.subr.mxu0 0.0
    %6810 = vmatpush1.msra.mxu0 %v5422
    %6811 = vmatprep.subr.mxu0 0.0
    %6812 = vmatpush1.msra.mxu0 %v5423
    %6813 = vmatprep.subr.mxu0 0.0
    %6814 = vmatpush1.msra.mxu0 0.0
    %6815 = vmatprep.subr.mxu0 0.0
    %6816 = vmatpush1.msra.mxu0 0.0
    %6817 = vmatprep.subr.mxu0 0.0
    %6818 = vmatpush1.msra.mxu0 0.0
    %6819 = vmatprep.subr.mxu0 0.0
    %6820 = vmatpush1.msra.mxu0 0.0
    %6821 = vmatprep.subr.mxu0 0.0
    %6822 = vmatpush1.msra.mxu0 0.0
    %6823 = vmatprep.subr.mxu0 0.0
    %6824 = vmatpush1.msra.mxu0 0.0
    %6825 = vmatprep.subr.mxu0 0.0
    %6826 = vmatpush1.msra.mxu0 0.0
    %6827 = vmatprep.subr.mxu0 0.0
    %6828 = vmatpush1.msra.mxu0 0.0
    %6829 = vmatprep.subr.mxu0 0.0
    %6830 = vmatpush1.msra.mxu0 0.0
    %6831 = vmatprep.subr.mxu0 0.0
    %6832 = vmatpush1.msra.mxu0 0.0
    %6833 = vmatprep.subr.mxu0 0.0
    %6834 = vmatpush1.msra.mxu0 0.0
    %6835 = vmatprep.subr.mxu0 0.0
    %6836 = vmatpush1.msra.mxu0 0.0
    %6837 = vmatprep.subr.mxu0 0.0
    %6838 = vmatpush1.msra.mxu0 0.0
    %6839 = vmatprep.subr.mxu0 0.0
    %6840 = vmatpush1.msra.mxu0 0.0
    %6841 = vmatprep.subr.mxu0 0.0
    %6842 = vmatpush1.msra.mxu0 0.0
    %6843 = vmatprep.subr.mxu0 0.0
    %6844 = vmatpush1.msra.mxu0 0.0
    %6845 = vmatprep.subr.mxu0 0.0
    %6846 = vmatpush1.msra.mxu0 0.0
    %6847 = vmatprep.subr.mxu0 0.0
    %6848 = vmatpush1.msra.mxu0 0.0
    %6849 = vmatprep.subr.mxu0 0.0
    %6850 = vmatpush1.msra.mxu0 0.0
    %6851 = vmatprep.subr.mxu0 0.0
    %6852 = vmatpush1.msra.mxu0 0.0
    %6853 = vmatprep.subr.mxu0 0.0
    %6854 = vmatpush1.msra.mxu0 0.0
    %6855 = vmatprep.subr.mxu0 0.0
    %6856 = vmatpush1.msra.mxu0 0.0
    %6857 = vmatprep.subr.mxu0 0.0
    %6858 = vmatpush1.msra.mxu0 0.0
    %6859 = vmatprep.subr.mxu0 0.0
    %6860 = vmatpush1.msra.mxu0 0.0
    %6861 = vmatprep.subr.mxu0 0.0
    %6862 = vmatpush1.msra.mxu0 0.0
    %6863 = vmatprep.subr.mxu0 0.0
    %6864 = vmatpush1.msra.mxu0 0.0
    %6865 = vmatprep.subr.mxu0 0.0
    %6866 = vmatpush1.msra.mxu0 0.0
    %6867 = vmatprep.subr.mxu0 0.0
    %6868 = vmatpush1.msra.mxu0 0.0
    %6869 = vmatprep.mubr.f32.mxu0 0.0
    %6870 = vmatmul.mubr.f32.gmra.mrb[0].mxu0 %v6800
    %v6871 = vpop.f32.mrb[0].mxu0
    %v6872 = vadd.f32 0.0, %v6871
    %v6873 = vpop.f32.mrb[0].mxu0
    %6874 = vmatprep.mubr.f32.mxu0 0.0
    %6875 = vmatmul.mubr.f32.gmra.mrb[0].mxu0 %v6803
    %v6876 = vpop.f32.mrb[0].mxu0
    %v6877 = vadd.f32 0.0, %v6876
    %v6878 = vpop.f32.mrb[0].mxu0
    %6879 = vdwg.mxu0
    %v6880 = vadd.f32 %v6797, %v6872
    %v6881 = vadd.f32 %v6798, %v6877
    %v6883 = vsel %vm877, %v6506, 0
    %v6886 = vsel %vm877, %v6511, 0
    %6888 = vmatprep.subr.mxu0 0.0
    %6889 = vmatpush1.msra.mxu0 %v5424
    %6890 = vmatprep.subr.mxu0 0.0
    %6891 = vmatpush1.msra.mxu0 %v5425
    %6892 = vmatprep.subr.mxu0 0.0
    %6893 = vmatpush1.msra.mxu0 %v5426
    %6894 = vmatprep.subr.mxu0 0.0
    %6895 = vmatpush1.msra.mxu0 %v5427
    %6896 = vmatprep.subr.mxu0 0.0
    %6897 = vmatpush1.msra.mxu0 0.0
    %6898 = vmatprep.subr.mxu0 0.0
    %6899 = vmatpush1.msra.mxu0 0.0
    %6900 = vmatprep.subr.mxu0 0.0
    %6901 = vmatpush1.msra.mxu0 0.0
    %6902 = vmatprep.subr.mxu0 0.0
    %6903 = vmatpush1.msra.mxu0 0.0
    %6904 = vmatprep.subr.mxu0 0.0
    %6905 = vmatpush1.msra.mxu0 0.0
    %6906 = vmatprep.subr.mxu0 0.0
    %6907 = vmatpush1.msra.mxu0 0.0
    %6908 = vmatprep.subr.mxu0 0.0
    %6909 = vmatpush1.msra.mxu0 0.0
    %6910 = vmatprep.subr.mxu0 0.0
    %6911 = vmatpush1.msra.mxu0 0.0
    %6912 = vmatprep.subr.mxu0 0.0
    %6913 = vmatpush1.msra.mxu0 0.0
    %6914 = vmatprep.subr.mxu0 0.0
    %6915 = vmatpush1.msra.mxu0 0.0
    %6916 = vmatprep.subr.mxu0 0.0
    %6917 = vmatpush1.msra.mxu0 0.0
    %6918 = vmatprep.subr.mxu0 0.0
    %6919 = vmatpush1.msra.mxu0 0.0
    %6920 = vmatprep.subr.mxu0 0.0
    %6921 = vmatpush1.msra.mxu0 0.0
    %6922 = vmatprep.subr.mxu0 0.0
    %6923 = vmatpush1.msra.mxu0 0.0
    %6924 = vmatprep.subr.mxu0 0.0
    %6925 = vmatpush1.msra.mxu0 0.0
    %6926 = vmatprep.subr.mxu0 0.0
    %6927 = vmatpush1.msra.mxu0 0.0
    %6928 = vmatprep.subr.mxu0 0.0
    %6929 = vmatpush1.msra.mxu0 0.0
    %6930 = vmatprep.subr.mxu0 0.0
    %6931 = vmatpush1.msra.mxu0 0.0
    %6932 = vmatprep.subr.mxu0 0.0
    %6933 = vmatpush1.msra.mxu0 0.0
    %6934 = vmatprep.subr.mxu0 0.0
    %6935 = vmatpush1.msra.mxu0 0.0
    %6936 = vmatprep.subr.mxu0 0.0
    %6937 = vmatpush1.msra.mxu0 0.0
    %6938 = vmatprep.subr.mxu0 0.0
    %6939 = vmatpush1.msra.mxu0 0.0
    %6940 = vmatprep.subr.mxu0 0.0
    %6941 = vmatpush1.msra.mxu0 0.0
    %6942 = vmatprep.subr.mxu0 0.0
    %6943 = vmatpush1.msra.mxu0 0.0
    %6944 = vmatprep.subr.mxu0 0.0
    %6945 = vmatpush1.msra.mxu0 0.0
    %6946 = vmatprep.subr.mxu0 0.0
    %6947 = vmatpush1.msra.mxu0 0.0
    %6948 = vmatprep.subr.mxu0 0.0
    %6949 = vmatpush1.msra.mxu0 0.0
    %6950 = vmatprep.subr.mxu0 0.0
    %6951 = vmatpush1.msra.mxu0 0.0
    %6952 = vmatprep.mubr.f32.mxu0 0.0
    %6953 = vmatmul.mubr.f32.gmra.mrb[0].mxu0 %v6883
    %v6954 = vpop.f32.mrb[0].mxu0
    %v6955 = vadd.f32 0.0, %v6954
    %v6956 = vpop.f32.mrb[0].mxu0
    %6957 = vmatprep.mubr.f32.mxu0 0.0
    %6958 = vmatmul.mubr.f32.gmra.mrb[0].mxu0 %v6886
    %v6959 = vpop.f32.mrb[0].mxu0
    %v6960 = vadd.f32 0.0, %v6959
    %v6961 = vpop.f32.mrb[0].mxu0
    %6962 = vdwg.mxu0
    %v6963 = vadd.f32 %v6880, %v6955
    %v6964 = vadd.f32 %v6881, %v6960
    %v6966 = vsel %vm877, %v6516, 0
    %v6969 = vsel %vm877, %v6521, 0
    %6971 = vmatprep.subr.mxu0 0.0
    %6972 = vmatpush1.msra.mxu0 %v5428
    %6973 = vmatprep.subr.mxu0 0.0
    %6974 = vmatpush1.msra.mxu0 %v5429
    %6975 = vmatprep.subr.mxu0 0.0
    %6976 = vmatpush1.msra.mxu0 %v5430
    %6977 = vmatprep.subr.mxu0 0.0
    %6978 = vmatpush1.msra.mxu0 %v5431
    %6979 = vmatprep.subr.mxu0 0.0
    %6980 = vmatpush1.msra.mxu0 0.0
    %6981 = vmatprep.subr.mxu0 0.0
    %6982 = vmatpush1.msra.mxu0 0.0
    %6983 = vmatprep.subr.mxu0 0.0
    %6984 = vmatpush1.msra.mxu0 0.0
    %6985 = vmatprep.subr.mxu0 0.0
    %6986 = vmatpush1.msra.mxu0 0.0
    %6987 = vmatprep.subr.mxu0 0.0
    %6988 = vmatpush1.msra.mxu0 0.0
    %6989 = vmatprep.subr.mxu0 0.0
    %6990 = vmatpush1.msra.mxu0 0.0
    %6991 = vmatprep.subr.mxu0 0.0
    %6992 = vmatpush1.msra.mxu0 0.0
    %6993 = vmatprep.subr.mxu0 0.0
    %6994 = vmatpush1.msra.mxu0 0.0
    %6995 = vmatprep.subr.mxu0 0.0
    %6996 = vmatpush1.msra.mxu0 0.0
    %6997 = vmatprep.subr.mxu0 0.0
    %6998 = vmatpush1.msra.mxu0 0.0
    %6999 = vmatprep.subr.mxu0 0.0
    %7000 = vmatpush1.msra.mxu0 0.0
    %7001 = vmatprep.subr.mxu0 0.0
    %7002 = vmatpush1.msra.mxu0 0.0
    %7003 = vmatprep.subr.mxu0 0.0
    %7004 = vmatpush1.msra.mxu0 0.0
    %7005 = vmatprep.subr.mxu0 0.0
    %7006 = vmatpush1.msra.mxu0 0.0
    %7007 = vmatprep.subr.mxu0 0.0
    %7008 = vmatpush1.msra.mxu0 0.0
    %7009 = vmatprep.subr.mxu0 0.0
    %7010 = vmatpush1.msra.mxu0 0.0
    %7011 = vmatprep.subr.mxu0 0.0
    %7012 = vmatpush1.msra.mxu0 0.0
    %7013 = vmatprep.subr.mxu0 0.0
    %7014 = vmatpush1.msra.mxu0 0.0
    %7015 = vmatprep.subr.mxu0 0.0
    %7016 = vmatpush1.msra.mxu0 0.0
    %7017 = vmatprep.subr.mxu0 0.0
    %7018 = vmatpush1.msra.mxu0 0.0
    %7019 = vmatprep.subr.mxu0 0.0
    %7020 = vmatpush1.msra.mxu0 0.0
    %7021 = vmatprep.subr.mxu0 0.0
    %7022 = vmatpush1.msra.mxu0 0.0
    %7023 = vmatprep.subr.mxu0 0.0
    %7024 = vmatpush1.msra.mxu0 0.0
    %7025 = vmatprep.subr.mxu0 0.0
    %7026 = vmatpush1.msra.mxu0 0.0
    %7027 = vmatprep.subr.mxu0 0.0
    %7028 = vmatpush1.msra.mxu0 0.0
    %7029 = vmatprep.subr.mxu0 0.0
    %7030 = vmatpush1.msra.mxu0 0.0
    %7031 = vmatprep.subr.mxu0 0.0
    %7032 = vmatpush1.msra.mxu0 0.0
    %7033 = vmatprep.subr.mxu0 0.0
    %7034 = vmatpush1.msra.mxu0 0.0
    %7035 = vmatprep.mubr.f32.mxu0 0.0
    %7036 = vmatmul.mubr.f32.gmra.mrb[0].mxu0 %v6966
    %v7037 = vpop.f32.mrb[0].mxu0
    %v7038 = vadd.f32 0.0, %v7037
    %v7039 = vpop.f32.mrb[0].mxu0
    %7040 = vmatprep.mubr.f32.mxu0 0.0
    %7041 = vmatmul.mubr.f32.gmra.mrb[0].mxu0 %v6969
    %v7042 = vpop.f32.mrb[0].mxu0
    %v7043 = vadd.f32 0.0, %v7042
    %v7044 = vpop.f32.mrb[0].mxu0
    %7045 = vdwg.mxu0
    %v7046 = vadd.f32 %v6963, %v7038
    %v7047 = vadd.f32 %v6964, %v7043
    %v7049 = vsel %vm877, %v6526, 0
    %v7052 = vsel %vm877, %v6531, 0
    %7054 = vmatprep.subr.mxu0 0.0
    %7055 = vmatpush1.msra.mxu0 %v5432
    %7056 = vmatprep.subr.mxu0 0.0
    %7057 = vmatpush1.msra.mxu0 %v5433
    %7058 = vmatprep.subr.mxu0 0.0
    %7059 = vmatpush1.msra.mxu0 %v5434
    %7060 = vmatprep.subr.mxu0 0.0
    %7061 = vmatpush1.msra.mxu0 %v5435
    %7062 = vmatprep.subr.mxu0 0.0
    %7063 = vmatpush1.msra.mxu0 0.0
    %7064 = vmatprep.subr.mxu0 0.0
    %7065 = vmatpush1.msra.mxu0 0.0
    %7066 = vmatprep.subr.mxu0 0.0
    %7067 = vmatpush1.msra.mxu0 0.0
    %7068 = vmatprep.subr.mxu0 0.0
    %7069 = vmatpush1.msra.mxu0 0.0
    %7070 = vmatprep.subr.mxu0 0.0
    %7071 = vmatpush1.msra.mxu0 0.0
    %7072 = vmatprep.subr.mxu0 0.0
    %7073 = vmatpush1.msra.mxu0 0.0
    %7074 = vmatprep.subr.mxu0 0.0
    %7075 = vmatpush1.msra.mxu0 0.0
    %7076 = vmatprep.subr.mxu0 0.0
    %7077 = vmatpush1.msra.mxu0 0.0
    %7078 = vmatprep.subr.mxu0 0.0
    %7079 = vmatpush1.msra.mxu0 0.0
    %7080 = vmatprep.subr.mxu0 0.0
    %7081 = vmatpush1.msra.mxu0 0.0
    %7082 = vmatprep.subr.mxu0 0.0
    %7083 = vmatpush1.msra.mxu0 0.0
    %7084 = vmatprep.subr.mxu0 0.0
    %7085 = vmatpush1.msra.mxu0 0.0
    %7086 = vmatprep.subr.mxu0 0.0
    %7087 = vmatpush1.msra.mxu0 0.0
    %7088 = vmatprep.subr.mxu0 0.0
    %7089 = vmatpush1.msra.mxu0 0.0
    %7090 = vmatprep.subr.mxu0 0.0
    %7091 = vmatpush1.msra.mxu0 0.0
    %7092 = vmatprep.subr.mxu0 0.0
    %7093 = vmatpush1.msra.mxu0 0.0
    %7094 = vmatprep.subr.mxu0 0.0
    %7095 = vmatpush1.msra.mxu0 0.0
    %7096 = vmatprep.subr.mxu0 0.0
    %7097 = vmatpush1.msra.mxu0 0.0
    %7098 = vmatprep.subr.mxu0 0.0
    %7099 = vmatpush1.msra.mxu0 0.0
    %7100 = vmatprep.subr.mxu0 0.0
    %7101 = vmatpush1.msra.mxu0 0.0
    %7102 = vmatprep.subr.mxu0 0.0
    %7103 = vmatpush1.msra.mxu0 0.0
    %7104 = vmatprep.subr.mxu0 0.0
    %7105 = vmatpush1.msra.mxu0 0.0
    %7106 = vmatprep.subr.mxu0 0.0
    %7107 = vmatpush1.msra.mxu0 0.0
    %7108 = vmatprep.subr.mxu0 0.0
    %7109 = vmatpush1.msra.mxu0 0.0
    %7110 = vmatprep.subr.mxu0 0.0
    %7111 = vmatpush1.msra.mxu0 0.0
    %7112 = vmatprep.subr.mxu0 0.0
    %7113 = vmatpush1.msra.mxu0 0.0
    %7114 = vmatprep.subr.mxu0 0.0
    %7115 = vmatpush1.msra.mxu0 0.0
    %7116 = vmatprep.subr.mxu0 0.0
    %7117 = vmatpush1.msra.mxu0 0.0
    %7118 = vmatprep.mubr.f32.mxu0 0.0
    %7119 = vmatmul.mubr.f32.gmra.mrb[0].mxu0 %v7049
    %v7120 = vpop.f32.mrb[0].mxu0
    %v7121 = vadd.f32 0.0, %v7120
    %v7122 = vpop.f32.mrb[0].mxu0
    %7123 = vmatprep.mubr.f32.mxu0 0.0
    %7124 = vmatmul.mubr.f32.gmra.mrb[0].mxu0 %v7052
    %v7125 = vpop.f32.mrb[0].mxu0
    %v7126 = vadd.f32 0.0, %v7125
    %v7127 = vpop.f32.mrb[0].mxu0
    %7128 = vdwg.mxu0
    %v7129 = vadd.f32 %v7046, %v7121
    %v7130 = vadd.f32 %v7047, %v7126
    %v7132 = vsel %vm877, %v6536, 0
    %v7135 = vsel %vm877, %v6541, 0
    %7137 = vmatprep.subr.mxu0 0.0
    %7138 = vmatpush1.msra.mxu0 %v5436
    %7139 = vmatprep.subr.mxu0 0.0
    %7140 = vmatpush1.msra.mxu0 %v5437
    %7141 = vmatprep.subr.mxu0 0.0
    %7142 = vmatpush1.msra.mxu0 %v5438
    %7143 = vmatprep.subr.mxu0 0.0
    %7144 = vmatpush1.msra.mxu0 %v5439
    %7145 = vmatprep.subr.mxu0 0.0
    %7146 = vmatpush1.msra.mxu0 0.0
    %7147 = vmatprep.subr.mxu0 0.0
    %7148 = vmatpush1.msra.mxu0 0.0
    %7149 = vmatprep.subr.mxu0 0.0
    %7150 = vmatpush1.msra.mxu0 0.0
    %7151 = vmatprep.subr.mxu0 0.0
    %7152 = vmatpush1.msra.mxu0 0.0
    %7153 = vmatprep.subr.mxu0 0.0
    %7154 = vmatpush1.msra.mxu0 0.0
    %7155 = vmatprep.subr.mxu0 0.0
    %7156 = vmatpush1.msra.mxu0 0.0
    %7157 = vmatprep.subr.mxu0 0.0
    %7158 = vmatpush1.msra.mxu0 0.0
    %7159 = vmatprep.subr.mxu0 0.0
    %7160 = vmatpush1.msra.mxu0 0.0
    %7161 = vmatprep.subr.mxu0 0.0
    %7162 = vmatpush1.msra.mxu0 0.0
    %7163 = vmatprep.subr.mxu0 0.0
    %7164 = vmatpush1.msra.mxu0 0.0
    %7165 = vmatprep.subr.mxu0 0.0
    %7166 = vmatpush1.msra.mxu0 0.0
    %7167 = vmatprep.subr.mxu0 0.0
    %7168 = vmatpush1.msra.mxu0 0.0
    %7169 = vmatprep.subr.mxu0 0.0
    %7170 = vmatpush1.msra.mxu0 0.0
    %7171 = vmatprep.subr.mxu0 0.0
    %7172 = vmatpush1.msra.mxu0 0.0
    %7173 = vmatprep.subr.mxu0 0.0
    %7174 = vmatpush1.msra.mxu0 0.0
    %7175 = vmatprep.subr.mxu0 0.0
    %7176 = vmatpush1.msra.mxu0 0.0
    %7177 = vmatprep.subr.mxu0 0.0
    %7178 = vmatpush1.msra.mxu0 0.0
    %7179 = vmatprep.subr.mxu0 0.0
    %7180 = vmatpush1.msra.mxu0 0.0
    %7181 = vmatprep.subr.mxu0 0.0
    %7182 = vmatpush1.msra.mxu0 0.0
    %7183 = vmatprep.subr.mxu0 0.0
    %7184 = vmatpush1.msra.mxu0 0.0
    %7185 = vmatprep.subr.mxu0 0.0
    %7186 = vmatpush1.msra.mxu0 0.0
    %7187 = vmatprep.subr.mxu0 0.0
    %7188 = vmatpush1.msra.mxu0 0.0
    %7189 = vmatprep.subr.mxu0 0.0
    %7190 = vmatpush1.msra.mxu0 0.0
    %7191 = vmatprep.subr.mxu0 0.0
    %7192 = vmatpush1.msra.mxu0 0.0
    %7193 = vmatprep.subr.mxu0 0.0
    %7194 = vmatpush1.msra.mxu0 0.0
    %7195 = vmatprep.subr.mxu0 0.0
    %7196 = vmatpush1.msra.mxu0 0.0
    %7197 = vmatprep.subr.mxu0 0.0
    %7198 = vmatpush1.msra.mxu0 0.0
    %7199 = vmatprep.subr.mxu0 0.0
    %7200 = vmatpush1.msra.mxu0 0.0
    %7201 = vmatprep.mubr.f32.mxu0 0.0
    %7202 = vmatmul.mubr.f32.gmra.mrb[0].mxu0 %v7132
    %v7203 = vpop.f32.mrb[0].mxu0
    %v7204 = vadd.f32 0.0, %v7203
    %v7205 = vpop.f32.mrb[0].mxu0
    %7206 = vmatprep.mubr.f32.mxu0 0.0
    %7207 = vmatmul.mubr.f32.gmra.mrb[0].mxu0 %v7135
    %v7208 = vpop.f32.mrb[0].mxu0
    %v7209 = vadd.f32 0.0, %v7208
    %v7210 = vpop.f32.mrb[0].mxu0
    %7211 = vdwg.mxu0
    %v7212 = vadd.f32 %v7129, %v7204
    %v7213 = vadd.f32 %v7130, %v7209
    %v7215 = vsel %vm877, %v6546, 0
    %v7218 = vsel %vm877, %v6551, 0
    %7220 = vmatprep.subr.mxu0 0.0
    %7221 = vmatpush1.msra.mxu0 %v5440
    %7222 = vmatprep.subr.mxu0 0.0
    %7223 = vmatpush1.msra.mxu0 %v5441
    %7224 = vmatprep.subr.mxu0 0.0
    %7225 = vmatpush1.msra.mxu0 %v5442
    %7226 = vmatprep.subr.mxu0 0.0
    %7227 = vmatpush1.msra.mxu0 %v5443
    %7228 = vmatprep.subr.mxu0 0.0
    %7229 = vmatpush1.msra.mxu0 0.0
    %7230 = vmatprep.subr.mxu0 0.0
    %7231 = vmatpush1.msra.mxu0 0.0
    %7232 = vmatprep.subr.mxu0 0.0
    %7233 = vmatpush1.msra.mxu0 0.0
    %7234 = vmatprep.subr.mxu0 0.0
    %7235 = vmatpush1.msra.mxu0 0.0
    %7236 = vmatprep.subr.mxu0 0.0
    %7237 = vmatpush1.msra.mxu0 0.0
    %7238 = vmatprep.subr.mxu0 0.0
    %7239 = vmatpush1.msra.mxu0 0.0
    %7240 = vmatprep.subr.mxu0 0.0
    %7241 = vmatpush1.msra.mxu0 0.0
    %7242 = vmatprep.subr.mxu0 0.0
    %7243 = vmatpush1.msra.mxu0 0.0
    %7244 = vmatprep.subr.mxu0 0.0
    %7245 = vmatpush1.msra.mxu0 0.0
    %7246 = vmatprep.subr.mxu0 0.0
    %7247 = vmatpush1.msra.mxu0 0.0
    %7248 = vmatprep.subr.mxu0 0.0
    %7249 = vmatpush1.msra.mxu0 0.0
    %7250 = vmatprep.subr.mxu0 0.0
    %7251 = vmatpush1.msra.mxu0 0.0
    %7252 = vmatprep.subr.mxu0 0.0
    %7253 = vmatpush1.msra.mxu0 0.0
    %7254 = vmatprep.subr.mxu0 0.0
    %7255 = vmatpush1.msra.mxu0 0.0
    %7256 = vmatprep.subr.mxu0 0.0
    %7257 = vmatpush1.msra.mxu0 0.0
    %7258 = vmatprep.subr.mxu0 0.0
    %7259 = vmatpush1.msra.mxu0 0.0
    %7260 = vmatprep.subr.mxu0 0.0
    %7261 = vmatpush1.msra.mxu0 0.0
    %7262 = vmatprep.subr.mxu0 0.0
    %7263 = vmatpush1.msra.mxu0 0.0
    %7264 = vmatprep.subr.mxu0 0.0
    %7265 = vmatpush1.msra.mxu0 0.0
    %7266 = vmatprep.subr.mxu0 0.0
    %7267 = vmatpush1.msra.mxu0 0.0
    %7268 = vmatprep.subr.mxu0 0.0
    %7269 = vmatpush1.msra.mxu0 0.0
    %7270 = vmatprep.subr.mxu0 0.0
    %7271 = vmatpush1.msra.mxu0 0.0
    %7272 = vmatprep.subr.mxu0 0.0
    %7273 = vmatpush1.msra.mxu0 0.0
    %7274 = vmatprep.subr.mxu0 0.0
    %7275 = vmatpush1.msra.mxu0 0.0
    %7276 = vmatprep.subr.mxu0 0.0
    %7277 = vmatpush1.msra.mxu0 0.0
    %7278 = vmatprep.subr.mxu0 0.0
    %7279 = vmatpush1.msra.mxu0 0.0
    %7280 = vmatprep.subr.mxu0 0.0
    %7281 = vmatpush1.msra.mxu0 0.0
    %7282 = vmatprep.subr.mxu0 0.0
    %7283 = vmatpush1.msra.mxu0 0.0
    %7284 = vmatprep.mubr.f32.mxu0 0.0
    %7285 = vmatmul.mubr.f32.gmra.mrb[0].mxu0 %v7215
    %v7286 = vpop.f32.mrb[0].mxu0
    %v7287 = vadd.f32 0.0, %v7286
    %v7288 = vpop.f32.mrb[0].mxu0
    %7289 = vmatprep.mubr.f32.mxu0 0.0
    %7290 = vmatmul.mubr.f32.gmra.mrb[0].mxu0 %v7218
    %v7291 = vpop.f32.mrb[0].mxu0
    %v7292 = vadd.f32 0.0, %v7291
    %v7293 = vpop.f32.mrb[0].mxu0
    %7294 = vdwg.mxu0
    %v7295 = vadd.f32 %v7212, %v7287
    %v7296 = vadd.f32 %v7213, %v7292
    %7297 = vst.msk [vmem:[#allocation3 + $0x10] sm:$0xff] %vm877, %v7295
    %7298 = vst.msk [vmem:[#allocation3 + $0x18] sm:$0xff] %vm877, %v7296
    %v7299 = vld [vmem:[#allocation3] sm:$0xff]
    %v7300 = vld [vmem:[#allocation3 + $0x8] sm:$0xff]
    %v7301 = vld [vmem:[#allocation3 + $0x10] sm:$0xff]
    %v7302 = vld [vmem:[#allocation3 + $0x18] sm:$0xff]
    %v7303 = vld [vmem:[#allocation13] sm:$0x1]
    %v7304 = vld [vmem:[#allocation15] sm:$0x1]
    %v7305 = vsel %vm877, %v7299, 0.0
    %v7306 = vsel %vm877, %v7300, 0.0
    %v7307 = vadd.f32 %v7305, %v7306
    %v7308 = vsel %vm877, %v7301, 0.0
    %v7309 = vadd.f32 %v7307, %v7308
    %v7310 = vsel %vm877, %v7302, 0.0
    %v7311 = vadd.f32 %v7309, %v7310
    %v7312 = vrot.slane %v7311, 4
    %v7313 = vadd.f32 %v7311, %v7312
    %v7314 = vrot.slane %v7313, 2
    %v7315 = vadd.f32 %v7313, %v7314
    %v7316 = vrot.slane %v7315, 1
    %v7317 = vadd.f32 %v7315, %v7316
    %v7318 = vrcp.pop 32.0
    %v7319 = vmul.f32 %v7317, %v7318
    %v7320 = vsub.f32 %v7299, %v7319
    %v7321 = vsub.f32 %v7300, %v7319
    %v7322 = vsub.f32 %v7301, %v7319
    %v7323 = vsub.f32 %v7302, %v7319
    %v7324 = vmul.f32 %v7320, %v7320
    %v7325 = vmul.f32 %v7321, %v7321
    %v7326 = vmul.f32 %v7322, %v7322
    %v7327 = vmul.f32 %v7323, %v7323
    %v7328 = vsel %vm877, %v7324, 0.0
    %v7329 = vsel %vm877, %v7325, 0.0
    %v7330 = vadd.f32 %v7328, %v7329
    %v7331 = vsel %vm877, %v7326, 0.0
    %v7332 = vadd.f32 %v7330, %v7331
    %v7333 = vsel %vm877, %v7327, 0.0
    %v7334 = vadd.f32 %v7332, %v7333
    %v7335 = vrot.slane %v7334, 4
    %v7336 = vadd.f32 %v7334, %v7335
    %v7337 = vrot.slane %v7336, 2
    %v7338 = vadd.f32 %v7336, %v7337
    %v7339 = vrot.slane %v7338, 1
    %v7340 = vadd.f32 %v7338, %v7339
    %v7341 = vmul.f32 %v7340, %v7318
    %v7342 = vadd.f32 %v7341, 1e-05
    %v7343 = vrsqrt.pop %v7342
    %v7344 = vmul.f32 %v7320, %v7343
    %v7345 = vmul.f32 %v7321, %v7343
    %v7346 = vmul.f32 %v7322, %v7343
    %v7347 = vmul.f32 %v7323, %v7343
    %v7349 = vlaneseq
    %v7350 = vshrl.u32 %v7349, 7
    %v7351 = vsub.s32 0, %v7350
    %v7352 = vrot.slane %v7303, %v7351
    %v7354 = vmul.f32 %v7344, %v7352
    %v7355 = vmul.f32 %v7345, %v7352
    %v7356 = vmul.f32 %v7346, %v7352
    %v7357 = vmul.f32 %v7347, %v7352
    %v7359 = vlaneseq
    %v7360 = vshrl.u32 %v7359, 7
    %v7361 = vsub.s32 0, %v7360
    %v7362 = vrot.slane %v7304, %v7361
    %v7364 = vadd.f32 %v7354, %v7362
    %v7365 = vadd.f32 %v7355, %v7362
    %v7366 = vadd.f32 %v7356, %v7362
    %v7367 = vadd.f32 %v7357, %v7362
    %vm7368 = vcmp.gt.f32.partialorder %v7364, 0.0
    %vm7369 = vcmp.gt.f32.partialorder %v7365, 0.0
    %vm7370 = vcmp.gt.f32.partialorder %v7366, 0.0
    %vm7371 = vcmp.gt.f32.partialorder %v7367, 0.0
    %v7372 = vmul.f32 %v7364, 0.01
    %v7373 = vmul.f32 %v7365, 0.01
    %v7374 = vmul.f32 %v7366, 0.01
    %v7375 = vmul.f32 %v7367, 0.01
    %v7376 = vsel %vm7368, %v7364, %v7372
    %v7377 = vsel %vm7369, %v7365, %v7373
    %v7378 = vsel %vm7370, %v7366, %v7374
    %v7379 = vsel %vm7371, %v7367, %v7375
    %v7380 = vld [vmem:[%s12] sm:$0xff]
    %v7381 = vld [vmem:[%s12 + $0x8] sm:$0xff]
    %v7382 = vld [vmem:[%s12 + $0x10] sm:$0xff]
    %v7383 = vld [vmem:[%s12 + $0x18] sm:$0xff]
    %v7384 = vld [vmem:[%s12 + $0x20] sm:$0xff]
    %v7385 = vld [vmem:[%s12 + $0x28] sm:$0xff]
    %v7386 = vld [vmem:[%s12 + $0x30] sm:$0xff]
    %v7387 = vld [vmem:[%s12 + $0x38] sm:$0xff]
    %v7388 = vld [vmem:[%s12 + $0x40] sm:$0xff]
    %v7389 = vld [vmem:[%s12 + $0x48] sm:$0xff]
    %v7390 = vld [vmem:[%s12 + $0x50] sm:$0xff]
    %v7391 = vld [vmem:[%s12 + $0x58] sm:$0xff]
    %v7392 = vld [vmem:[%s12 + $0x60] sm:$0xff]
    %v7393 = vld [vmem:[%s12 + $0x68] sm:$0xff]
    %v7394 = vld [vmem:[%s12 + $0x70] sm:$0xff]
    %v7395 = vld [vmem:[%s12 + $0x78] sm:$0xff]
    %v7397 = vsel %vm877, %v7376, 0
    %v7400 = vsel %vm877, %v7377, 0
    %v7403 = vsel %vm877, %v7378, 0
    %v7406 = vsel %vm877, %v7379, 0
    %7408 = vmatprep.subr.mxu0 %v7381
    %7409 = vmatpush1.msra.mxu0 %v7380
    %7410 = vmatprep.subr.mxu0 %v7385
    %7411 = vmatpush1.msra.mxu0 %v7384
    %7412 = vmatprep.subr.mxu0 %v7389
    %7413 = vmatpush1.msra.mxu0 %v7388
    %7414 = vmatprep.subr.mxu0 %v7393
    %7415 = vmatpush1.msra.mxu0 %v7392
    %7416 = vmatprep.subr.mxu0 0.0
    %7417 = vmatpush1.msra.mxu0 0.0
    %7418 = vmatprep.subr.mxu0 0.0
    %7419 = vmatpush1.msra.mxu0 0.0
    %7420 = vmatprep.subr.mxu0 0.0
    %7421 = vmatpush1.msra.mxu0 0.0
    %7422 = vmatprep.subr.mxu0 0.0
    %7423 = vmatpush1.msra.mxu0 0.0
    %7424 = vmatprep.subr.mxu0 0.0
    %7425 = vmatpush1.msra.mxu0 0.0
    %7426 = vmatprep.subr.mxu0 0.0
    %7427 = vmatpush1.msra.mxu0 0.0
    %7428 = vmatprep.subr.mxu0 0.0
    %7429 = vmatpush1.msra.mxu0 0.0
    %7430 = vmatprep.subr.mxu0 0.0
    %7431 = vmatpush1.msra.mxu0 0.0
    %7432 = vmatprep.subr.mxu0 0.0
    %7433 = vmatpush1.msra.mxu0 0.0
    %7434 = vmatprep.subr.mxu0 0.0
    %7435 = vmatpush1.msra.mxu0 0.0
    %7436 = vmatprep.subr.mxu0 0.0
    %7437 = vmatpush1.msra.mxu0 0.0
    %7438 = vmatprep.subr.mxu0 0.0
    %7439 = vmatpush1.msra.mxu0 0.0
    %7440 = vmatprep.subr.mxu0 0.0
    %7441 = vmatpush1.msra.mxu0 0.0
    %7442 = vmatprep.subr.mxu0 0.0
    %7443 = vmatpush1.msra.mxu0 0.0
    %7444 = vmatprep.subr.mxu0 0.0
    %7445 = vmatpush1.msra.mxu0 0.0
    %7446 = vmatprep.subr.mxu0 0.0
    %7447 = vmatpush1.msra.mxu0 0.0
    %7448 = vmatprep.subr.mxu0 0.0
    %7449 = vmatpush1.msra.mxu0 0.0
    %7450 = vmatprep.subr.mxu0 0.0
    %7451 = vmatpush1.msra.mxu0 0.0
    %7452 = vmatprep.subr.mxu0 0.0
    %7453 = vmatpush1.msra.mxu0 0.0
    %7454 = vmatprep.subr.mxu0 0.0
    %7455 = vmatpush1.msra.mxu0 0.0
    %7456 = vmatprep.subr.mxu0 0.0
    %7457 = vmatpush1.msra.mxu0 0.0
    %7458 = vmatprep.subr.mxu0 0.0
    %7459 = vmatpush1.msra.mxu0 0.0
    %7460 = vmatprep.subr.mxu0 0.0
    %7461 = vmatpush1.msra.mxu0 0.0
    %7462 = vmatprep.subr.mxu0 0.0
    %7463 = vmatpush1.msra.mxu0 0.0
    %7464 = vmatprep.subr.mxu0 0.0
    %7465 = vmatpush1.msra.mxu0 0.0
    %7466 = vmatprep.subr.mxu0 0.0
    %7467 = vmatpush1.msra.mxu0 0.0
    %7468 = vmatprep.subr.mxu0 0.0
    %7469 = vmatpush1.msra.mxu0 0.0
    %7470 = vmatprep.subr.mxu0 0.0
    %7471 = vmatpush1.msra.mxu0 0.0
    %7472 = vmatprep.mubr.f32.mxu0 0.0
    %7473 = vmatmul.mubr.f32.gmra.mrb[0].mxu0 %v7397
    %v7474 = vpop.f32.mrb[0].mxu0
    %v7475 = vadd.f32 0.0, %v7474
    %v7476 = vpop.f32.mrb[0].mxu0
    %v7477 = vadd.f32 0.0, %v7476
    %7478 = vmatprep.mubr.f32.mxu0 0.0
    %7479 = vmatmul.mubr.f32.gmra.mrb[0].mxu0 %v7400
    %v7480 = vpop.f32.mrb[0].mxu0
    %v7481 = vadd.f32 0.0, %v7480
    %v7482 = vpop.f32.mrb[0].mxu0
    %v7483 = vadd.f32 0.0, %v7482
    %7484 = vmatprep.mubr.f32.mxu0 0.0
    %7485 = vmatmul.mubr.f32.gmra.mrb[0].mxu0 %v7403
    %v7486 = vpop.f32.mrb[0].mxu0
    %v7487 = vadd.f32 0.0, %v7486
    %v7488 = vpop.f32.mrb[0].mxu0
    %v7489 = vadd.f32 0.0, %v7488
    %7490 = vmatprep.mubr.f32.mxu0 0.0
    %7491 = vmatmul.mubr.f32.gmra.mrb[0].mxu0 %v7406
    %v7492 = vpop.f32.mrb[0].mxu0
    %v7493 = vadd.f32 0.0, %v7492
    %v7494 = vpop.f32.mrb[0].mxu0
    %v7495 = vadd.f32 0.0, %v7494
    %7496 = vdwg.mxu0
    %7497 = vmatprep.subr.mxu0 %v7383
    %7498 = vmatpush1.msra.mxu0 %v7382
    %7499 = vmatprep.subr.mxu0 %v7387
    %7500 = vmatpush1.msra.mxu0 %v7386
    %7501 = vmatprep.subr.mxu0 %v7391
    %7502 = vmatpush1.msra.mxu0 %v7390
    %7503 = vmatprep.subr.mxu0 %v7395
    %7504 = vmatpush1.msra.mxu0 %v7394
    %7505 = vmatprep.subr.mxu0 0.0
    %7506 = vmatpush1.msra.mxu0 0.0
    %7507 = vmatprep.subr.mxu0 0.0
    %7508 = vmatpush1.msra.mxu0 0.0
    %7509 = vmatprep.subr.mxu0 0.0
    %7510 = vmatpush1.msra.mxu0 0.0
    %7511 = vmatprep.subr.mxu0 0.0
    %7512 = vmatpush1.msra.mxu0 0.0
    %7513 = vmatprep.subr.mxu0 0.0
    %7514 = vmatpush1.msra.mxu0 0.0
    %7515 = vmatprep.subr.mxu0 0.0
    %7516 = vmatpush1.msra.mxu0 0.0
    %7517 = vmatprep.subr.mxu0 0.0
    %7518 = vmatpush1.msra.mxu0 0.0
    %7519 = vmatprep.subr.mxu0 0.0
    %7520 = vmatpush1.msra.mxu0 0.0
    %7521 = vmatprep.subr.mxu0 0.0
    %7522 = vmatpush1.msra.mxu0 0.0
    %7523 = vmatprep.subr.mxu0 0.0
    %7524 = vmatpush1.msra.mxu0 0.0
    %7525 = vmatprep.subr.mxu0 0.0
    %7526 = vmatpush1.msra.mxu0 0.0
    %7527 = vmatprep.subr.mxu0 0.0
    %7528 = vmatpush1.msra.mxu0 0.0
    %7529 = vmatprep.subr.mxu0 0.0
    %7530 = vmatpush1.msra.mxu0 0.0
    %7531 = vmatprep.subr.mxu0 0.0
    %7532 = vmatpush1.msra.mxu0 0.0
    %7533 = vmatprep.subr.mxu0 0.0
    %7534 = vmatpush1.msra.mxu0 0.0
    %7535 = vmatprep.subr.mxu0 0.0
    %7536 = vmatpush1.msra.mxu0 0.0
    %7537 = vmatprep.subr.mxu0 0.0
    %7538 = vmatpush1.msra.mxu0 0.0
    %7539 = vmatprep.subr.mxu0 0.0
    %7540 = vmatpush1.msra.mxu0 0.0
    %7541 = vmatprep.subr.mxu0 0.0
    %7542 = vmatpush1.msra.mxu0 0.0
    %7543 = vmatprep.subr.mxu0 0.0
    %7544 = vmatpush1.msra.mxu0 0.0
    %7545 = vmatprep.subr.mxu0 0.0
    %7546 = vmatpush1.msra.mxu0 0.0
    %7547 = vmatprep.subr.mxu0 0.0
    %7548 = vmatpush1.msra.mxu0 0.0
    %7549 = vmatprep.subr.mxu0 0.0
    %7550 = vmatpush1.msra.mxu0 0.0
    %7551 = vmatprep.subr.mxu0 0.0
    %7552 = vmatpush1.msra.mxu0 0.0
    %7553 = vmatprep.subr.mxu0 0.0
    %7554 = vmatpush1.msra.mxu0 0.0
    %7555 = vmatprep.subr.mxu0 0.0
    %7556 = vmatpush1.msra.mxu0 0.0
    %7557 = vmatprep.subr.mxu0 0.0
    %7558 = vmatpush1.msra.mxu0 0.0
    %7559 = vmatprep.subr.mxu0 0.0
    %7560 = vmatpush1.msra.mxu0 0.0
    %7561 = vmatprep.mubr.f32.mxu0 0.0
    %7562 = vmatmul.mubr.f32.gmra.mrb[0].mxu0 %v7397
    %v7563 = vpop.f32.mrb[0].mxu0
    %v7564 = vadd.f32 0.0, %v7563
    %v7565 = vpop.f32.mrb[0].mxu0
    %v7566 = vadd.f32 0.0, %v7565
    %7567 = vmatprep.mubr.f32.mxu0 0.0
    %7568 = vmatmul.mubr.f32.gmra.mrb[0].mxu0 %v7400
    %v7569 = vpop.f32.mrb[0].mxu0
    %v7570 = vadd.f32 0.0, %v7569
    %v7571 = vpop.f32.mrb[0].mxu0
    %v7572 = vadd.f32 0.0, %v7571
    %7573 = vmatprep.mubr.f32.mxu0 0.0
    %7574 = vmatmul.mubr.f32.gmra.mrb[0].mxu0 %v7403
    %v7575 = vpop.f32.mrb[0].mxu0
    %v7576 = vadd.f32 0.0, %v7575
    %v7577 = vpop.f32.mrb[0].mxu0
    %v7578 = vadd.f32 0.0, %v7577
    %7579 = vmatprep.mubr.f32.mxu0 0.0
    %7580 = vmatmul.mubr.f32.gmra.mrb[0].mxu0 %v7406
    %v7581 = vpop.f32.mrb[0].mxu0
    %v7582 = vadd.f32 0.0, %v7581
    %v7583 = vpop.f32.mrb[0].mxu0
    %v7584 = vadd.f32 0.0, %v7583
    %7585 = vdwg.mxu0
    %v7586 = vld [vmem:[%s13] sm:$0xff]
    %v7587 = vld [vmem:[%s13 + $0x8] sm:$0xff]
    %v7588 = vld [vmem:[%s13 + $0x10] sm:$0xff]
    %v7589 = vld [vmem:[%s13 + $0x18] sm:$0xff]
    %v7590 = vld [vmem:[%s13 + $0x20] sm:$0xff]
    %v7591 = vld [vmem:[%s13 + $0x28] sm:$0xff]
    %v7592 = vld [vmem:[%s13 + $0x30] sm:$0xff]
    %v7593 = vld [vmem:[%s13 + $0x38] sm:$0xff]
    %v7594 = vld [vmem:[%s13 + $0x40] sm:$0xff]
    %v7595 = vld [vmem:[%s13 + $0x48] sm:$0xff]
    %v7596 = vld [vmem:[%s13 + $0x50] sm:$0xff]
    %v7597 = vld [vmem:[%s13 + $0x58] sm:$0xff]
    %v7598 = vld [vmem:[%s13 + $0x60] sm:$0xff]
    %v7599 = vld [vmem:[%s13 + $0x68] sm:$0xff]
    %v7600 = vld [vmem:[%s13 + $0x70] sm:$0xff]
    %v7601 = vld [vmem:[%s13 + $0x78] sm:$0xff]
    %v7602 = vmul.f32 %v7475, %v7586
    %v7603 = vmul.f32 %v7477, %v7587
    %v7604 = vmul.f32 %v7564, %v7588
    %v7605 = vmul.f32 %v7566, %v7589
    %v7606 = vmul.f32 %v7481, %v7590
    %v7607 = vmul.f32 %v7483, %v7591
    %v7608 = vmul.f32 %v7570, %v7592
    %v7609 = vmul.f32 %v7572, %v7593
    %v7610 = vmul.f32 %v7487, %v7594
    %v7611 = vmul.f32 %v7489, %v7595
    %v7612 = vmul.f32 %v7576, %v7596
    %v7613 = vmul.f32 %v7578, %v7597
    %v7614 = vmul.f32 %v7493, %v7598
    %v7615 = vmul.f32 %v7495, %v7599
    %v7616 = vmul.f32 %v7582, %v7600
    %v7617 = vmul.f32 %v7584, %v7601
    %v7618 = vld [vmem:[%s15] sm:$0xff]
    %v7619 = vld [vmem:[%s15 + $0x8] sm:$0xff]
    %v7620 = vld [vmem:[%s15 + $0x10] sm:$0xff]
    %v7621 = vld [vmem:[%s15 + $0x18] sm:$0xff]
    %v7622 = vld [vmem:[%s15 + $0x20] sm:$0xff]
    %v7623 = vld [vmem:[%s15 + $0x28] sm:$0xff]
    %v7624 = vld [vmem:[%s15 + $0x30] sm:$0xff]
    %v7625 = vld [vmem:[%s15 + $0x38] sm:$0xff]
    %v7626 = vld [vmem:[%s15 + $0x40] sm:$0xff]
    %v7627 = vld [vmem:[%s15 + $0x48] sm:$0xff]
    %v7628 = vld [vmem:[%s15 + $0x50] sm:$0xff]
    %v7629 = vld [vmem:[%s15 + $0x58] sm:$0xff]
    %v7630 = vld [vmem:[%s15 + $0x60] sm:$0xff]
    %v7631 = vld [vmem:[%s15 + $0x68] sm:$0xff]
    %v7632 = vld [vmem:[%s15 + $0x70] sm:$0xff]
    %v7633 = vld [vmem:[%s15 + $0x78] sm:$0xff]
    %v7634 = vld [vmem:[%s15 + $0x80] sm:$0xff]
    %v7635 = vld [vmem:[%s15 + $0x88] sm:$0xff]
    %v7636 = vld [vmem:[%s15 + $0x90] sm:$0xff]
    %v7637 = vld [vmem:[%s15 + $0x98] sm:$0xff]
    %v7638 = vld [vmem:[%s15 + $0xa0] sm:$0xff]
    %v7639 = vld [vmem:[%s15 + $0xa8] sm:$0xff]
    %v7640 = vld [vmem:[%s15 + $0xb0] sm:$0xff]
    %v7641 = vld [vmem:[%s15 + $0xb8] sm:$0xff]
    %v7642 = vld [vmem:[%s15 + $0xc0] sm:$0xff]
    %v7643 = vld [vmem:[%s15 + $0xc8] sm:$0xff]
    %v7644 = vld [vmem:[%s15 + $0xd0] sm:$0xff]
    %v7645 = vld [vmem:[%s15 + $0xd8] sm:$0xff]
    %v7646 = vld [vmem:[%s15 + $0xe0] sm:$0xff]
    %v7647 = vld [vmem:[%s15 + $0xe8] sm:$0xff]
    %v7648 = vld [vmem:[%s15 + $0xf0] sm:$0xff]
    %v7649 = vld [vmem:[%s15 + $0xf8] sm:$0xff]
    %v7650 = vld [vmem:[%s15 + $0x100] sm:$0xff]
    %v7651 = vld [vmem:[%s15 + $0x108] sm:$0xff]
    %v7652 = vld [vmem:[%s15 + $0x110] sm:$0xff]
    %v7653 = vld [vmem:[%s15 + $0x118] sm:$0xff]
    %v7654 = vld [vmem:[%s15 + $0x120] sm:$0xff]
    %v7655 = vld [vmem:[%s15 + $0x128] sm:$0xff]
    %v7656 = vld [vmem:[%s15 + $0x130] sm:$0xff]
    %v7657 = vld [vmem:[%s15 + $0x138] sm:$0xff]
    %v7658 = vld [vmem:[%s15 + $0x140] sm:$0xff]
    %v7659 = vld [vmem:[%s15 + $0x148] sm:$0xff]
    %v7660 = vld [vmem:[%s15 + $0x150] sm:$0xff]
    %v7661 = vld [vmem:[%s15 + $0x158] sm:$0xff]
    %v7662 = vld [vmem:[%s15 + $0x160] sm:$0xff]
    %v7663 = vld [vmem:[%s15 + $0x168] sm:$0xff]
    %v7664 = vld [vmem:[%s15 + $0x170] sm:$0xff]
    %v7665 = vld [vmem:[%s15 + $0x178] sm:$0xff]
    %v7666 = vld [vmem:[%s15 + $0x180] sm:$0xff]
    %v7667 = vld [vmem:[%s15 + $0x188] sm:$0xff]
    %v7668 = vld [vmem:[%s15 + $0x190] sm:$0xff]
    %v7669 = vld [vmem:[%s15 + $0x198] sm:$0xff]
    %v7670 = vld [vmem:[%s15 + $0x1a0] sm:$0xff]
    %v7671 = vld [vmem:[%s15 + $0x1a8] sm:$0xff]
    %v7672 = vld [vmem:[%s15 + $0x1b0] sm:$0xff]
    %v7673 = vld [vmem:[%s15 + $0x1b8] sm:$0xff]
    %v7674 = vld [vmem:[%s15 + $0x1c0] sm:$0xff]
    %v7675 = vld [vmem:[%s15 + $0x1c8] sm:$0xff]
    %v7676 = vld [vmem:[%s15 + $0x1d0] sm:$0xff]
    %v7677 = vld [vmem:[%s15 + $0x1d8] sm:$0xff]
    %v7678 = vld [vmem:[%s15 + $0x1e0] sm:$0xff]
    %v7679 = vld [vmem:[%s15 + $0x1e8] sm:$0xff]
    %v7680 = vld [vmem:[%s15 + $0x1f0] sm:$0xff]
    %v7681 = vld [vmem:[%s15 + $0x1f8] sm:$0xff]
    %v7682 = vld [vmem:[%s15 + $0x200] sm:$0xff]
    %v7683 = vld [vmem:[%s15 + $0x208] sm:$0xff]
    %v7684 = vld [vmem:[%s15 + $0x210] sm:$0xff]
    %v7685 = vld [vmem:[%s15 + $0x218] sm:$0xff]
    %v7686 = vld [vmem:[%s15 + $0x220] sm:$0xff]
    %v7687 = vld [vmem:[%s15 + $0x228] sm:$0xff]
    %v7688 = vld [vmem:[%s15 + $0x230] sm:$0xff]
    %v7689 = vld [vmem:[%s15 + $0x238] sm:$0xff]
    %v7690 = vld [vmem:[%s15 + $0x240] sm:$0xff]
    %v7691 = vld [vmem:[%s15 + $0x248] sm:$0xff]
    %v7692 = vld [vmem:[%s15 + $0x250] sm:$0xff]
    %v7693 = vld [vmem:[%s15 + $0x258] sm:$0xff]
    %v7694 = vld [vmem:[%s15 + $0x260] sm:$0xff]
    %v7695 = vld [vmem:[%s15 + $0x268] sm:$0xff]
    %v7696 = vld [vmem:[%s15 + $0x270] sm:$0xff]
    %v7697 = vld [vmem:[%s15 + $0x278] sm:$0xff]
    %v7698 = vld [vmem:[%s15 + $0x280] sm:$0xff]
    %v7699 = vld [vmem:[%s15 + $0x288] sm:$0xff]
    %v7700 = vld [vmem:[%s15 + $0x290] sm:$0xff]
    %v7701 = vld [vmem:[%s15 + $0x298] sm:$0xff]
    %v7702 = vld [vmem:[%s15 + $0x2a0] sm:$0xff]
    %v7703 = vld [vmem:[%s15 + $0x2a8] sm:$0xff]
    %v7704 = vld [vmem:[%s15 + $0x2b0] sm:$0xff]
    %v7705 = vld [vmem:[%s15 + $0x2b8] sm:$0xff]
    %v7706 = vld [vmem:[%s15 + $0x2c0] sm:$0xff]
    %v7707 = vld [vmem:[%s15 + $0x2c8] sm:$0xff]
    %v7708 = vld [vmem:[%s15 + $0x2d0] sm:$0xff]
    %v7709 = vld [vmem:[%s15 + $0x2d8] sm:$0xff]
    %v7710 = vld [vmem:[%s15 + $0x2e0] sm:$0xff]
    %v7711 = vld [vmem:[%s15 + $0x2e8] sm:$0xff]
    %v7712 = vld [vmem:[%s15 + $0x2f0] sm:$0xff]
    %v7713 = vld [vmem:[%s15 + $0x2f8] sm:$0xff]
    %v7714 = vld [vmem:[%s15 + $0x300] sm:$0xff]
    %v7715 = vld [vmem:[%s15 + $0x308] sm:$0xff]
    %v7716 = vld [vmem:[%s15 + $0x310] sm:$0xff]
    %v7717 = vld [vmem:[%s15 + $0x318] sm:$0xff]
    %v7718 = vld [vmem:[%s15 + $0x320] sm:$0xff]
    %v7719 = vld [vmem:[%s15 + $0x328] sm:$0xff]
    %v7720 = vld [vmem:[%s15 + $0x330] sm:$0xff]
    %v7721 = vld [vmem:[%s15 + $0x338] sm:$0xff]
    %v7722 = vld [vmem:[%s15 + $0x340] sm:$0xff]
    %v7723 = vld [vmem:[%s15 + $0x348] sm:$0xff]
    %v7724 = vld [vmem:[%s15 + $0x350] sm:$0xff]
    %v7725 = vld [vmem:[%s15 + $0x358] sm:$0xff]
    %v7726 = vld [vmem:[%s15 + $0x360] sm:$0xff]
    %v7727 = vld [vmem:[%s15 + $0x368] sm:$0xff]
    %v7728 = vld [vmem:[%s15 + $0x370] sm:$0xff]
    %v7729 = vld [vmem:[%s15 + $0x378] sm:$0xff]
    %v7730 = vld [vmem:[%s15 + $0x380] sm:$0xff]
    %v7731 = vld [vmem:[%s15 + $0x388] sm:$0xff]
    %v7732 = vld [vmem:[%s15 + $0x390] sm:$0xff]
    %v7733 = vld [vmem:[%s15 + $0x398] sm:$0xff]
    %v7734 = vld [vmem:[%s15 + $0x3a0] sm:$0xff]
    %v7735 = vld [vmem:[%s15 + $0x3a8] sm:$0xff]
    %v7736 = vld [vmem:[%s15 + $0x3b0] sm:$0xff]
    %v7737 = vld [vmem:[%s15 + $0x3b8] sm:$0xff]
    %v7738 = vld [vmem:[%s15 + $0x3c0] sm:$0xff]
    %v7739 = vld [vmem:[%s15 + $0x3c8] sm:$0xff]
    %v7740 = vld [vmem:[%s15 + $0x3d0] sm:$0xff]
    %v7741 = vld [vmem:[%s15 + $0x3d8] sm:$0xff]
    %v7742 = vld [vmem:[%s15 + $0x3e0] sm:$0xff]
    %v7743 = vld [vmem:[%s15 + $0x3e8] sm:$0xff]
    %v7744 = vld [vmem:[%s15 + $0x3f0] sm:$0xff]
    %v7745 = vld [vmem:[%s15 + $0x3f8] sm:$0xff]
    %7746 = vmatprep.subr.mxu0 %v7619
    %7747 = vmatpush1.msra.mxu0 %v7618
    %7748 = vmatprep.subr.mxu0 %v7621
    %7749 = vmatpush1.msra.mxu0 %v7620
    %7750 = vmatprep.subr.mxu0 %v7623
    %7751 = vmatpush1.msra.mxu0 %v7622
    %7752 = vmatprep.subr.mxu0 %v7625
    %7753 = vmatpush1.msra.mxu0 %v7624
    %7754 = vmatprep.subr.mxu0 %v7627
    %7755 = vmatpush1.msra.mxu0 %v7626
    %7756 = vmatprep.subr.mxu0 %v7629
    %7757 = vmatpush1.msra.mxu0 %v7628
    %7758 = vmatprep.subr.mxu0 %v7631
    %7759 = vmatpush1.msra.mxu0 %v7630
    %7760 = vmatprep.subr.mxu0 %v7633
    %7761 = vmatpush1.msra.mxu0 %v7632
    %7762 = vmatprep.subr.mxu0 %v7635
    %7763 = vmatpush1.msra.mxu0 %v7634
    %7764 = vmatprep.subr.mxu0 %v7637
    %7765 = vmatpush1.msra.mxu0 %v7636
    %7766 = vmatprep.subr.mxu0 %v7639
    %7767 = vmatpush1.msra.mxu0 %v7638
    %7768 = vmatprep.subr.mxu0 %v7641
    %7769 = vmatpush1.msra.mxu0 %v7640
    %7770 = vmatprep.subr.mxu0 %v7643
    %7771 = vmatpush1.msra.mxu0 %v7642
    %7772 = vmatprep.subr.mxu0 %v7645
    %7773 = vmatpush1.msra.mxu0 %v7644
    %7774 = vmatprep.subr.mxu0 %v7647
    %7775 = vmatpush1.msra.mxu0 %v7646
    %7776 = vmatprep.subr.mxu0 %v7649
    %7777 = vmatpush1.msra.mxu0 %v7648
    %7778 = vmatprep.subr.mxu0 %v7651
    %7779 = vmatpush1.msra.mxu0 %v7650
    %7780 = vmatprep.subr.mxu0 %v7653
    %7781 = vmatpush1.msra.mxu0 %v7652
    %7782 = vmatprep.subr.mxu0 %v7655
    %7783 = vmatpush1.msra.mxu0 %v7654
    %7784 = vmatprep.subr.mxu0 %v7657
    %7785 = vmatpush1.msra.mxu0 %v7656
    %7786 = vmatprep.subr.mxu0 %v7659
    %7787 = vmatpush1.msra.mxu0 %v7658
    %7788 = vmatprep.subr.mxu0 %v7661
    %7789 = vmatpush1.msra.mxu0 %v7660
    %7790 = vmatprep.subr.mxu0 %v7663
    %7791 = vmatpush1.msra.mxu0 %v7662
    %7792 = vmatprep.subr.mxu0 %v7665
    %7793 = vmatpush1.msra.mxu0 %v7664
    %7794 = vmatprep.subr.mxu0 %v7667
    %7795 = vmatpush1.msra.mxu0 %v7666
    %7796 = vmatprep.subr.mxu0 %v7669
    %7797 = vmatpush1.msra.mxu0 %v7668
    %7798 = vmatprep.subr.mxu0 %v7671
    %7799 = vmatpush1.msra.mxu0 %v7670
    %7800 = vmatprep.subr.mxu0 %v7673
    %7801 = vmatpush1.msra.mxu0 %v7672
    %7802 = vmatprep.subr.mxu0 %v7675
    %7803 = vmatpush1.msra.mxu0 %v7674
    %7804 = vmatprep.subr.mxu0 %v7677
    %7805 = vmatpush1.msra.mxu0 %v7676
    %7806 = vmatprep.subr.mxu0 %v7679
    %7807 = vmatpush1.msra.mxu0 %v7678
    %7808 = vmatprep.subr.mxu0 %v7681
    %7809 = vmatpush1.msra.mxu0 %v7680
    %7810 = vmatprep.mubr.f32.mxu0 %v7603
    %7811 = vmatmul.mubr.f32.gmra.mrb[0].mxu0 %v7602
    %v7812 = vpop.f32.mrb[0].mxu0
    %v7813 = vadd.f32 0.0, %v7812
    %v7814 = vpop.f32.mrb[0].mxu0
    %v7815 = vadd.f32 0.0, %v7814
    %7816 = vmatprep.mubr.f32.mxu0 %v7607
    %7817 = vmatmul.mubr.f32.gmra.mrb[0].mxu0 %v7606
    %v7818 = vpop.f32.mrb[0].mxu0
    %v7819 = vadd.f32 0.0, %v7818
    %v7820 = vpop.f32.mrb[0].mxu0
    %v7821 = vadd.f32 0.0, %v7820
    %7822 = vmatprep.mubr.f32.mxu0 %v7611
    %7823 = vmatmul.mubr.f32.gmra.mrb[0].mxu0 %v7610
    %v7824 = vpop.f32.mrb[0].mxu0
    %v7825 = vadd.f32 0.0, %v7824
    %v7826 = vpop.f32.mrb[0].mxu0
    %v7827 = vadd.f32 0.0, %v7826
    %7828 = vmatprep.mubr.f32.mxu0 %v7615
    %7829 = vmatmul.mubr.f32.gmra.mrb[0].mxu0 %v7614
    %v7830 = vpop.f32.mrb[0].mxu0
    %v7831 = vadd.f32 0.0, %v7830
    %v7832 = vpop.f32.mrb[0].mxu0
    %v7833 = vadd.f32 0.0, %v7832
    %7834 = vdwg.mxu0
    %7835 = vmatprep.subr.mxu0 %v7683
    %7836 = vmatpush1.msra.mxu0 %v7682
    %7837 = vmatprep.subr.mxu0 %v7685
    %7838 = vmatpush1.msra.mxu0 %v7684
    %7839 = vmatprep.subr.mxu0 %v7687
    %7840 = vmatpush1.msra.mxu0 %v7686
    %7841 = vmatprep.subr.mxu0 %v7689
    %7842 = vmatpush1.msra.mxu0 %v7688
    %7843 = vmatprep.subr.mxu0 %v7691
    %7844 = vmatpush1.msra.mxu0 %v7690
    %7845 = vmatprep.subr.mxu0 %v7693
    %7846 = vmatpush1.msra.mxu0 %v7692
    %7847 = vmatprep.subr.mxu0 %v7695
    %7848 = vmatpush1.msra.mxu0 %v7694
    %7849 = vmatprep.subr.mxu0 %v7697
    %7850 = vmatpush1.msra.mxu0 %v7696
    %7851 = vmatprep.subr.mxu0 %v7699
    %7852 = vmatpush1.msra.mxu0 %v7698
    %7853 = vmatprep.subr.mxu0 %v7701
    %7854 = vmatpush1.msra.mxu0 %v7700
    %7855 = vmatprep.subr.mxu0 %v7703
    %7856 = vmatpush1.msra.mxu0 %v7702
    %7857 = vmatprep.subr.mxu0 %v7705
    %7858 = vmatpush1.msra.mxu0 %v7704
    %7859 = vmatprep.subr.mxu0 %v7707
    %7860 = vmatpush1.msra.mxu0 %v7706
    %7861 = vmatprep.subr.mxu0 %v7709
    %7862 = vmatpush1.msra.mxu0 %v7708
    %7863 = vmatprep.subr.mxu0 %v7711
    %7864 = vmatpush1.msra.mxu0 %v7710
    %7865 = vmatprep.subr.mxu0 %v7713
    %7866 = vmatpush1.msra.mxu0 %v7712
    %7867 = vmatprep.subr.mxu0 %v7715
    %7868 = vmatpush1.msra.mxu0 %v7714
    %7869 = vmatprep.subr.mxu0 %v7717
    %7870 = vmatpush1.msra.mxu0 %v7716
    %7871 = vmatprep.subr.mxu0 %v7719
    %7872 = vmatpush1.msra.mxu0 %v7718
    %7873 = vmatprep.subr.mxu0 %v7721
    %7874 = vmatpush1.msra.mxu0 %v7720
    %7875 = vmatprep.subr.mxu0 %v7723
    %7876 = vmatpush1.msra.mxu0 %v7722
    %7877 = vmatprep.subr.mxu0 %v7725
    %7878 = vmatpush1.msra.mxu0 %v7724
    %7879 = vmatprep.subr.mxu0 %v7727
    %7880 = vmatpush1.msra.mxu0 %v7726
    %7881 = vmatprep.subr.mxu0 %v7729
    %7882 = vmatpush1.msra.mxu0 %v7728
    %7883 = vmatprep.subr.mxu0 %v7731
    %7884 = vmatpush1.msra.mxu0 %v7730
    %7885 = vmatprep.subr.mxu0 %v7733
    %7886 = vmatpush1.msra.mxu0 %v7732
    %7887 = vmatprep.subr.mxu0 %v7735
    %7888 = vmatpush1.msra.mxu0 %v7734
    %7889 = vmatprep.subr.mxu0 %v7737
    %7890 = vmatpush1.msra.mxu0 %v7736
    %7891 = vmatprep.subr.mxu0 %v7739
    %7892 = vmatpush1.msra.mxu0 %v7738
    %7893 = vmatprep.subr.mxu0 %v7741
    %7894 = vmatpush1.msra.mxu0 %v7740
    %7895 = vmatprep.subr.mxu0 %v7743
    %7896 = vmatpush1.msra.mxu0 %v7742
    %7897 = vmatprep.subr.mxu0 %v7745
    %7898 = vmatpush1.msra.mxu0 %v7744
    %7899 = vmatprep.mubr.f32.mxu0 %v7605
    %7900 = vmatmul.mubr.f32.gmra.mrb[0].mxu0 %v7604
    %v7901 = vpop.f32.mrb[0].mxu0
    %v7902 = vadd.f32 %v7813, %v7901
    %v7903 = vpop.f32.mrb[0].mxu0
    %v7904 = vadd.f32 %v7815, %v7903
    %7905 = vmatprep.mubr.f32.mxu0 %v7609
    %7906 = vmatmul.mubr.f32.gmra.mrb[0].mxu0 %v7608
    %v7907 = vpop.f32.mrb[0].mxu0
    %v7908 = vadd.f32 %v7819, %v7907
    %v7909 = vpop.f32.mrb[0].mxu0
    %v7910 = vadd.f32 %v7821, %v7909
    %7911 = vmatprep.mubr.f32.mxu0 %v7613
    %7912 = vmatmul.mubr.f32.gmra.mrb[0].mxu0 %v7612
    %v7913 = vpop.f32.mrb[0].mxu0
    %v7914 = vadd.f32 %v7825, %v7913
    %v7915 = vpop.f32.mrb[0].mxu0
    %v7916 = vadd.f32 %v7827, %v7915
    %7917 = vmatprep.mubr.f32.mxu0 %v7617
    %7918 = vmatmul.mubr.f32.gmra.mrb[0].mxu0 %v7616
    %v7919 = vpop.f32.mrb[0].mxu0
    %v7920 = vadd.f32 %v7831, %v7919
    %v7921 = vpop.f32.mrb[0].mxu0
    %v7922 = vadd.f32 %v7833, %v7921
    %7923 = vdwg.mxu0
    %v7924 = vld [vmem:[#allocation16] sm:$0x3]
    %v7926 = vsel %vm877, %v7924, 0
    %7928 = vmatprep.subr.mxu0 %v7904
    %7929 = vmatpush1.msra.mxu0 %v7902
    %7930 = vmatprep.subr.mxu0 %v7910
    %7931 = vmatpush1.msra.mxu0 %v7908
    %7932 = vmatprep.subr.mxu0 %v7916
    %7933 = vmatpush1.msra.mxu0 %v7914
    %7934 = vmatprep.subr.mxu0 %v7922
    %7935 = vmatpush1.msra.mxu0 %v7920
    %7936 = vmatprep.subr.mxu0 0.0
    %7937 = vmatpush1.msra.mxu0 0.0
    %7938 = vmatprep.subr.mxu0 0.0
    %7939 = vmatpush1.msra.mxu0 0.0
    %7940 = vmatprep.subr.mxu0 0.0
    %7941 = vmatpush1.msra.mxu0 0.0
    %7942 = vmatprep.subr.mxu0 0.0
    %7943 = vmatpush1.msra.mxu0 0.0
    %7944 = vmatprep.subr.mxu0 0.0
    %7945 = vmatpush1.msra.mxu0 0.0
    %7946 = vmatprep.subr.mxu0 0.0
    %7947 = vmatpush1.msra.mxu0 0.0
    %7948 = vmatprep.subr.mxu0 0.0
    %7949 = vmatpush1.msra.mxu0 0.0
    %7950 = vmatprep.subr.mxu0 0.0
    %7951 = vmatpush1.msra.mxu0 0.0
    %7952 = vmatprep.subr.mxu0 0.0
    %7953 = vmatpush1.msra.mxu0 0.0
    %7954 = vmatprep.subr.mxu0 0.0
    %7955 = vmatpush1.msra.mxu0 0.0
    %7956 = vmatprep.subr.mxu0 0.0
    %7957 = vmatpush1.msra.mxu0 0.0
    %7958 = vmatprep.subr.mxu0 0.0
    %7959 = vmatpush1.msra.mxu0 0.0
    %7960 = vmatprep.subr.mxu0 0.0
    %7961 = vmatpush1.msra.mxu0 0.0
    %7962 = vmatprep.subr.mxu0 0.0
    %7963 = vmatpush1.msra.mxu0 0.0
    %7964 = vmatprep.subr.mxu0 0.0
    %7965 = vmatpush1.msra.mxu0 0.0
    %7966 = vmatprep.subr.mxu0 0.0
    %7967 = vmatpush1.msra.mxu0 0.0
    %7968 = vmatprep.subr.mxu0 0.0
    %7969 = vmatpush1.msra.mxu0 0.0
    %7970 = vmatprep.subr.mxu0 0.0
    %7971 = vmatpush1.msra.mxu0 0.0
    %7972 = vmatprep.subr.mxu0 0.0
    %7973 = vmatpush1.msra.mxu0 0.0
    %7974 = vmatprep.subr.mxu0 0.0
    %7975 = vmatpush1.msra.mxu0 0.0
    %7976 = vmatprep.subr.mxu0 0.0
    %7977 = vmatpush1.msra.mxu0 0.0
    %7978 = vmatprep.subr.mxu0 0.0
    %7979 = vmatpush1.msra.mxu0 0.0
    %7980 = vmatprep.subr.mxu0 0.0
    %7981 = vmatpush1.msra.mxu0 0.0
    %7982 = vmatprep.subr.mxu0 0.0
    %7983 = vmatpush1.msra.mxu0 0.0
    %7984 = vmatprep.subr.mxu0 0.0
    %7985 = vmatpush1.msra.mxu0 0.0
    %7986 = vmatprep.subr.mxu0 0.0
    %7987 = vmatpush1.msra.mxu0 0.0
    %7988 = vmatprep.subr.mxu0 0.0
    %7989 = vmatpush1.msra.mxu0 0.0
    %7990 = vmatprep.subr.mxu0 0.0
    %7991 = vmatpush1.msra.mxu0 0.0
    %7992 = vmatprep.mubr.f32.mxu0 0.0
    %7993 = vmatmul.mubr.f32.gmra.mrb[0].mxu0 %v7926
    %v7994 = vpop.f32.mrb[0].mxu0
    %v7995 = vadd.f32 0.0, %v7994
    %v7996 = vpop.f32.mrb[0].mxu0
    %v7997 = vadd.f32 0.0, %v7996
    %7998 = vdwg.mxu0
    %v7999 = vld [vmem:[#allocation18] sm:$0x3]
    %v8000 = vld [vmem:[#allocation19] sm:$0x3]
    %vm8001 = vcmask 1041408
    %v8002 = vsel %vm8001, %v7995, 0.0
    %v8003 = vrot.slane %v8002, 4
    %v8004 = vadd.f32 %v8002, %v8003
    %v8005 = vrot.slane %v8004, 2
    %v8006 = vadd.f32 %v8004, %v8005
    %v8007 = vrot.slane %v8006, 1
    %v8008 = vadd.f32 %v8006, %v8007
    %v8009 = vsel %vm8001, %v7997, 0.0
    %v8010 = vrot.slane %v8009, 4
    %v8011 = vadd.f32 %v8009, %v8010
    %v8012 = vrot.slane %v8011, 2
    %v8013 = vadd.f32 %v8011, %v8012
    %v8014 = vrot.slane %v8013, 1
    %v8015 = vadd.f32 %v8013, %v8014
    %v8016 = vrcp.pop 2.0
    %v8017 = vmul.f32 %v8008, %v8016
    %v8018 = vmul.f32 %v8015, %v8016
    %v8019 = vsub.f32 %v7995, %v8017
    %v8020 = vsub.f32 %v7997, %v8018
    %v8021 = vmul.f32 %v8019, %v8019
    %v8022 = vmul.f32 %v8020, %v8020
    %v8023 = vsel %vm8001, %v8021, 0.0
    %v8024 = vrot.slane %v8023, 4
    %v8025 = vadd.f32 %v8023, %v8024
    %v8026 = vrot.slane %v8025, 2
    %v8027 = vadd.f32 %v8025, %v8026
    %v8028 = vrot.slane %v8027, 1
    %v8029 = vadd.f32 %v8027, %v8028
    %v8030 = vsel %vm8001, %v8022, 0.0
    %v8031 = vrot.slane %v8030, 4
    %v8032 = vadd.f32 %v8030, %v8031
    %v8033 = vrot.slane %v8032, 2
    %v8034 = vadd.f32 %v8032, %v8033
    %v8035 = vrot.slane %v8034, 1
    %v8036 = vadd.f32 %v8034, %v8035
    %v8037 = vmul.f32 %v8029, %v8016
    %v8038 = vmul.f32 %v8036, %v8016
    %v8039 = vadd.f32 %v8037, 1e-05
    %v8040 = vadd.f32 %v8038, 1e-05
    %v8041 = vrsqrt.pop %v8039
    %v8042 = vrsqrt.pop %v8040
    %v8043 = vmul.f32 %v8019, %v8041
    %v8044 = vmul.f32 %v8020, %v8042
    %v8046 = vlaneseq
    %v8047 = vshrl.u32 %v8046, 7
    %v8048 = vsub.s32 0, %v8047
    %v8049 = vrot.slane %v7999, %v8048
    %v8050 = vlaneseq
    %v8051 = vshrl.u32 %v8050, 7
    %v8052 = vsub.s32 1, %v8051
    %v8053 = vrot.slane %v7999, %v8052
    %v8056 = vmul.f32 %v8043, %v8049
    %v8057 = vmul.f32 %v8044, %v8053
    %v8059 = vlaneseq
    %v8060 = vshrl.u32 %v8059, 7
    %v8061 = vsub.s32 0, %v8060
    %v8062 = vrot.slane %v8000, %v8061
    %v8063 = vlaneseq
    %v8064 = vshrl.u32 %v8063, 7
    %v8065 = vsub.s32 1, %v8064
    %v8066 = vrot.slane %v8000, %v8065
    %v8069 = vadd.f32 %v8056, %v8062
    %v8070 = vadd.f32 %v8057, %v8066
    %vm8071 = vcmp.gt.f32.partialorder %v8069, 0.0
    %vm8072 = vcmp.gt.f32.partialorder %v8070, 0.0
    %v8073 = vmul.f32 %v8069, 0.01
    %v8074 = vmul.f32 %v8070, 0.01
    %v8075 = vsel %vm8071, %v8069, %v8073
    %v8076 = vsel %vm8072, %v8070, %v8074
    %v8077 = vld [vmem:[%s18] sm:$0xff]
    %v8078 = vld [vmem:[%s18 + $0x8] sm:$0xff]
    %v8079 = vld [vmem:[%s18 + $0x10] sm:$0xff]
    %v8080 = vld [vmem:[%s18 + $0x18] sm:$0xff]
    %v8081 = vld [vmem:[%s18 + $0x20] sm:$0xff]
    %v8082 = vld [vmem:[%s18 + $0x28] sm:$0xff]
    %v8083 = vld [vmem:[%s18 + $0x30] sm:$0xff]
    %v8084 = vld [vmem:[%s18 + $0x38] sm:$0xff]
    %v8085 = vld [vmem:[%s18 + $0x40] sm:$0xff]
    %v8086 = vld [vmem:[%s18 + $0x48] sm:$0xff]
    %v8087 = vld [vmem:[%s18 + $0x50] sm:$0xff]
    %v8088 = vld [vmem:[%s18 + $0x58] sm:$0xff]
    %v8089 = vld [vmem:[%s18 + $0x60] sm:$0xff]
    %v8090 = vld [vmem:[%s18 + $0x68] sm:$0xff]
    %v8091 = vld [vmem:[%s18 + $0x70] sm:$0xff]
    %v8092 = vld [vmem:[%s18 + $0x78] sm:$0xff]
    %v8093 = vld [vmem:[%s18 + $0x80] sm:$0xff]
    %v8094 = vld [vmem:[%s18 + $0x88] sm:$0xff]
    %v8095 = vld [vmem:[%s18 + $0x90] sm:$0xff]
    %v8096 = vld [vmem:[%s18 + $0x98] sm:$0xff]
    %v8097 = vld [vmem:[%s18 + $0xa0] sm:$0xff]
    %v8098 = vld [vmem:[%s18 + $0xa8] sm:$0xff]
    %v8099 = vld [vmem:[%s18 + $0xb0] sm:$0xff]
    %v8100 = vld [vmem:[%s18 + $0xb8] sm:$0xff]
    %v8101 = vld [vmem:[%s18 + $0xc0] sm:$0xff]
    %v8102 = vld [vmem:[%s18 + $0xc8] sm:$0xff]
    %v8103 = vld [vmem:[%s18 + $0xd0] sm:$0xff]
    %v8104 = vld [vmem:[%s18 + $0xd8] sm:$0xff]
    %v8105 = vld [vmem:[%s18 + $0xe0] sm:$0xff]
    %v8106 = vld [vmem:[%s18 + $0xe8] sm:$0xff]
    %v8107 = vld [vmem:[%s18 + $0xf0] sm:$0xff]
    %v8108 = vld [vmem:[%s18 + $0xf8] sm:$0xff]
    %8109 = vmatprep.subr.mxu0 0.0
    %8110 = vmatpush1.msra.mxu0 %v8077
    %8111 = vmatprep.subr.mxu0 0.0
    %8112 = vmatpush1.msra.mxu0 %v8078
    %8113 = vmatprep.subr.mxu0 0.0
    %8114 = vmatpush1.msra.mxu0 %v8079
    %8115 = vmatprep.subr.mxu0 0.0
    %8116 = vmatpush1.msra.mxu0 %v8080
    %8117 = vmatprep.subr.mxu0 0.0
    %8118 = vmatpush1.msra.mxu0 %v8081
    %8119 = vmatprep.subr.mxu0 0.0
    %8120 = vmatpush1.msra.mxu0 %v8082
    %8121 = vmatprep.subr.mxu0 0.0
    %8122 = vmatpush1.msra.mxu0 %v8083
    %8123 = vmatprep.subr.mxu0 0.0
    %8124 = vmatpush1.msra.mxu0 %v8084
    %8125 = vmatprep.subr.mxu0 0.0
    %8126 = vmatpush1.msra.mxu0 %v8085
    %8127 = vmatprep.subr.mxu0 0.0
    %8128 = vmatpush1.msra.mxu0 %v8086
    %8129 = vmatprep.subr.mxu0 0.0
    %8130 = vmatpush1.msra.mxu0 %v8087
    %8131 = vmatprep.subr.mxu0 0.0
    %8132 = vmatpush1.msra.mxu0 %v8088
    %8133 = vmatprep.subr.mxu0 0.0
    %8134 = vmatpush1.msra.mxu0 %v8089
    %8135 = vmatprep.subr.mxu0 0.0
    %8136 = vmatpush1.msra.mxu0 %v8090
    %8137 = vmatprep.subr.mxu0 0.0
    %8138 = vmatpush1.msra.mxu0 %v8091
    %8139 = vmatprep.subr.mxu0 0.0
    %8140 = vmatpush1.msra.mxu0 %v8092
    %8141 = vmatprep.subr.mxu0 0.0
    %8142 = vmatpush1.msra.mxu0 %v8093
    %8143 = vmatprep.subr.mxu0 0.0
    %8144 = vmatpush1.msra.mxu0 %v8094
    %8145 = vmatprep.subr.mxu0 0.0
    %8146 = vmatpush1.msra.mxu0 %v8095
    %8147 = vmatprep.subr.mxu0 0.0
    %8148 = vmatpush1.msra.mxu0 %v8096
    %8149 = vmatprep.subr.mxu0 0.0
    %8150 = vmatpush1.msra.mxu0 %v8097
    %8151 = vmatprep.subr.mxu0 0.0
    %8152 = vmatpush1.msra.mxu0 %v8098
    %8153 = vmatprep.subr.mxu0 0.0
    %8154 = vmatpush1.msra.mxu0 %v8099
    %8155 = vmatprep.subr.mxu0 0.0
    %8156 = vmatpush1.msra.mxu0 %v8100
    %8157 = vmatprep.subr.mxu0 0.0
    %8158 = vmatpush1.msra.mxu0 %v8101
    %8159 = vmatprep.subr.mxu0 0.0
    %8160 = vmatpush1.msra.mxu0 %v8102
    %8161 = vmatprep.subr.mxu0 0.0
    %8162 = vmatpush1.msra.mxu0 %v8103
    %8163 = vmatprep.subr.mxu0 0.0
    %8164 = vmatpush1.msra.mxu0 %v8104
    %8165 = vmatprep.subr.mxu0 0.0
    %8166 = vmatpush1.msra.mxu0 %v8105
    %8167 = vmatprep.subr.mxu0 0.0
    %8168 = vmatpush1.msra.mxu0 %v8106
    %8169 = vmatprep.subr.mxu0 0.0
    %8170 = vmatpush1.msra.mxu0 %v8107
    %8171 = vmatprep.subr.mxu0 0.0
    %8172 = vmatpush1.msra.mxu0 %v8108
    %8173 = vmatprep.mubr.f32.mxu0 %v8076
    %8174 = vmatmul.mubr.f32.gmra.mrb[0].mxu0 %v8075
    %v8175 = vpop.f32.mrb[0].mxu0
    %v8176 = vadd.f32 0.0, %v8175
    %v8177 = vpop.f32.mrb[0].mxu0
    %8178 = vdwg.mxu0
    %v8179 = vld [vmem:[#allocation21] sm:$0x1]
    %v8180 = vld [vmem:[#allocation22] sm:$0x1]
    %v8181 = vsel %vm8001, %v8176, 0.0
    %v8182 = vrot.slane %v8181, 4
    %v8183 = vadd.f32 %v8181, %v8182
    %v8184 = vrot.slane %v8183, 2
    %v8185 = vadd.f32 %v8183, %v8184
    %v8186 = vrot.slane %v8185, 1
    %v8187 = vadd.f32 %v8185, %v8186
    %v8188 = vmul.f32 %v8187, %v8016
    %v8189 = vsub.f32 %v8176, %v8188
    %v8190 = vmul.f32 %v8189, %v8189
    %v8191 = vsel %vm8001, %v8190, 0.0
    %v8192 = vrot.slane %v8191, 4
    %v8193 = vadd.f32 %v8191, %v8192
    %v8194 = vrot.slane %v8193, 2
    %v8195 = vadd.f32 %v8193, %v8194
    %v8196 = vrot.slane %v8195, 1
    %v8197 = vadd.f32 %v8195, %v8196
    %v8198 = vmul.f32 %v8197, %v8016
    %v8199 = vadd.f32 %v8198, 1e-05
    %v8200 = vrsqrt.pop %v8199
    %v8201 = vmul.f32 %v8189, %v8200
    %v8203 = vlaneseq
    %v8204 = vshrl.u32 %v8203, 7
    %v8205 = vsub.s32 0, %v8204
    %v8206 = vrot.slane %v8179, %v8205
    %v8208 = vmul.f32 %v8201, %v8206
    %v8210 = vlaneseq
    %v8211 = vshrl.u32 %v8210, 7
    %v8212 = vsub.s32 0, %v8211
    %v8213 = vrot.slane %v8180, %v8212
    %v8215 = vadd.f32 %v8208, %v8213
    %vm8216 = vcmp.gt.f32.partialorder %v8215, 0.0
    %v8217 = vmul.f32 %v8215, 0.01
    %v8218 = vsel %vm8216, %v8215, %v8217
    %v8219 = vld [vmem:[%s21] sm:$0xff]
    %v8220 = vld [vmem:[%s21 + $0x8] sm:$0xff]
    %v8221 = vld [vmem:[%s21 + $0x10] sm:$0xff]
    %v8222 = vld [vmem:[%s21 + $0x18] sm:$0xff]
    %v8223 = vld [vmem:[%s21 + $0x20] sm:$0xff]
    %v8224 = vld [vmem:[%s21 + $0x28] sm:$0xff]
    %v8225 = vld [vmem:[%s21 + $0x30] sm:$0xff]
    %v8226 = vld [vmem:[%s21 + $0x38] sm:$0xff]
    %v8227 = vld [vmem:[%s21 + $0x40] sm:$0xff]
    %v8228 = vld [vmem:[%s21 + $0x48] sm:$0xff]
    %v8229 = vld [vmem:[%s21 + $0x50] sm:$0xff]
    %v8230 = vld [vmem:[%s21 + $0x58] sm:$0xff]
    %v8231 = vld [vmem:[%s21 + $0x60] sm:$0xff]
    %v8232 = vld [vmem:[%s21 + $0x68] sm:$0xff]
    %v8233 = vld [vmem:[%s21 + $0x70] sm:$0xff]
    %v8234 = vld [vmem:[%s21 + $0x78] sm:$0xff]
    %v8235 = vld [vmem:[#allocation24] sm:$0x1]
    %v8237 = vlaneseq
    %v8238 = vshrl.u32 %v8237, 7
    %v8239 = vsub.s32 0, %v8238
    %v8240 = vrot.slane %v8235, %v8239
    %8242 = vmatprep.subr.mxu0 0.0
    %8243 = vmatpush1.msra.mxu0 %v8219
    %8244 = vmatprep.subr.mxu0 0.0
    %8245 = vmatpush1.msra.mxu0 %v8220
    %8246 = vmatprep.subr.mxu0 0.0
    %8247 = vmatpush1.msra.mxu0 %v8221
    %8248 = vmatprep.subr.mxu0 0.0
    %8249 = vmatpush1.msra.mxu0 %v8222
    %8250 = vmatprep.subr.mxu0 0.0
    %8251 = vmatpush1.msra.mxu0 %v8223
    %8252 = vmatprep.subr.mxu0 0.0
    %8253 = vmatpush1.msra.mxu0 %v8224
    %8254 = vmatprep.subr.mxu0 0.0
    %8255 = vmatpush1.msra.mxu0 %v8225
    %8256 = vmatprep.subr.mxu0 0.0
    %8257 = vmatpush1.msra.mxu0 %v8226
    %8258 = vmatprep.subr.mxu0 0.0
    %8259 = vmatpush1.msra.mxu0 %v8227
    %8260 = vmatprep.subr.mxu0 0.0
    %8261 = vmatpush1.msra.mxu0 %v8228
    %8262 = vmatprep.subr.mxu0 0.0
    %8263 = vmatpush1.msra.mxu0 %v8229
    %8264 = vmatprep.subr.mxu0 0.0
    %8265 = vmatpush1.msra.mxu0 %v8230
    %8266 = vmatprep.subr.mxu0 0.0
    %8267 = vmatpush1.msra.mxu0 %v8231
    %8268 = vmatprep.subr.mxu0 0.0
    %8269 = vmatpush1.msra.mxu0 %v8232
    %8270 = vmatprep.subr.mxu0 0.0
    %8271 = vmatpush1.msra.mxu0 %v8233
    %8272 = vmatprep.subr.mxu0 0.0
    %8273 = vmatpush1.msra.mxu0 %v8234
    %8274 = vmatprep.subr.mxu0 0.0
    %8275 = vmatpush1.msra.mxu0 0.0
    %8276 = vmatprep.subr.mxu0 0.0
    %8277 = vmatpush1.msra.mxu0 0.0
    %8278 = vmatprep.subr.mxu0 0.0
    %8279 = vmatpush1.msra.mxu0 0.0
    %8280 = vmatprep.subr.mxu0 0.0
    %8281 = vmatpush1.msra.mxu0 0.0
    %8282 = vmatprep.subr.mxu0 0.0
    %8283 = vmatpush1.msra.mxu0 0.0
    %8284 = vmatprep.subr.mxu0 0.0
    %8285 = vmatpush1.msra.mxu0 0.0
    %8286 = vmatprep.subr.mxu0 0.0
    %8287 = vmatpush1.msra.mxu0 0.0
    %8288 = vmatprep.subr.mxu0 0.0
    %8289 = vmatpush1.msra.mxu0 0.0
    %8290 = vmatprep.subr.mxu0 0.0
    %8291 = vmatpush1.msra.mxu0 0.0
    %8292 = vmatprep.subr.mxu0 0.0
    %8293 = vmatpush1.msra.mxu0 0.0
    %8294 = vmatprep.subr.mxu0 0.0
    %8295 = vmatpush1.msra.mxu0 0.0
    %8296 = vmatprep.subr.mxu0 0.0
    %8297 = vmatpush1.msra.mxu0 0.0
    %8298 = vmatprep.subr.mxu0 0.0
    %8299 = vmatpush1.msra.mxu0 0.0
    %8300 = vmatprep.subr.mxu0 0.0
    %8301 = vmatpush1.msra.mxu0 0.0
    %8302 = vmatprep.subr.mxu0 0.0
    %8303 = vmatpush1.msra.mxu0 0.0
    %8304 = vmatprep.subr.mxu0 0.0
    %8305 = vmatpush1.msra.mxu0 0.0
    %8306 = vmatprep.mubr.f32.mxu0 0.0
    %8307 = vmatmul.mubr.f32.gmra.mrb[0].mxu0 %v8218
    %v8308 = vpop.f32.mrb[0].mxu0
    %v8309 = vadd.f32 %v8240, %v8308
    %v8310 = vpop.f32.mrb[0].mxu0
    %8311 = vdwg.mxu0
    %vm8312 = vcmask 254976
    %8313 = vst.msk [vmem:[#allocation25] sm:$0x3] %vm8312, %v8309
    // Predicated region
    $region146: #{encoder_forward.1} parent=1 // pred_check
      _
    $region147: #{encoder_forward.1} parent=1 // pred_check_branch
      %8315 = sbr.rel (0) target = $region149
    $region148: #{encoder_forward.1} parent=1 // pred_region
      %s8317 = ssub.s32 32, 32
      %8318 = vsyncadd [#allocation6], %s8317
      %s8320 = sshll.u32 [#allocation25], 4
      %s8321 = int_to_ptr.vmem [resolvable:$true] %s8320
      %8323 = dma.vmem_to_hbm [thread:$0]  %s8321, 32, %s23, [#allocation6]
    $region149: #{encoder_forward.1} parent=1 // pred_fallthru
      _
    // Predicated region
    $region150: #{encoder_forward.1} parent=1 // pred_check
      _
    $region151: #{encoder_forward.1} parent=1 // pred_check_branch
      %8325 = sbr.rel (0) target = $region153
    $region152: #{encoder_forward.1} parent=1 // pred_region
      %8326 = dma.done [#allocation6], 32
    $region153: #{encoder_forward.1} parent=1 // pred_fallthru
      _
    %8327 = vsyncpa [#allocation5], 1
    %8328 = vsyncpa [#allocation8], 1
    %8329 = vsyncpa [#allocation11], 1
    %8330 = vsyncpa [#allocation14], 1
    %8331 = vsyncpa [#allocation17], 1
    %8332 = vsyncpa [#allocation20], 1
    %8333 = vsyncpa [#allocation23], 1
    %8334 = vsyncpa [#allocation6], 1

</llo_original>
